<compile_context>
chip_gen: v6e
topology: v6e:2x2x1
jax: 0.10.0
libtpu: 0.0.40
codegen_flags: <defaults>
</compile_context>

<pallas_src>
import functools
import math

import jax
import jax.numpy as jnp
from jax import lax
from jax.experimental import pallas as pl
from jax.experimental.pallas import tpu as pltpu

BN_EPS = 1e-5
_LANE = 128
# Leave headroom below v7x's 64 MiB physical VMEM (compiler scratch, DMA
# descriptors, semaphores); safe on v5e/v6e (128 MiB) as well.
_VMEM_LIMIT = 48 * 1024 * 1024
_COPY_CHUNK = 128          # rows per slab-assembly / normalize chunk
_ROW_TILE_TARGET = 512     # target conv output-row tile (multiple of the halo)


def _round_up(x, m):
    return (x + m - 1) // m * m


def _cdiv(a, b):
    return -(-a // b)


# ---------------------------------------------------------------------------
# Kernel 1: row-tiled implicit-GEMM conv (+ optional fused BN+ReLU of the
# *input*, hoisted across output-channel blocks) and per-tile masked BN
# partial statistics of the conv output.
# ---------------------------------------------------------------------------
def _conv_bn_stats_kernel(a_main_ref, a_halo_ref, w_ref, scale_ref, shift_ref,
                          mask_ref, z_ref, stats_ref, a_scr,
                          *, width, tm, th, kh, kw, tco, apply_input_act):
    """
    a_main_ref : (1, tm, cp_in)  bf16  wide-activation rows of this row tile
    a_halo_ref : (1, th, cp_in)  bf16  the halo rows just after the tile
    w_ref      : (kh*kw, cp_in, cp_out) bf16  per-tap weights (fully resident)
    scale_ref  : (1, cp_in) f32  fused input-BN scale  (iff apply_input_act)
    shift_ref  : (1, cp_in) f32  fused input-BN shift  (iff apply_input_act)
    mask_ref   : (tm, 1)    f32  1.0 on valid (non-overhang) output rows
    z_ref      : (1, tm, tco)   bf16  pre-BN conv output rows of this tile
    stats_ref  : (1, 1, 8, tco) f32  row0 = masked sum, row1 = masked sum sq
    a_scr      : (tm + th, cp_in) bf16  persistent input slab (shared over j)
    """
    j = pl.program_id(2)
    n_cblk = w_ref.shape[-1] // tco

    # Assemble the contiguous (main + halo) input slab once per (batch, tile).
    # The channel-block axis j is innermost so a_scr persists across j, and the
    # fused BN+ReLU of the previous layer is applied only once per tile.
    @pl.when(j == 0)
    def _assemble_slab():
        for src, base, nrows in ((a_main_ref, 0, tm), (a_halo_ref, tm, th)):
            for c in range(0, nrows, _COPY_CHUNK):
                rows = min(_COPY_CHUNK, nrows - c)
                blk = src[0, c:c + rows, :]
                if apply_input_act:
                    v = blk.astype(jnp.float32) * scale_ref[...] + shift_ref[...]
                    blk = jnp.maximum(v, 0.0).astype(a_scr.dtype)
                a_scr[base + c:base + c + rows, :] = blk

    # Implicit-GEMM conv: kh*kw shifted MXU matmuls, accumulated per row chunk
    # in registers (no full-tile SSA carry, no VMEM RMW accumulator).
    rc = max(8, min(128, 16384 // tco))
    s0 = jnp.zeros((1, tco), jnp.float32)
    s1 = jnp.zeros((1, tco), jnp.float32)
    for c in range(0, tm, rc):
        rows = min(rc, tm - c)
        acc = jnp.zeros((rows, tco), jnp.float32)
        for di in range(kh):
            for dj in range(kw):
                # TODO(synk): off is generally not 8-row aligned; pre-shifted
                #             slab copies would remove per-tap XLU relayouts.
                off = c + di * width + dj
                if n_cblk == 1:
                    wj = w_ref[di * kw + dj]
                else:
                    wj = w_ref[di * kw + dj, :,
                               pl.ds(pl.multiple_of(j * tco, _LANE), tco)]
                acc = acc + jnp.dot(a_scr[off:off + rows, :], wj,
                                    preferred_element_type=jnp.float32)
        z_ref[0, c:c + rows, :] = acc.astype(z_ref.dtype)

        # Masked per-channel partials for the *global* batch statistics.
        # VPU multiply + cross-sublane sum in true f32 (keeps the MXU free).
        m = mask_ref[c:c + rows, :]
        am = acc * m
        s0 = s0 + jnp.sum(am, axis=0, keepdims=True)
        s1 = s1 + jnp.sum(am * acc, axis=0, keepdims=True)

    stats_ref[0, 0, :, :] = jnp.concatenate(
        [s0, s1, jnp.zeros((6, tco), jnp.float32)], axis=0)


def _conv_bn_stats_pass(a, w9, scale_in, shift_in, mask, *,
                        width, tm, th, n_tiles, kh, kw, tco, apply_input_act):
    n, r_in, cp_in = a.shape
    taps, cp_in_w, cp_out = w9.shape
    assert taps == kh * kw and cp_in_w == cp_in
    assert th % 8 == 0 and tm % th == 0
    assert cp_out % tco == 0
    r_out = n_tiles * tm
    assert r_in >= r_out + th          # halo blocks of the last tile in bounds
    n_cblk = cp_out // tco
    k_ratio = tm // th

    kernel = functools.partial(
        _conv_bn_stats_kernel, width=width, tm=tm, th=th, kh=kh, kw=kw,
        tco=tco, apply_input_act=apply_input_act)

    flops = 2 * n * r_out * taps * cp_in * cp_out
    bytes_accessed = (n * r_in * cp_in * 2 + taps * cp_in * cp_out * 2
                      + n * r_out * cp_out * 2 + n * n_tiles * 8 * cp_out * 4)

    z, stats = pl.pallas_call(
        kernel,
        grid=(n, n_tiles, n_cblk),
        in_specs=[
            pl.BlockSpec((1, tm, cp_in), lambda i, t, j: (i, t, 0)),
            pl.BlockSpec((1, th, cp_in),
                         lambda i, t, j: (i, (t + 1) * k_ratio, 0)),
            pl.BlockSpec((taps, cp_in, cp_out), lambda i, t, j: (0, 0, 0)),
            pl.BlockSpec((1, cp_in), lambda i, t, j: (0, 0)),
            pl.BlockSpec((1, cp_in), lambda i, t, j: (0, 0)),
            pl.BlockSpec((tm, 1), lambda i, t, j: (t, 0)),
        ],
        out_specs=[
            pl.BlockSpec((1, tm, tco), lambda i, t, j: (i, t, j)),
            pl.BlockSpec((1, 1, 8, tco), lambda i, t, j: (i, t, 0, j)),
        ],
        out_shape=[
            jax.ShapeDtypeStruct((n, r_out, cp_out), jnp.bfloat16),
            jax.ShapeDtypeStruct((n, n_tiles, 8, cp_out), jnp.float32),
        ],
        scratch_shapes=[pltpu.VMEM((tm + th, cp_in), jnp.bfloat16)],
        compiler_params=pltpu.CompilerParams(
            dimension_semantics=("parallel", "arbitrary", "arbitrary"),
            vmem_limit_bytes=_VMEM_LIMIT),
        cost_estimate=pl.CostEstimate(flops=flops, transcendentals=0,
                                      bytes_accessed=bytes_accessed),
    )(a, a, w9, scale_in, shift_in, mask)
    return z, stats


# ---------------------------------------------------------------------------
# Kernel 2: tiled BN (precomputed per-channel affine) + ReLU, with the
# overhang-column / padded-channel crop fused into the output BlockSpec.
# ---------------------------------------------------------------------------
def _bn_act_crop_kernel(z_ref, scale_ref, shift_ref, o_ref,
                        *, toh, width, ow, cout):
    rch = max(1, 256 // width)
    for r0 in range(0, toh, rch):
        rr = min(rch, toh - r0)
        z = z_ref[0, r0 * width:(r0 + rr) * width, :].astype(jnp.float32)
        y = jnp.maximum(z * scale_ref[...] + shift_ref[...], 0.0)
        for q in range(rr):
            o_ref[0, r0 + q, :, :] = y[q * width:q * width + ow, :cout]


def _bn_act_crop_pass(z, scale, shift, *, toh, width, oh, ow, cout):
    n, r_rows, cp = z.shape
    n_bt = _cdiv(oh, toh)
    assert r_rows >= n_bt * toh * width
    kernel = functools.partial(_bn_act_crop_kernel, toh=toh, width=width,
                               ow=ow, cout=cout)
    # TODO(synk): emit NCHW directly from this kernel to also fold the final
    #             transpose (currently one XLA relayout of the cropped output).
    return pl.pallas_call(
        kernel,
        grid=(n, n_bt),
        in_specs=[
            pl.BlockSpec((1, toh * width, cp), lambda i, t: (i, t, 0)),
            pl.BlockSpec((1, cp), lambda i, t: (0, 0)),
            pl.BlockSpec((1, cp), lambda i, t: (0, 0)),
        ],
        out_specs=pl.BlockSpec((1, toh, ow, cout), lambda i, t: (i, t, 0, 0)),
        out_shape=jax.ShapeDtypeStruct((n, oh, ow, cout), jnp.float32),
        compiler_params=pltpu.CompilerParams(
            dimension_semantics=("parallel", "parallel"),
            vmem_limit_bytes=_VMEM_LIMIT),
        cost_estimate=pl.CostEstimate(
            flops=3 * n * oh * ow * cout, transcendentals=0,
            bytes_accessed=n * (n_bt * toh * width * cp * 2
                                + oh * ow * cout * 4)),
    )(z, scale, shift)


# ---------------------------------------------------------------------------
# Plain-JAX glue: reduce partial stats -> per-channel BN affine.
# ---------------------------------------------------------------------------
def _bn_affine_from_stats(stats, gamma, beta, count, cp):
    g = jnp.zeros((cp,), jnp.float32).at[:gamma.shape[0]].set(gamma)
    b = jnp.zeros((cp,), jnp.float32).at[:beta.shape[0]].set(beta)
    s0 = jnp.sum(stats[:, :, 0, :], axis=(0, 1))
    s1 = jnp.sum(stats[:, :, 1, :], axis=(0, 1))
    mean = s0 / count
    var = jnp.maximum(s1 / count - mean * mean, 0.0)   # biased, train-mode BN
    inv = lax.rsqrt(var + BN_EPS)
    scale = g * inv
    shift = b - mean * scale
    return scale.reshape(1, cp), shift.reshape(1, cp)


# ---------------------------------------------------------------------------
# Parameters (conv bias omitted: exactly cancelled by train-mode BatchNorm).
# ---------------------------------------------------------------------------
def init_single_conv_params(key, in_chans, out_chans, kernel=(3, 3)):
    kh, kw = kernel
    fan_in = in_chans * kh * kw
    bound = 1.0 / jnp.sqrt(jnp.float32(fan_in))
    w = jax.random.uniform(key, (kh, kw, in_chans, out_chans),
                           jnp.float32, -bound, bound)
    gamma = jnp.ones((out_chans,), jnp.float32)
    beta = jnp.zeros((out_chans,), jnp.float32)
    return (w, gamma, beta)


# ---------------------------------------------------------------------------
# Full DoubleConv forward (NCHW in, NCHW out).
# ---------------------------------------------------------------------------
@jax.jit
def double_conv_forward(x_nchw, params1, params2):
    w1, g1, b1 = params1
    w2, g2, b2 = params2
    kh, kw, cin, cmid = w1.shape
    _, _, cmid2, cout = w2.shape
    n, _, h, w = x_nchw.shape

    cp_in = _round_up(cin, _LANE)
    cp_mid = _round_up(cmid, _LANE)
    cp_out = _round_up(cout, _LANE)
    tco1 = 256 if cp_mid % 256 == 0 else 128      # 256-wide MXU feed on v6e/v7x
    tco2 = 256 if cp_out % 256 == 0 else 128

    # Geometry of the two VALID convs on the flattened "wide" matrix.
    oh1, owv1 = h - kh + 1, w - kw + 1
    oh2, owv2 = oh1 - kh + 1, owv1 - kw + 1
    m1, m2 = oh1 * w, oh2 * w
    th = max(8, _round_up((kh - 1) * w + (kw - 1), 8))   # halo rows (padded)

    # Final BN+ReLU pass tiling: whole output-image rows per block.
    step = 8 // math.gcd(w, 8)
    toh = _round_up(max(1, min(32, max(1, 512 // w), oh2)), step)
    n_bt = _cdiv(oh2, toh)
    bn_rows = n_bt * toh * w

    # conv2 row tiling (row tile is a multiple of the halo so the halo
    # BlockSpec lands on exact block boundaries).
    k_target = max(1, _ROW_TILE_TARGET // th)
    rows2 = max(m2, bn_rows)
    tm2 = th * max(1, min(k_target, _cdiv(rows2, th)))
    n_t2 = _cdiv(rows2, tm2)
    r_out2 = n_t2 * tm2

    # conv1 row tiling: its output must also cover conv2's last halo block.
    rows1 = max(m1, r_out2 + th)
    tm1 = th * max(1, min(k_target, _cdiv(rows1, th)))
    n_t1 = _cdiv(rows1, tm1)
    r_out1 = n_t1 * tm1
    r_in1 = r_out1 + th

    # NCHW -> flattened, zero-padded (rows + channels), bf16 wide activation.
    x_nhwc = jnp.transpose(x_nchw, (0, 2, 3, 1)).astype(jnp.float32)
    a0 = jnp.pad(x_nhwc.reshape(n, h * w, cin),
                 ((0, 0), (0, r_in1 - h * w), (0, cp_in - cin))
                 ).astype(jnp.bfloat16)

    # Per-tap weight matrices, channel padded, bf16.
    # TODO(synk): for conv1 (tiny cin) pack the kh*kw taps into the MXU K dim
    #             instead of padding cin to 128; pack tap pairs to K=256 on
    #             v6e/v7x for the 128-channel case.
    w1_t = jnp.pad(w1.reshape(kh * kw, cin, cmid),
                   ((0, 0), (0, cp_in - cin), (0, cp_mid - cmid))
                   ).astype(jnp.bfloat16)
    w2_t = jnp.pad(w2.reshape(kh * kw, cmid2, cout),
                   ((0, 0), (0, cp_mid - cmid2), (0, cp_out - cout))
                   ).astype(jnp.bfloat16)

    # Valid-row masks (drop width-overhang columns and padded tail rows).
    def valid_mask(r_rows, m_valid, owv):
        r = jnp.arange(r_rows)
        ok = (r < m_valid) & ((r % w) < owv)
        return ok.astype(jnp.float32).reshape(r_rows, 1)

    mask1 = valid_mask(r_out1, m1, owv1)
    mask2 = valid_mask(r_out2, m2, owv2)

    ones_in = jnp.ones((1, cp_in), jnp.float32)
    zeros_in = jnp.zeros((1, cp_in), jnp.float32)

    # conv1: implicit-GEMM conv + masked per-tile BN partial statistics.
    z1, st1 = _conv_bn_stats_pass(
        a0, w1_t, ones_in, zeros_in, mask1, width=w, tm=tm1, th=th,
        n_tiles=n_t1, kh=kh, kw=kw, tco=tco1, apply_input_act=False)
    scale1, shift1 = _bn_affine_from_stats(st1, g1, b1,
                                           float(n * oh1 * owv1), cp_mid)

    # conv2: fused BN+ReLU of conv1's output (once per row tile) + conv + stats.
    z2, st2 = _conv_bn_stats_pass(
        z1, w2_t, scale1, shift1, mask2, width=w, tm=tm2, th=th,
        n_tiles=n_t2, kh=kh, kw=kw, tco=tco2, apply_input_act=True)
    scale2, shift2 = _bn_affine_from_stats(st2, g2, b2,
                                           float(n * oh2 * owv2), cp_out)

    # Final BN + ReLU, cropped to valid NHWC inside the kernel.
    y_nhwc = _bn_act_crop_pass(z2, scale2, shift2, toh=toh, width=w,
                               oh=oh2, ow=owv2, cout=cout)
    return jnp.transpose(y_nhwc, (0, 3, 1, 2))


# ---------------------------------------------------------------------------
# Pure-JAX reference (correctness check of the Pallas path).
# ---------------------------------------------------------------------------
def _reference_double_conv(x, params1, params2):
    def single(inp, p):
        wgt, gamma, beta = p
        y = lax.conv_general_dilated(
            inp, wgt, window_strides=(1, 1), padding="VALID",
            dimension_numbers=("NCHW", "HWIO", "NCHW"))
        mean = jnp.mean(y, axis=(0, 2, 3), keepdims=True)
        var = jnp.mean((y - mean) ** 2, axis=(0, 2, 3), keepdims=True)
        y = (y - mean) * lax.rsqrt(var + BN_EPS)
        y = y * gamma.reshape(1, -1, 1, 1) + beta.reshape(1, -1, 1, 1)
        return jnp.maximum(y, 0.0)
    return single(single(x, params1), params2)


if __name__ == "__main__":
    in_chans, out_chans = 4, 8
    N, H, W = 2, 16, 16

    root = jax.random.PRNGKey(0)
    k_x, k_p1, k_p2 = jax.random.split(root, 3)

    x = jax.random.normal(k_x, (N, in_chans, H, W), jnp.float32)
    params1 = init_single_conv_params(k_p1, in_chans, out_chans)
    params2 = init_single_conv_params(k_p2, out_chans, out_chans)

    out = double_conv_forward(x, params1, params2)
    out = jax.block_until_ready(out)

    # Conv(3x3, pad=0) twice: 16 -> 14 -> 12 spatial.
    assert out.shape == (N, out_chans, 12, 12), out.shape
    assert out.dtype == jnp.float32
    assert bool(jnp.all(jnp.isfinite(out)))

    ref = _reference_double_conv(x, params1, params2)
    max_err = float(jnp.max(jnp.abs(out - ref)))
    assert bool(jnp.allclose(out, ref, atol=7e-2, rtol=7e-2)), max_err

    print("KERNEL_OK")
</pallas_src>

<mosaic_0001>
module attributes {stable_mosaic.version = 11 : i64} {
  func.func @_conv_bn_stats_kernel(%arg0: i32, %arg1: i32, %arg2: i32, %arg3: memref<1x240x128xbf16, #tpu.memory_space<vmem>>, %arg4: memref<1x40x128xbf16, #tpu.memory_space<vmem>>, %arg5: memref<9x128x128xbf16, #tpu.memory_space<vmem>>, %arg6: memref<1x128xf32, #tpu.memory_space<vmem>>, %arg7: memref<1x128xf32, #tpu.memory_space<vmem>>, %arg8: memref<240x1xf32, #tpu.memory_space<vmem>>, %arg9: memref<1x240x128xbf16, #tpu.memory_space<vmem>>, %arg10: memref<1x1x8x128xf32, #tpu.memory_space<vmem>>, %arg11: memref<280x128xbf16, #tpu.memory_space<vmem>>) attributes {dimension_semantics = [#tpu.dimension_semantics<parallel>, #tpu.dimension_semantics<arbitrary>, #tpu.dimension_semantics<arbitrary>], iteration_bounds = array<i64: 2, 1, 1>, scalar_prefetch = 0 : i64, scratch_operands = 1 : i64, tpu.core_type = #tpu.core_type<tc>, window_params = [{transform_indices = @transform_0, window_bounds = array<i64: 1, 240, 128>}, {transform_indices = @transform_1, window_bounds = array<i64: 1, 40, 128>}, {pipeline_mode = #tpu.pipeline_mode<synchronous>, transform_indices = @transform_2, window_bounds = array<i64: 9, 128, 128>}, {pipeline_mode = #tpu.pipeline_mode<synchronous>, transform_indices = @transform_3, window_bounds = array<i64: 1, 128>}, {pipeline_mode = #tpu.pipeline_mode<synchronous>, transform_indices = @transform_4, window_bounds = array<i64: 1, 128>}, {transform_indices = @transform_5, window_bounds = array<i64: 240, 1>}, {transform_indices = @transform_6, window_bounds = array<i64: 1, 240, 128>}, {transform_indices = @transform_7, window_bounds = array<i64: 1, 1, 8, 128>}]} {
    %c0_i32 = arith.constant 0 : i32
    %0 = arith.cmpi eq, %arg2, %c0_i32 : i32
    %1 = arith.extui %0 : i1 to i32
    %c0_i32_0 = arith.constant 0 : i32
    %2 = arith.cmpi ne, %1, %c0_i32_0 : i32
    scf.if %2 {
      %c0_107 = arith.constant 0 : index
      %c0_108 = arith.constant 0 : index
      %c0_109 = arith.constant 0 : index
      %130 = vector.load %arg3[%c0_107, %c0_108, %c0_109] : memref<1x240x128xbf16, #tpu.memory_space<vmem>>, vector<1x128x128xbf16>
      %131 = vector.shape_cast %130 : vector<1x128x128xbf16> to vector<128x128xbf16>
      %c0_110 = arith.constant 0 : index
      %c0_111 = arith.constant 0 : index
      %132 = vector.load %arg11[%c0_110, %c0_111] : memref<280x128xbf16, #tpu.memory_space<vmem>>, vector<128x128xbf16>
      tpu.vector_store %arg11[%c0_110, %c0_111], %131 {strides = array<i32>} : memref<280x128xbf16, #tpu.memory_space<vmem>>, vector<128x128xbf16>,
      %c0_112 = arith.constant 0 : index
      %c128_113 = arith.constant 128 : index
      %c0_114 = arith.constant 0 : index
      %133 = vector.load %arg3[%c0_112, %c128_113, %c0_114] : memref<1x240x128xbf16, #tpu.memory_space<vmem>>, vector<1x112x128xbf16>
      %134 = vector.shape_cast %133 : vector<1x112x128xbf16> to vector<112x128xbf16>
      %c128_115 = arith.constant 128 : index
      %c0_116 = arith.constant 0 : index
      %135 = vector.load %arg11[%c128_115, %c0_116] : memref<280x128xbf16, #tpu.memory_space<vmem>>, vector<112x128xbf16>
      tpu.vector_store %arg11[%c128_115, %c0_116], %134 {strides = array<i32>} : memref<280x128xbf16, #tpu.memory_space<vmem>>, vector<112x128xbf16>,
      %c0_117 = arith.constant 0 : index
      %c0_118 = arith.constant 0 : index
      %c0_119 = arith.constant 0 : index
      %136 = vector.load %arg4[%c0_117, %c0_118, %c0_119] : memref<1x40x128xbf16, #tpu.memory_space<vmem>>, vector<1x40x128xbf16>
      %137 = vector.shape_cast %136 : vector<1x40x128xbf16> to vector<40x128xbf16>
      %c240 = arith.constant 240 : index
      %c0_120 = arith.constant 0 : index
      %138 = vector.load %arg11[%c240, %c0_120] : memref<280x128xbf16, #tpu.memory_space<vmem>>, vector<40x128xbf16>
      tpu.vector_store %arg11[%c240, %c0_120], %137 {strides = array<i32>} : memref<280x128xbf16, #tpu.memory_space<vmem>>, vector<40x128xbf16>,
    } else {
    }
    %cst = arith.constant 0.000000e+00 : f32
    %3 = vector.broadcast %cst : f32 to vector<1x128xf32>
    %cst_1 = arith.constant 0.000000e+00 : f32
    %4 = vector.broadcast %cst_1 : f32 to vector<1x128xf32>
    %cst_2 = arith.constant 0.000000e+00 : f32
    %5 = vector.broadcast %cst_2 : f32 to vector<128x128xf32>
    %c0 = arith.constant 0 : index
    %c0_3 = arith.constant 0 : index
    %c0_4 = arith.constant 0 : index
    %6 = vector.load %arg5[%c0, %c0_3, %c0_4] : memref<9x128x128xbf16, #tpu.memory_space<vmem>>, vector<1x128x128xbf16>
    %7 = vector.shape_cast %6 : vector<1x128x128xbf16> to vector<128x128xbf16>
    %c0_5 = arith.constant 0 : index
    %c0_6 = arith.constant 0 : index
    %8 = vector.load %arg11[%c0_5, %c0_6] : memref<280x128xbf16, #tpu.memory_space<vmem>>, vector<128x128xbf16>
    %cst_7 = arith.constant dense<0.000000e+00> : vector<128x128xf32>
    %9 = tpu.matmul %8, %7, %cst_7 {dimension_numbers = #tpu.dot_dimension_numbers<[1], [0], [0], [1], [0, 0, 1, 1], [], []>} : vector<128x128xbf16>, vector<128x128xbf16>, vector<128x128xf32> -> vector<128x128xf32>
    %10 = arith.addf %5, %9 : vector<128x128xf32>
    %c1 = arith.constant 1 : index
    %c0_8 = arith.constant 0 : index
    %c0_9 = arith.constant 0 : index
    %11 = vector.load %arg5[%c1, %c0_8, %c0_9] : memref<9x128x128xbf16, #tpu.memory_space<vmem>>, vector<1x128x128xbf16>
    %12 = vector.shape_cast %11 : vector<1x128x128xbf16> to vector<128x128xbf16>
    %c1_10 = arith.constant 1 : index
    %c0_11 = arith.constant 0 : index
    %13 = vector.load %arg11[%c1_10, %c0_11] : memref<280x128xbf16, #tpu.memory_space<vmem>>, vector<128x128xbf16>
    %cst_12 = arith.constant dense<0.000000e+00> : vector<128x128xf32>
    %14 = tpu.matmul %13, %12, %cst_12 {dimension_numbers = #tpu.dot_dimension_numbers<[1], [0], [0], [1], [0, 0, 1, 1], [], []>} : vector<128x128xbf16>, vector<128x128xbf16>, vector<128x128xf32> -> vector<128x128xf32>
    %15 = arith.addf %10, %14 : vector<128x128xf32>
    %c2 = arith.constant 2 : index
    %c0_13 = arith.constant 0 : index
    %c0_14 = arith.constant 0 : index
    %16 = vector.load %arg5[%c2, %c0_13, %c0_14] : memref<9x128x128xbf16, #tpu.memory_space<vmem>>, vector<1x128x128xbf16>
    %17 = vector.shape_cast %16 : vector<1x128x128xbf16> to vector<128x128xbf16>
    %c2_15 = arith.constant 2 : index
    %c0_16 = arith.constant 0 : index
    %18 = vector.load %arg11[%c2_15, %c0_16] : memref<280x128xbf16, #tpu.memory_space<vmem>>, vector<128x128xbf16>
    %cst_17 = arith.constant dense<0.000000e+00> : vector<128x128xf32>
    %19 = tpu.matmul %18, %17, %cst_17 {dimension_numbers = #tpu.dot_dimension_numbers<[1], [0], [0], [1], [0, 0, 1, 1], [], []>} : vector<128x128xbf16>, vector<128x128xbf16>, vector<128x128xf32> -> vector<128x128xf32>
    %20 = arith.addf %15, %19 : vector<128x128xf32>
    %c3 = arith.constant 3 : index
    %c0_18 = arith.constant 0 : index
    %c0_19 = arith.constant 0 : index
    %21 = vector.load %arg5[%c3, %c0_18, %c0_19] : memref<9x128x128xbf16, #tpu.memory_space<vmem>>, vector<1x128x128xbf16>
    %22 = vector.shape_cast %21 : vector<1x128x128xbf16> to vector<128x128xbf16>
    %c16 = arith.constant 16 : index
    %c0_20 = arith.constant 0 : index
    %23 = vector.load %arg11[%c16, %c0_20] : memref<280x128xbf16, #tpu.memory_space<vmem>>, vector<128x128xbf16>
    %cst_21 = arith.constant dense<0.000000e+00> : vector<128x128xf32>
    %24 = tpu.matmul %23, %22, %cst_21 {dimension_numbers = #tpu.dot_dimension_numbers<[1], [0], [0], [1], [0, 0, 1, 1], [], []>} : vector<128x128xbf16>, vector<128x128xbf16>, vector<128x128xf32> -> vector<128x128xf32>
    %25 = arith.addf %20, %24 : vector<128x128xf32>
    %c4 = arith.constant 4 : index
    %c0_22 = arith.constant 0 : index
    %c0_23 = arith.constant 0 : index
    %26 = vector.load %arg5[%c4, %c0_22, %c0_23] : memref<9x128x128xbf16, #tpu.memory_space<vmem>>, vector<1x128x128xbf16>
    %27 = vector.shape_cast %26 : vector<1x128x128xbf16> to vector<128x128xbf16>
    %c17 = arith.constant 17 : index
    %c0_24 = arith.constant 0 : index
    %28 = vector.load %arg11[%c17, %c0_24] : memref<280x128xbf16, #tpu.memory_space<vmem>>, vector<128x128xbf16>
    %cst_25 = arith.constant dense<0.000000e+00> : vector<128x128xf32>
    %29 = tpu.matmul %28, %27, %cst_25 {dimension_numbers = #tpu.dot_dimension_numbers<[1], [0], [0], [1], [0, 0, 1, 1], [], []>} : vector<128x128xbf16>, vector<128x128xbf16>, vector<128x128xf32> -> vector<128x128xf32>
    %30 = arith.addf %25, %29 : vector<128x128xf32>
    %c5 = arith.constant 5 : index
    %c0_26 = arith.constant 0 : index
    %c0_27 = arith.constant 0 : index
    %31 = vector.load %arg5[%c5, %c0_26, %c0_27] : memref<9x128x128xbf16, #tpu.memory_space<vmem>>, vector<1x128x128xbf16>
    %32 = vector.shape_cast %31 : vector<1x128x128xbf16> to vector<128x128xbf16>
    %c18 = arith.constant 18 : index
    %c0_28 = arith.constant 0 : index
    %33 = vector.load %arg11[%c18, %c0_28] : memref<280x128xbf16, #tpu.memory_space<vmem>>, vector<128x128xbf16>
    %cst_29 = arith.constant dense<0.000000e+00> : vector<128x128xf32>
    %34 = tpu.matmul %33, %32, %cst_29 {dimension_numbers = #tpu.dot_dimension_numbers<[1], [0], [0], [1], [0, 0, 1, 1], [], []>} : vector<128x128xbf16>, vector<128x128xbf16>, vector<128x128xf32> -> vector<128x128xf32>
    %35 = arith.addf %30, %34 : vector<128x128xf32>
    %c6 = arith.constant 6 : index
    %c0_30 = arith.constant 0 : index
    %c0_31 = arith.constant 0 : index
    %36 = vector.load %arg5[%c6, %c0_30, %c0_31] : memref<9x128x128xbf16, #tpu.memory_space<vmem>>, vector<1x128x128xbf16>
    %37 = vector.shape_cast %36 : vector<1x128x128xbf16> to vector<128x128xbf16>
    %c32 = arith.constant 32 : index
    %c0_32 = arith.constant 0 : index
    %38 = vector.load %arg11[%c32, %c0_32] : memref<280x128xbf16, #tpu.memory_space<vmem>>, vector<128x128xbf16>
    %cst_33 = arith.constant dense<0.000000e+00> : vector<128x128xf32>
    %39 = tpu.matmul %38, %37, %cst_33 {dimension_numbers = #tpu.dot_dimension_numbers<[1], [0], [0], [1], [0, 0, 1, 1], [], []>} : vector<128x128xbf16>, vector<128x128xbf16>, vector<128x128xf32> -> vector<128x128xf32>
    %40 = arith.addf %35, %39 : vector<128x128xf32>
    %c7 = arith.constant 7 : index
    %c0_34 = arith.constant 0 : index
    %c0_35 = arith.constant 0 : index
    %41 = vector.load %arg5[%c7, %c0_34, %c0_35] : memref<9x128x128xbf16, #tpu.memory_space<vmem>>, vector<1x128x128xbf16>
    %42 = vector.shape_cast %41 : vector<1x128x128xbf16> to vector<128x128xbf16>
    %c33 = arith.constant 33 : index
    %c0_36 = arith.constant 0 : index
    %43 = vector.load %arg11[%c33, %c0_36] : memref<280x128xbf16, #tpu.memory_space<vmem>>, vector<128x128xbf16>
    %cst_37 = arith.constant dense<0.000000e+00> : vector<128x128xf32>
    %44 = tpu.matmul %43, %42, %cst_37 {dimension_numbers = #tpu.dot_dimension_numbers<[1], [0], [0], [1], [0, 0, 1, 1], [], []>} : vector<128x128xbf16>, vector<128x128xbf16>, vector<128x128xf32> -> vector<128x128xf32>
    %45 = arith.addf %40, %44 : vector<128x128xf32>
    %c8 = arith.constant 8 : index
    %c0_38 = arith.constant 0 : index
    %c0_39 = arith.constant 0 : index
    %46 = vector.load %arg5[%c8, %c0_38, %c0_39] : memref<9x128x128xbf16, #tpu.memory_space<vmem>>, vector<1x128x128xbf16>
    %47 = vector.shape_cast %46 : vector<1x128x128xbf16> to vector<128x128xbf16>
    %c34 = arith.constant 34 : index
    %c0_40 = arith.constant 0 : index
    %48 = vector.load %arg11[%c34, %c0_40] : memref<280x128xbf16, #tpu.memory_space<vmem>>, vector<128x128xbf16>
    %cst_41 = arith.constant dense<0.000000e+00> : vector<128x128xf32>
    %49 = tpu.matmul %48, %47, %cst_41 {dimension_numbers = #tpu.dot_dimension_numbers<[1], [0], [0], [1], [0, 0, 1, 1], [], []>} : vector<128x128xbf16>, vector<128x128xbf16>, vector<128x128xf32> -> vector<128x128xf32>
    %50 = arith.addf %45, %49 : vector<128x128xf32>
    %51 = arith.truncf %50 : vector<128x128xf32> to vector<128x128xbf16>
    %c0_42 = arith.constant 0 : index
    %c0_43 = arith.constant 0 : index
    %c0_44 = arith.constant 0 : index
    %52 = vector.load %arg9[%c0_42, %c0_43, %c0_44] : memref<1x240x128xbf16, #tpu.memory_space<vmem>>, vector<1x128x128xbf16>
    %53 = vector.shape_cast %52 : vector<1x128x128xbf16> to vector<128x128xbf16>
    %54 = vector.shape_cast %51 : vector<128x128xbf16> to vector<1x128x128xbf16>
    tpu.vector_store %arg9[%c0_42, %c0_43, %c0_44], %54 {strides = array<i32>} : memref<1x240x128xbf16, #tpu.memory_space<vmem>>, vector<1x128x128xbf16>,
    %c0_45 = arith.constant 0 : index
    %c0_46 = arith.constant 0 : index
    %55 = vector.load %arg8[%c0_45, %c0_46] : memref<240x1xf32, #tpu.memory_space<vmem>>, vector<128x1xf32>
    %56 = vector.broadcast %55 : vector<128x1xf32> to vector<128x128xf32>
    %57 = arith.mulf %50, %56 : vector<128x128xf32>
    %cst_47 = arith.constant dense<0.000000e+00> : vector<128xf32>
    %58 = vector.multi_reduction <add>, %57, %cst_47 [0] : vector<128x128xf32> to vector<128xf32>
    %59 = vector.shape_cast %58 : vector<128xf32> to vector<1x128xf32>
    %60 = arith.addf %3, %59 : vector<1x128xf32>
    %61 = arith.mulf %57, %50 : vector<128x128xf32>
    %cst_48 = arith.constant dense<0.000000e+00> : vector<128xf32>
    %62 = vector.multi_reduction <add>, %61, %cst_48 [0] : vector<128x128xf32> to vector<128xf32>
    %63 = vector.shape_cast %62 : vector<128xf32> to vector<1x128xf32>
    %64 = arith.addf %4, %63 : vector<1x128xf32>
    %cst_49 = arith.constant 0.000000e+00 : f32
    %65 = vector.broadcast %cst_49 : f32 to vector<112x128xf32>
    %c0_50 = arith.constant 0 : index
    %c0_51 = arith.constant 0 : index
    %c0_52 = arith.constant 0 : index
    %66 = vector.load %arg5[%c0_50, %c0_51, %c0_52] : memref<9x128x128xbf16, #tpu.memory_space<vmem>>, vector<1x128x128xbf16>
    %67 = vector.shape_cast %66 : vector<1x128x128xbf16> to vector<128x128xbf16>
    %c128 = arith.constant 128 : index
    %c0_53 = arith.constant 0 : index
    %68 = vector.load %arg11[%c128, %c0_53] : memref<280x128xbf16, #tpu.memory_space<vmem>>, vector<112x128xbf16>
    %cst_54 = arith.constant dense<0.000000e+00> : vector<112x128xf32>
    %69 = tpu.matmul %68, %67, %cst_54 {dimension_numbers = #tpu.dot_dimension_numbers<[1], [0], [0], [1], [0, 0, 1, 1], [], []>} : vector<112x128xbf16>, vector<128x128xbf16>, vector<112x128xf32> -> vector<112x128xf32>
    %70 = arith.addf %65, %69 : vector<112x128xf32>
    %c1_55 = arith.constant 1 : index
    %c0_56 = arith.constant 0 : index
    %c0_57 = arith.constant 0 : index
    %71 = vector.load %arg5[%c1_55, %c0_56, %c0_57] : memref<9x128x128xbf16, #tpu.memory_space<vmem>>, vector<1x128x128xbf16>
    %72 = vector.shape_cast %71 : vector<1x128x128xbf16> to vector<128x128xbf16>
    %c129 = arith.constant 129 : index
    %c0_58 = arith.constant 0 : index
    %73 = vector.load %arg11[%c129, %c0_58] : memref<280x128xbf16, #tpu.memory_space<vmem>>, vector<112x128xbf16>
    %cst_59 = arith.constant dense<0.000000e+00> : vector<112x128xf32>
    %74 = tpu.matmul %73, %72, %cst_59 {dimension_numbers = #tpu.dot_dimension_numbers<[1], [0], [0], [1], [0, 0, 1, 1], [], []>} : vector<112x128xbf16>, vector<128x128xbf16>, vector<112x128xf32> -> vector<112x128xf32>
    %75 = arith.addf %70, %74 : vector<112x128xf32>
    %c2_60 = arith.constant 2 : index
    %c0_61 = arith.constant 0 : index
    %c0_62 = arith.constant 0 : index
    %76 = vector.load %arg5[%c2_60, %c0_61, %c0_62] : memref<9x128x128xbf16, #tpu.memory_space<vmem>>, vector<1x128x128xbf16>
    %77 = vector.shape_cast %76 : vector<1x128x128xbf16> to vector<128x128xbf16>
    %c130 = arith.constant 130 : index
    %c0_63 = arith.constant 0 : index
    %78 = vector.load %arg11[%c130, %c0_63] : memref<280x128xbf16, #tpu.memory_space<vmem>>, vector<112x128xbf16>
    %cst_64 = arith.constant dense<0.000000e+00> : vector<112x128xf32>
    %79 = tpu.matmul %78, %77, %cst_64 {dimension_numbers = #tpu.dot_dimension_numbers<[1], [0], [0], [1], [0, 0, 1, 1], [], []>} : vector<112x128xbf16>, vector<128x128xbf16>, vector<112x128xf32> -> vector<112x128xf32>
    %80 = arith.addf %75, %79 : vector<112x128xf32>
    %c3_65 = arith.constant 3 : index
    %c0_66 = arith.constant 0 : index
    %c0_67 = arith.constant 0 : index
    %81 = vector.load %arg5[%c3_65, %c0_66, %c0_67] : memref<9x128x128xbf16, #tpu.memory_space<vmem>>, vector<1x128x128xbf16>
    %82 = vector.shape_cast %81 : vector<1x128x128xbf16> to vector<128x128xbf16>
    %c144 = arith.constant 144 : index
    %c0_68 = arith.constant 0 : index
    %83 = vector.load %arg11[%c144, %c0_68] : memref<280x128xbf16, #tpu.memory_space<vmem>>, vector<112x128xbf16>
    %cst_69 = arith.constant dense<0.000000e+00> : vector<112x128xf32>
    %84 = tpu.matmul %83, %82, %cst_69 {dimension_numbers = #tpu.dot_dimension_numbers<[1], [0], [0], [1], [0, 0, 1, 1], [], []>} : vector<112x128xbf16>, vector<128x128xbf16>, vector<112x128xf32> -> vector<112x128xf32>
    %85 = arith.addf %80, %84 : vector<112x128xf32>
    %c4_70 = arith.constant 4 : index
    %c0_71 = arith.constant 0 : index
    %c0_72 = arith.constant 0 : index
    %86 = vector.load %arg5[%c4_70, %c0_71, %c0_72] : memref<9x128x128xbf16, #tpu.memory_space<vmem>>, vector<1x128x128xbf16>
    %87 = vector.shape_cast %86 : vector<1x128x128xbf16> to vector<128x128xbf16>
    %c145 = arith.constant 145 : index
    %c0_73 = arith.constant 0 : index
    %88 = vector.load %arg11[%c145, %c0_73] : memref<280x128xbf16, #tpu.memory_space<vmem>>, vector<112x128xbf16>
    %cst_74 = arith.constant dense<0.000000e+00> : vector<112x128xf32>
    %89 = tpu.matmul %88, %87, %cst_74 {dimension_numbers = #tpu.dot_dimension_numbers<[1], [0], [0], [1], [0, 0, 1, 1], [], []>} : vector<112x128xbf16>, vector<128x128xbf16>, vector<112x128xf32> -> vector<112x128xf32>
    %90 = arith.addf %85, %89 : vector<112x128xf32>
    %c5_75 = arith.constant 5 : index
    %c0_76 = arith.constant 0 : index
    %c0_77 = arith.constant 0 : index
    %91 = vector.load %arg5[%c5_75, %c0_76, %c0_77] : memref<9x128x128xbf16, #tpu.memory_space<vmem>>, vector<1x128x128xbf16>
    %92 = vector.shape_cast %91 : vector<1x128x128xbf16> to vector<128x128xbf16>
    %c146 = arith.constant 146 : index
    %c0_78 = arith.constant 0 : index
    %93 = vector.load %arg11[%c146, %c0_78] : memref<280x128xbf16, #tpu.memory_space<vmem>>, vector<112x128xbf16>
    %cst_79 = arith.constant dense<0.000000e+00> : vector<112x128xf32>
    %94 = tpu.matmul %93, %92, %cst_79 {dimension_numbers = #tpu.dot_dimension_numbers<[1], [0], [0], [1], [0, 0, 1, 1], [], []>} : vector<112x128xbf16>, vector<128x128xbf16>, vector<112x128xf32> -> vector<112x128xf32>
    %95 = arith.addf %90, %94 : vector<112x128xf32>
    %c6_80 = arith.constant 6 : index
    %c0_81 = arith.constant 0 : index
    %c0_82 = arith.constant 0 : index
    %96 = vector.load %arg5[%c6_80, %c0_81, %c0_82] : memref<9x128x128xbf16, #tpu.memory_space<vmem>>, vector<1x128x128xbf16>
    %97 = vector.shape_cast %96 : vector<1x128x128xbf16> to vector<128x128xbf16>
    %c160 = arith.constant 160 : index
    %c0_83 = arith.constant 0 : index
    %98 = vector.load %arg11[%c160, %c0_83] : memref<280x128xbf16, #tpu.memory_space<vmem>>, vector<112x128xbf16>
    %cst_84 = arith.constant dense<0.000000e+00> : vector<112x128xf32>
    %99 = tpu.matmul %98, %97, %cst_84 {dimension_numbers = #tpu.dot_dimension_numbers<[1], [0], [0], [1], [0, 0, 1, 1], [], []>} : vector<112x128xbf16>, vector<128x128xbf16>, vector<112x128xf32> -> vector<112x128xf32>
    %100 = arith.addf %95, %99 : vector<112x128xf32>
    %c7_85 = arith.constant 7 : index
    %c0_86 = arith.constant 0 : index
    %c0_87 = arith.constant 0 : index
    %101 = vector.load %arg5[%c7_85, %c0_86, %c0_87] : memref<9x128x128xbf16, #tpu.memory_space<vmem>>, vector<1x128x128xbf16>
    %102 = vector.shape_cast %101 : vector<1x128x128xbf16> to vector<128x128xbf16>
    %c161 = arith.constant 161 : index
    %c0_88 = arith.constant 0 : index
    %103 = vector.load %arg11[%c161, %c0_88] : memref<280x128xbf16, #tpu.memory_space<vmem>>, vector<112x128xbf16>
    %cst_89 = arith.constant dense<0.000000e+00> : vector<112x128xf32>
    %104 = tpu.matmul %103, %102, %cst_89 {dimension_numbers = #tpu.dot_dimension_numbers<[1], [0], [0], [1], [0, 0, 1, 1], [], []>} : vector<112x128xbf16>, vector<128x128xbf16>, vector<112x128xf32> -> vector<112x128xf32>
    %105 = arith.addf %100, %104 : vector<112x128xf32>
    %c8_90 = arith.constant 8 : index
    %c0_91 = arith.constant 0 : index
    %c0_92 = arith.constant 0 : index
    %106 = vector.load %arg5[%c8_90, %c0_91, %c0_92] : memref<9x128x128xbf16, #tpu.memory_space<vmem>>, vector<1x128x128xbf16>
    %107 = vector.shape_cast %106 : vector<1x128x128xbf16> to vector<128x128xbf16>
    %c162 = arith.constant 162 : index
    %c0_93 = arith.constant 0 : index
    %108 = vector.load %arg11[%c162, %c0_93] : memref<280x128xbf16, #tpu.memory_space<vmem>>, vector<112x128xbf16>
    %cst_94 = arith.constant dense<0.000000e+00> : vector<112x128xf32>
    %109 = tpu.matmul %108, %107, %cst_94 {dimension_numbers = #tpu.dot_dimension_numbers<[1], [0], [0], [1], [0, 0, 1, 1], [], []>} : vector<112x128xbf16>, vector<128x128xbf16>, vector<112x128xf32> -> vector<112x128xf32>
    %110 = arith.addf %105, %109 : vector<112x128xf32>
    %111 = arith.truncf %110 : vector<112x128xf32> to vector<112x128xbf16>
    %c0_95 = arith.constant 0 : index
    %c128_96 = arith.constant 128 : index
    %c0_97 = arith.constant 0 : index
    %112 = vector.load %arg9[%c0_95, %c128_96, %c0_97] : memref<1x240x128xbf16, #tpu.memory_space<vmem>>, vector<1x112x128xbf16>
    %113 = vector.shape_cast %112 : vector<1x112x128xbf16> to vector<112x128xbf16>
    %114 = vector.shape_cast %111 : vector<112x128xbf16> to vector<1x112x128xbf16>
    tpu.vector_store %arg9[%c0_95, %c128_96, %c0_97], %114 {strides = array<i32>} : memref<1x240x128xbf16, #tpu.memory_space<vmem>>, vector<1x112x128xbf16>,
    %c128_98 = arith.constant 128 : index
    %c0_99 = arith.constant 0 : index
    %115 = vector.load %arg8[%c128_98, %c0_99] : memref<240x1xf32, #tpu.memory_space<vmem>>, vector<112x1xf32>
    %116 = vector.broadcast %115 : vector<112x1xf32> to vector<112x128xf32>
    %117 = arith.mulf %110, %116 : vector<112x128xf32>
    %cst_100 = arith.constant dense<0.000000e+00> : vector<128xf32>
    %118 = vector.multi_reduction <add>, %117, %cst_100 [0] : vector<112x128xf32> to vector<128xf32>
    %119 = vector.shape_cast %118 : vector<128xf32> to vector<1x128xf32>
    %120 = arith.addf %60, %119 : vector<1x128xf32>
    %121 = arith.mulf %117, %110 : vector<112x128xf32>
    %cst_101 = arith.constant dense<0.000000e+00> : vector<128xf32>
    %122 = vector.multi_reduction <add>, %121, %cst_101 [0] : vector<112x128xf32> to vector<128xf32>
    %123 = vector.shape_cast %122 : vector<128xf32> to vector<1x128xf32>
    %124 = arith.addf %64, %123 : vector<1x128xf32>
    %cst_102 = arith.constant 0.000000e+00 : f32
    %125 = vector.broadcast %cst_102 : f32 to vector<6x128xf32>
    %126 = tpu.concatenate %120, %124, %125 in 0 : vector<1x128xf32>, vector<1x128xf32>, vector<6x128xf32> -> vector<8x128xf32>
    %c0_103 = arith.constant 0 : index
    %c0_104 = arith.constant 0 : index
    %c0_105 = arith.constant 0 : index
    %c0_106 = arith.constant 0 : index
    %127 = vector.load %arg10[%c0_103, %c0_104, %c0_105, %c0_106] : memref<1x1x8x128xf32, #tpu.memory_space<vmem>>, vector<1x1x8x128xf32>
    %128 = vector.shape_cast %127 : vector<1x1x8x128xf32> to vector<8x128xf32>
    %129 = vector.shape_cast %126 : vector<8x128xf32> to vector<1x1x8x128xf32>
    tpu.vector_store %arg10[%c0_103, %c0_104, %c0_105, %c0_106], %129 {strides = array<i32>} : memref<1x1x8x128xf32, #tpu.memory_space<vmem>>, vector<1x1x8x128xf32>,
    return
  }
  func.func @transform_0(%arg0: i32, %arg1: i32, %arg2: i32) -> (i32, i32, i32) {
    %c0_i32 = arith.constant 0 : i32
    %c0_i32_0 = arith.constant 0 : i32
    return %arg0, %arg1, %c0_i32 : i32, i32, i32
  }
  func.func @transform_1(%arg0: i32, %arg1: i32, %arg2: i32) -> (i32, i32, i32) {
    %c1_i32 = arith.constant 1 : i32
    %0 = arith.addi %arg1, %c1_i32 : i32
    %c6_i32 = arith.constant 6 : i32
    %1 = arith.muli %0, %c6_i32 : i32
    %c0_i32 = arith.constant 0 : i32
    %c0_i32_0 = arith.constant 0 : i32
    return %arg0, %1, %c0_i32 : i32, i32, i32
  }
  func.func @transform_2(%arg0: i32, %arg1: i32, %arg2: i32) -> (i32, i32, i32) {
    %c0_i32 = arith.constant 0 : i32
    %c0_i32_0 = arith.constant 0 : i32
    %c0_i32_1 = arith.constant 0 : i32
    %c0_i32_2 = arith.constant 0 : i32
    return %c0_i32, %c0_i32_0, %c0_i32_1 : i32, i32, i32
  }
  func.func @transform_3(%arg0: i32, %arg1: i32, %arg2: i32) -> (i32, i32) {
    %c0_i32 = arith.constant 0 : i32
    %c0_i32_0 = arith.constant 0 : i32
    %c0_i32_1 = arith.constant 0 : i32
    return %c0_i32, %c0_i32_0 : i32, i32
  }
  func.func @transform_4(%arg0: i32, %arg1: i32, %arg2: i32) -> (i32, i32) {
    %c0_i32 = arith.constant 0 : i32
    %c0_i32_0 = arith.constant 0 : i32
    %c0_i32_1 = arith.constant 0 : i32
    return %c0_i32, %c0_i32_0 : i32, i32
  }
  func.func @transform_5(%arg0: i32, %arg1: i32, %arg2: i32) -> (i32, i32) {
    %c0_i32 = arith.constant 0 : i32
    %c0_i32_0 = arith.constant 0 : i32
    return %arg1, %c0_i32 : i32, i32
  }
  func.func @transform_6(%arg0: i32, %arg1: i32, %arg2: i32) -> (i32, i32, i32) {
    %c0_i32 = arith.constant 0 : i32
    return %arg0, %arg1, %arg2 : i32, i32, i32
  }
  func.func @transform_7(%arg0: i32, %arg1: i32, %arg2: i32) -> (i32, i32, i32, i32) {
    %c0_i32 = arith.constant 0 : i32
    %c0_i32_0 = arith.constant 0 : i32
    return %arg0, %arg1, %c0_i32, %arg2 : i32, i32, i32, i32
  }
}

module attributes {stable_mosaic.version = 11 : i64} {
  func.func @_conv_bn_stats_kernel(%arg0: i32, %arg1: i32, %arg2: i32, %arg3: memref<1x200x128xbf16, #tpu.memory_space<vmem>>, %arg4: memref<1x40x128xbf16, #tpu.memory_space<vmem>>, %arg5: memref<9x128x128xbf16, #tpu.memory_space<vmem>>, %arg6: memref<1x128xf32, #tpu.memory_space<vmem>>, %arg7: memref<1x128xf32, #tpu.memory_space<vmem>>, %arg8: memref<200x1xf32, #tpu.memory_space<vmem>>, %arg9: memref<1x200x128xbf16, #tpu.memory_space<vmem>>, %arg10: memref<1x1x8x128xf32, #tpu.memory_space<vmem>>, %arg11: memref<240x128xbf16, #tpu.memory_space<vmem>>) attributes {dimension_semantics = [#tpu.dimension_semantics<parallel>, #tpu.dimension_semantics<arbitrary>, #tpu.dimension_semantics<arbitrary>], iteration_bounds = array<i64: 2, 1, 1>, scalar_prefetch = 0 : i64, scratch_operands = 1 : i64, tpu.core_type = #tpu.core_type<tc>, window_params = [{transform_indices = @transform_0, window_bounds = array<i64: 1, 200, 128>}, {transform_indices = @transform_1, window_bounds = array<i64: 1, 40, 128>}, {pipeline_mode = #tpu.pipeline_mode<synchronous>, transform_indices = @transform_2, window_bounds = array<i64: 9, 128, 128>}, {pipeline_mode = #tpu.pipeline_mode<synchronous>, transform_indices = @transform_3, window_bounds = array<i64: 1, 128>}, {pipeline_mode = #tpu.pipeline_mode<synchronous>, transform_indices = @transform_4, window_bounds = array<i64: 1, 128>}, {transform_indices = @transform_5, window_bounds = array<i64: 200, 1>}, {transform_indices = @transform_6, window_bounds = array<i64: 1, 200, 128>}, {transform_indices = @transform_7, window_bounds = array<i64: 1, 1, 8, 128>}]} {
    %c0_i32 = arith.constant 0 : i32
    %0 = arith.cmpi eq, %arg2, %c0_i32 : i32
    %1 = arith.extui %0 : i1 to i32
    %c0_i32_0 = arith.constant 0 : i32
    %2 = arith.cmpi ne, %1, %c0_i32_0 : i32
    scf.if %2 {
      %c0_107 = arith.constant 0 : index
      %c0_108 = arith.constant 0 : index
      %c0_109 = arith.constant 0 : index
      %130 = vector.load %arg3[%c0_107, %c0_108, %c0_109] : memref<1x200x128xbf16, #tpu.memory_space<vmem>>, vector<1x128x128xbf16>
      %131 = vector.shape_cast %130 : vector<1x128x128xbf16> to vector<128x128xbf16>
      %132 = arith.extf %131 : vector<128x128xbf16> to vector<128x128xf32>
      %c0_110 = arith.constant 0 : index
      %c0_111 = arith.constant 0 : index
      %133 = vector.load %arg6[%c0_110, %c0_111] : memref<1x128xf32, #tpu.memory_space<vmem>>, vector<1x128xf32>
      %134 = vector.broadcast %133 : vector<1x128xf32> to vector<128x128xf32>
      %135 = arith.mulf %132, %134 : vector<128x128xf32>
      %c0_112 = arith.constant 0 : index
      %c0_113 = arith.constant 0 : index
      %136 = vector.load %arg7[%c0_112, %c0_113] : memref<1x128xf32, #tpu.memory_space<vmem>>, vector<1x128xf32>
      %137 = vector.broadcast %136 : vector<1x128xf32> to vector<128x128xf32>
      %138 = arith.addf %135, %137 : vector<128x128xf32>
      %cst_114 = arith.constant 0.000000e+00 : f32
      %139 = vector.broadcast %cst_114 : f32 to vector<128x128xf32>
      %140 = arith.maximumf %138, %139 : vector<128x128xf32>
      %141 = arith.truncf %140 : vector<128x128xf32> to vector<128x128xbf16>
      %c0_115 = arith.constant 0 : index
      %c0_116 = arith.constant 0 : index
      %142 = vector.load %arg11[%c0_115, %c0_116] : memref<240x128xbf16, #tpu.memory_space<vmem>>, vector<128x128xbf16>
      tpu.vector_store %arg11[%c0_115, %c0_116], %141 {strides = array<i32>} : memref<240x128xbf16, #tpu.memory_space<vmem>>, vector<128x128xbf16>,
      %c0_117 = arith.constant 0 : index
      %c128_118 = arith.constant 128 : index
      %c0_119 = arith.constant 0 : index
      %143 = vector.load %arg3[%c0_117, %c128_118, %c0_119] : memref<1x200x128xbf16, #tpu.memory_space<vmem>>, vector<1x72x128xbf16>
      %144 = vector.shape_cast %143 : vector<1x72x128xbf16> to vector<72x128xbf16>
      %145 = arith.extf %144 : vector<72x128xbf16> to vector<72x128xf32>
      %c0_120 = arith.constant 0 : index
      %c0_121 = arith.constant 0 : index
      %146 = vector.load %arg6[%c0_120, %c0_121] : memref<1x128xf32, #tpu.memory_space<vmem>>, vector<1x128xf32>
      %147 = vector.broadcast %146 : vector<1x128xf32> to vector<72x128xf32>
      %148 = arith.mulf %145, %147 : vector<72x128xf32>
      %c0_122 = arith.constant 0 : index
      %c0_123 = arith.constant 0 : index
      %149 = vector.load %arg7[%c0_122, %c0_123] : memref<1x128xf32, #tpu.memory_space<vmem>>, vector<1x128xf32>
      %150 = vector.broadcast %149 : vector<1x128xf32> to vector<72x128xf32>
      %151 = arith.addf %148, %150 : vector<72x128xf32>
      %cst_124 = arith.constant 0.000000e+00 : f32
      %152 = vector.broadcast %cst_124 : f32 to vector<72x128xf32>
      %153 = arith.maximumf %151, %152 : vector<72x128xf32>
      %154 = arith.truncf %153 : vector<72x128xf32> to vector<72x128xbf16>
      %c128_125 = arith.constant 128 : index
      %c0_126 = arith.constant 0 : index
      %155 = vector.load %arg11[%c128_125, %c0_126] : memref<240x128xbf16, #tpu.memory_space<vmem>>, vector<72x128xbf16>
      tpu.vector_store %arg11[%c128_125, %c0_126], %154 {strides = array<i32>} : memref<240x128xbf16, #tpu.memory_space<vmem>>, vector<72x128xbf16>,
      %c0_127 = arith.constant 0 : index
      %c0_128 = arith.constant 0 : index
      %c0_129 = arith.constant 0 : index
      %156 = vector.load %arg4[%c0_127, %c0_128, %c0_129] : memref<1x40x128xbf16, #tpu.memory_space<vmem>>, vector<1x40x128xbf16>
      %157 = vector.shape_cast %156 : vector<1x40x128xbf16> to vector<40x128xbf16>
      %158 = arith.extf %157 : vector<40x128xbf16> to vector<40x128xf32>
      %c0_130 = arith.constant 0 : index
      %c0_131 = arith.constant 0 : index
      %159 = vector.load %arg6[%c0_130, %c0_131] : memref<1x128xf32, #tpu.memory_space<vmem>>, vector<1x128xf32>
      %160 = vector.broadcast %159 : vector<1x128xf32> to vector<40x128xf32>
      %161 = arith.mulf %158, %160 : vector<40x128xf32>
      %c0_132 = arith.constant 0 : index
      %c0_133 = arith.constant 0 : index
      %162 = vector.load %arg7[%c0_132, %c0_133] : memref<1x128xf32, #tpu.memory_space<vmem>>, vector<1x128xf32>
      %163 = vector.broadcast %162 : vector<1x128xf32> to vector<40x128xf32>
      %164 = arith.addf %161, %163 : vector<40x128xf32>
      %cst_134 = arith.constant 0.000000e+00 : f32
      %165 = vector.broadcast %cst_134 : f32 to vector<40x128xf32>
      %166 = arith.maximumf %164, %165 : vector<40x128xf32>
      %167 = arith.truncf %166 : vector<40x128xf32> to vector<40x128xbf16>
      %c200 = arith.constant 200 : index
      %c0_135 = arith.constant 0 : index
      %168 = vector.load %arg11[%c200, %c0_135] : memref<240x128xbf16, #tpu.memory_space<vmem>>, vector<40x128xbf16>
      tpu.vector_store %arg11[%c200, %c0_135], %167 {strides = array<i32>} : memref<240x128xbf16, #tpu.memory_space<vmem>>, vector<40x128xbf16>,
    } else {
    }
    %cst = arith.constant 0.000000e+00 : f32
    %3 = vector.broadcast %cst : f32 to vector<1x128xf32>
    %cst_1 = arith.constant 0.000000e+00 : f32
    %4 = vector.broadcast %cst_1 : f32 to vector<1x128xf32>
    %cst_2 = arith.constant 0.000000e+00 : f32
    %5 = vector.broadcast %cst_2 : f32 to vector<128x128xf32>
    %c0 = arith.constant 0 : index
    %c0_3 = arith.constant 0 : index
    %c0_4 = arith.constant 0 : index
    %6 = vector.load %arg5[%c0, %c0_3, %c0_4] : memref<9x128x128xbf16, #tpu.memory_space<vmem>>, vector<1x128x128xbf16>
    %7 = vector.shape_cast %6 : vector<1x128x128xbf16> to vector<128x128xbf16>
    %c0_5 = arith.constant 0 : index
    %c0_6 = arith.constant 0 : index
    %8 = vector.load %arg11[%c0_5, %c0_6] : memref<240x128xbf16, #tpu.memory_space<vmem>>, vector<128x128xbf16>
    %cst_7 = arith.constant dense<0.000000e+00> : vector<128x128xf32>
    %9 = tpu.matmul %8, %7, %cst_7 {dimension_numbers = #tpu.dot_dimension_numbers<[1], [0], [0], [1], [0, 0, 1, 1], [], []>} : vector<128x128xbf16>, vector<128x128xbf16>, vector<128x128xf32> -> vector<128x128xf32>
    %10 = arith.addf %5, %9 : vector<128x128xf32>
    %c1 = arith.constant 1 : index
    %c0_8 = arith.constant 0 : index
    %c0_9 = arith.constant 0 : index
    %11 = vector.load %arg5[%c1, %c0_8, %c0_9] : memref<9x128x128xbf16, #tpu.memory_space<vmem>>, vector<1x128x128xbf16>
    %12 = vector.shape_cast %11 : vector<1x128x128xbf16> to vector<128x128xbf16>
    %c1_10 = arith.constant 1 : index
    %c0_11 = arith.constant 0 : index
    %13 = vector.load %arg11[%c1_10, %c0_11] : memref<240x128xbf16, #tpu.memory_space<vmem>>, vector<128x128xbf16>
    %cst_12 = arith.constant dense<0.000000e+00> : vector<128x128xf32>
    %14 = tpu.matmul %13, %12, %cst_12 {dimension_numbers = #tpu.dot_dimension_numbers<[1], [0], [0], [1], [0, 0, 1, 1], [], []>} : vector<128x128xbf16>, vector<128x128xbf16>, vector<128x128xf32> -> vector<128x128xf32>
    %15 = arith.addf %10, %14 : vector<128x128xf32>
    %c2 = arith.constant 2 : index
    %c0_13 = arith.constant 0 : index
    %c0_14 = arith.constant 0 : index
    %16 = vector.load %arg5[%c2, %c0_13, %c0_14] : memref<9x128x128xbf16, #tpu.memory_space<vmem>>, vector<1x128x128xbf16>
    %17 = vector.shape_cast %16 : vector<1x128x128xbf16> to vector<128x128xbf16>
    %c2_15 = arith.constant 2 : index
    %c0_16 = arith.constant 0 : index
    %18 = vector.load %arg11[%c2_15, %c0_16] : memref<240x128xbf16, #tpu.memory_space<vmem>>, vector<128x128xbf16>
    %cst_17 = arith.constant dense<0.000000e+00> : vector<128x128xf32>
    %19 = tpu.matmul %18, %17, %cst_17 {dimension_numbers = #tpu.dot_dimension_numbers<[1], [0], [0], [1], [0, 0, 1, 1], [], []>} : vector<128x128xbf16>, vector<128x128xbf16>, vector<128x128xf32> -> vector<128x128xf32>
    %20 = arith.addf %15, %19 : vector<128x128xf32>
    %c3 = arith.constant 3 : index
    %c0_18 = arith.constant 0 : index
    %c0_19 = arith.constant 0 : index
    %21 = vector.load %arg5[%c3, %c0_18, %c0_19] : memref<9x128x128xbf16, #tpu.memory_space<vmem>>, vector<1x128x128xbf16>
    %22 = vector.shape_cast %21 : vector<1x128x128xbf16> to vector<128x128xbf16>
    %c16 = arith.constant 16 : index
    %c0_20 = arith.constant 0 : index
    %23 = vector.load %arg11[%c16, %c0_20] : memref<240x128xbf16, #tpu.memory_space<vmem>>, vector<128x128xbf16>
    %cst_21 = arith.constant dense<0.000000e+00> : vector<128x128xf32>
    %24 = tpu.matmul %23, %22, %cst_21 {dimension_numbers = #tpu.dot_dimension_numbers<[1], [0], [0], [1], [0, 0, 1, 1], [], []>} : vector<128x128xbf16>, vector<128x128xbf16>, vector<128x128xf32> -> vector<128x128xf32>
    %25 = arith.addf %20, %24 : vector<128x128xf32>
    %c4 = arith.constant 4 : index
    %c0_22 = arith.constant 0 : index
    %c0_23 = arith.constant 0 : index
    %26 = vector.load %arg5[%c4, %c0_22, %c0_23] : memref<9x128x128xbf16, #tpu.memory_space<vmem>>, vector<1x128x128xbf16>
    %27 = vector.shape_cast %26 : vector<1x128x128xbf16> to vector<128x128xbf16>
    %c17 = arith.constant 17 : index
    %c0_24 = arith.constant 0 : index
    %28 = vector.load %arg11[%c17, %c0_24] : memref<240x128xbf16, #tpu.memory_space<vmem>>, vector<128x128xbf16>
    %cst_25 = arith.constant dense<0.000000e+00> : vector<128x128xf32>
    %29 = tpu.matmul %28, %27, %cst_25 {dimension_numbers = #tpu.dot_dimension_numbers<[1], [0], [0], [1], [0, 0, 1, 1], [], []>} : vector<128x128xbf16>, vector<128x128xbf16>, vector<128x128xf32> -> vector<128x128xf32>
    %30 = arith.addf %25, %29 : vector<128x128xf32>
    %c5 = arith.constant 5 : index
    %c0_26 = arith.constant 0 : index
    %c0_27 = arith.constant 0 : index
    %31 = vector.load %arg5[%c5, %c0_26, %c0_27] : memref<9x128x128xbf16, #tpu.memory_space<vmem>>, vector<1x128x128xbf16>
    %32 = vector.shape_cast %31 : vector<1x128x128xbf16> to vector<128x128xbf16>
    %c18 = arith.constant 18 : index
    %c0_28 = arith.constant 0 : index
    %33 = vector.load %arg11[%c18, %c0_28] : memref<240x128xbf16, #tpu.memory_space<vmem>>, vector<128x128xbf16>
    %cst_29 = arith.constant dense<0.000000e+00> : vector<128x128xf32>
    %34 = tpu.matmul %33, %32, %cst_29 {dimension_numbers = #tpu.dot_dimension_numbers<[1], [0], [0], [1], [0, 0, 1, 1], [], []>} : vector<128x128xbf16>, vector<128x128xbf16>, vector<128x128xf32> -> vector<128x128xf32>
    %35 = arith.addf %30, %34 : vector<128x128xf32>
    %c6 = arith.constant 6 : index
    %c0_30 = arith.constant 0 : index
    %c0_31 = arith.constant 0 : index
    %36 = vector.load %arg5[%c6, %c0_30, %c0_31] : memref<9x128x128xbf16, #tpu.memory_space<vmem>>, vector<1x128x128xbf16>
    %37 = vector.shape_cast %36 : vector<1x128x128xbf16> to vector<128x128xbf16>
    %c32 = arith.constant 32 : index
    %c0_32 = arith.constant 0 : index
    %38 = vector.load %arg11[%c32, %c0_32] : memref<240x128xbf16, #tpu.memory_space<vmem>>, vector<128x128xbf16>
    %cst_33 = arith.constant dense<0.000000e+00> : vector<128x128xf32>
    %39 = tpu.matmul %38, %37, %cst_33 {dimension_numbers = #tpu.dot_dimension_numbers<[1], [0], [0], [1], [0, 0, 1, 1], [], []>} : vector<128x128xbf16>, vector<128x128xbf16>, vector<128x128xf32> -> vector<128x128xf32>
    %40 = arith.addf %35, %39 : vector<128x128xf32>
    %c7 = arith.constant 7 : index
    %c0_34 = arith.constant 0 : index
    %c0_35 = arith.constant 0 : index
    %41 = vector.load %arg5[%c7, %c0_34, %c0_35] : memref<9x128x128xbf16, #tpu.memory_space<vmem>>, vector<1x128x128xbf16>
    %42 = vector.shape_cast %41 : vector<1x128x128xbf16> to vector<128x128xbf16>
    %c33 = arith.constant 33 : index
    %c0_36 = arith.constant 0 : index
    %43 = vector.load %arg11[%c33, %c0_36] : memref<240x128xbf16, #tpu.memory_space<vmem>>, vector<128x128xbf16>
    %cst_37 = arith.constant dense<0.000000e+00> : vector<128x128xf32>
    %44 = tpu.matmul %43, %42, %cst_37 {dimension_numbers = #tpu.dot_dimension_numbers<[1], [0], [0], [1], [0, 0, 1, 1], [], []>} : vector<128x128xbf16>, vector<128x128xbf16>, vector<128x128xf32> -> vector<128x128xf32>
    %45 = arith.addf %40, %44 : vector<128x128xf32>
    %c8 = arith.constant 8 : index
    %c0_38 = arith.constant 0 : index
    %c0_39 = arith.constant 0 : index
    %46 = vector.load %arg5[%c8, %c0_38, %c0_39] : memref<9x128x128xbf16, #tpu.memory_space<vmem>>, vector<1x128x128xbf16>
    %47 = vector.shape_cast %46 : vector<1x128x128xbf16> to vector<128x128xbf16>
    %c34 = arith.constant 34 : index
    %c0_40 = arith.constant 0 : index
    %48 = vector.load %arg11[%c34, %c0_40] : memref<240x128xbf16, #tpu.memory_space<vmem>>, vector<128x128xbf16>
    %cst_41 = arith.constant dense<0.000000e+00> : vector<128x128xf32>
    %49 = tpu.matmul %48, %47, %cst_41 {dimension_numbers = #tpu.dot_dimension_numbers<[1], [0], [0], [1], [0, 0, 1, 1], [], []>} : vector<128x128xbf16>, vector<128x128xbf16>, vector<128x128xf32> -> vector<128x128xf32>
    %50 = arith.addf %45, %49 : vector<128x128xf32>
    %51 = arith.truncf %50 : vector<128x128xf32> to vector<128x128xbf16>
    %c0_42 = arith.constant 0 : index
    %c0_43 = arith.constant 0 : index
    %c0_44 = arith.constant 0 : index
    %52 = vector.load %arg9[%c0_42, %c0_43, %c0_44] : memref<1x200x128xbf16, #tpu.memory_space<vmem>>, vector<1x128x128xbf16>
    %53 = vector.shape_cast %52 : vector<1x128x128xbf16> to vector<128x128xbf16>
    %54 = vector.shape_cast %51 : vector<128x128xbf16> to vector<1x128x128xbf16>
    tpu.vector_store %arg9[%c0_42, %c0_43, %c0_44], %54 {strides = array<i32>} : memref<1x200x128xbf16, #tpu.memory_space<vmem>>, vector<1x128x128xbf16>,
    %c0_45 = arith.constant 0 : index
    %c0_46 = arith.constant 0 : index
    %55 = vector.load %arg8[%c0_45, %c0_46] : memref<200x1xf32, #tpu.memory_space<vmem>>, vector<128x1xf32>
    %56 = vector.broadcast %55 : vector<128x1xf32> to vector<128x128xf32>
    %57 = arith.mulf %50, %56 : vector<128x128xf32>
    %cst_47 = arith.constant dense<0.000000e+00> : vector<128xf32>
    %58 = vector.multi_reduction <add>, %57, %cst_47 [0] : vector<128x128xf32> to vector<128xf32>
    %59 = vector.shape_cast %58 : vector<128xf32> to vector<1x128xf32>
    %60 = arith.addf %3, %59 : vector<1x128xf32>
    %61 = arith.mulf %57, %50 : vector<128x128xf32>
    %cst_48 = arith.constant dense<0.000000e+00> : vector<128xf32>
    %62 = vector.multi_reduction <add>, %61, %cst_48 [0] : vector<128x128xf32> to vector<128xf32>
    %63 = vector.shape_cast %62 : vector<128xf32> to vector<1x128xf32>
    %64 = arith.addf %4, %63 : vector<1x128xf32>
    %cst_49 = arith.constant 0.000000e+00 : f32
    %65 = vector.broadcast %cst_49 : f32 to vector<72x128xf32>
    %c0_50 = arith.constant 0 : index
    %c0_51 = arith.constant 0 : index
    %c0_52 = arith.constant 0 : index
    %66 = vector.load %arg5[%c0_50, %c0_51, %c0_52] : memref<9x128x128xbf16, #tpu.memory_space<vmem>>, vector<1x128x128xbf16>
    %67 = vector.shape_cast %66 : vector<1x128x128xbf16> to vector<128x128xbf16>
    %c128 = arith.constant 128 : index
    %c0_53 = arith.constant 0 : index
    %68 = vector.load %arg11[%c128, %c0_53] : memref<240x128xbf16, #tpu.memory_space<vmem>>, vector<72x128xbf16>
    %cst_54 = arith.constant dense<0.000000e+00> : vector<72x128xf32>
    %69 = tpu.matmul %68, %67, %cst_54 {dimension_numbers = #tpu.dot_dimension_numbers<[1], [0], [0], [1], [0, 0, 1, 1], [], []>} : vector<72x128xbf16>, vector<128x128xbf16>, vector<72x128xf32> -> vector<72x128xf32>
    %70 = arith.addf %65, %69 : vector<72x128xf32>
    %c1_55 = arith.constant 1 : index
    %c0_56 = arith.constant 0 : index
    %c0_57 = arith.constant 0 : index
    %71 = vector.load %arg5[%c1_55, %c0_56, %c0_57] : memref<9x128x128xbf16, #tpu.memory_space<vmem>>, vector<1x128x128xbf16>
    %72 = vector.shape_cast %71 : vector<1x128x128xbf16> to vector<128x128xbf16>
    %c129 = arith.constant 129 : index
    %c0_58 = arith.constant 0 : index
    %73 = vector.load %arg11[%c129, %c0_58] : memref<240x128xbf16, #tpu.memory_space<vmem>>, vector<72x128xbf16>
    %cst_59 = arith.constant dense<0.000000e+00> : vector<72x128xf32>
    %74 = tpu.matmul %73, %72, %cst_59 {dimension_numbers = #tpu.dot_dimension_numbers<[1], [0], [0], [1], [0, 0, 1, 1], [], []>} : vector<72x128xbf16>, vector<128x128xbf16>, vector<72x128xf32> -> vector<72x128xf32>
    %75 = arith.addf %70, %74 : vector<72x128xf32>
    %c2_60 = arith.constant 2 : index
    %c0_61 = arith.constant 0 : index
    %c0_62 = arith.constant 0 : index
    %76 = vector.load %arg5[%c2_60, %c0_61, %c0_62] : memref<9x128x128xbf16, #tpu.memory_space<vmem>>, vector<1x128x128xbf16>
    %77 = vector.shape_cast %76 : vector<1x128x128xbf16> to vector<128x128xbf16>
    %c130 = arith.constant 130 : index
    %c0_63 = arith.constant 0 : index
    %78 = vector.load %arg11[%c130, %c0_63] : memref<240x128xbf16, #tpu.memory_space<vmem>>, vector<72x128xbf16>
    %cst_64 = arith.constant dense<0.000000e+00> : vector<72x128xf32>
    %79 = tpu.matmul %78, %77, %cst_64 {dimension_numbers = #tpu.dot_dimension_numbers<[1], [0], [0], [1], [0, 0, 1, 1], [], []>} : vector<72x128xbf16>, vector<128x128xbf16>, vector<72x128xf32> -> vector<72x128xf32>
    %80 = arith.addf %75, %79 : vector<72x128xf32>
    %c3_65 = arith.constant 3 : index
    %c0_66 = arith.constant 0 : index
    %c0_67 = arith.constant 0 : index
    %81 = vector.load %arg5[%c3_65, %c0_66, %c0_67] : memref<9x128x128xbf16, #tpu.memory_space<vmem>>, vector<1x128x128xbf16>
    %82 = vector.shape_cast %81 : vector<1x128x128xbf16> to vector<128x128xbf16>
    %c144 = arith.constant 144 : index
    %c0_68 = arith.constant 0 : index
    %83 = vector.load %arg11[%c144, %c0_68] : memref<240x128xbf16, #tpu.memory_space<vmem>>, vector<72x128xbf16>
    %cst_69 = arith.constant dense<0.000000e+00> : vector<72x128xf32>
    %84 = tpu.matmul %83, %82, %cst_69 {dimension_numbers = #tpu.dot_dimension_numbers<[1], [0], [0], [1], [0, 0, 1, 1], [], []>} : vector<72x128xbf16>, vector<128x128xbf16>, vector<72x128xf32> -> vector<72x128xf32>
    %85 = arith.addf %80, %84 : vector<72x128xf32>
    %c4_70 = arith.constant 4 : index
    %c0_71 = arith.constant 0 : index
    %c0_72 = arith.constant 0 : index
    %86 = vector.load %arg5[%c4_70, %c0_71, %c0_72] : memref<9x128x128xbf16, #tpu.memory_space<vmem>>, vector<1x128x128xbf16>
    %87 = vector.shape_cast %86 : vector<1x128x128xbf16> to vector<128x128xbf16>
    %c145 = arith.constant 145 : index
    %c0_73 = arith.constant 0 : index
    %88 = vector.load %arg11[%c145, %c0_73] : memref<240x128xbf16, #tpu.memory_space<vmem>>, vector<72x128xbf16>
    %cst_74 = arith.constant dense<0.000000e+00> : vector<72x128xf32>
    %89 = tpu.matmul %88, %87, %cst_74 {dimension_numbers = #tpu.dot_dimension_numbers<[1], [0], [0], [1], [0, 0, 1, 1], [], []>} : vector<72x128xbf16>, vector<128x128xbf16>, vector<72x128xf32> -> vector<72x128xf32>
    %90 = arith.addf %85, %89 : vector<72x128xf32>
    %c5_75 = arith.constant 5 : index
    %c0_76 = arith.constant 0 : index
    %c0_77 = arith.constant 0 : index
    %91 = vector.load %arg5[%c5_75, %c0_76, %c0_77] : memref<9x128x128xbf16, #tpu.memory_space<vmem>>, vector<1x128x128xbf16>
    %92 = vector.shape_cast %91 : vector<1x128x128xbf16> to vector<128x128xbf16>
    %c146 = arith.constant 146 : index
    %c0_78 = arith.constant 0 : index
    %93 = vector.load %arg11[%c146, %c0_78] : memref<240x128xbf16, #tpu.memory_space<vmem>>, vector<72x128xbf16>
    %cst_79 = arith.constant dense<0.000000e+00> : vector<72x128xf32>
    %94 = tpu.matmul %93, %92, %cst_79 {dimension_numbers = #tpu.dot_dimension_numbers<[1], [0], [0], [1], [0, 0, 1, 1], [], []>} : vector<72x128xbf16>, vector<128x128xbf16>, vector<72x128xf32> -> vector<72x128xf32>
    %95 = arith.addf %90, %94 : vector<72x128xf32>
    %c6_80 = arith.constant 6 : index
    %c0_81 = arith.constant 0 : index
    %c0_82 = arith.constant 0 : index
    %96 = vector.load %arg5[%c6_80, %c0_81, %c0_82] : memref<9x128x128xbf16, #tpu.memory_space<vmem>>, vector<1x128x128xbf16>
    %97 = vector.shape_cast %96 : vector<1x128x128xbf16> to vector<128x128xbf16>
    %c160 = arith.constant 160 : index
    %c0_83 = arith.constant 0 : index
    %98 = vector.load %arg11[%c160, %c0_83] : memref<240x128xbf16, #tpu.memory_space<vmem>>, vector<72x128xbf16>
    %cst_84 = arith.constant dense<0.000000e+00> : vector<72x128xf32>
    %99 = tpu.matmul %98, %97, %cst_84 {dimension_numbers = #tpu.dot_dimension_numbers<[1], [0], [0], [1], [0, 0, 1, 1], [], []>} : vector<72x128xbf16>, vector<128x128xbf16>, vector<72x128xf32> -> vector<72x128xf32>
    %100 = arith.addf %95, %99 : vector<72x128xf32>
    %c7_85 = arith.constant 7 : index
    %c0_86 = arith.constant 0 : index
    %c0_87 = arith.constant 0 : index
    %101 = vector.load %arg5[%c7_85, %c0_86, %c0_87] : memref<9x128x128xbf16, #tpu.memory_space<vmem>>, vector<1x128x128xbf16>
    %102 = vector.shape_cast %101 : vector<1x128x128xbf16> to vector<128x128xbf16>
    %c161 = arith.constant 161 : index
    %c0_88 = arith.constant 0 : index
    %103 = vector.load %arg11[%c161, %c0_88] : memref<240x128xbf16, #tpu.memory_space<vmem>>, vector<72x128xbf16>
    %cst_89 = arith.constant dense<0.000000e+00> : vector<72x128xf32>
    %104 = tpu.matmul %103, %102, %cst_89 {dimension_numbers = #tpu.dot_dimension_numbers<[1], [0], [0], [1], [0, 0, 1, 1], [], []>} : vector<72x128xbf16>, vector<128x128xbf16>, vector<72x128xf32> -> vector<72x128xf32>
    %105 = arith.addf %100, %104 : vector<72x128xf32>
    %c8_90 = arith.constant 8 : index
    %c0_91 = arith.constant 0 : index
    %c0_92 = arith.constant 0 : index
    %106 = vector.load %arg5[%c8_90, %c0_91, %c0_92] : memref<9x128x128xbf16, #tpu.memory_space<vmem>>, vector<1x128x128xbf16>
    %107 = vector.shape_cast %106 : vector<1x128x128xbf16> to vector<128x128xbf16>
    %c162 = arith.constant 162 : index
    %c0_93 = arith.constant 0 : index
    %108 = vector.load %arg11[%c162, %c0_93] : memref<240x128xbf16, #tpu.memory_space<vmem>>, vector<72x128xbf16>
    %cst_94 = arith.constant dense<0.000000e+00> : vector<72x128xf32>
    %109 = tpu.matmul %108, %107, %cst_94 {dimension_numbers = #tpu.dot_dimension_numbers<[1], [0], [0], [1], [0, 0, 1, 1], [], []>} : vector<72x128xbf16>, vector<128x128xbf16>, vector<72x128xf32> -> vector<72x128xf32>
    %110 = arith.addf %105, %109 : vector<72x128xf32>
    %111 = arith.truncf %110 : vector<72x128xf32> to vector<72x128xbf16>
    %c0_95 = arith.constant 0 : index
    %c128_96 = arith.constant 128 : index
    %c0_97 = arith.constant 0 : index
    %112 = vector.load %arg9[%c0_95, %c128_96, %c0_97] : memref<1x200x128xbf16, #tpu.memory_space<vmem>>, vector<1x72x128xbf16>
    %113 = vector.shape_cast %112 : vector<1x72x128xbf16> to vector<72x128xbf16>
    %114 = vector.shape_cast %111 : vector<72x128xbf16> to vector<1x72x128xbf16>
    tpu.vector_store %arg9[%c0_95, %c128_96, %c0_97], %114 {strides = array<i32>} : memref<1x200x128xbf16, #tpu.memory_space<vmem>>, vector<1x72x128xbf16>,
    %c128_98 = arith.constant 128 : index
    %c0_99 = arith.constant 0 : index
    %115 = vector.load %arg8[%c128_98, %c0_99] : memref<200x1xf32, #tpu.memory_space<vmem>>, vector<72x1xf32>
    %116 = vector.broadcast %115 : vector<72x1xf32> to vector<72x128xf32>
    %117 = arith.mulf %110, %116 : vector<72x128xf32>
    %cst_100 = arith.constant dense<0.000000e+00> : vector<128xf32>
    %118 = vector.multi_reduction <add>, %117, %cst_100 [0] : vector<72x128xf32> to vector<128xf32>
    %119 = vector.shape_cast %118 : vector<128xf32> to vector<1x128xf32>
    %120 = arith.addf %60, %119 : vector<1x128xf32>
    %121 = arith.mulf %117, %110 : vector<72x128xf32>
    %cst_101 = arith.constant dense<0.000000e+00> : vector<128xf32>
    %122 = vector.multi_reduction <add>, %121, %cst_101 [0] : vector<72x128xf32> to vector<128xf32>
    %123 = vector.shape_cast %122 : vector<128xf32> to vector<1x128xf32>
    %124 = arith.addf %64, %123 : vector<1x128xf32>
    %cst_102 = arith.constant 0.000000e+00 : f32
    %125 = vector.broadcast %cst_102 : f32 to vector<6x128xf32>
    %126 = tpu.concatenate %120, %124, %125 in 0 : vector<1x128xf32>, vector<1x128xf32>, vector<6x128xf32> -> vector<8x128xf32>
    %c0_103 = arith.constant 0 : index
    %c0_104 = arith.constant 0 : index
    %c0_105 = arith.constant 0 : index
    %c0_106 = arith.constant 0 : index
    %127 = vector.load %arg10[%c0_103, %c0_104, %c0_105, %c0_106] : memref<1x1x8x128xf32, #tpu.memory_space<vmem>>, vector<1x1x8x128xf32>
    %128 = vector.shape_cast %127 : vector<1x1x8x128xf32> to vector<8x128xf32>
    %129 = vector.shape_cast %126 : vector<8x128xf32> to vector<1x1x8x128xf32>
    tpu.vector_store %arg10[%c0_103, %c0_104, %c0_105, %c0_106], %129 {strides = array<i32>} : memref<1x1x8x128xf32, #tpu.memory_space<vmem>>, vector<1x1x8x128xf32>,
    return
  }
  func.func @transform_0(%arg0: i32, %arg1: i32, %arg2: i32) -> (i32, i32, i32) {
    %c0_i32 = arith.constant 0 : i32
    %c0_i32_0 = arith.constant 0 : i32
    return %arg0, %arg1, %c0_i32 : i32, i32, i32
  }
  func.func @transform_1(%arg0: i32, %arg1: i32, %arg2: i32) -> (i32, i32, i32) {
    %c1_i32 = arith.constant 1 : i32
    %0 = arith.addi %arg1, %c1_i32 : i32
    %c5_i32 = arith.constant 5 : i32
    %1 = arith.muli %0, %c5_i32 : i32
    %c0_i32 = arith.constant 0 : i32
    %c0_i32_0 = arith.constant 0 : i32
    return %arg0, %1, %c0_i32 : i32, i32, i32
  }
  func.func @transform_2(%arg0: i32, %arg1: i32, %arg2: i32) -> (i32, i32, i32) {
    %c0_i32 = arith.constant 0 : i32
    %c0_i32_0 = arith.constant 0 : i32
    %c0_i32_1 = arith.constant 0 : i32
    %c0_i32_2 = arith.constant 0 : i32
    return %c0_i32, %c0_i32_0, %c0_i32_1 : i32, i32, i32
  }
  func.func @transform_3(%arg0: i32, %arg1: i32, %arg2: i32) -> (i32, i32) {
    %c0_i32 = arith.constant 0 : i32
    %c0_i32_0 = arith.constant 0 : i32
    %c0_i32_1 = arith.constant 0 : i32
    return %c0_i32, %c0_i32_0 : i32, i32
  }
  func.func @transform_4(%arg0: i32, %arg1: i32, %arg2: i32) -> (i32, i32) {
    %c0_i32 = arith.constant 0 : i32
    %c0_i32_0 = arith.constant 0 : i32
    %c0_i32_1 = arith.constant 0 : i32
    return %c0_i32, %c0_i32_0 : i32, i32
  }
  func.func @transform_5(%arg0: i32, %arg1: i32, %arg2: i32) -> (i32, i32) {
    %c0_i32 = arith.constant 0 : i32
    %c0_i32_0 = arith.constant 0 : i32
    return %arg1, %c0_i32 : i32, i32
  }
  func.func @transform_6(%arg0: i32, %arg1: i32, %arg2: i32) -> (i32, i32, i32) {
    %c0_i32 = arith.constant 0 : i32
    return %arg0, %arg1, %arg2 : i32, i32, i32
  }
  func.func @transform_7(%arg0: i32, %arg1: i32, %arg2: i32) -> (i32, i32, i32, i32) {
    %c0_i32 = arith.constant 0 : i32
    %c0_i32_0 = arith.constant 0 : i32
    return %arg0, %arg1, %c0_i32, %arg2 : i32, i32, i32, i32
  }
}

module attributes {stable_mosaic.version = 11 : i64} {
  func.func @_bn_act_crop_kernel(%arg0: i32, %arg1: i32, %arg2: memref<1x192x128xbf16, #tpu.memory_space<vmem>>, %arg3: memref<1x128xf32, #tpu.memory_space<vmem>>, %arg4: memref<1x128xf32, #tpu.memory_space<vmem>>, %arg5: memref<1x12x12x8xf32, #tpu.memory_space<vmem>>) attributes {dimension_semantics = [#tpu.dimension_semantics<parallel>, #tpu.dimension_semantics<parallel>], iteration_bounds = array<i64: 2, 1>, scalar_prefetch = 0 : i64, scratch_operands = 0 : i64, tpu.core_type = #tpu.core_type<tc>, window_params = [{transform_indices = @transform_0, window_bounds = array<i64: 1, 192, 128>}, {pipeline_mode = #tpu.pipeline_mode<synchronous>, transform_indices = @transform_1, window_bounds = array<i64: 1, 128>}, {pipeline_mode = #tpu.pipeline_mode<synchronous>, transform_indices = @transform_2, window_bounds = array<i64: 1, 128>}, {transform_indices = @transform_3, window_bounds = array<i64: 1, 12, 12, 8>}]} {
    %c0 = arith.constant 0 : index
    %c0_0 = arith.constant 0 : index
    %c0_1 = arith.constant 0 : index
    %0 = vector.load %arg2[%c0, %c0_0, %c0_1] : memref<1x192x128xbf16, #tpu.memory_space<vmem>>, vector<1x192x128xbf16>
    %1 = vector.shape_cast %0 : vector<1x192x128xbf16> to vector<192x128xbf16>
    %2 = arith.extf %1 : vector<192x128xbf16> to vector<192x128xf32>
    %c0_2 = arith.constant 0 : index
    %c0_3 = arith.constant 0 : index
    %3 = vector.load %arg3[%c0_2, %c0_3] : memref<1x128xf32, #tpu.memory_space<vmem>>, vector<1x128xf32>
    %4 = vector.broadcast %3 : vector<1x128xf32> to vector<192x128xf32>
    %5 = arith.mulf %2, %4 : vector<192x128xf32>
    %c0_4 = arith.constant 0 : index
    %c0_5 = arith.constant 0 : index
    %6 = vector.load %arg4[%c0_4, %c0_5] : memref<1x128xf32, #tpu.memory_space<vmem>>, vector<1x128xf32>
    %7 = vector.broadcast %6 : vector<1x128xf32> to vector<192x128xf32>
    %8 = arith.addf %5, %7 : vector<192x128xf32>
    %cst = arith.constant 0.000000e+00 : f32
    %9 = vector.broadcast %cst : f32 to vector<192x128xf32>
    %10 = arith.maximumf %8, %9 : vector<192x128xf32>
    %11 = vector.extract_strided_slice %10 {offsets = [0, 0], sizes = [12, 8], strides = [1, 1]} : vector<192x128xf32> to vector<12x8xf32>
    %c0_6 = arith.constant 0 : index
    %c0_7 = arith.constant 0 : index
    %c0_8 = arith.constant 0 : index
    %c0_9 = arith.constant 0 : index
    %12 = vector.load %arg5[%c0_6, %c0_7, %c0_8, %c0_9] : memref<1x12x12x8xf32, #tpu.memory_space<vmem>>, vector<1x1x12x8xf32>
    %13 = vector.shape_cast %12 : vector<1x1x12x8xf32> to vector<12x8xf32>
    %14 = vector.shape_cast %11 : vector<12x8xf32> to vector<1x1x12x8xf32>
    tpu.vector_store %arg5[%c0_6, %c0_7, %c0_8, %c0_9], %14 {strides = array<i32>} : memref<1x12x12x8xf32, #tpu.memory_space<vmem>>, vector<1x1x12x8xf32>,
    %15 = vector.extract_strided_slice %10 {offsets = [16, 0], sizes = [12, 8], strides = [1, 1]} : vector<192x128xf32> to vector<12x8xf32>
    %c0_10 = arith.constant 0 : index
    %c1 = arith.constant 1 : index
    %c0_11 = arith.constant 0 : index
    %c0_12 = arith.constant 0 : index
    %16 = vector.load %arg5[%c0_10, %c1, %c0_11, %c0_12] : memref<1x12x12x8xf32, #tpu.memory_space<vmem>>, vector<1x1x12x8xf32>
    %17 = vector.shape_cast %16 : vector<1x1x12x8xf32> to vector<12x8xf32>
    %18 = vector.shape_cast %15 : vector<12x8xf32> to vector<1x1x12x8xf32>
    tpu.vector_store %arg5[%c0_10, %c1, %c0_11, %c0_12], %18 {strides = array<i32>} : memref<1x12x12x8xf32, #tpu.memory_space<vmem>>, vector<1x1x12x8xf32>,
    %19 = vector.extract_strided_slice %10 {offsets = [32, 0], sizes = [12, 8], strides = [1, 1]} : vector<192x128xf32> to vector<12x8xf32>
    %c0_13 = arith.constant 0 : index
    %c2 = arith.constant 2 : index
    %c0_14 = arith.constant 0 : index
    %c0_15 = arith.constant 0 : index
    %20 = vector.load %arg5[%c0_13, %c2, %c0_14, %c0_15] : memref<1x12x12x8xf32, #tpu.memory_space<vmem>>, vector<1x1x12x8xf32>
    %21 = vector.shape_cast %20 : vector<1x1x12x8xf32> to vector<12x8xf32>
    %22 = vector.shape_cast %19 : vector<12x8xf32> to vector<1x1x12x8xf32>
    tpu.vector_store %arg5[%c0_13, %c2, %c0_14, %c0_15], %22 {strides = array<i32>} : memref<1x12x12x8xf32, #tpu.memory_space<vmem>>, vector<1x1x12x8xf32>,
    %23 = vector.extract_strided_slice %10 {offsets = [48, 0], sizes = [12, 8], strides = [1, 1]} : vector<192x128xf32> to vector<12x8xf32>
    %c0_16 = arith.constant 0 : index
    %c3 = arith.constant 3 : index
    %c0_17 = arith.constant 0 : index
    %c0_18 = arith.constant 0 : index
    %24 = vector.load %arg5[%c0_16, %c3, %c0_17, %c0_18] : memref<1x12x12x8xf32, #tpu.memory_space<vmem>>, vector<1x1x12x8xf32>
    %25 = vector.shape_cast %24 : vector<1x1x12x8xf32> to vector<12x8xf32>
    %26 = vector.shape_cast %23 : vector<12x8xf32> to vector<1x1x12x8xf32>
    tpu.vector_store %arg5[%c0_16, %c3, %c0_17, %c0_18], %26 {strides = array<i32>} : memref<1x12x12x8xf32, #tpu.memory_space<vmem>>, vector<1x1x12x8xf32>,
    %27 = vector.extract_strided_slice %10 {offsets = [64, 0], sizes = [12, 8], strides = [1, 1]} : vector<192x128xf32> to vector<12x8xf32>
    %c0_19 = arith.constant 0 : index
    %c4 = arith.constant 4 : index
    %c0_20 = arith.constant 0 : index
    %c0_21 = arith.constant 0 : index
    %28 = vector.load %arg5[%c0_19, %c4, %c0_20, %c0_21] : memref<1x12x12x8xf32, #tpu.memory_space<vmem>>, vector<1x1x12x8xf32>
    %29 = vector.shape_cast %28 : vector<1x1x12x8xf32> to vector<12x8xf32>
    %30 = vector.shape_cast %27 : vector<12x8xf32> to vector<1x1x12x8xf32>
    tpu.vector_store %arg5[%c0_19, %c4, %c0_20, %c0_21], %30 {strides = array<i32>} : memref<1x12x12x8xf32, #tpu.memory_space<vmem>>, vector<1x1x12x8xf32>,
    %31 = vector.extract_strided_slice %10 {offsets = [80, 0], sizes = [12, 8], strides = [1, 1]} : vector<192x128xf32> to vector<12x8xf32>
    %c0_22 = arith.constant 0 : index
    %c5 = arith.constant 5 : index
    %c0_23 = arith.constant 0 : index
    %c0_24 = arith.constant 0 : index
    %32 = vector.load %arg5[%c0_22, %c5, %c0_23, %c0_24] : memref<1x12x12x8xf32, #tpu.memory_space<vmem>>, vector<1x1x12x8xf32>
    %33 = vector.shape_cast %32 : vector<1x1x12x8xf32> to vector<12x8xf32>
    %34 = vector.shape_cast %31 : vector<12x8xf32> to vector<1x1x12x8xf32>
    tpu.vector_store %arg5[%c0_22, %c5, %c0_23, %c0_24], %34 {strides = array<i32>} : memref<1x12x12x8xf32, #tpu.memory_space<vmem>>, vector<1x1x12x8xf32>,
    %35 = vector.extract_strided_slice %10 {offsets = [96, 0], sizes = [12, 8], strides = [1, 1]} : vector<192x128xf32> to vector<12x8xf32>
    %c0_25 = arith.constant 0 : index
    %c6 = arith.constant 6 : index
    %c0_26 = arith.constant 0 : index
    %c0_27 = arith.constant 0 : index
    %36 = vector.load %arg5[%c0_25, %c6, %c0_26, %c0_27] : memref<1x12x12x8xf32, #tpu.memory_space<vmem>>, vector<1x1x12x8xf32>
    %37 = vector.shape_cast %36 : vector<1x1x12x8xf32> to vector<12x8xf32>
    %38 = vector.shape_cast %35 : vector<12x8xf32> to vector<1x1x12x8xf32>
    tpu.vector_store %arg5[%c0_25, %c6, %c0_26, %c0_27], %38 {strides = array<i32>} : memref<1x12x12x8xf32, #tpu.memory_space<vmem>>, vector<1x1x12x8xf32>,
    %39 = vector.extract_strided_slice %10 {offsets = [112, 0], sizes = [12, 8], strides = [1, 1]} : vector<192x128xf32> to vector<12x8xf32>
    %c0_28 = arith.constant 0 : index
    %c7 = arith.constant 7 : index
    %c0_29 = arith.constant 0 : index
    %c0_30 = arith.constant 0 : index
    %40 = vector.load %arg5[%c0_28, %c7, %c0_29, %c0_30] : memref<1x12x12x8xf32, #tpu.memory_space<vmem>>, vector<1x1x12x8xf32>
    %41 = vector.shape_cast %40 : vector<1x1x12x8xf32> to vector<12x8xf32>
    %42 = vector.shape_cast %39 : vector<12x8xf32> to vector<1x1x12x8xf32>
    tpu.vector_store %arg5[%c0_28, %c7, %c0_29, %c0_30], %42 {strides = array<i32>} : memref<1x12x12x8xf32, #tpu.memory_space<vmem>>, vector<1x1x12x8xf32>,
    %43 = vector.extract_strided_slice %10 {offsets = [128, 0], sizes = [12, 8], strides = [1, 1]} : vector<192x128xf32> to vector<12x8xf32>
    %c0_31 = arith.constant 0 : index
    %c8 = arith.constant 8 : index
    %c0_32 = arith.constant 0 : index
    %c0_33 = arith.constant 0 : index
    %44 = vector.load %arg5[%c0_31, %c8, %c0_32, %c0_33] : memref<1x12x12x8xf32, #tpu.memory_space<vmem>>, vector<1x1x12x8xf32>
    %45 = vector.shape_cast %44 : vector<1x1x12x8xf32> to vector<12x8xf32>
    %46 = vector.shape_cast %43 : vector<12x8xf32> to vector<1x1x12x8xf32>
    tpu.vector_store %arg5[%c0_31, %c8, %c0_32, %c0_33], %46 {strides = array<i32>} : memref<1x12x12x8xf32, #tpu.memory_space<vmem>>, vector<1x1x12x8xf32>,
    %47 = vector.extract_strided_slice %10 {offsets = [144, 0], sizes = [12, 8], strides = [1, 1]} : vector<192x128xf32> to vector<12x8xf32>
    %c0_34 = arith.constant 0 : index
    %c9 = arith.constant 9 : index
    %c0_35 = arith.constant 0 : index
    %c0_36 = arith.constant 0 : index
    %48 = vector.load %arg5[%c0_34, %c9, %c0_35, %c0_36] : memref<1x12x12x8xf32, #tpu.memory_space<vmem>>, vector<1x1x12x8xf32>
    %49 = vector.shape_cast %48 : vector<1x1x12x8xf32> to vector<12x8xf32>
    %50 = vector.shape_cast %47 : vector<12x8xf32> to vector<1x1x12x8xf32>
    tpu.vector_store %arg5[%c0_34, %c9, %c0_35, %c0_36], %50 {strides = array<i32>} : memref<1x12x12x8xf32, #tpu.memory_space<vmem>>, vector<1x1x12x8xf32>,
    %51 = vector.extract_strided_slice %10 {offsets = [160, 0], sizes = [12, 8], strides = [1, 1]} : vector<192x128xf32> to vector<12x8xf32>
    %c0_37 = arith.constant 0 : index
    %c10 = arith.constant 10 : index
    %c0_38 = arith.constant 0 : index
    %c0_39 = arith.constant 0 : index
    %52 = vector.load %arg5[%c0_37, %c10, %c0_38, %c0_39] : memref<1x12x12x8xf32, #tpu.memory_space<vmem>>, vector<1x1x12x8xf32>
    %53 = vector.shape_cast %52 : vector<1x1x12x8xf32> to vector<12x8xf32>
    %54 = vector.shape_cast %51 : vector<12x8xf32> to vector<1x1x12x8xf32>
    tpu.vector_store %arg5[%c0_37, %c10, %c0_38, %c0_39], %54 {strides = array<i32>} : memref<1x12x12x8xf32, #tpu.memory_space<vmem>>, vector<1x1x12x8xf32>,
    %55 = vector.extract_strided_slice %10 {offsets = [176, 0], sizes = [12, 8], strides = [1, 1]} : vector<192x128xf32> to vector<12x8xf32>
    %c0_40 = arith.constant 0 : index
    %c11 = arith.constant 11 : index
    %c0_41 = arith.constant 0 : index
    %c0_42 = arith.constant 0 : index
    %56 = vector.load %arg5[%c0_40, %c11, %c0_41, %c0_42] : memref<1x12x12x8xf32, #tpu.memory_space<vmem>>, vector<1x1x12x8xf32>
    %57 = vector.shape_cast %56 : vector<1x1x12x8xf32> to vector<12x8xf32>
    %58 = vector.shape_cast %55 : vector<12x8xf32> to vector<1x1x12x8xf32>
    tpu.vector_store %arg5[%c0_40, %c11, %c0_41, %c0_42], %58 {strides = array<i32>} : memref<1x12x12x8xf32, #tpu.memory_space<vmem>>, vector<1x1x12x8xf32>,
    return
  }
  func.func @transform_0(%arg0: i32, %arg1: i32) -> (i32, i32, i32) {
    %c0_i32 = arith.constant 0 : i32
    %c0_i32_0 = arith.constant 0 : i32
    return %arg0, %arg1, %c0_i32 : i32, i32, i32
  }
  func.func @transform_1(%arg0: i32, %arg1: i32) -> (i32, i32) {
    %c0_i32 = arith.constant 0 : i32
    %c0_i32_0 = arith.constant 0 : i32
    %c0_i32_1 = arith.constant 0 : i32
    return %c0_i32, %c0_i32_0 : i32, i32
  }
  func.func @transform_2(%arg0: i32, %arg1: i32) -> (i32, i32) {
    %c0_i32 = arith.constant 0 : i32
    %c0_i32_0 = arith.constant 0 : i32
    %c0_i32_1 = arith.constant 0 : i32
    return %c0_i32, %c0_i32_0 : i32, i32
  }
  func.func @transform_3(%arg0: i32, %arg1: i32) -> (i32, i32, i32, i32) {
    %c0_i32 = arith.constant 0 : i32
    %c0_i32_0 = arith.constant 0 : i32
    %c0_i32_1 = arith.constant 0 : i32
    return %arg0, %arg1, %c0_i32, %c0_i32_0 : i32, i32, i32, i32
  }
}

</mosaic_0001>

<llo_original>
// kernel: double_conv_forward.5
$region0: #{double_conv_forward.5}
  #allocation0 [shape = 'u32[]', space=smem, size = 0x4, offset = 0x4, fixed_abs, tag = 'smem constant byte address 0x4 - core index']
  #allocation1 [shape = 'u32[144,128]{1,0:T(1,128)}', space=vmem, size = 0x12000, scoped, tag = 'internal scratch']
  %s0 = inlined_call_operand.vmem [shape: bf16[2,200,128], index: 0, kind: input, shape index: {}]
  %s1 = inlined_call_operand.vmem [shape: f32[1,128], index: 1, kind: input, shape index: {}]
  %s2 = inlined_call_operand.vmem [shape: f32[1,128], index: 2, kind: input, shape index: {}]
  %s3 = inlined_call_operand.vmem [shape: f32[2,12,12,8], index: 3, kind: output, shape index: {}]
  %s4 = sld [smem:[#allocation0]]
  $region45: #{double_conv_forward.5} parent=0
    _
  %s6 = ssub.s32 1, %s4
  %s7 = scalar_select 0, %s6, %s4
  loop: start=0, step=1, limit=4
  $region2: #{double_conv_forward.5} parent=0 // loop_pre_header
    _
  $region3: #{double_conv_forward.5} parent=0 // loop_header
    %s9 = sphi 0, %s13
    %p10 = scmp.ge.s32.totalorder %s9, 4
    %s16 = sphi 0, %s28
    %s17 = sphi 0, %s24
    %s18 = sphi 0, %s16
    %s19 = sphi 0, %s17
    %s20 = sphi 0, %s18
    %s21 = sphi 0, %s19
    %s33 = sphi 0, %s35
    %s36 = sphi 0, %s33
    %s37 = sphi 0, %s36
    %s53 = sphi 0, %s37
    %s57 = sphi 0, %s57
    %s59 = sphi 0, %s57
    %s60 = sphi 0, %s59
    %s74 = sphi 0, %s60
    %s78 = sphi 0, %s78
    %s80 = sphi 0, %s78
    %s81 = sphi 0, %s80
    %s95 = sphi 0, %s81
    %s103 = sphi 0, %s105
    %s106 = sphi 0, %s103
    %s107 = sphi 0, %s106
    %s123 = sphi 0, %s107
  $region4: #{double_conv_forward.5} parent=0 // loop_header_branch
    %12 = sbr.rel (%p10) target = $region8
  $region5: #{double_conv_forward.5} parent=0 // loop_body
    %s14 = ssub.s32 %s9, 1
    %s15 = ssub.s32 %s9, 2
    %s22 = sadd.s32 1, %s17
    %p23 = scmp.ge.s32.totalorder %s22, 1
    %s24 = scalar_select %p23, 0, %s22
    %s25 = sadd.s32 1, %s16
    %s26 = scalar_select %p23, %s25, %s16
    %p27 = scmp.ge.s32.totalorder %s26, 2
    %s28 = scalar_select %p27, 0, %s26
    %s29 = ssub.s32 %s16, %s28
    %s30 = ssub.s32 %s17, %s24
    %s31 = sor.u32 %s29, %s30
    %p32 = scmp.eq.s32.totalorder %s31, 0
    %s34 = sadd.s32 %s33, 1
    %s35 = scalar_select %p32, %s33, %s34
    %p38 = pneg %p32
    %p39 = scmp.eq.s32.totalorder %s9, 1
    %p40 = por %p38, %p39
    %p41 = scmp.ne.s32.totalorder %s33, %s36
    %p42 = scmp.eq.s32.totalorder %s9, 0
    %p43 = por %p41, %p42
    %p44 = scmp.ne.s32.totalorder %s33, %s36
    %p45 = scmp.eq.s32.totalorder %s14, 1
    %p46 = por %p44, %p45
    %p47 = scmp.ne.s32.totalorder %s36, %s37
    %p48 = scmp.eq.s32.totalorder %s14, 0
    %p49 = por %p47, %p48
    %p50 = scmp.ne.s32.totalorder %s36, %s37
    %p51 = scmp.eq.s32.totalorder %s15, 1
    %p52 = por %p50, %p51
    %p54 = scmp.ne.s32.totalorder %s37, %s53
    %p55 = scmp.eq.s32.totalorder %s15, 0
    %p56 = por %p54, %p55
    %s58 = sadd.s32 %s57, 1
    %p61 = scmp.eq.s32.totalorder %s9, 1
    %p62 = scmp.ne.s32.totalorder %s57, %s59
    %p63 = scmp.eq.s32.totalorder %s9, 0
    %p64 = por %p62, %p63
    %p65 = scmp.ne.s32.totalorder %s57, %s59
    %p66 = scmp.eq.s32.totalorder %s14, 1
    %p67 = por %p65, %p66
    %p68 = scmp.ne.s32.totalorder %s59, %s60
    %p69 = scmp.eq.s32.totalorder %s14, 0
    %p70 = por %p68, %p69
    %p71 = scmp.ne.s32.totalorder %s59, %s60
    %p72 = scmp.eq.s32.totalorder %s15, 1
    %p73 = por %p71, %p72
    %p75 = scmp.ne.s32.totalorder %s60, %s74
    %p76 = scmp.eq.s32.totalorder %s15, 0
    %p77 = por %p75, %p76
    %s79 = sadd.s32 %s78, 1
    %p82 = scmp.eq.s32.totalorder %s9, 1
    %p83 = scmp.ne.s32.totalorder %s78, %s80
    %p84 = scmp.eq.s32.totalorder %s9, 0
    %p85 = por %p83, %p84
    %p86 = scmp.ne.s32.totalorder %s78, %s80
    %p87 = scmp.eq.s32.totalorder %s14, 1
    %p88 = por %p86, %p87
    %p89 = scmp.ne.s32.totalorder %s80, %s81
    %p90 = scmp.eq.s32.totalorder %s14, 0
    %p91 = por %p89, %p90
    %p92 = scmp.ne.s32.totalorder %s80, %s81
    %p93 = scmp.eq.s32.totalorder %s15, 1
    %p94 = por %p92, %p93
    %p96 = scmp.ne.s32.totalorder %s81, %s95
    %p97 = scmp.eq.s32.totalorder %s15, 0
    %p98 = por %p96, %p97
    %s99 = ssub.s32 %s16, %s28
    %s100 = ssub.s32 %s17, %s24
    %s101 = sor.u32 %s99, %s100
    %p102 = scmp.eq.s32.totalorder %s101, 0
    %s104 = sadd.s32 %s103, 1
    %s105 = scalar_select %p102, %s103, %s104
    %p108 = pneg %p102
    %p109 = scmp.eq.s32.totalorder %s9, 1
    %p110 = por %p108, %p109
    %p111 = scmp.ne.s32.totalorder %s103, %s106
    %p112 = scmp.eq.s32.totalorder %s9, 0
    %p113 = por %p111, %p112
    %p114 = scmp.ne.s32.totalorder %s103, %s106
    %p115 = scmp.eq.s32.totalorder %s14, 1
    %p116 = por %p114, %p115
    %p117 = scmp.ne.s32.totalorder %s106, %s107
    %p118 = scmp.eq.s32.totalorder %s14, 0
    %p119 = por %p117, %p118
    %p120 = scmp.ne.s32.totalorder %s106, %s107
    %p121 = scmp.eq.s32.totalorder %s15, 1
    %p122 = por %p120, %p121
    %p124 = scmp.ne.s32.totalorder %s107, %s123
    %p125 = scmp.eq.s32.totalorder %s15, 0
    %p126 = por %p124, %p125
    %p127 = scmp.le.s32.totalorder 1, %s9
    %p128 = scmp.lt.s32.totalorder %s9, 3
    %p129 = pnand %p127, %p128
    %p130 = pneg %p129
    // Predicated region
    $region9: #{double_conv_forward.5} parent=5 // pred_check
      _
    $region10: #{double_conv_forward.5} parent=5 // pred_check_branch
      %132 = sbr.rel (%p129) target = $region12
    $region11: #{double_conv_forward.5} parent=5 // pred_region
      %s133 = ssub.s32 %s9, 1
      // Predicated region
      $region13: #{double_conv_forward.5} parent=11 // pred_check
        %p134 = pneg %p70
      $region14: #{double_conv_forward.5} parent=11 // pred_check_branch
        %136 = sbr.rel (%p134) target = $region16
      $region15: #{double_conv_forward.5} parent=11 // pred_region
        _
      $region16: #{double_conv_forward.5} parent=11 // pred_fallthru
        _
      // Predicated region
      $region17: #{double_conv_forward.5} parent=11 // pred_check
        %p137 = pneg %p91
      $region18: #{double_conv_forward.5} parent=11 // pred_check_branch
        %139 = sbr.rel (%p137) target = $region20
      $region19: #{double_conv_forward.5} parent=11 // pred_region
        _
      $region20: #{double_conv_forward.5} parent=11 // pred_fallthru
        _
    $region12: #{double_conv_forward.5} parent=5 // pred_fallthru
      _
    %p140 = scmp.lt.s32.totalorder %s9, 2
    // Predicated region
    $region21: #{double_conv_forward.5} parent=5 // pred_check
      %p141 = pneg %p140
    $region22: #{double_conv_forward.5} parent=5 // pred_check_branch
      %143 = sbr.rel (%p141) target = $region24
    $region23: #{double_conv_forward.5} parent=5 // pred_region
      // Predicated region
      $region25: #{double_conv_forward.5} parent=23 // pred_check
        %p144 = pneg %p43
      $region26: #{double_conv_forward.5} parent=23 // pred_check_branch
        %146 = sbr.rel (%p144) target = $region28
      $region27: #{double_conv_forward.5} parent=23 // pred_region
        %s147 = smul.u32 24, %s17
        %s148 = ssub.s32 25, %s147
        %p149 = scmp.lt.s32.totalorder %s148, 24
        %s150 = scalar_select %p149, %s148, 24
        %s151 = smul.u32 64, %s150
        %p152 = scmp.lt.s32.totalorder %s16, 1
        %s153 = scalar_select %p152, %s16, 1
        %p154 = scmp.lt.s32.totalorder %s147, 24
        %s155 = scalar_select %p154, %s147, 24
        %s156 = smul.addr %s153, 25
        %s157 = sadd.s32 %s155, %s156
        %s158 = smul.addr %s157, 4
        %s159 = scalar_lea.vmem %s0, %s158
        %s160 = smul.u32 24, %s17
        %s161 = ssub.s32 25, %s160
        %p162 = scmp.lt.s32.totalorder %s161, 24
        %s163 = scalar_select %p162, %s161, 24
        %s164 = smul.u32 64, %s163
      $region28: #{double_conv_forward.5} parent=23 // pred_fallthru
        _
    $region24: #{double_conv_forward.5} parent=5 // pred_fallthru
      _
    %p165 = scmp.le.s32.totalorder 1, %s9
    %p166 = scmp.lt.s32.totalorder %s9, 3
    %p167 = pnand %p165, %p166
    %p168 = pneg %p167
    // Predicated region
    $region29: #{double_conv_forward.5} parent=5 // pred_check
      _
    $region30: #{double_conv_forward.5} parent=5 // pred_check_branch
      %170 = sbr.rel (%p167) target = $region32
    $region31: #{double_conv_forward.5} parent=5 // pred_region
      %s171 = ssub.s32 %s9, 1
      %s172 = smul.u32 24, %s19
      %s173 = ssub.s32 25, %s172
      %p174 = scmp.lt.s32.totalorder %s173, 24
      %s175 = scalar_select %p174, %s173, 24
      %s176 = smul.u32 64, %s175
      %p177 = scmp.lt.s32.totalorder %s18, 1
      %s178 = scalar_select %p177, %s18, 1
      %p179 = scmp.lt.s32.totalorder %s172, 24
      %s180 = scalar_select %p179, %s172, 24
      %s181 = smul.addr %s178, 25
      %s182 = sadd.s32 %s180, %s181
      %s183 = smul.addr %s182, 4
      %s184 = scalar_lea.vmem %s0, %s183
      %p185 = pneg %p49
      %p186 = pneg %p46
      %p187 = pneg %p70
      %p188 = pneg %p67
      %p189 = pneg %p91
      %p190 = pneg %p88
      %p191 = pneg %p119
      %p192 = pneg %p116
      %s193 = smul.u32 12, %s19
      %p194 = scmp.lt.s32.totalorder %s18, 1
      %s195 = scalar_select %p194, %s18, 1
      %p196 = scmp.lt.s32.totalorder %s193, 11
      %s197 = scalar_select %p196, %s193, 11
      %s198 = smul.addr %s197, 2
      %s199 = smul.addr %s195, 24
      %s200 = sadd.s32 %s198, %s199
      %s201 = smul.addr %s200, 8
      %s202 = scalar_lea.vmem %s3, %s201
      %s203 = smul.u32 24, %s19
      %s204 = ssub.s32 25, %s203
      %p205 = scmp.lt.s32.totalorder %s204, 24
      %s206 = scalar_select %p205, %s204, 24
      %s207 = smul.u32 64, %s206
      %p208 = scmp.lt.s32.totalorder %s18, 1
      %s209 = scalar_select %p208, %s18, 1
      %p210 = scmp.lt.s32.totalorder %s203, 24
      %s211 = scalar_select %p210, %s203, 24
      %s212 = smul.addr %s209, 25
      %s213 = sadd.s32 %s211, %s212
      %s214 = smul.addr %s213, 4
      %s215 = scalar_lea.vmem %s0, %s214
      %s216 = smul.u32 24, %s19
      %s217 = ssub.s32 25, %s216
      %p218 = scmp.lt.s32.totalorder %s217, 24
      %s219 = scalar_select %p218, %s217, 24
      %s220 = smul.u32 64, %s219
      %s221 = smul.u32 12, %s19
      %p222 = scmp.lt.s32.totalorder %s18, 1
      %s223 = scalar_select %p222, %s18, 1
      %p224 = scmp.lt.s32.totalorder %s221, 11
      %s225 = scalar_select %p224, %s221, 11
      %s226 = smul.addr %s225, 2
      %s227 = smul.addr %s223, 24
      %s228 = sadd.s32 %s226, %s227
      %s229 = smul.addr %s228, 8
      %s230 = scalar_lea.vmem %s3, %s229
      %s231 = smul.u32 12, %s19
      %v232 = vld [vmem:[%s215] sm:$0xf]
      %v233 = vld [vmem:[%s215 + $0x4] sm:$0xf]
      %v234 = vld [vmem:[%s215 + $0x8] sm:$0xf]
      %v235 = vld [vmem:[%s215 + $0xc] sm:$0xf]
      %v236 = vld [vmem:[%s215 + $0x10] sm:$0xf]
      %v237 = vld [vmem:[%s215 + $0x14] sm:$0xf]
      %v238 = vld [vmem:[%s215 + $0x18] sm:$0xf]
      %v239 = vld [vmem:[%s215 + $0x1c] sm:$0xf]
      %v240 = vld [vmem:[%s215 + $0x20] sm:$0xf]
      %v241 = vld [vmem:[%s215 + $0x24] sm:$0xf]
      %v242 = vld [vmem:[%s215 + $0x28] sm:$0xf]
      %v243 = vld [vmem:[%s215 + $0x2c] sm:$0xf]
      %v244 = vld [vmem:[%s215 + $0x30] sm:$0xf]
      %v245 = vld [vmem:[%s215 + $0x34] sm:$0xf]
      %v246 = vld [vmem:[%s215 + $0x38] sm:$0xf]
      %v247 = vld [vmem:[%s215 + $0x3c] sm:$0xf]
      %v248 = vld [vmem:[%s215 + $0x40] sm:$0xf]
      %v249 = vld [vmem:[%s215 + $0x44] sm:$0xf]
      %v250 = vld [vmem:[%s215 + $0x48] sm:$0xf]
      %v251 = vld [vmem:[%s215 + $0x4c] sm:$0xf]
      %v252 = vld [vmem:[%s215 + $0x50] sm:$0xf]
      %v253 = vld [vmem:[%s215 + $0x54] sm:$0xf]
      %v254 = vld [vmem:[%s215 + $0x58] sm:$0xf]
      %v255 = vld [vmem:[%s215 + $0x5c] sm:$0xf]
      %v256 = vunpack.c.l.bf16 %v232
      %v257 = vunpack.c.l.bf16 %v233
      %v258 = vunpack.c.l.bf16 %v234
      %v259 = vunpack.c.l.bf16 %v235
      %v260 = vunpack.c.l.bf16 %v236
      %v261 = vunpack.c.l.bf16 %v237
      %v262 = vunpack.c.l.bf16 %v238
      %v263 = vunpack.c.l.bf16 %v239
      %v264 = vunpack.c.l.bf16 %v240
      %v265 = vunpack.c.l.bf16 %v241
      %v266 = vunpack.c.l.bf16 %v242
      %v267 = vunpack.c.l.bf16 %v243
      %v268 = vunpack.c.l.bf16 %v244
      %v269 = vunpack.c.l.bf16 %v245
      %v270 = vunpack.c.l.bf16 %v246
      %v271 = vunpack.c.l.bf16 %v247
      %v272 = vunpack.c.l.bf16 %v248
      %v273 = vunpack.c.l.bf16 %v249
      %v274 = vunpack.c.l.bf16 %v250
      %v275 = vunpack.c.l.bf16 %v251
      %v276 = vunpack.c.l.bf16 %v252
      %v277 = vunpack.c.l.bf16 %v253
      %v278 = vunpack.c.l.bf16 %v254
      %v279 = vunpack.c.l.bf16 %v255
      %v280 = vld [vmem:[%s1] sm:$0x1]
      %v282 = vlaneseq
      %v283 = vshrl.u32 %v282, 7
      %v284 = vsub.s32 0, %v283
      %v285 = vrot.slane %v280, %v284
      %v287 = vmul.f32 %v256, %v285
      %v288 = vmul.f32 %v257, %v285
      %v289 = vmul.f32 %v258, %v285
      %v290 = vmul.f32 %v259, %v285
      %v291 = vmul.f32 %v260, %v285
      %v292 = vmul.f32 %v261, %v285
      %v293 = vmul.f32 %v262, %v285
      %v294 = vmul.f32 %v263, %v285
      %v295 = vmul.f32 %v264, %v285
      %v296 = vmul.f32 %v265, %v285
      %v297 = vmul.f32 %v266, %v285
      %v298 = vmul.f32 %v267, %v285
      %v299 = vmul.f32 %v268, %v285
      %v300 = vmul.f32 %v269, %v285
      %v301 = vmul.f32 %v270, %v285
      %v302 = vmul.f32 %v271, %v285
      %v303 = vmul.f32 %v272, %v285
      %v304 = vmul.f32 %v273, %v285
      %v305 = vmul.f32 %v274, %v285
      %v306 = vmul.f32 %v275, %v285
      %v307 = vmul.f32 %v276, %v285
      %v308 = vmul.f32 %v277, %v285
      %v309 = vmul.f32 %v278, %v285
      %v310 = vmul.f32 %v279, %v285
      %v311 = vld [vmem:[%s2] sm:$0x1]
      %v313 = vlaneseq
      %v314 = vshrl.u32 %v313, 7
      %v315 = vsub.s32 0, %v314
      %v316 = vrot.slane %v311, %v315
      %v318 = vadd.f32 %v287, %v316
      %v319 = vadd.f32 %v288, %v316
      %v320 = vadd.f32 %v289, %v316
      %v321 = vadd.f32 %v290, %v316
      %v322 = vadd.f32 %v291, %v316
      %v323 = vadd.f32 %v292, %v316
      %v324 = vadd.f32 %v293, %v316
      %v325 = vadd.f32 %v294, %v316
      %v326 = vadd.f32 %v295, %v316
      %v327 = vadd.f32 %v296, %v316
      %v328 = vadd.f32 %v297, %v316
      %v329 = vadd.f32 %v298, %v316
      %v330 = vadd.f32 %v299, %v316
      %v331 = vadd.f32 %v300, %v316
      %v332 = vadd.f32 %v301, %v316
      %v333 = vadd.f32 %v302, %v316
      %v334 = vadd.f32 %v303, %v316
      %v335 = vadd.f32 %v304, %v316
      %v336 = vadd.f32 %v305, %v316
      %v337 = vadd.f32 %v306, %v316
      %v338 = vadd.f32 %v307, %v316
      %v339 = vadd.f32 %v308, %v316
      %v340 = vadd.f32 %v309, %v316
      %v341 = vadd.f32 %v310, %v316
      %v342 = vmax.f32 %v318, 0.0
      %v343 = vmax.f32 %v319, 0.0
      %v344 = vmax.f32 %v320, 0.0
      %v345 = vmax.f32 %v321, 0.0
      %v346 = vmax.f32 %v322, 0.0
      %v347 = vmax.f32 %v323, 0.0
      %v348 = vmax.f32 %v324, 0.0
      %v349 = vmax.f32 %v325, 0.0
      %v350 = vmax.f32 %v326, 0.0
      %v351 = vmax.f32 %v327, 0.0
      %v352 = vmax.f32 %v328, 0.0
      %v353 = vmax.f32 %v329, 0.0
      %v354 = vmax.f32 %v330, 0.0
      %v355 = vmax.f32 %v331, 0.0
      %v356 = vmax.f32 %v332, 0.0
      %v357 = vmax.f32 %v333, 0.0
      %v358 = vmax.f32 %v334, 0.0
      %v359 = vmax.f32 %v335, 0.0
      %v360 = vmax.f32 %v336, 0.0
      %v361 = vmax.f32 %v337, 0.0
      %v362 = vmax.f32 %v338, 0.0
      %v363 = vmax.f32 %v339, 0.0
      %v364 = vmax.f32 %v340, 0.0
      %v365 = vmax.f32 %v341, 0.0
      %vm366 = vcmask 64512
      %367 = vst.msk [vmem:[%s230] sm:$0xff] %vm366, %v342
      %vm368 = vcmask 60416
      %369 = vst.msk [vmem:[%s230 + $0x8] sm:$0xf] %vm368, %v343
      %s370 = scalar_lea.vmem %s230, 16
      %371 = vst.msk [vmem:[%s370] sm:$0xff] %vm366, %v344
      %372 = vst.msk [vmem:[%s370 + $0x8] sm:$0xf] %vm368, %v345
      %s373 = scalar_lea.vmem %s230, 32
      %374 = vst.msk [vmem:[%s373] sm:$0xff] %vm366, %v346
      %375 = vst.msk [vmem:[%s373 + $0x8] sm:$0xf] %vm368, %v347
      %s376 = scalar_lea.vmem %s230, 48
      %377 = vst.msk [vmem:[%s376] sm:$0xff] %vm366, %v348
      %378 = vst.msk [vmem:[%s376 + $0x8] sm:$0xf] %vm368, %v349
      %s379 = scalar_lea.vmem %s230, 64
      %380 = vst.msk [vmem:[%s379] sm:$0xff] %vm366, %v350
      %381 = vst.msk [vmem:[%s379 + $0x8] sm:$0xf] %vm368, %v351
      %s382 = scalar_lea.vmem %s230, 80
      %383 = vst.msk [vmem:[%s382] sm:$0xff] %vm366, %v352
      %384 = vst.msk [vmem:[%s382 + $0x8] sm:$0xf] %vm368, %v353
      %s385 = scalar_lea.vmem %s230, 96
      %386 = vst.msk [vmem:[%s385] sm:$0xff] %vm366, %v354
      %387 = vst.msk [vmem:[%s385 + $0x8] sm:$0xf] %vm368, %v355
      %s388 = scalar_lea.vmem %s230, 112
      %389 = vst.msk [vmem:[%s388] sm:$0xff] %vm366, %v356
      %390 = vst.msk [vmem:[%s388 + $0x8] sm:$0xf] %vm368, %v357
      %s391 = scalar_lea.vmem %s230, 128
      %392 = vst.msk [vmem:[%s391] sm:$0xff] %vm366, %v358
      %393 = vst.msk [vmem:[%s391 + $0x8] sm:$0xf] %vm368, %v359
      %s394 = scalar_lea.vmem %s230, 144
      %395 = vst.msk [vmem:[%s394] sm:$0xff] %vm366, %v360
      %396 = vst.msk [vmem:[%s394 + $0x8] sm:$0xf] %vm368, %v361
      %s397 = scalar_lea.vmem %s230, 160
      %398 = vst.msk [vmem:[%s397] sm:$0xff] %vm366, %v362
      %399 = vst.msk [vmem:[%s397 + $0x8] sm:$0xf] %vm368, %v363
      %s400 = scalar_lea.vmem %s230, 176
      %401 = vst.msk [vmem:[%s400] sm:$0xff] %vm366, %v364
      %402 = vst.msk [vmem:[%s400 + $0x8] sm:$0xf] %vm368, %v365
      %s403 = smul.u32 12, %s19
      %p404 = scmp.lt.s32.totalorder %s18, 1
      %s405 = scalar_select %p404, %s18, 1
      %p406 = scmp.lt.s32.totalorder %s403, 11
      %s407 = scalar_select %p406, %s403, 11
      %s408 = smul.addr %s407, 2
      %s409 = smul.addr %s405, 24
      %s410 = sadd.s32 %s408, %s409
      %s411 = smul.addr %s410, 8
      %s412 = scalar_lea.vmem %s3, %s411
      // Predicated region
      $region33: #{double_conv_forward.5} parent=31 // pred_check
        %p413 = pneg %p116
      $region34: #{double_conv_forward.5} parent=31 // pred_check_branch
        %415 = sbr.rel (%p413) target = $region36
      $region35: #{double_conv_forward.5} parent=31 // pred_region
        %s416 = smul.u32 12, %s19
      $region36: #{double_conv_forward.5} parent=31 // pred_fallthru
        _
    $region32: #{double_conv_forward.5} parent=5 // pred_fallthru
      _
    %p417 = scmp.le.s32.totalorder 2, %s9
    // Predicated region
    $region37: #{double_conv_forward.5} parent=5 // pred_check
      %p418 = pneg %p417
    $region38: #{double_conv_forward.5} parent=5 // pred_check_branch
      %420 = sbr.rel (%p418) target = $region40
    $region39: #{double_conv_forward.5} parent=5 // pred_region
      %s421 = ssub.s32 %s9, 2
      // Predicated region
      $region41: #{double_conv_forward.5} parent=39 // pred_check
        %p422 = pneg %p122
      $region42: #{double_conv_forward.5} parent=39 // pred_check_branch
        %424 = sbr.rel (%p422) target = $region44
      $region43: #{double_conv_forward.5} parent=39 // pred_region
        %s425 = smul.u32 12, %s21
        %p426 = scmp.lt.s32.totalorder %s20, 1
        %s427 = scalar_select %p426, %s20, 1
        %p428 = scmp.lt.s32.totalorder %s425, 11
        %s429 = scalar_select %p428, %s425, 11
        %s430 = smul.addr %s429, 2
        %s431 = smul.addr %s427, 24
        %s432 = sadd.s32 %s430, %s431
        %s433 = smul.addr %s432, 8
        %s434 = scalar_lea.vmem %s3, %s433
      $region44: #{double_conv_forward.5} parent=39 // pred_fallthru
        _
    $region40: #{double_conv_forward.5} parent=5 // pred_fallthru
      _
  $region6: #{double_conv_forward.5} parent=0 // loop_footer
    %s13 = sadd.s32 1, %s9
  $region7: #{double_conv_forward.5} parent=0 // loop_footer_branch
    %8 = sbr.rel target = $region3
  $region8: #{double_conv_forward.5} parent=0 // loop_exit
    _

// kernel: double_conv_forward.3
$region0: #{double_conv_forward.3}
  #allocation0 [shape = 'u32[]', space=smem, size = 0x4, offset = 0x4, fixed_abs, tag = 'smem constant byte address 0x4 - core index']
  #allocation1 [shape = 'u32[144,128]{1,0:T(1,128)}', space=vmem, size = 0x12000, scoped, tag = 'internal scratch']
  #allocation2 [shape = 'bf16[280,128]{1,0:T(8,128)(2,1)}', space=vmem, size = 0x11800, scoped, tag = 'scratch operand']
  %s0 = inlined_call_operand.vmem [shape: bf16[2,280,128], index: 0, kind: input, shape index: {}, may-alias: {0,1}]
  %s1 = inlined_call_operand.vmem [shape: bf16[2,280,128], index: 1, kind: input, shape index: {}, may-alias: {0,1}]
  %s2 = inlined_call_operand.vmem [shape: bf16[9,128,128], index: 2, kind: input, shape index: {}]
  %s3 = inlined_call_operand.vmem [shape: f32[1,128], index: 3, kind: input, shape index: {}]
  %s4 = inlined_call_operand.vmem [shape: f32[1,128], index: 4, kind: input, shape index: {}]
  %s5 = inlined_call_operand.vmem [shape: f32[240,1], index: 5, kind: input, shape index: {}]
  %s6 = inlined_call_operand.vmem [shape: bf16[2,240,128], index: 6, kind: output, shape index: {0}]
  %s7 = inlined_call_operand.vmem [shape: f32[2,1,8,128], index: 7, kind: output, shape index: {1}]
  %8 = xla_tuple %s6, %s7
  %s9 = sld [smem:[#allocation0]]
  $region69: #{double_conv_forward.3} parent=0
    _
  %s11 = ssub.s32 1, %s9
  %s12 = scalar_select 0, %s11, %s9
  loop: start=0, step=1, limit=4
  $region2: #{double_conv_forward.3} parent=0 // loop_pre_header
    _
  $region3: #{double_conv_forward.3} parent=0 // loop_header
    %s14 = sphi 0, %s18
    %p15 = scmp.ge.s32.totalorder %s14, 4
    %s21 = sphi 0, %s40
    %s22 = sphi 0, %s36
    %s23 = sphi 0, %s32
    %s24 = sphi 0, %s21
    %s25 = sphi 0, %s22
    %s26 = sphi 0, %s23
    %s27 = sphi 0, %s24
    %s28 = sphi 0, %s25
    %s29 = sphi 0, %s26
    %s45 = sphi 0, %s47
    %s48 = sphi 0, %s45
    %s49 = sphi 0, %s48
    %s65 = sphi 0, %s49
    %s77 = sphi 0, %s79
    %s80 = sphi 0, %s77
    %s81 = sphi 0, %s80
    %s97 = sphi 0, %s81
    %s101 = sphi 0, %s101
    %s103 = sphi 0, %s101
    %s104 = sphi 0, %s103
    %s118 = sphi 0, %s104
    %s122 = sphi 0, %s122
    %s124 = sphi 0, %s122
    %s125 = sphi 0, %s124
    %s139 = sphi 0, %s125
    %s143 = sphi 0, %s143
    %s145 = sphi 0, %s143
    %s146 = sphi 0, %s145
    %s160 = sphi 0, %s146
    %s166 = sphi 0, %s168
    %s169 = sphi 0, %s166
    %s170 = sphi 0, %s169
    %s186 = sphi 0, %s170
    %s196 = sphi 0, %s198
    %s199 = sphi 0, %s196
    %s200 = sphi 0, %s199
    %s216 = sphi 0, %s200
    %s226 = sphi 0, %s228
    %s229 = sphi 0, %s226
    %s230 = sphi 0, %s229
    %s246 = sphi 0, %s230
  $region4: #{double_conv_forward.3} parent=0 // loop_header_branch
    %17 = sbr.rel (%p15) target = $region8
  $region5: #{double_conv_forward.3} parent=0 // loop_body
    %s19 = ssub.s32 %s14, 1
    %s20 = ssub.s32 %s14, 2
    %s30 = sadd.s32 1, %s23
    %p31 = scmp.ge.s32.totalorder %s30, 1
    %s32 = scalar_select %p31, 0, %s30
    %s33 = sadd.s32 1, %s22
    %s34 = scalar_select %p31, %s33, %s22
    %p35 = scmp.ge.s32.totalorder %s34, 1
    %s36 = scalar_select %p35, 0, %s34
    %s37 = sadd.s32 1, %s21
    %s38 = scalar_select %p35, %s37, %s21
    %p39 = scmp.ge.s32.totalorder %s38, 2
    %s40 = scalar_select %p39, 0, %s38
    %s41 = ssub.s32 %s21, %s40
    %s42 = ssub.s32 %s22, %s36
    %s43 = sor.u32 %s41, %s42
    %p44 = scmp.eq.s32.totalorder %s43, 0
    %s46 = sadd.s32 %s45, 1
    %s47 = scalar_select %p44, %s45, %s46
    %p50 = pneg %p44
    %p51 = scmp.eq.s32.totalorder %s14, 1
    %p52 = por %p50, %p51
    %p53 = scmp.ne.s32.totalorder %s45, %s48
    %p54 = scmp.eq.s32.totalorder %s14, 0
    %p55 = por %p53, %p54
    %p56 = scmp.ne.s32.totalorder %s45, %s48
    %p57 = scmp.eq.s32.totalorder %s19, 1
    %p58 = por %p56, %p57
    %p59 = scmp.ne.s32.totalorder %s48, %s49
    %p60 = scmp.eq.s32.totalorder %s19, 0
    %p61 = por %p59, %p60
    %p62 = scmp.ne.s32.totalorder %s48, %s49
    %p63 = scmp.eq.s32.totalorder %s20, 1
    %p64 = por %p62, %p63
    %p66 = scmp.ne.s32.totalorder %s49, %s65
    %p67 = scmp.eq.s32.totalorder %s20, 0
    %p68 = por %p66, %p67
    %s69 = sadd.s32 %s22, 1
    %s70 = smul.u32 %s69, 6
    %s71 = sadd.s32 %s36, 1
    %s72 = smul.u32 %s71, 6
    %s73 = ssub.s32 %s21, %s40
    %s74 = ssub.s32 %s70, %s72
    %s75 = sor.u32 %s73, %s74
    %p76 = scmp.eq.s32.totalorder %s75, 0
    %s78 = sadd.s32 %s77, 1
    %s79 = scalar_select %p76, %s77, %s78
    %p82 = pneg %p76
    %p83 = scmp.eq.s32.totalorder %s14, 1
    %p84 = por %p82, %p83
    %p85 = scmp.ne.s32.totalorder %s77, %s80
    %p86 = scmp.eq.s32.totalorder %s14, 0
    %p87 = por %p85, %p86
    %p88 = scmp.ne.s32.totalorder %s77, %s80
    %p89 = scmp.eq.s32.totalorder %s19, 1
    %p90 = por %p88, %p89
    %p91 = scmp.ne.s32.totalorder %s80, %s81
    %p92 = scmp.eq.s32.totalorder %s19, 0
    %p93 = por %p91, %p92
    %p94 = scmp.ne.s32.totalorder %s80, %s81
    %p95 = scmp.eq.s32.totalorder %s20, 1
    %p96 = por %p94, %p95
    %p98 = scmp.ne.s32.totalorder %s81, %s97
    %p99 = scmp.eq.s32.totalorder %s20, 0
    %p100 = por %p98, %p99
    %s102 = sadd.s32 %s101, 1
    %p105 = scmp.eq.s32.totalorder %s14, 1
    %p106 = scmp.ne.s32.totalorder %s101, %s103
    %p107 = scmp.eq.s32.totalorder %s14, 0
    %p108 = por %p106, %p107
    %p109 = scmp.ne.s32.totalorder %s101, %s103
    %p110 = scmp.eq.s32.totalorder %s19, 1
    %p111 = por %p109, %p110
    %p112 = scmp.ne.s32.totalorder %s103, %s104
    %p113 = scmp.eq.s32.totalorder %s19, 0
    %p114 = por %p112, %p113
    %p115 = scmp.ne.s32.totalorder %s103, %s104
    %p116 = scmp.eq.s32.totalorder %s20, 1
    %p117 = por %p115, %p116
    %p119 = scmp.ne.s32.totalorder %s104, %s118
    %p120 = scmp.eq.s32.totalorder %s20, 0
    %p121 = por %p119, %p120
    %s123 = sadd.s32 %s122, 1
    %p126 = scmp.eq.s32.totalorder %s14, 1
    %p127 = scmp.ne.s32.totalorder %s122, %s124
    %p128 = scmp.eq.s32.totalorder %s14, 0
    %p129 = por %p127, %p128
    %p130 = scmp.ne.s32.totalorder %s122, %s124
    %p131 = scmp.eq.s32.totalorder %s19, 1
    %p132 = por %p130, %p131
    %p133 = scmp.ne.s32.totalorder %s124, %s125
    %p134 = scmp.eq.s32.totalorder %s19, 0
    %p135 = por %p133, %p134
    %p136 = scmp.ne.s32.totalorder %s124, %s125
    %p137 = scmp.eq.s32.totalorder %s20, 1
    %p138 = por %p136, %p137
    %p140 = scmp.ne.s32.totalorder %s125, %s139
    %p141 = scmp.eq.s32.totalorder %s20, 0
    %p142 = por %p140, %p141
    %s144 = sadd.s32 %s143, 1
    %p147 = scmp.eq.s32.totalorder %s14, 1
    %p148 = scmp.ne.s32.totalorder %s143, %s145
    %p149 = scmp.eq.s32.totalorder %s14, 0
    %p150 = por %p148, %p149
    %p151 = scmp.ne.s32.totalorder %s143, %s145
    %p152 = scmp.eq.s32.totalorder %s19, 1
    %p153 = por %p151, %p152
    %p154 = scmp.ne.s32.totalorder %s145, %s146
    %p155 = scmp.eq.s32.totalorder %s19, 0
    %p156 = por %p154, %p155
    %p157 = scmp.ne.s32.totalorder %s145, %s146
    %p158 = scmp.eq.s32.totalorder %s20, 1
    %p159 = por %p157, %p158
    %p161 = scmp.ne.s32.totalorder %s146, %s160
    %p162 = scmp.eq.s32.totalorder %s20, 0
    %p163 = por %p161, %p162
    %s164 = ssub.s32 %s22, %s36
    %p165 = scmp.eq.s32.totalorder %s164, 0
    %s167 = sadd.s32 %s166, 1
    %s168 = scalar_select %p165, %s166, %s167
    %p171 = pneg %p165
    %p172 = scmp.eq.s32.totalorder %s14, 1
    %p173 = por %p171, %p172
    %p174 = scmp.ne.s32.totalorder %s166, %s169
    %p175 = scmp.eq.s32.totalorder %s14, 0
    %p176 = por %p174, %p175
    %p177 = scmp.ne.s32.totalorder %s166, %s169
    %p178 = scmp.eq.s32.totalorder %s19, 1
    %p179 = por %p177, %p178
    %p180 = scmp.ne.s32.totalorder %s169, %s170
    %p181 = scmp.eq.s32.totalorder %s19, 0
    %p182 = por %p180, %p181
    %p183 = scmp.ne.s32.totalorder %s169, %s170
    %p184 = scmp.eq.s32.totalorder %s20, 1
    %p185 = por %p183, %p184
    %p187 = scmp.ne.s32.totalorder %s170, %s186
    %p188 = scmp.eq.s32.totalorder %s20, 0
    %p189 = por %p187, %p188
    %s190 = ssub.s32 %s21, %s40
    %s191 = ssub.s32 %s22, %s36
    %s192 = sor.u32 %s190, %s191
    %s193 = ssub.s32 %s23, %s32
    %s194 = sor.u32 %s192, %s193
    %p195 = scmp.eq.s32.totalorder %s194, 0
    %s197 = sadd.s32 %s196, 1
    %s198 = scalar_select %p195, %s196, %s197
    %p201 = pneg %p195
    %p202 = scmp.eq.s32.totalorder %s14, 1
    %p203 = por %p201, %p202
    %p204 = scmp.ne.s32.totalorder %s196, %s199
    %p205 = scmp.eq.s32.totalorder %s14, 0
    %p206 = por %p204, %p205
    %p207 = scmp.ne.s32.totalorder %s196, %s199
    %p208 = scmp.eq.s32.totalorder %s19, 1
    %p209 = por %p207, %p208
    %p210 = scmp.ne.s32.totalorder %s199, %s200
    %p211 = scmp.eq.s32.totalorder %s19, 0
    %p212 = por %p210, %p211
    %p213 = scmp.ne.s32.totalorder %s199, %s200
    %p214 = scmp.eq.s32.totalorder %s20, 1
    %p215 = por %p213, %p214
    %p217 = scmp.ne.s32.totalorder %s200, %s216
    %p218 = scmp.eq.s32.totalorder %s20, 0
    %p219 = por %p217, %p218
    %s220 = ssub.s32 %s21, %s40
    %s221 = ssub.s32 %s22, %s36
    %s222 = sor.u32 %s220, %s221
    %s223 = ssub.s32 %s23, %s32
    %s224 = sor.u32 %s222, %s223
    %p225 = scmp.eq.s32.totalorder %s224, 0
    %s227 = sadd.s32 %s226, 1
    %s228 = scalar_select %p225, %s226, %s227
    %p231 = pneg %p225
    %p232 = scmp.eq.s32.totalorder %s14, 1
    %p233 = por %p231, %p232
    %p234 = scmp.ne.s32.totalorder %s226, %s229
    %p235 = scmp.eq.s32.totalorder %s14, 0
    %p236 = por %p234, %p235
    %p237 = scmp.ne.s32.totalorder %s226, %s229
    %p238 = scmp.eq.s32.totalorder %s19, 1
    %p239 = por %p237, %p238
    %p240 = scmp.ne.s32.totalorder %s229, %s230
    %p241 = scmp.eq.s32.totalorder %s19, 0
    %p242 = por %p240, %p241
    %p243 = scmp.ne.s32.totalorder %s229, %s230
    %p244 = scmp.eq.s32.totalorder %s20, 1
    %p245 = por %p243, %p244
    %p247 = scmp.ne.s32.totalorder %s230, %s246
    %p248 = scmp.eq.s32.totalorder %s20, 0
    %p249 = por %p247, %p248
    %p250 = scmp.le.s32.totalorder 1, %s14
    %p251 = scmp.lt.s32.totalorder %s14, 3
    %p252 = pnand %p250, %p251
    %p253 = pneg %p252
    // Predicated region
    $region9: #{double_conv_forward.3} parent=5 // pred_check
      _
    $region10: #{double_conv_forward.3} parent=5 // pred_check_branch
      %255 = sbr.rel (%p252) target = $region12
    $region11: #{double_conv_forward.3} parent=5 // pred_region
      %s256 = ssub.s32 %s14, 1
      // Predicated region
      $region13: #{double_conv_forward.3} parent=11 // pred_check
        %p257 = pneg %p114
      $region14: #{double_conv_forward.3} parent=11 // pred_check_branch
        %259 = sbr.rel (%p257) target = $region16
      $region15: #{double_conv_forward.3} parent=11 // pred_region
        _
      $region16: #{double_conv_forward.3} parent=11 // pred_fallthru
        _
      // Predicated region
      $region17: #{double_conv_forward.3} parent=11 // pred_check
        %p260 = pneg %p135
      $region18: #{double_conv_forward.3} parent=11 // pred_check_branch
        %262 = sbr.rel (%p260) target = $region20
      $region19: #{double_conv_forward.3} parent=11 // pred_region
        _
      $region20: #{double_conv_forward.3} parent=11 // pred_fallthru
        _
      // Predicated region
      $region21: #{double_conv_forward.3} parent=11 // pred_check
        %p263 = pneg %p156
      $region22: #{double_conv_forward.3} parent=11 // pred_check_branch
        %265 = sbr.rel (%p263) target = $region24
      $region23: #{double_conv_forward.3} parent=11 // pred_region
        _
      $region24: #{double_conv_forward.3} parent=11 // pred_fallthru
        _
      // Predicated region
      $region25: #{double_conv_forward.3} parent=11 // pred_check
        %p266 = pneg %p182
      $region26: #{double_conv_forward.3} parent=11 // pred_check_branch
        %268 = sbr.rel (%p266) target = $region28
      $region27: #{double_conv_forward.3} parent=11 // pred_region
        %s269 = smul.u32 30, %s25
        %p270 = scmp.lt.s32.totalorder %s269, 29
        %s271 = scalar_select %p270, %s269, 29
        %s272 = smul.addr %s271, 8
        %s273 = scalar_lea.vmem %s5, %s272
        %s274 = smul.u32 30, %s25
      $region28: #{double_conv_forward.3} parent=11 // pred_fallthru
        _
    $region12: #{double_conv_forward.3} parent=5 // pred_fallthru
      _
    %p275 = scmp.lt.s32.totalorder %s14, 2
    // Predicated region
    $region29: #{double_conv_forward.3} parent=5 // pred_check
      %p276 = pneg %p275
    $region30: #{double_conv_forward.3} parent=5 // pred_check_branch
      %278 = sbr.rel (%p276) target = $region32
    $region31: #{double_conv_forward.3} parent=5 // pred_region
      // Predicated region
      $region33: #{double_conv_forward.3} parent=31 // pred_check
        %p279 = pneg %p55
      $region34: #{double_conv_forward.3} parent=31 // pred_check_branch
        %281 = sbr.rel (%p279) target = $region36
      $region35: #{double_conv_forward.3} parent=31 // pred_region
        %s282 = smul.u32 30, %s22
        %s283 = ssub.s32 35, %s282
        %p284 = scmp.lt.s32.totalorder %s283, 30
        %s285 = scalar_select %p284, %s283, 30
        %s286 = smul.u32 64, %s285
        %p287 = scmp.lt.s32.totalorder %s21, 1
        %s288 = scalar_select %p287, %s21, 1
        %p289 = scmp.lt.s32.totalorder %s282, 34
        %s290 = scalar_select %p289, %s282, 34
        %s291 = smul.addr %s288, 35
        %s292 = sadd.s32 %s290, %s291
        %s293 = smul.addr %s292, 4
        %s294 = scalar_lea.vmem %s0, %s293
        %s295 = smul.u32 30, %s22
        %s296 = ssub.s32 35, %s295
        %p297 = scmp.lt.s32.totalorder %s296, 30
        %s298 = scalar_select %p297, %s296, 30
        %s299 = smul.u32 64, %s298
      $region36: #{double_conv_forward.3} parent=31 // pred_fallthru
        _
      // Predicated region
      $region37: #{double_conv_forward.3} parent=31 // pred_check
        %p300 = pneg %p87
      $region38: #{double_conv_forward.3} parent=31 // pred_check_branch
        %302 = sbr.rel (%p300) target = $region40
      $region39: #{double_conv_forward.3} parent=31 // pred_region
        %s303 = sadd.s32 %s22, 1
        %s304 = smul.u32 %s303, 6
        %s305 = smul.u32 5, %s304
        %p306 = scmp.lt.s32.totalorder %s21, 1
        %s307 = scalar_select %p306, %s21, 1
        %p308 = scmp.lt.s32.totalorder %s305, 34
        %s309 = scalar_select %p308, %s305, 34
        %s310 = smul.addr %s307, 35
        %s311 = sadd.s32 %s309, %s310
        %s312 = smul.addr %s311, 4
        %s313 = scalar_lea.vmem %s1, %s312
        %s314 = sadd.s32 %s22, 1
        %s315 = smul.u32 %s314, 6
        %s316 = smul.u32 5, %s315
      $region40: #{double_conv_forward.3} parent=31 // pred_fallthru
        _
    $region32: #{double_conv_forward.3} parent=5 // pred_fallthru
      _
    %p317 = scmp.le.s32.totalorder 1, %s14
    %p318 = scmp.lt.s32.totalorder %s14, 3
    %p319 = pnand %p317, %p318
    %p320 = pneg %p319
    // Predicated region
    $region41: #{double_conv_forward.3} parent=5 // pred_check
      _
    $region42: #{double_conv_forward.3} parent=5 // pred_check_branch
      %322 = sbr.rel (%p319) target = $region44
    $region43: #{double_conv_forward.3} parent=5 // pred_region
      %s323 = ssub.s32 %s14, 1
      %s324 = smul.u32 30, %s25
      %s325 = ssub.s32 35, %s324
      %p326 = scmp.lt.s32.totalorder %s325, 30
      %s327 = scalar_select %p326, %s325, 30
      %s328 = smul.u32 64, %s327
      %p329 = scmp.lt.s32.totalorder %s24, 1
      %s330 = scalar_select %p329, %s24, 1
      %p331 = scmp.lt.s32.totalorder %s324, 34
      %s332 = scalar_select %p331, %s324, 34
      %s333 = smul.addr %s330, 35
      %s334 = sadd.s32 %s332, %s333
      %s335 = smul.addr %s334, 4
      %s336 = scalar_lea.vmem %s0, %s335
      %p337 = pneg %p61
      %p338 = pneg %p58
      %s339 = sadd.s32 %s25, 1
      %s340 = smul.u32 %s339, 6
      %s341 = smul.u32 5, %s340
      %p342 = scmp.lt.s32.totalorder %s24, 1
      %s343 = scalar_select %p342, %s24, 1
      %p344 = scmp.lt.s32.totalorder %s341, 34
      %s345 = scalar_select %p344, %s341, 34
      %s346 = smul.addr %s343, 35
      %s347 = sadd.s32 %s345, %s346
      %s348 = smul.addr %s347, 4
      %s349 = scalar_lea.vmem %s1, %s348
      %p350 = pneg %p93
      %p351 = pneg %p90
      %p352 = pneg %p114
      %p353 = pneg %p111
      %p354 = pneg %p135
      %p355 = pneg %p132
      %p356 = pneg %p156
      %p357 = pneg %p153
      %s358 = smul.u32 30, %s25
      %p359 = scmp.lt.s32.totalorder %s358, 29
      %s360 = scalar_select %p359, %s358, 29
      %s361 = smul.addr %s360, 8
      %s362 = scalar_lea.vmem %s5, %s361
      %p363 = pneg %p182
      %p364 = pneg %p179
      %p365 = pneg %p212
      %p366 = pneg %p209
      %s367 = smul.u32 30, %s25
      %p368 = scmp.lt.s32.totalorder %s24, 1
      %s369 = scalar_select %p368, %s24, 1
      %p370 = scmp.lt.s32.totalorder %s367, 29
      %s371 = scalar_select %p370, %s367, 29
      %p372 = scmp.lt.s32.totalorder %s26, 0
      %s373 = scalar_select %p372, %s26, 0
      %s374 = sadd.s32 %s373, %s371
      %s375 = smul.addr %s369, 30
      %s376 = sadd.s32 %s374, %s375
      %s377 = smul.addr %s376, 4
      %s378 = scalar_lea.vmem %s6, %s377
      %p379 = pneg %p242
      %p380 = pneg %p239
      %p381 = scmp.lt.s32.totalorder %s24, 1
      %s382 = scalar_select %p381, %s24, 1
      %p383 = scmp.lt.s32.totalorder %s25, 0
      %s384 = scalar_select %p383, %s25, 0
      %p385 = scmp.lt.s32.totalorder %s26, 0
      %s386 = scalar_select %p385, %s26, 0
      %s387 = sadd.s32 %s386, %s384
      %s388 = sadd.s32 %s387, %s382
      %s389 = smul.addr %s388, 8
      %s390 = scalar_lea.vmem %s7, %s389
      %s391 = smul.u32 30, %s25
      %s392 = ssub.s32 35, %s391
      %p393 = scmp.lt.s32.totalorder %s392, 30
      %s394 = scalar_select %p393, %s392, 30
      %s395 = smul.u32 64, %s394
      %p396 = scmp.lt.s32.totalorder %s24, 1
      %s397 = scalar_select %p396, %s24, 1
      %p398 = scmp.lt.s32.totalorder %s391, 34
      %s399 = scalar_select %p398, %s391, 34
      %s400 = smul.addr %s397, 35
      %s401 = sadd.s32 %s399, %s400
      %s402 = smul.addr %s401, 4
      %s403 = scalar_lea.vmem %s0, %s402
      %s404 = smul.u32 30, %s25
      %s405 = ssub.s32 35, %s404
      %p406 = scmp.lt.s32.totalorder %s405, 30
      %s407 = scalar_select %p406, %s405, 30
      %s408 = smul.u32 64, %s407
      %s409 = sadd.s32 %s25, 1
      %s410 = smul.u32 %s409, 6
      %s411 = smul.u32 5, %s410
      %p412 = scmp.lt.s32.totalorder %s24, 1
      %s413 = scalar_select %p412, %s24, 1
      %p414 = scmp.lt.s32.totalorder %s411, 34
      %s415 = scalar_select %p414, %s411, 34
      %s416 = smul.addr %s413, 35
      %s417 = sadd.s32 %s415, %s416
      %s418 = smul.addr %s417, 4
      %s419 = scalar_lea.vmem %s1, %s418
      %s420 = sadd.s32 %s25, 1
      %s421 = smul.u32 %s420, 6
      %s422 = smul.u32 5, %s421
      %s423 = smul.u32 30, %s25
      %p424 = scmp.lt.s32.totalorder %s423, 29
      %s425 = scalar_select %p424, %s423, 29
      %s426 = smul.addr %s425, 8
      %s427 = scalar_lea.vmem %s5, %s426
      %s428 = smul.u32 30, %s25
      %s429 = smul.u32 30, %s25
      %p430 = scmp.lt.s32.totalorder %s24, 1
      %s431 = scalar_select %p430, %s24, 1
      %p432 = scmp.lt.s32.totalorder %s429, 29
      %s433 = scalar_select %p432, %s429, 29
      %p434 = scmp.lt.s32.totalorder %s26, 0
      %s435 = scalar_select %p434, %s26, 0
      %s436 = sadd.s32 %s435, %s433
      %s437 = smul.addr %s431, 30
      %s438 = sadd.s32 %s436, %s437
      %s439 = smul.addr %s438, 4
      %s440 = scalar_lea.vmem %s6, %s439
      %s441 = smul.u32 30, %s25
      %p442 = scmp.lt.s32.totalorder %s24, 1
      %s443 = scalar_select %p442, %s24, 1
      %p444 = scmp.lt.s32.totalorder %s25, 0
      %s445 = scalar_select %p444, %s25, 0
      %p446 = scmp.lt.s32.totalorder %s26, 0
      %s447 = scalar_select %p446, %s26, 0
      %s448 = sadd.s32 %s447, %s445
      %s449 = sadd.s32 %s448, %s443
      %s450 = smul.addr %s449, 8
      %s451 = scalar_lea.vmem %s7, %s450
      %p453 = scmp.eq.s32.totalorder %s26, 0
      // Predicated region
      $region45: #{double_conv_forward.3} parent=43 // pred_check
        %p454 = pneg %p453
      $region46: #{double_conv_forward.3} parent=43 // pred_check_branch
        %456 = sbr.rel (%p454) target = $region48
      $region47: #{double_conv_forward.3} parent=43 // pred_region
        %v457 = vld [vmem:[%s403] sm:$0xf]
        %v458 = vld [vmem:[%s403 + $0x4] sm:$0xf]
        %v459 = vld [vmem:[%s403 + $0x8] sm:$0xf]
        %v460 = vld [vmem:[%s403 + $0xc] sm:$0xf]
        %v461 = vld [vmem:[%s403 + $0x10] sm:$0xf]
        %v462 = vld [vmem:[%s403 + $0x14] sm:$0xf]
        %v463 = vld [vmem:[%s403 + $0x18] sm:$0xf]
        %v464 = vld [vmem:[%s403 + $0x1c] sm:$0xf]
        %v465 = vld [vmem:[%s403 + $0x20] sm:$0xf]
        %v466 = vld [vmem:[%s403 + $0x24] sm:$0xf]
        %v467 = vld [vmem:[%s403 + $0x28] sm:$0xf]
        %v468 = vld [vmem:[%s403 + $0x2c] sm:$0xf]
        %v469 = vld [vmem:[%s403 + $0x30] sm:$0xf]
        %v470 = vld [vmem:[%s403 + $0x34] sm:$0xf]
        %v471 = vld [vmem:[%s403 + $0x38] sm:$0xf]
        %v472 = vld [vmem:[%s403 + $0x3c] sm:$0xf]
        %473 = vst [vmem:[#allocation2] sm:$0xf] %v457
        %474 = vst [vmem:[#allocation2 + $0x4] sm:$0xf] %v458
        %475 = vst [vmem:[#allocation2 + $0x8] sm:$0xf] %v459
        %476 = vst [vmem:[#allocation2 + $0xc] sm:$0xf] %v460
        %477 = vst [vmem:[#allocation2 + $0x10] sm:$0xf] %v461
        %478 = vst [vmem:[#allocation2 + $0x14] sm:$0xf] %v462
        %479 = vst [vmem:[#allocation2 + $0x18] sm:$0xf] %v463
        %480 = vst [vmem:[#allocation2 + $0x1c] sm:$0xf] %v464
        %481 = vst [vmem:[#allocation2 + $0x20] sm:$0xf] %v465
        %482 = vst [vmem:[#allocation2 + $0x24] sm:$0xf] %v466
        %483 = vst [vmem:[#allocation2 + $0x28] sm:$0xf] %v467
        %484 = vst [vmem:[#allocation2 + $0x2c] sm:$0xf] %v468
        %485 = vst [vmem:[#allocation2 + $0x30] sm:$0xf] %v469
        %486 = vst [vmem:[#allocation2 + $0x34] sm:$0xf] %v470
        %487 = vst [vmem:[#allocation2 + $0x38] sm:$0xf] %v471
        %488 = vst [vmem:[#allocation2 + $0x3c] sm:$0xf] %v472
        %v489 = vld [vmem:[%s403 + $0x40] sm:$0xf]
        %v490 = vld [vmem:[%s403 + $0x44] sm:$0xf]
        %v491 = vld [vmem:[%s403 + $0x48] sm:$0xf]
        %v492 = vld [vmem:[%s403 + $0x4c] sm:$0xf]
        %v493 = vld [vmem:[%s403 + $0x50] sm:$0xf]
        %v494 = vld [vmem:[%s403 + $0x54] sm:$0xf]
        %v495 = vld [vmem:[%s403 + $0x58] sm:$0xf]
        %v496 = vld [vmem:[%s403 + $0x5c] sm:$0xf]
        %v497 = vld [vmem:[%s403 + $0x60] sm:$0xf]
        %v498 = vld [vmem:[%s403 + $0x64] sm:$0xf]
        %v499 = vld [vmem:[%s403 + $0x68] sm:$0xf]
        %v500 = vld [vmem:[%s403 + $0x6c] sm:$0xf]
        %v501 = vld [vmem:[%s403 + $0x70] sm:$0xf]
        %v502 = vld [vmem:[%s403 + $0x74] sm:$0xf]
        %503 = vst [vmem:[#allocation2 + $0x40] sm:$0xf] %v489
        %504 = vst [vmem:[#allocation2 + $0x44] sm:$0xf] %v490
        %505 = vst [vmem:[#allocation2 + $0x48] sm:$0xf] %v491
        %506 = vst [vmem:[#allocation2 + $0x4c] sm:$0xf] %v492
        %507 = vst [vmem:[#allocation2 + $0x50] sm:$0xf] %v493
        %508 = vst [vmem:[#allocation2 + $0x54] sm:$0xf] %v494
        %509 = vst [vmem:[#allocation2 + $0x58] sm:$0xf] %v495
        %510 = vst [vmem:[#allocation2 + $0x5c] sm:$0xf] %v496
        %511 = vst [vmem:[#allocation2 + $0x60] sm:$0xf] %v497
        %512 = vst [vmem:[#allocation2 + $0x64] sm:$0xf] %v498
        %513 = vst [vmem:[#allocation2 + $0x68] sm:$0xf] %v499
        %514 = vst [vmem:[#allocation2 + $0x6c] sm:$0xf] %v500
        %515 = vst [vmem:[#allocation2 + $0x70] sm:$0xf] %v501
        %516 = vst [vmem:[#allocation2 + $0x74] sm:$0xf] %v502
        %v517 = vld [vmem:[%s419] sm:$0xf]
        %v518 = vld [vmem:[%s419 + $0x4] sm:$0xf]
        %v519 = vld [vmem:[%s419 + $0x8] sm:$0xf]
        %v520 = vld [vmem:[%s419 + $0xc] sm:$0xf]
        %v521 = vld [vmem:[%s419 + $0x10] sm:$0xf]
        %522 = vst [vmem:[#allocation2 + $0x78] sm:$0xf] %v517
        %523 = vst [vmem:[#allocation2 + $0x7c] sm:$0xf] %v518
        %524 = vst [vmem:[#allocation2 + $0x80] sm:$0xf] %v519
        %525 = vst [vmem:[#allocation2 + $0x84] sm:$0xf] %v520
        %526 = vst [vmem:[#allocation2 + $0x88] sm:$0xf] %v521
      $region48: #{double_conv_forward.3} parent=43 // pred_fallthru
        _
      %v527 = vld [vmem:[%s2] sm:$0xf]
      %v528 = vld [vmem:[%s2 + $0x4] sm:$0xf]
      %v529 = vld [vmem:[%s2 + $0x8] sm:$0xf]
      %v530 = vld [vmem:[%s2 + $0xc] sm:$0xf]
      %v531 = vld [vmem:[%s2 + $0x10] sm:$0xf]
      %v532 = vld [vmem:[%s2 + $0x14] sm:$0xf]
      %v533 = vld [vmem:[%s2 + $0x18] sm:$0xf]
      %v534 = vld [vmem:[%s2 + $0x1c] sm:$0xf]
      %v535 = vld [vmem:[%s2 + $0x20] sm:$0xf]
      %v536 = vld [vmem:[%s2 + $0x24] sm:$0xf]
      %v537 = vld [vmem:[%s2 + $0x28] sm:$0xf]
      %v538 = vld [vmem:[%s2 + $0x2c] sm:$0xf]
      %v539 = vld [vmem:[%s2 + $0x30] sm:$0xf]
      %v540 = vld [vmem:[%s2 + $0x34] sm:$0xf]
      %v541 = vld [vmem:[%s2 + $0x38] sm:$0xf]
      %v542 = vld [vmem:[%s2 + $0x3c] sm:$0xf]
      %v543 = vld [vmem:[#allocation2] sm:$0xf]
      %v544 = vld [vmem:[#allocation2 + $0x4] sm:$0xf]
      %v545 = vld [vmem:[#allocation2 + $0x8] sm:$0xf]
      %v546 = vld [vmem:[#allocation2 + $0xc] sm:$0xf]
      %v547 = vld [vmem:[#allocation2 + $0x10] sm:$0xf]
      %v548 = vld [vmem:[#allocation2 + $0x14] sm:$0xf]
      %v549 = vld [vmem:[#allocation2 + $0x18] sm:$0xf]
      %v550 = vld [vmem:[#allocation2 + $0x1c] sm:$0xf]
      %v551 = vld [vmem:[#allocation2 + $0x20] sm:$0xf]
      %v552 = vld [vmem:[#allocation2 + $0x24] sm:$0xf]
      %v553 = vld [vmem:[#allocation2 + $0x28] sm:$0xf]
      %v554 = vld [vmem:[#allocation2 + $0x2c] sm:$0xf]
      %v555 = vld [vmem:[#allocation2 + $0x30] sm:$0xf]
      %v556 = vld [vmem:[#allocation2 + $0x34] sm:$0xf]
      %v557 = vld [vmem:[#allocation2 + $0x38] sm:$0xf]
      %v558 = vld [vmem:[#allocation2 + $0x3c] sm:$0xf]
      %s559 = scalar_lea.vmem %s2, 64
      %v560 = vld [vmem:[%s559] sm:$0xf]
      %v561 = vld [vmem:[%s559 + $0x4] sm:$0xf]
      %v562 = vld [vmem:[%s559 + $0x8] sm:$0xf]
      %v563 = vld [vmem:[%s559 + $0xc] sm:$0xf]
      %v564 = vld [vmem:[%s559 + $0x10] sm:$0xf]
      %v565 = vld [vmem:[%s559 + $0x14] sm:$0xf]
      %v566 = vld [vmem:[%s559 + $0x18] sm:$0xf]
      %v567 = vld [vmem:[%s559 + $0x1c] sm:$0xf]
      %v568 = vld [vmem:[%s559 + $0x20] sm:$0xf]
      %v569 = vld [vmem:[%s559 + $0x24] sm:$0xf]
      %v570 = vld [vmem:[%s559 + $0x28] sm:$0xf]
      %v571 = vld [vmem:[%s559 + $0x2c] sm:$0xf]
      %v572 = vld [vmem:[%s559 + $0x30] sm:$0xf]
      %v573 = vld [vmem:[%s559 + $0x34] sm:$0xf]
      %v574 = vld [vmem:[%s559 + $0x38] sm:$0xf]
      %v575 = vld [vmem:[%s559 + $0x3c] sm:$0xf]
      %v576 = vld [vmem:[#allocation2 + $0x40] sm:$0x1]
      %v594 = vunpack.c.l.b16 %v543
      %v595 = vunpack.c.l.b16 %v544
      %v596 = vunpack.c.l.b16 %v545
      %v597 = vunpack.c.l.b16 %v546
      %v598 = vunpack.c.l.b16 %v547
      %v599 = vunpack.c.l.b16 %v548
      %v600 = vunpack.c.l.b16 %v549
      %v601 = vunpack.c.l.b16 %v550
      %v602 = vunpack.c.l.b16 %v551
      %v603 = vunpack.c.l.b16 %v552
      %v604 = vunpack.c.l.b16 %v553
      %v605 = vunpack.c.l.b16 %v554
      %v606 = vunpack.c.l.b16 %v555
      %v607 = vunpack.c.l.b16 %v556
      %v608 = vunpack.c.l.b16 %v557
      %v609 = vunpack.c.l.b16 %v558
      %v610 = vunpack.c.l.b16 %v576
      %v611 = vpack.c.b16 %v595, %v594
      %v612 = vpack.c.b16 %v597, %v596
      %v613 = vpack.c.b16 %v599, %v598
      %v614 = vpack.c.b16 %v601, %v600
      %v615 = vpack.c.b16 %v603, %v602
      %v616 = vpack.c.b16 %v605, %v604
      %v617 = vpack.c.b16 %v607, %v606
      %v618 = vpack.c.b16 %v609, %v608
      %v619 = vpack.c.b16 %v610, %v610
      %vm620 = vsmask.f32 7424
      %v622 = vshrl.u32 %v611, 16
      %v624 = vshll.u32 %v611, 16
      %v626 = vrot.slane %v624, 1
      %v627 = vor.u32 %v622, %v626
      %v629 = vshll.u32 %v612, 16
      %v631 = vrot.slane %v629, 1
      %v632 = vsel %vm620, %v627, %v631
      %v633 = vshrl.u32 %v612, 16
      %v635 = vor.u32 %v633, %v631
      %v637 = vshll.u32 %v613, 16
      %v639 = vrot.slane %v637, 1
      %v640 = vsel %vm620, %v635, %v639
      %v641 = vshrl.u32 %v613, 16
      %v643 = vor.u32 %v641, %v639
      %v645 = vshll.u32 %v614, 16
      %v647 = vrot.slane %v645, 1
      %v648 = vsel %vm620, %v643, %v647
      %v649 = vshrl.u32 %v614, 16
      %v651 = vor.u32 %v649, %v647
      %v653 = vshll.u32 %v615, 16
      %v655 = vrot.slane %v653, 1
      %v656 = vsel %vm620, %v651, %v655
      %v657 = vshrl.u32 %v615, 16
      %v659 = vor.u32 %v657, %v655
      %v661 = vshll.u32 %v616, 16
      %v663 = vrot.slane %v661, 1
      %v664 = vsel %vm620, %v659, %v663
      %v665 = vshrl.u32 %v616, 16
      %v667 = vor.u32 %v665, %v663
      %v669 = vshll.u32 %v617, 16
      %v671 = vrot.slane %v669, 1
      %v672 = vsel %vm620, %v667, %v671
      %v673 = vshrl.u32 %v617, 16
      %v675 = vor.u32 %v673, %v671
      %v677 = vshll.u32 %v618, 16
      %v679 = vrot.slane %v677, 1
      %v680 = vsel %vm620, %v675, %v679
      %v681 = vshrl.u32 %v618, 16
      %v683 = vor.u32 %v681, %v679
      %v685 = vshll.u32 %v619, 16
      %v687 = vrot.slane %v685, 1
      %v688 = vsel %vm620, %v683, %v687
      %v713 = vunpack.c.l.b16 %v560
      %v714 = vunpack.c.l.b16 %v561
      %v715 = vunpack.c.l.b16 %v562
      %v716 = vunpack.c.l.b16 %v563
      %v717 = vunpack.c.l.b16 %v564
      %v718 = vunpack.c.l.b16 %v565
      %v719 = vunpack.c.l.b16 %v566
      %v720 = vunpack.c.l.b16 %v567
      %v721 = vunpack.c.l.b16 %v568
      %v722 = vunpack.c.l.b16 %v569
      %v723 = vunpack.c.l.b16 %v570
      %v724 = vunpack.c.l.b16 %v571
      %v725 = vunpack.c.l.b16 %v572
      %v726 = vunpack.c.l.b16 %v573
      %v727 = vunpack.c.l.b16 %v574
      %v728 = vunpack.c.l.b16 %v575
      %v729 = vpack.c.b16 %v714, %v713
      %v730 = vpack.c.b16 %v716, %v715
      %v731 = vpack.c.b16 %v718, %v717
      %v732 = vpack.c.b16 %v720, %v719
      %v733 = vpack.c.b16 %v722, %v721
      %v734 = vpack.c.b16 %v724, %v723
      %v735 = vpack.c.b16 %v726, %v725
      %v736 = vpack.c.b16 %v728, %v727
      %745 = vmatprep.subr.bf16.mxu0 0
      %746 = vmatpush1.bf16.msra.mxu0 %v736
      %747 = vmatprep.subr.bf16.mxu0 0
      %748 = vmatpush1.bf16.msra.mxu0 %v735
      %749 = vmatprep.subr.bf16.mxu0 0
      %750 = vmatpush1.bf16.msra.mxu0 %v734
      %751 = vmatprep.subr.bf16.mxu0 0
      %752 = vmatpush1.bf16.msra.mxu0 %v733
      %753 = vmatprep.subr.bf16.mxu0 0
      %754 = vmatpush1.bf16.msra.mxu0 %v732
      %755 = vmatprep.subr.bf16.mxu0 0
      %756 = vmatpush1.bf16.msra.mxu0 %v731
      %757 = vmatprep.subr.bf16.mxu0 0
      %758 = vmatpush1.bf16.msra.mxu0 %v730
      %759 = vmatprep.subr.bf16.mxu0 0
      %760 = vmatpush1.bf16.msra.mxu0 %v729
      %761 = vmatprep.subr.bf16.mxu0 0
      %762 = vmatpush2.bf16.msra.mxu0 0
      %763 = vmatprep.subr.bf16.mxu0 0
      %764 = vmatpush2.bf16.msra.mxu0 0
      %765 = vmatprep.subr.bf16.mxu0 0
      %766 = vmatpush2.bf16.msra.mxu0 0
      %767 = vmatprep.subr.bf16.mxu0 0
      %768 = vmatpush2.bf16.msra.mxu0 0
      %769 = vmatprep.subr.bf16.mxu0 0
      %770 = vmatpush2.bf16.msra.mxu0 0
      %771 = vmatprep.subr.bf16.mxu0 0
      %772 = vmatpush2.bf16.msra.mxu0 0
      %773 = vmatprep.subr.bf16.mxu0 0
      %774 = vmatpush2.bf16.msra.mxu0 0
      %775 = vmatprep.subr.bf16.mxu0 0
      %776 = vmatpush2.bf16.msra.mxu0 0
      %777 = vmatprep.mubr.bf16.mxu0 0
      %778 = vmatmul.mubr.bf16.gmra.mxu0 %v632
      %v779 = vpop.f32.mrf.mxu0
      %v780 = vadd.f32 0.0, %v779
      %v781 = vpop.f32.mrf.mxu0
      %v782 = vpop.f32.mrf.mxu0
      %v783 = vadd.f32 0.0, %v782
      %v784 = vpop.f32.mrf.mxu0
      %785 = vmatprep.mubr.bf16.mxu0 0
      %786 = vmatmul.mubr.bf16.gmra.mxu0 %v640
      %v787 = vpop.f32.mrf.mxu0
      %v788 = vadd.f32 0.0, %v787
      %v789 = vpop.f32.mrf.mxu0
      %v790 = vpop.f32.mrf.mxu0
      %v791 = vadd.f32 0.0, %v790
      %v792 = vpop.f32.mrf.mxu0
      %793 = vmatprep.mubr.bf16.mxu0 0
      %794 = vmatmul.mubr.bf16.gmra.mxu0 %v648
      %v795 = vpop.f32.mrf.mxu0
      %v796 = vadd.f32 0.0, %v795
      %v797 = vpop.f32.mrf.mxu0
      %v798 = vpop.f32.mrf.mxu0
      %v799 = vadd.f32 0.0, %v798
      %v800 = vpop.f32.mrf.mxu0
      %801 = vmatprep.mubr.bf16.mxu0 0
      %802 = vmatmul.mubr.bf16.gmra.mxu0 %v656
      %v803 = vpop.f32.mrf.mxu0
      %v804 = vadd.f32 0.0, %v803
      %v805 = vpop.f32.mrf.mxu0
      %v806 = vpop.f32.mrf.mxu0
      %v807 = vadd.f32 0.0, %v806
      %v808 = vpop.f32.mrf.mxu0
      %809 = vmatprep.mubr.bf16.mxu0 0
      %810 = vmatmul.mubr.bf16.gmra.mxu0 %v664
      %v811 = vpop.f32.mrf.mxu0
      %v812 = vadd.f32 0.0, %v811
      %v813 = vpop.f32.mrf.mxu0
      %v814 = vpop.f32.mrf.mxu0
      %v815 = vadd.f32 0.0, %v814
      %v816 = vpop.f32.mrf.mxu0
      %817 = vmatprep.mubr.bf16.mxu0 0
      %818 = vmatmul.mubr.bf16.gmra.mxu0 %v672
      %v819 = vpop.f32.mrf.mxu0
      %v820 = vadd.f32 0.0, %v819
      %v821 = vpop.f32.mrf.mxu0
      %v822 = vpop.f32.mrf.mxu0
      %v823 = vadd.f32 0.0, %v822
      %v824 = vpop.f32.mrf.mxu0
      %825 = vmatprep.mubr.bf16.mxu0 0
      %826 = vmatmul.mubr.bf16.gmra.mxu0 %v680
      %v827 = vpop.f32.mrf.mxu0
      %v828 = vadd.f32 0.0, %v827
      %v829 = vpop.f32.mrf.mxu0
      %v830 = vpop.f32.mrf.mxu0
      %v831 = vadd.f32 0.0, %v830
      %v832 = vpop.f32.mrf.mxu0
      %833 = vmatprep.mubr.bf16.mxu0 0
      %834 = vmatmul.mubr.bf16.gmra.mxu0 %v688
      %v835 = vpop.f32.mrf.mxu0
      %v836 = vadd.f32 0.0, %v835
      %v837 = vpop.f32.mrf.mxu0
      %v838 = vpop.f32.mrf.mxu0
      %v839 = vadd.f32 0.0, %v838
      %v840 = vpop.f32.mrf.mxu0
      %841 = vdwg.mxu0
      %v866 = vunpack.c.l.b16 %v527
      %v867 = vunpack.c.l.b16 %v528
      %v868 = vunpack.c.l.b16 %v529
      %v869 = vunpack.c.l.b16 %v530
      %v870 = vunpack.c.l.b16 %v531
      %v871 = vunpack.c.l.b16 %v532
      %v872 = vunpack.c.l.b16 %v533
      %v873 = vunpack.c.l.b16 %v534
      %v874 = vunpack.c.l.b16 %v535
      %v875 = vunpack.c.l.b16 %v536
      %v876 = vunpack.c.l.b16 %v537
      %v877 = vunpack.c.l.b16 %v538
      %v878 = vunpack.c.l.b16 %v539
      %v879 = vunpack.c.l.b16 %v540
      %v880 = vunpack.c.l.b16 %v541
      %v881 = vunpack.c.l.b16 %v542
      %v882 = vpack.c.b16 %v867, %v866
      %v883 = vpack.c.b16 %v869, %v868
      %v884 = vpack.c.b16 %v871, %v870
      %v885 = vpack.c.b16 %v873, %v872
      %v886 = vpack.c.b16 %v875, %v874
      %v887 = vpack.c.b16 %v877, %v876
      %v888 = vpack.c.b16 %v879, %v878
      %v889 = vpack.c.b16 %v881, %v880
      %898 = vmatprep.subr.bf16.mxu0 0
      %899 = vmatpush1.bf16.msra.mxu0 %v889
      %900 = vmatprep.subr.bf16.mxu0 0
      %901 = vmatpush1.bf16.msra.mxu0 %v888
      %902 = vmatprep.subr.bf16.mxu0 0
      %903 = vmatpush1.bf16.msra.mxu0 %v887
      %904 = vmatprep.subr.bf16.mxu0 0
      %905 = vmatpush1.bf16.msra.mxu0 %v886
      %906 = vmatprep.subr.bf16.mxu0 0
      %907 = vmatpush1.bf16.msra.mxu0 %v885
      %908 = vmatprep.subr.bf16.mxu0 0
      %909 = vmatpush1.bf16.msra.mxu0 %v884
      %910 = vmatprep.subr.bf16.mxu0 0
      %911 = vmatpush1.bf16.msra.mxu0 %v883
      %912 = vmatprep.subr.bf16.mxu0 0
      %913 = vmatpush1.bf16.msra.mxu0 %v882
      %914 = vmatprep.subr.bf16.mxu0 0
      %915 = vmatpush2.bf16.msra.mxu0 0
      %916 = vmatprep.subr.bf16.mxu0 0
      %917 = vmatpush2.bf16.msra.mxu0 0
      %918 = vmatprep.subr.bf16.mxu0 0
      %919 = vmatpush2.bf16.msra.mxu0 0
      %920 = vmatprep.subr.bf16.mxu0 0
      %921 = vmatpush2.bf16.msra.mxu0 0
      %922 = vmatprep.subr.bf16.mxu0 0
      %923 = vmatpush2.bf16.msra.mxu0 0
      %924 = vmatprep.subr.bf16.mxu0 0
      %925 = vmatpush2.bf16.msra.mxu0 0
      %926 = vmatprep.subr.bf16.mxu0 0
      %927 = vmatpush2.bf16.msra.mxu0 0
      %928 = vmatprep.subr.bf16.mxu0 0
      %929 = vmatpush2.bf16.msra.mxu0 0
      %930 = vmatprep.mubr.bf16.mxu0 0
      %931 = vmatmul.mubr.bf16.gmra.mxu0 %v611
      %v932 = vpop.f32.mrf.mxu0
      %v933 = vadd.f32 %v780, %v932
      %v934 = vpop.f32.mrf.mxu0
      %v935 = vpop.f32.mrf.mxu0
      %v936 = vadd.f32 %v783, %v935
      %v937 = vpop.f32.mrf.mxu0
      %938 = vmatprep.mubr.bf16.mxu0 0
      %939 = vmatmul.mubr.bf16.gmra.mxu0 %v612
      %v940 = vpop.f32.mrf.mxu0
      %v941 = vadd.f32 %v788, %v940
      %v942 = vpop.f32.mrf.mxu0
      %v943 = vpop.f32.mrf.mxu0
      %v944 = vadd.f32 %v791, %v943
      %v945 = vpop.f32.mrf.mxu0
      %946 = vmatprep.mubr.bf16.mxu0 0
      %947 = vmatmul.mubr.bf16.gmra.mxu0 %v613
      %v948 = vpop.f32.mrf.mxu0
      %v949 = vadd.f32 %v796, %v948
      %v950 = vpop.f32.mrf.mxu0
      %v951 = vpop.f32.mrf.mxu0
      %v952 = vadd.f32 %v799, %v951
      %v953 = vpop.f32.mrf.mxu0
      %954 = vmatprep.mubr.bf16.mxu0 0
      %955 = vmatmul.mubr.bf16.gmra.mxu0 %v614
      %v956 = vpop.f32.mrf.mxu0
      %v957 = vadd.f32 %v804, %v956
      %v958 = vpop.f32.mrf.mxu0
      %v959 = vpop.f32.mrf.mxu0
      %v960 = vadd.f32 %v807, %v959
      %v961 = vpop.f32.mrf.mxu0
      %962 = vmatprep.mubr.bf16.mxu0 0
      %963 = vmatmul.mubr.bf16.gmra.mxu0 %v615
      %v964 = vpop.f32.mrf.mxu0
      %v965 = vadd.f32 %v812, %v964
      %v966 = vpop.f32.mrf.mxu0
      %v967 = vpop.f32.mrf.mxu0
      %v968 = vadd.f32 %v815, %v967
      %v969 = vpop.f32.mrf.mxu0
      %970 = vmatprep.mubr.bf16.mxu0 0
      %971 = vmatmul.mubr.bf16.gmra.mxu0 %v616
      %v972 = vpop.f32.mrf.mxu0
      %v973 = vadd.f32 %v820, %v972
      %v974 = vpop.f32.mrf.mxu0
      %v975 = vpop.f32.mrf.mxu0
      %v976 = vadd.f32 %v823, %v975
      %v977 = vpop.f32.mrf.mxu0
      %978 = vmatprep.mubr.bf16.mxu0 0
      %979 = vmatmul.mubr.bf16.gmra.mxu0 %v617
      %v980 = vpop.f32.mrf.mxu0
      %v981 = vadd.f32 %v828, %v980
      %v982 = vpop.f32.mrf.mxu0
      %v983 = vpop.f32.mrf.mxu0
      %v984 = vadd.f32 %v831, %v983
      %v985 = vpop.f32.mrf.mxu0
      %986 = vmatprep.mubr.bf16.mxu0 0
      %987 = vmatmul.mubr.bf16.gmra.mxu0 %v618
      %v988 = vpop.f32.mrf.mxu0
      %v989 = vadd.f32 %v836, %v988
      %v990 = vpop.f32.mrf.mxu0
      %v991 = vpop.f32.mrf.mxu0
      %v992 = vadd.f32 %v839, %v991
      %v993 = vpop.f32.mrf.mxu0
      %994 = vdwg.mxu0
      %s995 = scalar_lea.vmem %s2, 128
      %v996 = vld [vmem:[%s995] sm:$0xf]
      %v997 = vld [vmem:[%s995 + $0x4] sm:$0xf]
      %v998 = vld [vmem:[%s995 + $0x8] sm:$0xf]
      %v999 = vld [vmem:[%s995 + $0xc] sm:$0xf]
      %v1000 = vld [vmem:[%s995 + $0x10] sm:$0xf]
      %v1001 = vld [vmem:[%s995 + $0x14] sm:$0xf]
      %v1002 = vld [vmem:[%s995 + $0x18] sm:$0xf]
      %v1003 = vld [vmem:[%s995 + $0x1c] sm:$0xf]
      %v1004 = vld [vmem:[%s995 + $0x20] sm:$0xf]
      %v1005 = vld [vmem:[%s995 + $0x24] sm:$0xf]
      %v1006 = vld [vmem:[%s995 + $0x28] sm:$0xf]
      %v1007 = vld [vmem:[%s995 + $0x2c] sm:$0xf]
      %v1008 = vld [vmem:[%s995 + $0x30] sm:$0xf]
      %v1009 = vld [vmem:[%s995 + $0x34] sm:$0xf]
      %v1010 = vld [vmem:[%s995 + $0x38] sm:$0xf]
      %v1011 = vld [vmem:[%s995 + $0x3c] sm:$0xf]
      %v1012 = vld [vmem:[#allocation2] sm:$0xe]
      %v1014 = vunpack.c.l.b16 %v1012
      %v1015 = vpack.c.b16 %v595, %v1014
      %vm1016 = vcmask 1046528
      %v1017 = vrot.slane %v1015, 1
      %v1018 = vrot.slane %v612, 1
      %v1019 = vsel %vm1016, %v1017, %v1018
      %v1020 = vrot.slane %v613, 1
      %v1021 = vsel %vm1016, %v1018, %v1020
      %v1022 = vrot.slane %v614, 1
      %v1023 = vsel %vm1016, %v1020, %v1022
      %v1024 = vrot.slane %v615, 1
      %v1025 = vsel %vm1016, %v1022, %v1024
      %v1026 = vrot.slane %v616, 1
      %v1027 = vsel %vm1016, %v1024, %v1026
      %v1028 = vrot.slane %v617, 1
      %v1029 = vsel %vm1016, %v1026, %v1028
      %v1030 = vrot.slane %v618, 1
      %v1031 = vsel %vm1016, %v1028, %v1030
      %v1032 = vrot.slane %v619, 1
      %v1033 = vsel %vm1016, %v1030, %v1032
      %v1058 = vunpack.c.l.b16 %v996
      %v1059 = vunpack.c.l.b16 %v997
      %v1060 = vunpack.c.l.b16 %v998
      %v1061 = vunpack.c.l.b16 %v999
      %v1062 = vunpack.c.l.b16 %v1000
      %v1063 = vunpack.c.l.b16 %v1001
      %v1064 = vunpack.c.l.b16 %v1002
      %v1065 = vunpack.c.l.b16 %v1003
      %v1066 = vunpack.c.l.b16 %v1004
      %v1067 = vunpack.c.l.b16 %v1005
      %v1068 = vunpack.c.l.b16 %v1006
      %v1069 = vunpack.c.l.b16 %v1007
      %v1070 = vunpack.c.l.b16 %v1008
      %v1071 = vunpack.c.l.b16 %v1009
      %v1072 = vunpack.c.l.b16 %v1010
      %v1073 = vunpack.c.l.b16 %v1011
      %v1074 = vpack.c.b16 %v1059, %v1058
      %v1075 = vpack.c.b16 %v1061, %v1060
      %v1076 = vpack.c.b16 %v1063, %v1062
      %v1077 = vpack.c.b16 %v1065, %v1064
      %v1078 = vpack.c.b16 %v1067, %v1066
      %v1079 = vpack.c.b16 %v1069, %v1068
      %v1080 = vpack.c.b16 %v1071, %v1070
      %v1081 = vpack.c.b16 %v1073, %v1072
      %1090 = vmatprep.subr.bf16.mxu0 0
      %1091 = vmatpush1.bf16.msra.mxu0 %v1081
      %1092 = vmatprep.subr.bf16.mxu0 0
      %1093 = vmatpush1.bf16.msra.mxu0 %v1080
      %1094 = vmatprep.subr.bf16.mxu0 0
      %1095 = vmatpush1.bf16.msra.mxu0 %v1079
      %1096 = vmatprep.subr.bf16.mxu0 0
      %1097 = vmatpush1.bf16.msra.mxu0 %v1078
      %1098 = vmatprep.subr.bf16.mxu0 0
      %1099 = vmatpush1.bf16.msra.mxu0 %v1077
      %1100 = vmatprep.subr.bf16.mxu0 0
      %1101 = vmatpush1.bf16.msra.mxu0 %v1076
      %1102 = vmatprep.subr.bf16.mxu0 0
      %1103 = vmatpush1.bf16.msra.mxu0 %v1075
      %1104 = vmatprep.subr.bf16.mxu0 0
      %1105 = vmatpush1.bf16.msra.mxu0 %v1074
      %1106 = vmatprep.subr.bf16.mxu0 0
      %1107 = vmatpush2.bf16.msra.mxu0 0
      %1108 = vmatprep.subr.bf16.mxu0 0
      %1109 = vmatpush2.bf16.msra.mxu0 0
      %1110 = vmatprep.subr.bf16.mxu0 0
      %1111 = vmatpush2.bf16.msra.mxu0 0
      %1112 = vmatprep.subr.bf16.mxu0 0
      %1113 = vmatpush2.bf16.msra.mxu0 0
      %1114 = vmatprep.subr.bf16.mxu0 0
      %1115 = vmatpush2.bf16.msra.mxu0 0
      %1116 = vmatprep.subr.bf16.mxu0 0
      %1117 = vmatpush2.bf16.msra.mxu0 0
      %1118 = vmatprep.subr.bf16.mxu0 0
      %1119 = vmatpush2.bf16.msra.mxu0 0
      %1120 = vmatprep.subr.bf16.mxu0 0
      %1121 = vmatpush2.bf16.msra.mxu0 0
      %1122 = vmatprep.mubr.bf16.mxu0 0
      %1123 = vmatmul.mubr.bf16.gmra.mxu0 %v1019
      %v1124 = vpop.f32.mrf.mxu0
      %v1125 = vadd.f32 0.0, %v1124
      %v1126 = vpop.f32.mrf.mxu0
      %v1127 = vpop.f32.mrf.mxu0
      %v1128 = vadd.f32 0.0, %v1127
      %v1129 = vpop.f32.mrf.mxu0
      %1130 = vmatprep.mubr.bf16.mxu0 0
      %1131 = vmatmul.mubr.bf16.gmra.mxu0 %v1021
      %v1132 = vpop.f32.mrf.mxu0
      %v1133 = vadd.f32 0.0, %v1132
      %v1134 = vpop.f32.mrf.mxu0
      %v1135 = vpop.f32.mrf.mxu0
      %v1136 = vadd.f32 0.0, %v1135
      %v1137 = vpop.f32.mrf.mxu0
      %1138 = vmatprep.mubr.bf16.mxu0 0
      %1139 = vmatmul.mubr.bf16.gmra.mxu0 %v1023
      %v1140 = vpop.f32.mrf.mxu0
      %v1141 = vadd.f32 0.0, %v1140
      %v1142 = vpop.f32.mrf.mxu0
      %v1143 = vpop.f32.mrf.mxu0
      %v1144 = vadd.f32 0.0, %v1143
      %v1145 = vpop.f32.mrf.mxu0
      %1146 = vmatprep.mubr.bf16.mxu0 0
      %1147 = vmatmul.mubr.bf16.gmra.mxu0 %v1025
      %v1148 = vpop.f32.mrf.mxu0
      %v1149 = vadd.f32 0.0, %v1148
      %v1150 = vpop.f32.mrf.mxu0
      %v1151 = vpop.f32.mrf.mxu0
      %v1152 = vadd.f32 0.0, %v1151
      %v1153 = vpop.f32.mrf.mxu0
      %1154 = vmatprep.mubr.bf16.mxu0 0
      %1155 = vmatmul.mubr.bf16.gmra.mxu0 %v1027
      %v1156 = vpop.f32.mrf.mxu0
      %v1157 = vadd.f32 0.0, %v1156
      %v1158 = vpop.f32.mrf.mxu0
      %v1159 = vpop.f32.mrf.mxu0
      %v1160 = vadd.f32 0.0, %v1159
      %v1161 = vpop.f32.mrf.mxu0
      %1162 = vmatprep.mubr.bf16.mxu0 0
      %1163 = vmatmul.mubr.bf16.gmra.mxu0 %v1029
      %v1164 = vpop.f32.mrf.mxu0
      %v1165 = vadd.f32 0.0, %v1164
      %v1166 = vpop.f32.mrf.mxu0
      %v1167 = vpop.f32.mrf.mxu0
      %v1168 = vadd.f32 0.0, %v1167
      %v1169 = vpop.f32.mrf.mxu0
      %1170 = vmatprep.mubr.bf16.mxu0 0
      %1171 = vmatmul.mubr.bf16.gmra.mxu0 %v1031
      %v1172 = vpop.f32.mrf.mxu0
      %v1173 = vadd.f32 0.0, %v1172
      %v1174 = vpop.f32.mrf.mxu0
      %v1175 = vpop.f32.mrf.mxu0
      %v1176 = vadd.f32 0.0, %v1175
      %v1177 = vpop.f32.mrf.mxu0
      %1178 = vmatprep.mubr.bf16.mxu0 0
      %1179 = vmatmul.mubr.bf16.gmra.mxu0 %v1033
      %v1180 = vpop.f32.mrf.mxu0
      %v1181 = vadd.f32 0.0, %v1180
      %v1182 = vpop.f32.mrf.mxu0
      %v1183 = vpop.f32.mrf.mxu0
      %v1184 = vadd.f32 0.0, %v1183
      %v1185 = vpop.f32.mrf.mxu0
      %1186 = vdwg.mxu0
      %v1187 = vadd.f32 %v933, %v1125
      %v1188 = vadd.f32 %v936, %v1128
      %v1189 = vadd.f32 %v941, %v1133
      %v1190 = vadd.f32 %v944, %v1136
      %v1191 = vadd.f32 %v949, %v1141
      %v1192 = vadd.f32 %v952, %v1144
      %v1193 = vadd.f32 %v957, %v1149
      %v1194 = vadd.f32 %v960, %v1152
      %v1195 = vadd.f32 %v965, %v1157
      %v1196 = vadd.f32 %v968, %v1160
      %v1197 = vadd.f32 %v973, %v1165
      %v1198 = vadd.f32 %v976, %v1168
      %v1199 = vadd.f32 %v981, %v1173
      %v1200 = vadd.f32 %v984, %v1176
      %v1201 = vadd.f32 %v989, %v1181
      %v1202 = vadd.f32 %v992, %v1184
      %s1203 = scalar_lea.vmem %s2, 192
      %v1204 = vld [vmem:[%s1203] sm:$0xf]
      %v1205 = vld [vmem:[%s1203 + $0x4] sm:$0xf]
      %v1206 = vld [vmem:[%s1203 + $0x8] sm:$0xf]
      %v1207 = vld [vmem:[%s1203 + $0xc] sm:$0xf]
      %v1208 = vld [vmem:[%s1203 + $0x10] sm:$0xf]
      %v1209 = vld [vmem:[%s1203 + $0x14] sm:$0xf]
      %v1210 = vld [vmem:[%s1203 + $0x18] sm:$0xf]
      %v1211 = vld [vmem:[%s1203 + $0x1c] sm:$0xf]
      %v1212 = vld [vmem:[%s1203 + $0x20] sm:$0xf]
      %v1213 = vld [vmem:[%s1203 + $0x24] sm:$0xf]
      %v1214 = vld [vmem:[%s1203 + $0x28] sm:$0xf]
      %v1215 = vld [vmem:[%s1203 + $0x2c] sm:$0xf]
      %v1216 = vld [vmem:[%s1203 + $0x30] sm:$0xf]
      %v1217 = vld [vmem:[%s1203 + $0x34] sm:$0xf]
      %v1218 = vld [vmem:[%s1203 + $0x38] sm:$0xf]
      %v1219 = vld [vmem:[%s1203 + $0x3c] sm:$0xf]
      %v1220 = vld [vmem:[#allocation2 + $0x8] sm:$0xf]
      %v1221 = vld [vmem:[#allocation2 + $0xc] sm:$0xf]
      %v1222 = vld [vmem:[#allocation2 + $0x10] sm:$0xf]
      %v1223 = vld [vmem:[#allocation2 + $0x14] sm:$0xf]
      %v1224 = vld [vmem:[#allocation2 + $0x18] sm:$0xf]
      %v1225 = vld [vmem:[#allocation2 + $0x1c] sm:$0xf]
      %v1226 = vld [vmem:[#allocation2 + $0x20] sm:$0xf]
      %v1227 = vld [vmem:[#allocation2 + $0x24] sm:$0xf]
      %v1228 = vld [vmem:[#allocation2 + $0x28] sm:$0xf]
      %v1229 = vld [vmem:[#allocation2 + $0x2c] sm:$0xf]
      %v1230 = vld [vmem:[#allocation2 + $0x30] sm:$0xf]
      %v1231 = vld [vmem:[#allocation2 + $0x34] sm:$0xf]
      %v1232 = vld [vmem:[#allocation2 + $0x38] sm:$0xf]
      %v1233 = vld [vmem:[#allocation2 + $0x3c] sm:$0xf]
      %v1234 = vld [vmem:[#allocation2 + $0x40] sm:$0xf]
      %v1235 = vld [vmem:[#allocation2 + $0x44] sm:$0xf]
      %v1252 = vunpack.c.l.b16 %v1220
      %v1253 = vunpack.c.l.b16 %v1221
      %v1254 = vunpack.c.l.b16 %v1222
      %v1255 = vunpack.c.l.b16 %v1223
      %v1256 = vunpack.c.l.b16 %v1224
      %v1257 = vunpack.c.l.b16 %v1225
      %v1258 = vunpack.c.l.b16 %v1226
      %v1259 = vunpack.c.l.b16 %v1227
      %v1260 = vunpack.c.l.b16 %v1228
      %v1261 = vunpack.c.l.b16 %v1229
      %v1262 = vunpack.c.l.b16 %v1230
      %v1263 = vunpack.c.l.b16 %v1231
      %v1264 = vunpack.c.l.b16 %v1232
      %v1265 = vunpack.c.l.b16 %v1233
      %v1266 = vunpack.c.l.b16 %v1234
      %v1267 = vunpack.c.l.b16 %v1235
      %v1268 = vpack.c.b16 %v1253, %v1252
      %v1269 = vpack.c.b16 %v1255, %v1254
      %v1270 = vpack.c.b16 %v1257, %v1256
      %v1271 = vpack.c.b16 %v1259, %v1258
      %v1272 = vpack.c.b16 %v1261, %v1260
      %v1273 = vpack.c.b16 %v1263, %v1262
      %v1274 = vpack.c.b16 %v1265, %v1264
      %v1275 = vpack.c.b16 %v1267, %v1266
      %v1300 = vunpack.c.l.b16 %v1204
      %v1301 = vunpack.c.l.b16 %v1205
      %v1302 = vunpack.c.l.b16 %v1206
      %v1303 = vunpack.c.l.b16 %v1207
      %v1304 = vunpack.c.l.b16 %v1208
      %v1305 = vunpack.c.l.b16 %v1209
      %v1306 = vunpack.c.l.b16 %v1210
      %v1307 = vunpack.c.l.b16 %v1211
      %v1308 = vunpack.c.l.b16 %v1212
      %v1309 = vunpack.c.l.b16 %v1213
      %v1310 = vunpack.c.l.b16 %v1214
      %v1311 = vunpack.c.l.b16 %v1215
      %v1312 = vunpack.c.l.b16 %v1216
      %v1313 = vunpack.c.l.b16 %v1217
      %v1314 = vunpack.c.l.b16 %v1218
      %v1315 = vunpack.c.l.b16 %v1219
      %v1316 = vpack.c.b16 %v1301, %v1300
      %v1317 = vpack.c.b16 %v1303, %v1302
      %v1318 = vpack.c.b16 %v1305, %v1304
      %v1319 = vpack.c.b16 %v1307, %v1306
      %v1320 = vpack.c.b16 %v1309, %v1308
      %v1321 = vpack.c.b16 %v1311, %v1310
      %v1322 = vpack.c.b16 %v1313, %v1312
      %v1323 = vpack.c.b16 %v1315, %v1314
      %1332 = vmatprep.subr.bf16.mxu0 0
      %1333 = vmatpush1.bf16.msra.mxu0 %v1323
      %1334 = vmatprep.subr.bf16.mxu0 0
      %1335 = vmatpush1.bf16.msra.mxu0 %v1322
      %1336 = vmatprep.subr.bf16.mxu0 0
      %1337 = vmatpush1.bf16.msra.mxu0 %v1321
      %1338 = vmatprep.subr.bf16.mxu0 0
      %1339 = vmatpush1.bf16.msra.mxu0 %v1320
      %1340 = vmatprep.subr.bf16.mxu0 0
      %1341 = vmatpush1.bf16.msra.mxu0 %v1319
      %1342 = vmatprep.subr.bf16.mxu0 0
      %1343 = vmatpush1.bf16.msra.mxu0 %v1318
      %1344 = vmatprep.subr.bf16.mxu0 0
      %1345 = vmatpush1.bf16.msra.mxu0 %v1317
      %1346 = vmatprep.subr.bf16.mxu0 0
      %1347 = vmatpush1.bf16.msra.mxu0 %v1316
      %1348 = vmatprep.subr.bf16.mxu0 0
      %1349 = vmatpush2.bf16.msra.mxu0 0
      %1350 = vmatprep.subr.bf16.mxu0 0
      %1351 = vmatpush2.bf16.msra.mxu0 0
      %1352 = vmatprep.subr.bf16.mxu0 0
      %1353 = vmatpush2.bf16.msra.mxu0 0
      %1354 = vmatprep.subr.bf16.mxu0 0
      %1355 = vmatpush2.bf16.msra.mxu0 0
      %1356 = vmatprep.subr.bf16.mxu0 0
      %1357 = vmatpush2.bf16.msra.mxu0 0
      %1358 = vmatprep.subr.bf16.mxu0 0
      %1359 = vmatpush2.bf16.msra.mxu0 0
      %1360 = vmatprep.subr.bf16.mxu0 0
      %1361 = vmatpush2.bf16.msra.mxu0 0
      %1362 = vmatprep.subr.bf16.mxu0 0
      %1363 = vmatpush2.bf16.msra.mxu0 0
      %1364 = vmatprep.mubr.bf16.mxu0 0
      %1365 = vmatmul.mubr.bf16.gmra.mxu0 %v1268
      %v1366 = vpop.f32.mrf.mxu0
      %v1367 = vadd.f32 0.0, %v1366
      %v1368 = vpop.f32.mrf.mxu0
      %v1369 = vpop.f32.mrf.mxu0
      %v1370 = vadd.f32 0.0, %v1369
      %v1371 = vpop.f32.mrf.mxu0
      %1372 = vmatprep.mubr.bf16.mxu0 0
      %1373 = vmatmul.mubr.bf16.gmra.mxu0 %v1269
      %v1374 = vpop.f32.mrf.mxu0
      %v1375 = vadd.f32 0.0, %v1374
      %v1376 = vpop.f32.mrf.mxu0
      %v1377 = vpop.f32.mrf.mxu0
      %v1378 = vadd.f32 0.0, %v1377
      %v1379 = vpop.f32.mrf.mxu0
      %1380 = vmatprep.mubr.bf16.mxu0 0
      %1381 = vmatmul.mubr.bf16.gmra.mxu0 %v1270
      %v1382 = vpop.f32.mrf.mxu0
      %v1383 = vadd.f32 0.0, %v1382
      %v1384 = vpop.f32.mrf.mxu0
      %v1385 = vpop.f32.mrf.mxu0
      %v1386 = vadd.f32 0.0, %v1385
      %v1387 = vpop.f32.mrf.mxu0
      %1388 = vmatprep.mubr.bf16.mxu0 0
      %1389 = vmatmul.mubr.bf16.gmra.mxu0 %v1271
      %v1390 = vpop.f32.mrf.mxu0
      %v1391 = vadd.f32 0.0, %v1390
      %v1392 = vpop.f32.mrf.mxu0
      %v1393 = vpop.f32.mrf.mxu0
      %v1394 = vadd.f32 0.0, %v1393
      %v1395 = vpop.f32.mrf.mxu0
      %1396 = vmatprep.mubr.bf16.mxu0 0
      %1397 = vmatmul.mubr.bf16.gmra.mxu0 %v1272
      %v1398 = vpop.f32.mrf.mxu0
      %v1399 = vadd.f32 0.0, %v1398
      %v1400 = vpop.f32.mrf.mxu0
      %v1401 = vpop.f32.mrf.mxu0
      %v1402 = vadd.f32 0.0, %v1401
      %v1403 = vpop.f32.mrf.mxu0
      %1404 = vmatprep.mubr.bf16.mxu0 0
      %1405 = vmatmul.mubr.bf16.gmra.mxu0 %v1273
      %v1406 = vpop.f32.mrf.mxu0
      %v1407 = vadd.f32 0.0, %v1406
      %v1408 = vpop.f32.mrf.mxu0
      %v1409 = vpop.f32.mrf.mxu0
      %v1410 = vadd.f32 0.0, %v1409
      %v1411 = vpop.f32.mrf.mxu0
      %1412 = vmatprep.mubr.bf16.mxu0 0
      %1413 = vmatmul.mubr.bf16.gmra.mxu0 %v1274
      %v1414 = vpop.f32.mrf.mxu0
      %v1415 = vadd.f32 0.0, %v1414
      %v1416 = vpop.f32.mrf.mxu0
      %v1417 = vpop.f32.mrf.mxu0
      %v1418 = vadd.f32 0.0, %v1417
      %v1419 = vpop.f32.mrf.mxu0
      %1420 = vmatprep.mubr.bf16.mxu0 0
      %1421 = vmatmul.mubr.bf16.gmra.mxu0 %v1275
      %v1422 = vpop.f32.mrf.mxu0
      %v1423 = vadd.f32 0.0, %v1422
      %v1424 = vpop.f32.mrf.mxu0
      %v1425 = vpop.f32.mrf.mxu0
      %v1426 = vadd.f32 0.0, %v1425
      %v1427 = vpop.f32.mrf.mxu0
      %1428 = vdwg.mxu0
      %v1429 = vadd.f32 %v1187, %v1367
      %v1430 = vadd.f32 %v1188, %v1370
      %v1431 = vadd.f32 %v1189, %v1375
      %v1432 = vadd.f32 %v1190, %v1378
      %v1433 = vadd.f32 %v1191, %v1383
      %v1434 = vadd.f32 %v1192, %v1386
      %v1435 = vadd.f32 %v1193, %v1391
      %v1436 = vadd.f32 %v1194, %v1394
      %v1437 = vadd.f32 %v1195, %v1399
      %v1438 = vadd.f32 %v1196, %v1402
      %v1439 = vadd.f32 %v1197, %v1407
      %v1440 = vadd.f32 %v1198, %v1410
      %v1441 = vadd.f32 %v1199, %v1415
      %v1442 = vadd.f32 %v1200, %v1418
      %v1443 = vadd.f32 %v1201, %v1423
      %v1444 = vadd.f32 %v1202, %v1426
      %s1445 = scalar_lea.vmem %s2, 256
      %v1446 = vld [vmem:[%s1445] sm:$0xf]
      %v1447 = vld [vmem:[%s1445 + $0x4] sm:$0xf]
      %v1448 = vld [vmem:[%s1445 + $0x8] sm:$0xf]
      %v1449 = vld [vmem:[%s1445 + $0xc] sm:$0xf]
      %v1450 = vld [vmem:[%s1445 + $0x10] sm:$0xf]
      %v1451 = vld [vmem:[%s1445 + $0x14] sm:$0xf]
      %v1452 = vld [vmem:[%s1445 + $0x18] sm:$0xf]
      %v1453 = vld [vmem:[%s1445 + $0x1c] sm:$0xf]
      %v1454 = vld [vmem:[%s1445 + $0x20] sm:$0xf]
      %v1455 = vld [vmem:[%s1445 + $0x24] sm:$0xf]
      %v1456 = vld [vmem:[%s1445 + $0x28] sm:$0xf]
      %v1457 = vld [vmem:[%s1445 + $0x2c] sm:$0xf]
      %v1458 = vld [vmem:[%s1445 + $0x30] sm:$0xf]
      %v1459 = vld [vmem:[%s1445 + $0x34] sm:$0xf]
      %v1460 = vld [vmem:[%s1445 + $0x38] sm:$0xf]
      %v1461 = vld [vmem:[%s1445 + $0x3c] sm:$0xf]
      %v1462 = vld [vmem:[#allocation2 + $0x8] sm:$0xf]
      %v1463 = vld [vmem:[#allocation2 + $0xc] sm:$0xf]
      %v1464 = vld [vmem:[#allocation2 + $0x10] sm:$0xf]
      %v1465 = vld [vmem:[#allocation2 + $0x14] sm:$0xf]
      %v1466 = vld [vmem:[#allocation2 + $0x18] sm:$0xf]
      %v1467 = vld [vmem:[#allocation2 + $0x1c] sm:$0xf]
      %v1468 = vld [vmem:[#allocation2 + $0x20] sm:$0xf]
      %v1469 = vld [vmem:[#allocation2 + $0x24] sm:$0xf]
      %v1470 = vld [vmem:[#allocation2 + $0x28] sm:$0xf]
      %v1471 = vld [vmem:[#allocation2 + $0x2c] sm:$0xf]
      %v1472 = vld [vmem:[#allocation2 + $0x30] sm:$0xf]
      %v1473 = vld [vmem:[#allocation2 + $0x34] sm:$0xf]
      %v1474 = vld [vmem:[#allocation2 + $0x38] sm:$0xf]
      %v1475 = vld [vmem:[#allocation2 + $0x3c] sm:$0xf]
      %v1476 = vld [vmem:[#allocation2 + $0x40] sm:$0xf]
      %v1477 = vld [vmem:[#allocation2 + $0x44] sm:$0xf]
      %v1478 = vld [vmem:[#allocation2 + $0x48] sm:$0x1]
      %v1496 = vunpack.c.l.b16 %v1462
      %v1497 = vunpack.c.l.b16 %v1463
      %v1498 = vunpack.c.l.b16 %v1464
      %v1499 = vunpack.c.l.b16 %v1465
      %v1500 = vunpack.c.l.b16 %v1466
      %v1501 = vunpack.c.l.b16 %v1467
      %v1502 = vunpack.c.l.b16 %v1468
      %v1503 = vunpack.c.l.b16 %v1469
      %v1504 = vunpack.c.l.b16 %v1470
      %v1505 = vunpack.c.l.b16 %v1471
      %v1506 = vunpack.c.l.b16 %v1472
      %v1507 = vunpack.c.l.b16 %v1473
      %v1508 = vunpack.c.l.b16 %v1474
      %v1509 = vunpack.c.l.b16 %v1475
      %v1510 = vunpack.c.l.b16 %v1476
      %v1511 = vunpack.c.l.b16 %v1477
      %v1512 = vunpack.c.l.b16 %v1478
      %v1513 = vpack.c.b16 %v1497, %v1496
      %v1514 = vpack.c.b16 %v1499, %v1498
      %v1515 = vpack.c.b16 %v1501, %v1500
      %v1516 = vpack.c.b16 %v1503, %v1502
      %v1517 = vpack.c.b16 %v1505, %v1504
      %v1518 = vpack.c.b16 %v1507, %v1506
      %v1519 = vpack.c.b16 %v1509, %v1508
      %v1520 = vpack.c.b16 %v1511, %v1510
      %v1521 = vpack.c.b16 %v1512, %v1512
      %v1523 = vshrl.u32 %v1513, 16
      %v1525 = vshll.u32 %v1513, 16
      %v1527 = vrot.slane %v1525, 1
      %v1528 = vor.u32 %v1523, %v1527
      %v1530 = vshll.u32 %v1514, 16
      %v1532 = vrot.slane %v1530, 1
      %v1533 = vsel %vm620, %v1528, %v1532
      %v1534 = vshrl.u32 %v1514, 16
      %v1536 = vor.u32 %v1534, %v1532
      %v1538 = vshll.u32 %v1515, 16
      %v1540 = vrot.slane %v1538, 1
      %v1541 = vsel %vm620, %v1536, %v1540
      %v1542 = vshrl.u32 %v1515, 16
      %v1544 = vor.u32 %v1542, %v1540
      %v1546 = vshll.u32 %v1516, 16
      %v1548 = vrot.slane %v1546, 1
      %v1549 = vsel %vm620, %v1544, %v1548
      %v1550 = vshrl.u32 %v1516, 16
      %v1552 = vor.u32 %v1550, %v1548
      %v1554 = vshll.u32 %v1517, 16
      %v1556 = vrot.slane %v1554, 1
      %v1557 = vsel %vm620, %v1552, %v1556
      %v1558 = vshrl.u32 %v1517, 16
      %v1560 = vor.u32 %v1558, %v1556
      %v1562 = vshll.u32 %v1518, 16
      %v1564 = vrot.slane %v1562, 1
      %v1565 = vsel %vm620, %v1560, %v1564
      %v1566 = vshrl.u32 %v1518, 16
      %v1568 = vor.u32 %v1566, %v1564
      %v1570 = vshll.u32 %v1519, 16
      %v1572 = vrot.slane %v1570, 1
      %v1573 = vsel %vm620, %v1568, %v1572
      %v1574 = vshrl.u32 %v1519, 16
      %v1576 = vor.u32 %v1574, %v1572
      %v1578 = vshll.u32 %v1520, 16
      %v1580 = vrot.slane %v1578, 1
      %v1581 = vsel %vm620, %v1576, %v1580
      %v1582 = vshrl.u32 %v1520, 16
      %v1584 = vor.u32 %v1582, %v1580
      %v1586 = vshll.u32 %v1521, 16
      %v1588 = vrot.slane %v1586, 1
      %v1589 = vsel %vm620, %v1584, %v1588
      %v1614 = vunpack.c.l.b16 %v1446
      %v1615 = vunpack.c.l.b16 %v1447
      %v1616 = vunpack.c.l.b16 %v1448
      %v1617 = vunpack.c.l.b16 %v1449
      %v1618 = vunpack.c.l.b16 %v1450
      %v1619 = vunpack.c.l.b16 %v1451
      %v1620 = vunpack.c.l.b16 %v1452
      %v1621 = vunpack.c.l.b16 %v1453
      %v1622 = vunpack.c.l.b16 %v1454
      %v1623 = vunpack.c.l.b16 %v1455
      %v1624 = vunpack.c.l.b16 %v1456
      %v1625 = vunpack.c.l.b16 %v1457
      %v1626 = vunpack.c.l.b16 %v1458
      %v1627 = vunpack.c.l.b16 %v1459
      %v1628 = vunpack.c.l.b16 %v1460
      %v1629 = vunpack.c.l.b16 %v1461
      %v1630 = vpack.c.b16 %v1615, %v1614
      %v1631 = vpack.c.b16 %v1617, %v1616
      %v1632 = vpack.c.b16 %v1619, %v1618
      %v1633 = vpack.c.b16 %v1621, %v1620
      %v1634 = vpack.c.b16 %v1623, %v1622
      %v1635 = vpack.c.b16 %v1625, %v1624
      %v1636 = vpack.c.b16 %v1627, %v1626
      %v1637 = vpack.c.b16 %v1629, %v1628
      %1646 = vmatprep.subr.bf16.mxu0 0
      %1647 = vmatpush1.bf16.msra.mxu0 %v1637
      %1648 = vmatprep.subr.bf16.mxu0 0
      %1649 = vmatpush1.bf16.msra.mxu0 %v1636
      %1650 = vmatprep.subr.bf16.mxu0 0
      %1651 = vmatpush1.bf16.msra.mxu0 %v1635
      %1652 = vmatprep.subr.bf16.mxu0 0
      %1653 = vmatpush1.bf16.msra.mxu0 %v1634
      %1654 = vmatprep.subr.bf16.mxu0 0
      %1655 = vmatpush1.bf16.msra.mxu0 %v1633
      %1656 = vmatprep.subr.bf16.mxu0 0
      %1657 = vmatpush1.bf16.msra.mxu0 %v1632
      %1658 = vmatprep.subr.bf16.mxu0 0
      %1659 = vmatpush1.bf16.msra.mxu0 %v1631
      %1660 = vmatprep.subr.bf16.mxu0 0
      %1661 = vmatpush1.bf16.msra.mxu0 %v1630
      %1662 = vmatprep.subr.bf16.mxu0 0
      %1663 = vmatpush2.bf16.msra.mxu0 0
      %1664 = vmatprep.subr.bf16.mxu0 0
      %1665 = vmatpush2.bf16.msra.mxu0 0
      %1666 = vmatprep.subr.bf16.mxu0 0
      %1667 = vmatpush2.bf16.msra.mxu0 0
      %1668 = vmatprep.subr.bf16.mxu0 0
      %1669 = vmatpush2.bf16.msra.mxu0 0
      %1670 = vmatprep.subr.bf16.mxu0 0
      %1671 = vmatpush2.bf16.msra.mxu0 0
      %1672 = vmatprep.subr.bf16.mxu0 0
      %1673 = vmatpush2.bf16.msra.mxu0 0
      %1674 = vmatprep.subr.bf16.mxu0 0
      %1675 = vmatpush2.bf16.msra.mxu0 0
      %1676 = vmatprep.subr.bf16.mxu0 0
      %1677 = vmatpush2.bf16.msra.mxu0 0
      %1678 = vmatprep.mubr.bf16.mxu0 0
      %1679 = vmatmul.mubr.bf16.gmra.mxu0 %v1533
      %v1680 = vpop.f32.mrf.mxu0
      %v1681 = vadd.f32 0.0, %v1680
      %v1682 = vpop.f32.mrf.mxu0
      %v1683 = vpop.f32.mrf.mxu0
      %v1684 = vadd.f32 0.0, %v1683
      %v1685 = vpop.f32.mrf.mxu0
      %1686 = vmatprep.mubr.bf16.mxu0 0
      %1687 = vmatmul.mubr.bf16.gmra.mxu0 %v1541
      %v1688 = vpop.f32.mrf.mxu0
      %v1689 = vadd.f32 0.0, %v1688
      %v1690 = vpop.f32.mrf.mxu0
      %v1691 = vpop.f32.mrf.mxu0
      %v1692 = vadd.f32 0.0, %v1691
      %v1693 = vpop.f32.mrf.mxu0
      %1694 = vmatprep.mubr.bf16.mxu0 0
      %1695 = vmatmul.mubr.bf16.gmra.mxu0 %v1549
      %v1696 = vpop.f32.mrf.mxu0
      %v1697 = vadd.f32 0.0, %v1696
      %v1698 = vpop.f32.mrf.mxu0
      %v1699 = vpop.f32.mrf.mxu0
      %v1700 = vadd.f32 0.0, %v1699
      %v1701 = vpop.f32.mrf.mxu0
      %1702 = vmatprep.mubr.bf16.mxu0 0
      %1703 = vmatmul.mubr.bf16.gmra.mxu0 %v1557
      %v1704 = vpop.f32.mrf.mxu0
      %v1705 = vadd.f32 0.0, %v1704
      %v1706 = vpop.f32.mrf.mxu0
      %v1707 = vpop.f32.mrf.mxu0
      %v1708 = vadd.f32 0.0, %v1707
      %v1709 = vpop.f32.mrf.mxu0
      %1710 = vmatprep.mubr.bf16.mxu0 0
      %1711 = vmatmul.mubr.bf16.gmra.mxu0 %v1565
      %v1712 = vpop.f32.mrf.mxu0
      %v1713 = vadd.f32 0.0, %v1712
      %v1714 = vpop.f32.mrf.mxu0
      %v1715 = vpop.f32.mrf.mxu0
      %v1716 = vadd.f32 0.0, %v1715
      %v1717 = vpop.f32.mrf.mxu0
      %1718 = vmatprep.mubr.bf16.mxu0 0
      %1719 = vmatmul.mubr.bf16.gmra.mxu0 %v1573
      %v1720 = vpop.f32.mrf.mxu0
      %v1721 = vadd.f32 0.0, %v1720
      %v1722 = vpop.f32.mrf.mxu0
      %v1723 = vpop.f32.mrf.mxu0
      %v1724 = vadd.f32 0.0, %v1723
      %v1725 = vpop.f32.mrf.mxu0
      %1726 = vmatprep.mubr.bf16.mxu0 0
      %1727 = vmatmul.mubr.bf16.gmra.mxu0 %v1581
      %v1728 = vpop.f32.mrf.mxu0
      %v1729 = vadd.f32 0.0, %v1728
      %v1730 = vpop.f32.mrf.mxu0
      %v1731 = vpop.f32.mrf.mxu0
      %v1732 = vadd.f32 0.0, %v1731
      %v1733 = vpop.f32.mrf.mxu0
      %1734 = vmatprep.mubr.bf16.mxu0 0
      %1735 = vmatmul.mubr.bf16.gmra.mxu0 %v1589
      %v1736 = vpop.f32.mrf.mxu0
      %v1737 = vadd.f32 0.0, %v1736
      %v1738 = vpop.f32.mrf.mxu0
      %v1739 = vpop.f32.mrf.mxu0
      %v1740 = vadd.f32 0.0, %v1739
      %v1741 = vpop.f32.mrf.mxu0
      %1742 = vdwg.mxu0
      %v1743 = vadd.f32 %v1429, %v1681
      %v1744 = vadd.f32 %v1430, %v1684
      %v1745 = vadd.f32 %v1431, %v1689
      %v1746 = vadd.f32 %v1432, %v1692
      %v1747 = vadd.f32 %v1433, %v1697
      %v1748 = vadd.f32 %v1434, %v1700
      %v1749 = vadd.f32 %v1435, %v1705
      %v1750 = vadd.f32 %v1436, %v1708
      %v1751 = vadd.f32 %v1437, %v1713
      %v1752 = vadd.f32 %v1438, %v1716
      %v1753 = vadd.f32 %v1439, %v1721
      %v1754 = vadd.f32 %v1440, %v1724
      %v1755 = vadd.f32 %v1441, %v1729
      %v1756 = vadd.f32 %v1442, %v1732
      %v1757 = vadd.f32 %v1443, %v1737
      %v1758 = vadd.f32 %v1444, %v1740
      %s1759 = scalar_lea.vmem %s2, 320
      %v1760 = vld [vmem:[%s1759] sm:$0xf]
      %v1761 = vld [vmem:[%s1759 + $0x4] sm:$0xf]
      %v1762 = vld [vmem:[%s1759 + $0x8] sm:$0xf]
      %v1763 = vld [vmem:[%s1759 + $0xc] sm:$0xf]
      %v1764 = vld [vmem:[%s1759 + $0x10] sm:$0xf]
      %v1765 = vld [vmem:[%s1759 + $0x14] sm:$0xf]
      %v1766 = vld [vmem:[%s1759 + $0x18] sm:$0xf]
      %v1767 = vld [vmem:[%s1759 + $0x1c] sm:$0xf]
      %v1768 = vld [vmem:[%s1759 + $0x20] sm:$0xf]
      %v1769 = vld [vmem:[%s1759 + $0x24] sm:$0xf]
      %v1770 = vld [vmem:[%s1759 + $0x28] sm:$0xf]
      %v1771 = vld [vmem:[%s1759 + $0x2c] sm:$0xf]
      %v1772 = vld [vmem:[%s1759 + $0x30] sm:$0xf]
      %v1773 = vld [vmem:[%s1759 + $0x34] sm:$0xf]
      %v1774 = vld [vmem:[%s1759 + $0x38] sm:$0xf]
      %v1775 = vld [vmem:[%s1759 + $0x3c] sm:$0xf]
      %v1776 = vld [vmem:[#allocation2 + $0x8] sm:$0xe]
      %v1778 = vunpack.c.l.b16 %v1776
      %v1779 = vpack.c.b16 %v1497, %v1778
      %v1780 = vrot.slane %v1779, 1
      %v1781 = vrot.slane %v1514, 1
      %v1782 = vsel %vm1016, %v1780, %v1781
      %v1783 = vrot.slane %v1515, 1
      %v1784 = vsel %vm1016, %v1781, %v1783
      %v1785 = vrot.slane %v1516, 1
      %v1786 = vsel %vm1016, %v1783, %v1785
      %v1787 = vrot.slane %v1517, 1
      %v1788 = vsel %vm1016, %v1785, %v1787
      %v1789 = vrot.slane %v1518, 1
      %v1790 = vsel %vm1016, %v1787, %v1789
      %v1791 = vrot.slane %v1519, 1
      %v1792 = vsel %vm1016, %v1789, %v1791
      %v1793 = vrot.slane %v1520, 1
      %v1794 = vsel %vm1016, %v1791, %v1793
      %v1795 = vrot.slane %v1521, 1
      %v1796 = vsel %vm1016, %v1793, %v1795
      %v1821 = vunpack.c.l.b16 %v1760
      %v1822 = vunpack.c.l.b16 %v1761
      %v1823 = vunpack.c.l.b16 %v1762
      %v1824 = vunpack.c.l.b16 %v1763
      %v1825 = vunpack.c.l.b16 %v1764
      %v1826 = vunpack.c.l.b16 %v1765
      %v1827 = vunpack.c.l.b16 %v1766
      %v1828 = vunpack.c.l.b16 %v1767
      %v1829 = vunpack.c.l.b16 %v1768
      %v1830 = vunpack.c.l.b16 %v1769
      %v1831 = vunpack.c.l.b16 %v1770
      %v1832 = vunpack.c.l.b16 %v1771
      %v1833 = vunpack.c.l.b16 %v1772
      %v1834 = vunpack.c.l.b16 %v1773
      %v1835 = vunpack.c.l.b16 %v1774
      %v1836 = vunpack.c.l.b16 %v1775
      %v1837 = vpack.c.b16 %v1822, %v1821
      %v1838 = vpack.c.b16 %v1824, %v1823
      %v1839 = vpack.c.b16 %v1826, %v1825
      %v1840 = vpack.c.b16 %v1828, %v1827
      %v1841 = vpack.c.b16 %v1830, %v1829
      %v1842 = vpack.c.b16 %v1832, %v1831
      %v1843 = vpack.c.b16 %v1834, %v1833
      %v1844 = vpack.c.b16 %v1836, %v1835
      %1853 = vmatprep.subr.bf16.mxu0 0
      %1854 = vmatpush1.bf16.msra.mxu0 %v1844
      %1855 = vmatprep.subr.bf16.mxu0 0
      %1856 = vmatpush1.bf16.msra.mxu0 %v1843
      %1857 = vmatprep.subr.bf16.mxu0 0
      %1858 = vmatpush1.bf16.msra.mxu0 %v1842
      %1859 = vmatprep.subr.bf16.mxu0 0
      %1860 = vmatpush1.bf16.msra.mxu0 %v1841
      %1861 = vmatprep.subr.bf16.mxu0 0
      %1862 = vmatpush1.bf16.msra.mxu0 %v1840
      %1863 = vmatprep.subr.bf16.mxu0 0
      %1864 = vmatpush1.bf16.msra.mxu0 %v1839
      %1865 = vmatprep.subr.bf16.mxu0 0
      %1866 = vmatpush1.bf16.msra.mxu0 %v1838
      %1867 = vmatprep.subr.bf16.mxu0 0
      %1868 = vmatpush1.bf16.msra.mxu0 %v1837
      %1869 = vmatprep.subr.bf16.mxu0 0
      %1870 = vmatpush2.bf16.msra.mxu0 0
      %1871 = vmatprep.subr.bf16.mxu0 0
      %1872 = vmatpush2.bf16.msra.mxu0 0
      %1873 = vmatprep.subr.bf16.mxu0 0
      %1874 = vmatpush2.bf16.msra.mxu0 0
      %1875 = vmatprep.subr.bf16.mxu0 0
      %1876 = vmatpush2.bf16.msra.mxu0 0
      %1877 = vmatprep.subr.bf16.mxu0 0
      %1878 = vmatpush2.bf16.msra.mxu0 0
      %1879 = vmatprep.subr.bf16.mxu0 0
      %1880 = vmatpush2.bf16.msra.mxu0 0
      %1881 = vmatprep.subr.bf16.mxu0 0
      %1882 = vmatpush2.bf16.msra.mxu0 0
      %1883 = vmatprep.subr.bf16.mxu0 0
      %1884 = vmatpush2.bf16.msra.mxu0 0
      %1885 = vmatprep.mubr.bf16.mxu0 0
      %1886 = vmatmul.mubr.bf16.gmra.mxu0 %v1782
      %v1887 = vpop.f32.mrf.mxu0
      %v1888 = vadd.f32 0.0, %v1887
      %v1889 = vpop.f32.mrf.mxu0
      %v1890 = vpop.f32.mrf.mxu0
      %v1891 = vadd.f32 0.0, %v1890
      %v1892 = vpop.f32.mrf.mxu0
      %1893 = vmatprep.mubr.bf16.mxu0 0
      %1894 = vmatmul.mubr.bf16.gmra.mxu0 %v1784
      %v1895 = vpop.f32.mrf.mxu0
      %v1896 = vadd.f32 0.0, %v1895
      %v1897 = vpop.f32.mrf.mxu0
      %v1898 = vpop.f32.mrf.mxu0
      %v1899 = vadd.f32 0.0, %v1898
      %v1900 = vpop.f32.mrf.mxu0
      %1901 = vmatprep.mubr.bf16.mxu0 0
      %1902 = vmatmul.mubr.bf16.gmra.mxu0 %v1786
      %v1903 = vpop.f32.mrf.mxu0
      %v1904 = vadd.f32 0.0, %v1903
      %v1905 = vpop.f32.mrf.mxu0
      %v1906 = vpop.f32.mrf.mxu0
      %v1907 = vadd.f32 0.0, %v1906
      %v1908 = vpop.f32.mrf.mxu0
      %1909 = vmatprep.mubr.bf16.mxu0 0
      %1910 = vmatmul.mubr.bf16.gmra.mxu0 %v1788
      %v1911 = vpop.f32.mrf.mxu0
      %v1912 = vadd.f32 0.0, %v1911
      %v1913 = vpop.f32.mrf.mxu0
      %v1914 = vpop.f32.mrf.mxu0
      %v1915 = vadd.f32 0.0, %v1914
      %v1916 = vpop.f32.mrf.mxu0
      %1917 = vmatprep.mubr.bf16.mxu0 0
      %1918 = vmatmul.mubr.bf16.gmra.mxu0 %v1790
      %v1919 = vpop.f32.mrf.mxu0
      %v1920 = vadd.f32 0.0, %v1919
      %v1921 = vpop.f32.mrf.mxu0
      %v1922 = vpop.f32.mrf.mxu0
      %v1923 = vadd.f32 0.0, %v1922
      %v1924 = vpop.f32.mrf.mxu0
      %1925 = vmatprep.mubr.bf16.mxu0 0
      %1926 = vmatmul.mubr.bf16.gmra.mxu0 %v1792
      %v1927 = vpop.f32.mrf.mxu0
      %v1928 = vadd.f32 0.0, %v1927
      %v1929 = vpop.f32.mrf.mxu0
      %v1930 = vpop.f32.mrf.mxu0
      %v1931 = vadd.f32 0.0, %v1930
      %v1932 = vpop.f32.mrf.mxu0
      %1933 = vmatprep.mubr.bf16.mxu0 0
      %1934 = vmatmul.mubr.bf16.gmra.mxu0 %v1794
      %v1935 = vpop.f32.mrf.mxu0
      %v1936 = vadd.f32 0.0, %v1935
      %v1937 = vpop.f32.mrf.mxu0
      %v1938 = vpop.f32.mrf.mxu0
      %v1939 = vadd.f32 0.0, %v1938
      %v1940 = vpop.f32.mrf.mxu0
      %1941 = vmatprep.mubr.bf16.mxu0 0
      %1942 = vmatmul.mubr.bf16.gmra.mxu0 %v1796
      %v1943 = vpop.f32.mrf.mxu0
      %v1944 = vadd.f32 0.0, %v1943
      %v1945 = vpop.f32.mrf.mxu0
      %v1946 = vpop.f32.mrf.mxu0
      %v1947 = vadd.f32 0.0, %v1946
      %v1948 = vpop.f32.mrf.mxu0
      %1949 = vdwg.mxu0
      %v1950 = vadd.f32 %v1743, %v1888
      %v1951 = vadd.f32 %v1744, %v1891
      %v1952 = vadd.f32 %v1745, %v1896
      %v1953 = vadd.f32 %v1746, %v1899
      %v1954 = vadd.f32 %v1747, %v1904
      %v1955 = vadd.f32 %v1748, %v1907
      %v1956 = vadd.f32 %v1749, %v1912
      %v1957 = vadd.f32 %v1750, %v1915
      %v1958 = vadd.f32 %v1751, %v1920
      %v1959 = vadd.f32 %v1752, %v1923
      %v1960 = vadd.f32 %v1753, %v1928
      %v1961 = vadd.f32 %v1754, %v1931
      %v1962 = vadd.f32 %v1755, %v1936
      %v1963 = vadd.f32 %v1756, %v1939
      %v1964 = vadd.f32 %v1757, %v1944
      %v1965 = vadd.f32 %v1758, %v1947
      %s1966 = scalar_lea.vmem %s2, 384
      %v1967 = vld [vmem:[%s1966] sm:$0xf]
      %v1968 = vld [vmem:[%s1966 + $0x4] sm:$0xf]
      %v1969 = vld [vmem:[%s1966 + $0x8] sm:$0xf]
      %v1970 = vld [vmem:[%s1966 + $0xc] sm:$0xf]
      %v1971 = vld [vmem:[%s1966 + $0x10] sm:$0xf]
      %v1972 = vld [vmem:[%s1966 + $0x14] sm:$0xf]
      %v1973 = vld [vmem:[%s1966 + $0x18] sm:$0xf]
      %v1974 = vld [vmem:[%s1966 + $0x1c] sm:$0xf]
      %v1975 = vld [vmem:[%s1966 + $0x20] sm:$0xf]
      %v1976 = vld [vmem:[%s1966 + $0x24] sm:$0xf]
      %v1977 = vld [vmem:[%s1966 + $0x28] sm:$0xf]
      %v1978 = vld [vmem:[%s1966 + $0x2c] sm:$0xf]
      %v1979 = vld [vmem:[%s1966 + $0x30] sm:$0xf]
      %v1980 = vld [vmem:[%s1966 + $0x34] sm:$0xf]
      %v1981 = vld [vmem:[%s1966 + $0x38] sm:$0xf]
      %v1982 = vld [vmem:[%s1966 + $0x3c] sm:$0xf]
      %v1983 = vld [vmem:[#allocation2 + $0x10] sm:$0xf]
      %v1984 = vld [vmem:[#allocation2 + $0x14] sm:$0xf]
      %v1985 = vld [vmem:[#allocation2 + $0x18] sm:$0xf]
      %v1986 = vld [vmem:[#allocation2 + $0x1c] sm:$0xf]
      %v1987 = vld [vmem:[#allocation2 + $0x20] sm:$0xf]
      %v1988 = vld [vmem:[#allocation2 + $0x24] sm:$0xf]
      %v1989 = vld [vmem:[#allocation2 + $0x28] sm:$0xf]
      %v1990 = vld [vmem:[#allocation2 + $0x2c] sm:$0xf]
      %v1991 = vld [vmem:[#allocation2 + $0x30] sm:$0xf]
      %v1992 = vld [vmem:[#allocation2 + $0x34] sm:$0xf]
      %v1993 = vld [vmem:[#allocation2 + $0x38] sm:$0xf]
      %v1994 = vld [vmem:[#allocation2 + $0x3c] sm:$0xf]
      %v1995 = vld [vmem:[#allocation2 + $0x40] sm:$0xf]
      %v1996 = vld [vmem:[#allocation2 + $0x44] sm:$0xf]
      %v1997 = vld [vmem:[#allocation2 + $0x48] sm:$0xf]
      %v1998 = vld [vmem:[#allocation2 + $0x4c] sm:$0xf]
      %v2015 = vunpack.c.l.b16 %v1983
      %v2016 = vunpack.c.l.b16 %v1984
      %v2017 = vunpack.c.l.b16 %v1985
      %v2018 = vunpack.c.l.b16 %v1986
      %v2019 = vunpack.c.l.b16 %v1987
      %v2020 = vunpack.c.l.b16 %v1988
      %v2021 = vunpack.c.l.b16 %v1989
      %v2022 = vunpack.c.l.b16 %v1990
      %v2023 = vunpack.c.l.b16 %v1991
      %v2024 = vunpack.c.l.b16 %v1992
      %v2025 = vunpack.c.l.b16 %v1993
      %v2026 = vunpack.c.l.b16 %v1994
      %v2027 = vunpack.c.l.b16 %v1995
      %v2028 = vunpack.c.l.b16 %v1996
      %v2029 = vunpack.c.l.b16 %v1997
      %v2030 = vunpack.c.l.b16 %v1998
      %v2031 = vpack.c.b16 %v2016, %v2015
      %v2032 = vpack.c.b16 %v2018, %v2017
      %v2033 = vpack.c.b16 %v2020, %v2019
      %v2034 = vpack.c.b16 %v2022, %v2021
      %v2035 = vpack.c.b16 %v2024, %v2023
      %v2036 = vpack.c.b16 %v2026, %v2025
      %v2037 = vpack.c.b16 %v2028, %v2027
      %v2038 = vpack.c.b16 %v2030, %v2029
      %v2063 = vunpack.c.l.b16 %v1967
      %v2064 = vunpack.c.l.b16 %v1968
      %v2065 = vunpack.c.l.b16 %v1969
      %v2066 = vunpack.c.l.b16 %v1970
      %v2067 = vunpack.c.l.b16 %v1971
      %v2068 = vunpack.c.l.b16 %v1972
      %v2069 = vunpack.c.l.b16 %v1973
      %v2070 = vunpack.c.l.b16 %v1974
      %v2071 = vunpack.c.l.b16 %v1975
      %v2072 = vunpack.c.l.b16 %v1976
      %v2073 = vunpack.c.l.b16 %v1977
      %v2074 = vunpack.c.l.b16 %v1978
      %v2075 = vunpack.c.l.b16 %v1979
      %v2076 = vunpack.c.l.b16 %v1980
      %v2077 = vunpack.c.l.b16 %v1981
      %v2078 = vunpack.c.l.b16 %v1982
      %v2079 = vpack.c.b16 %v2064, %v2063
      %v2080 = vpack.c.b16 %v2066, %v2065
      %v2081 = vpack.c.b16 %v2068, %v2067
      %v2082 = vpack.c.b16 %v2070, %v2069
      %v2083 = vpack.c.b16 %v2072, %v2071
      %v2084 = vpack.c.b16 %v2074, %v2073
      %v2085 = vpack.c.b16 %v2076, %v2075
      %v2086 = vpack.c.b16 %v2078, %v2077
      %2095 = vmatprep.subr.bf16.mxu0 0
      %2096 = vmatpush1.bf16.msra.mxu0 %v2086
      %2097 = vmatprep.subr.bf16.mxu0 0
      %2098 = vmatpush1.bf16.msra.mxu0 %v2085
      %2099 = vmatprep.subr.bf16.mxu0 0
      %2100 = vmatpush1.bf16.msra.mxu0 %v2084
      %2101 = vmatprep.subr.bf16.mxu0 0
      %2102 = vmatpush1.bf16.msra.mxu0 %v2083
      %2103 = vmatprep.subr.bf16.mxu0 0
      %2104 = vmatpush1.bf16.msra.mxu0 %v2082
      %2105 = vmatprep.subr.bf16.mxu0 0
      %2106 = vmatpush1.bf16.msra.mxu0 %v2081
      %2107 = vmatprep.subr.bf16.mxu0 0
      %2108 = vmatpush1.bf16.msra.mxu0 %v2080
      %2109 = vmatprep.subr.bf16.mxu0 0
      %2110 = vmatpush1.bf16.msra.mxu0 %v2079
      %2111 = vmatprep.subr.bf16.mxu0 0
      %2112 = vmatpush2.bf16.msra.mxu0 0
      %2113 = vmatprep.subr.bf16.mxu0 0
      %2114 = vmatpush2.bf16.msra.mxu0 0
      %2115 = vmatprep.subr.bf16.mxu0 0
      %2116 = vmatpush2.bf16.msra.mxu0 0
      %2117 = vmatprep.subr.bf16.mxu0 0
      %2118 = vmatpush2.bf16.msra.mxu0 0
      %2119 = vmatprep.subr.bf16.mxu0 0
      %2120 = vmatpush2.bf16.msra.mxu0 0
      %2121 = vmatprep.subr.bf16.mxu0 0
      %2122 = vmatpush2.bf16.msra.mxu0 0
      %2123 = vmatprep.subr.bf16.mxu0 0
      %2124 = vmatpush2.bf16.msra.mxu0 0
      %2125 = vmatprep.subr.bf16.mxu0 0
      %2126 = vmatpush2.bf16.msra.mxu0 0
      %2127 = vmatprep.mubr.bf16.mxu0 0
      %2128 = vmatmul.mubr.bf16.gmra.mxu0 %v2031
      %v2129 = vpop.f32.mrf.mxu0
      %v2130 = vadd.f32 0.0, %v2129
      %v2131 = vpop.f32.mrf.mxu0
      %v2132 = vpop.f32.mrf.mxu0
      %v2133 = vadd.f32 0.0, %v2132
      %v2134 = vpop.f32.mrf.mxu0
      %2135 = vmatprep.mubr.bf16.mxu0 0
      %2136 = vmatmul.mubr.bf16.gmra.mxu0 %v2032
      %v2137 = vpop.f32.mrf.mxu0
      %v2138 = vadd.f32 0.0, %v2137
      %v2139 = vpop.f32.mrf.mxu0
      %v2140 = vpop.f32.mrf.mxu0
      %v2141 = vadd.f32 0.0, %v2140
      %v2142 = vpop.f32.mrf.mxu0
      %2143 = vmatprep.mubr.bf16.mxu0 0
      %2144 = vmatmul.mubr.bf16.gmra.mxu0 %v2033
      %v2145 = vpop.f32.mrf.mxu0
      %v2146 = vadd.f32 0.0, %v2145
      %v2147 = vpop.f32.mrf.mxu0
      %v2148 = vpop.f32.mrf.mxu0
      %v2149 = vadd.f32 0.0, %v2148
      %v2150 = vpop.f32.mrf.mxu0
      %2151 = vmatprep.mubr.bf16.mxu0 0
      %2152 = vmatmul.mubr.bf16.gmra.mxu0 %v2034
      %v2153 = vpop.f32.mrf.mxu0
      %v2154 = vadd.f32 0.0, %v2153
      %v2155 = vpop.f32.mrf.mxu0
      %v2156 = vpop.f32.mrf.mxu0
      %v2157 = vadd.f32 0.0, %v2156
      %v2158 = vpop.f32.mrf.mxu0
      %2159 = vmatprep.mubr.bf16.mxu0 0
      %2160 = vmatmul.mubr.bf16.gmra.mxu0 %v2035
      %v2161 = vpop.f32.mrf.mxu0
      %v2162 = vadd.f32 0.0, %v2161
      %v2163 = vpop.f32.mrf.mxu0
      %v2164 = vpop.f32.mrf.mxu0
      %v2165 = vadd.f32 0.0, %v2164
      %v2166 = vpop.f32.mrf.mxu0
      %2167 = vmatprep.mubr.bf16.mxu0 0
      %2168 = vmatmul.mubr.bf16.gmra.mxu0 %v2036
      %v2169 = vpop.f32.mrf.mxu0
      %v2170 = vadd.f32 0.0, %v2169
      %v2171 = vpop.f32.mrf.mxu0
      %v2172 = vpop.f32.mrf.mxu0
      %v2173 = vadd.f32 0.0, %v2172
      %v2174 = vpop.f32.mrf.mxu0
      %2175 = vmatprep.mubr.bf16.mxu0 0
      %2176 = vmatmul.mubr.bf16.gmra.mxu0 %v2037
      %v2177 = vpop.f32.mrf.mxu0
      %v2178 = vadd.f32 0.0, %v2177
      %v2179 = vpop.f32.mrf.mxu0
      %v2180 = vpop.f32.mrf.mxu0
      %v2181 = vadd.f32 0.0, %v2180
      %v2182 = vpop.f32.mrf.mxu0
      %2183 = vmatprep.mubr.bf16.mxu0 0
      %2184 = vmatmul.mubr.bf16.gmra.mxu0 %v2038
      %v2185 = vpop.f32.mrf.mxu0
      %v2186 = vadd.f32 0.0, %v2185
      %v2187 = vpop.f32.mrf.mxu0
      %v2188 = vpop.f32.mrf.mxu0
      %v2189 = vadd.f32 0.0, %v2188
      %v2190 = vpop.f32.mrf.mxu0
      %2191 = vdwg.mxu0
      %v2192 = vadd.f32 %v1950, %v2130
      %v2193 = vadd.f32 %v1951, %v2133
      %v2194 = vadd.f32 %v1952, %v2138
      %v2195 = vadd.f32 %v1953, %v2141
      %v2196 = vadd.f32 %v1954, %v2146
      %v2197 = vadd.f32 %v1955, %v2149
      %v2198 = vadd.f32 %v1956, %v2154
      %v2199 = vadd.f32 %v1957, %v2157
      %v2200 = vadd.f32 %v1958, %v2162
      %v2201 = vadd.f32 %v1959, %v2165
      %v2202 = vadd.f32 %v1960, %v2170
      %v2203 = vadd.f32 %v1961, %v2173
      %v2204 = vadd.f32 %v1962, %v2178
      %v2205 = vadd.f32 %v1963, %v2181
      %v2206 = vadd.f32 %v1964, %v2186
      %v2207 = vadd.f32 %v1965, %v2189
      %s2208 = scalar_lea.vmem %s2, 448
      %v2209 = vld [vmem:[%s2208] sm:$0xf]
      %v2210 = vld [vmem:[%s2208 + $0x4] sm:$0xf]
      %v2211 = vld [vmem:[%s2208 + $0x8] sm:$0xf]
      %v2212 = vld [vmem:[%s2208 + $0xc] sm:$0xf]
      %v2213 = vld [vmem:[%s2208 + $0x10] sm:$0xf]
      %v2214 = vld [vmem:[%s2208 + $0x14] sm:$0xf]
      %v2215 = vld [vmem:[%s2208 + $0x18] sm:$0xf]
      %v2216 = vld [vmem:[%s2208 + $0x1c] sm:$0xf]
      %v2217 = vld [vmem:[%s2208 + $0x20] sm:$0xf]
      %v2218 = vld [vmem:[%s2208 + $0x24] sm:$0xf]
      %v2219 = vld [vmem:[%s2208 + $0x28] sm:$0xf]
      %v2220 = vld [vmem:[%s2208 + $0x2c] sm:$0xf]
      %v2221 = vld [vmem:[%s2208 + $0x30] sm:$0xf]
      %v2222 = vld [vmem:[%s2208 + $0x34] sm:$0xf]
      %v2223 = vld [vmem:[%s2208 + $0x38] sm:$0xf]
      %v2224 = vld [vmem:[%s2208 + $0x3c] sm:$0xf]
      %v2225 = vld [vmem:[#allocation2 + $0x10] sm:$0xf]
      %v2226 = vld [vmem:[#allocation2 + $0x14] sm:$0xf]
      %v2227 = vld [vmem:[#allocation2 + $0x18] sm:$0xf]
      %v2228 = vld [vmem:[#allocation2 + $0x1c] sm:$0xf]
      %v2229 = vld [vmem:[#allocation2 + $0x20] sm:$0xf]
      %v2230 = vld [vmem:[#allocation2 + $0x24] sm:$0xf]
      %v2231 = vld [vmem:[#allocation2 + $0x28] sm:$0xf]
      %v2232 = vld [vmem:[#allocation2 + $0x2c] sm:$0xf]
      %v2233 = vld [vmem:[#allocation2 + $0x30] sm:$0xf]
      %v2234 = vld [vmem:[#allocation2 + $0x34] sm:$0xf]
      %v2235 = vld [vmem:[#allocation2 + $0x38] sm:$0xf]
      %v2236 = vld [vmem:[#allocation2 + $0x3c] sm:$0xf]
      %v2237 = vld [vmem:[#allocation2 + $0x40] sm:$0xf]
      %v2238 = vld [vmem:[#allocation2 + $0x44] sm:$0xf]
      %v2239 = vld [vmem:[#allocation2 + $0x48] sm:$0xf]
      %v2240 = vld [vmem:[#allocation2 + $0x4c] sm:$0xf]
      %v2241 = vld [vmem:[#allocation2 + $0x50] sm:$0x1]
      %v2259 = vunpack.c.l.b16 %v2225
      %v2260 = vunpack.c.l.b16 %v2226
      %v2261 = vunpack.c.l.b16 %v2227
      %v2262 = vunpack.c.l.b16 %v2228
      %v2263 = vunpack.c.l.b16 %v2229
      %v2264 = vunpack.c.l.b16 %v2230
      %v2265 = vunpack.c.l.b16 %v2231
      %v2266 = vunpack.c.l.b16 %v2232
      %v2267 = vunpack.c.l.b16 %v2233
      %v2268 = vunpack.c.l.b16 %v2234
      %v2269 = vunpack.c.l.b16 %v2235
      %v2270 = vunpack.c.l.b16 %v2236
      %v2271 = vunpack.c.l.b16 %v2237
      %v2272 = vunpack.c.l.b16 %v2238
      %v2273 = vunpack.c.l.b16 %v2239
      %v2274 = vunpack.c.l.b16 %v2240
      %v2275 = vunpack.c.l.b16 %v2241
      %v2276 = vpack.c.b16 %v2260, %v2259
      %v2277 = vpack.c.b16 %v2262, %v2261
      %v2278 = vpack.c.b16 %v2264, %v2263
      %v2279 = vpack.c.b16 %v2266, %v2265
      %v2280 = vpack.c.b16 %v2268, %v2267
      %v2281 = vpack.c.b16 %v2270, %v2269
      %v2282 = vpack.c.b16 %v2272, %v2271
      %v2283 = vpack.c.b16 %v2274, %v2273
      %v2284 = vpack.c.b16 %v2275, %v2275
      %v2286 = vshrl.u32 %v2276, 16
      %v2288 = vshll.u32 %v2276, 16
      %v2290 = vrot.slane %v2288, 1
      %v2291 = vor.u32 %v2286, %v2290
      %v2293 = vshll.u32 %v2277, 16
      %v2295 = vrot.slane %v2293, 1
      %v2296 = vsel %vm620, %v2291, %v2295
      %v2297 = vshrl.u32 %v2277, 16
      %v2299 = vor.u32 %v2297, %v2295
      %v2301 = vshll.u32 %v2278, 16
      %v2303 = vrot.slane %v2301, 1
      %v2304 = vsel %vm620, %v2299, %v2303
      %v2305 = vshrl.u32 %v2278, 16
      %v2307 = vor.u32 %v2305, %v2303
      %v2309 = vshll.u32 %v2279, 16
      %v2311 = vrot.slane %v2309, 1
      %v2312 = vsel %vm620, %v2307, %v2311
      %v2313 = vshrl.u32 %v2279, 16
      %v2315 = vor.u32 %v2313, %v2311
      %v2317 = vshll.u32 %v2280, 16
      %v2319 = vrot.slane %v2317, 1
      %v2320 = vsel %vm620, %v2315, %v2319
      %v2321 = vshrl.u32 %v2280, 16
      %v2323 = vor.u32 %v2321, %v2319
      %v2325 = vshll.u32 %v2281, 16
      %v2327 = vrot.slane %v2325, 1
      %v2328 = vsel %vm620, %v2323, %v2327
      %v2329 = vshrl.u32 %v2281, 16
      %v2331 = vor.u32 %v2329, %v2327
      %v2333 = vshll.u32 %v2282, 16
      %v2335 = vrot.slane %v2333, 1
      %v2336 = vsel %vm620, %v2331, %v2335
      %v2337 = vshrl.u32 %v2282, 16
      %v2339 = vor.u32 %v2337, %v2335
      %v2341 = vshll.u32 %v2283, 16
      %v2343 = vrot.slane %v2341, 1
      %v2344 = vsel %vm620, %v2339, %v2343
      %v2345 = vshrl.u32 %v2283, 16
      %v2347 = vor.u32 %v2345, %v2343
      %v2349 = vshll.u32 %v2284, 16
      %v2351 = vrot.slane %v2349, 1
      %v2352 = vsel %vm620, %v2347, %v2351
      %v2377 = vunpack.c.l.b16 %v2209
      %v2378 = vunpack.c.l.b16 %v2210
      %v2379 = vunpack.c.l.b16 %v2211
      %v2380 = vunpack.c.l.b16 %v2212
      %v2381 = vunpack.c.l.b16 %v2213
      %v2382 = vunpack.c.l.b16 %v2214
      %v2383 = vunpack.c.l.b16 %v2215
      %v2384 = vunpack.c.l.b16 %v2216
      %v2385 = vunpack.c.l.b16 %v2217
      %v2386 = vunpack.c.l.b16 %v2218
      %v2387 = vunpack.c.l.b16 %v2219
      %v2388 = vunpack.c.l.b16 %v2220
      %v2389 = vunpack.c.l.b16 %v2221
      %v2390 = vunpack.c.l.b16 %v2222
      %v2391 = vunpack.c.l.b16 %v2223
      %v2392 = vunpack.c.l.b16 %v2224
      %v2393 = vpack.c.b16 %v2378, %v2377
      %v2394 = vpack.c.b16 %v2380, %v2379
      %v2395 = vpack.c.b16 %v2382, %v2381
      %v2396 = vpack.c.b16 %v2384, %v2383
      %v2397 = vpack.c.b16 %v2386, %v2385
      %v2398 = vpack.c.b16 %v2388, %v2387
      %v2399 = vpack.c.b16 %v2390, %v2389
      %v2400 = vpack.c.b16 %v2392, %v2391
      %2409 = vmatprep.subr.bf16.mxu0 0
      %2410 = vmatpush1.bf16.msra.mxu0 %v2400
      %2411 = vmatprep.subr.bf16.mxu0 0
      %2412 = vmatpush1.bf16.msra.mxu0 %v2399
      %2413 = vmatprep.subr.bf16.mxu0 0
      %2414 = vmatpush1.bf16.msra.mxu0 %v2398
      %2415 = vmatprep.subr.bf16.mxu0 0
      %2416 = vmatpush1.bf16.msra.mxu0 %v2397
      %2417 = vmatprep.subr.bf16.mxu0 0
      %2418 = vmatpush1.bf16.msra.mxu0 %v2396
      %2419 = vmatprep.subr.bf16.mxu0 0
      %2420 = vmatpush1.bf16.msra.mxu0 %v2395
      %2421 = vmatprep.subr.bf16.mxu0 0
      %2422 = vmatpush1.bf16.msra.mxu0 %v2394
      %2423 = vmatprep.subr.bf16.mxu0 0
      %2424 = vmatpush1.bf16.msra.mxu0 %v2393
      %2425 = vmatprep.subr.bf16.mxu0 0
      %2426 = vmatpush2.bf16.msra.mxu0 0
      %2427 = vmatprep.subr.bf16.mxu0 0
      %2428 = vmatpush2.bf16.msra.mxu0 0
      %2429 = vmatprep.subr.bf16.mxu0 0
      %2430 = vmatpush2.bf16.msra.mxu0 0
      %2431 = vmatprep.subr.bf16.mxu0 0
      %2432 = vmatpush2.bf16.msra.mxu0 0
      %2433 = vmatprep.subr.bf16.mxu0 0
      %2434 = vmatpush2.bf16.msra.mxu0 0
      %2435 = vmatprep.subr.bf16.mxu0 0
      %2436 = vmatpush2.bf16.msra.mxu0 0
      %2437 = vmatprep.subr.bf16.mxu0 0
      %2438 = vmatpush2.bf16.msra.mxu0 0
      %2439 = vmatprep.subr.bf16.mxu0 0
      %2440 = vmatpush2.bf16.msra.mxu0 0
      %2441 = vmatprep.mubr.bf16.mxu0 0
      %2442 = vmatmul.mubr.bf16.gmra.mxu0 %v2296
      %v2443 = vpop.f32.mrf.mxu0
      %v2444 = vadd.f32 0.0, %v2443
      %v2445 = vpop.f32.mrf.mxu0
      %v2446 = vpop.f32.mrf.mxu0
      %v2447 = vadd.f32 0.0, %v2446
      %v2448 = vpop.f32.mrf.mxu0
      %2449 = vmatprep.mubr.bf16.mxu0 0
      %2450 = vmatmul.mubr.bf16.gmra.mxu0 %v2304
      %v2451 = vpop.f32.mrf.mxu0
      %v2452 = vadd.f32 0.0, %v2451
      %v2453 = vpop.f32.mrf.mxu0
      %v2454 = vpop.f32.mrf.mxu0
      %v2455 = vadd.f32 0.0, %v2454
      %v2456 = vpop.f32.mrf.mxu0
      %2457 = vmatprep.mubr.bf16.mxu0 0
      %2458 = vmatmul.mubr.bf16.gmra.mxu0 %v2312
      %v2459 = vpop.f32.mrf.mxu0
      %v2460 = vadd.f32 0.0, %v2459
      %v2461 = vpop.f32.mrf.mxu0
      %v2462 = vpop.f32.mrf.mxu0
      %v2463 = vadd.f32 0.0, %v2462
      %v2464 = vpop.f32.mrf.mxu0
      %2465 = vmatprep.mubr.bf16.mxu0 0
      %2466 = vmatmul.mubr.bf16.gmra.mxu0 %v2320
      %v2467 = vpop.f32.mrf.mxu0
      %v2468 = vadd.f32 0.0, %v2467
      %v2469 = vpop.f32.mrf.mxu0
      %v2470 = vpop.f32.mrf.mxu0
      %v2471 = vadd.f32 0.0, %v2470
      %v2472 = vpop.f32.mrf.mxu0
      %2473 = vmatprep.mubr.bf16.mxu0 0
      %2474 = vmatmul.mubr.bf16.gmra.mxu0 %v2328
      %v2475 = vpop.f32.mrf.mxu0
      %v2476 = vadd.f32 0.0, %v2475
      %v2477 = vpop.f32.mrf.mxu0
      %v2478 = vpop.f32.mrf.mxu0
      %v2479 = vadd.f32 0.0, %v2478
      %v2480 = vpop.f32.mrf.mxu0
      %2481 = vmatprep.mubr.bf16.mxu0 0
      %2482 = vmatmul.mubr.bf16.gmra.mxu0 %v2336
      %v2483 = vpop.f32.mrf.mxu0
      %v2484 = vadd.f32 0.0, %v2483
      %v2485 = vpop.f32.mrf.mxu0
      %v2486 = vpop.f32.mrf.mxu0
      %v2487 = vadd.f32 0.0, %v2486
      %v2488 = vpop.f32.mrf.mxu0
      %2489 = vmatprep.mubr.bf16.mxu0 0
      %2490 = vmatmul.mubr.bf16.gmra.mxu0 %v2344
      %v2491 = vpop.f32.mrf.mxu0
      %v2492 = vadd.f32 0.0, %v2491
      %v2493 = vpop.f32.mrf.mxu0
      %v2494 = vpop.f32.mrf.mxu0
      %v2495 = vadd.f32 0.0, %v2494
      %v2496 = vpop.f32.mrf.mxu0
      %2497 = vmatprep.mubr.bf16.mxu0 0
      %2498 = vmatmul.mubr.bf16.gmra.mxu0 %v2352
      %v2499 = vpop.f32.mrf.mxu0
      %v2500 = vadd.f32 0.0, %v2499
      %v2501 = vpop.f32.mrf.mxu0
      %v2502 = vpop.f32.mrf.mxu0
      %v2503 = vadd.f32 0.0, %v2502
      %v2504 = vpop.f32.mrf.mxu0
      %2505 = vdwg.mxu0
      %v2506 = vadd.f32 %v2192, %v2444
      %v2507 = vadd.f32 %v2193, %v2447
      %v2508 = vadd.f32 %v2194, %v2452
      %v2509 = vadd.f32 %v2195, %v2455
      %v2510 = vadd.f32 %v2196, %v2460
      %v2511 = vadd.f32 %v2197, %v2463
      %v2512 = vadd.f32 %v2198, %v2468
      %v2513 = vadd.f32 %v2199, %v2471
      %v2514 = vadd.f32 %v2200, %v2476
      %v2515 = vadd.f32 %v2201, %v2479
      %v2516 = vadd.f32 %v2202, %v2484
      %v2517 = vadd.f32 %v2203, %v2487
      %v2518 = vadd.f32 %v2204, %v2492
      %v2519 = vadd.f32 %v2205, %v2495
      %v2520 = vadd.f32 %v2206, %v2500
      %v2521 = vadd.f32 %v2207, %v2503
      %s2522 = scalar_lea.vmem %s2, 512
      %v2523 = vld [vmem:[%s2522] sm:$0xf]
      %v2524 = vld [vmem:[%s2522 + $0x4] sm:$0xf]
      %v2525 = vld [vmem:[%s2522 + $0x8] sm:$0xf]
      %v2526 = vld [vmem:[%s2522 + $0xc] sm:$0xf]
      %v2527 = vld [vmem:[%s2522 + $0x10] sm:$0xf]
      %v2528 = vld [vmem:[%s2522 + $0x14] sm:$0xf]
      %v2529 = vld [vmem:[%s2522 + $0x18] sm:$0xf]
      %v2530 = vld [vmem:[%s2522 + $0x1c] sm:$0xf]
      %v2531 = vld [vmem:[%s2522 + $0x20] sm:$0xf]
      %v2532 = vld [vmem:[%s2522 + $0x24] sm:$0xf]
      %v2533 = vld [vmem:[%s2522 + $0x28] sm:$0xf]
      %v2534 = vld [vmem:[%s2522 + $0x2c] sm:$0xf]
      %v2535 = vld [vmem:[%s2522 + $0x30] sm:$0xf]
      %v2536 = vld [vmem:[%s2522 + $0x34] sm:$0xf]
      %v2537 = vld [vmem:[%s2522 + $0x38] sm:$0xf]
      %v2538 = vld [vmem:[%s2522 + $0x3c] sm:$0xf]
      %v2539 = vld [vmem:[#allocation2 + $0x10] sm:$0xe]
      %v2541 = vunpack.c.l.b16 %v2539
      %v2542 = vpack.c.b16 %v2260, %v2541
      %v2543 = vrot.slane %v2542, 1
      %v2544 = vrot.slane %v2277, 1
      %v2545 = vsel %vm1016, %v2543, %v2544
      %v2546 = vrot.slane %v2278, 1
      %v2547 = vsel %vm1016, %v2544, %v2546
      %v2548 = vrot.slane %v2279, 1
      %v2549 = vsel %vm1016, %v2546, %v2548
      %v2550 = vrot.slane %v2280, 1
      %v2551 = vsel %vm1016, %v2548, %v2550
      %v2552 = vrot.slane %v2281, 1
      %v2553 = vsel %vm1016, %v2550, %v2552
      %v2554 = vrot.slane %v2282, 1
      %v2555 = vsel %vm1016, %v2552, %v2554
      %v2556 = vrot.slane %v2283, 1
      %v2557 = vsel %vm1016, %v2554, %v2556
      %v2558 = vrot.slane %v2284, 1
      %v2559 = vsel %vm1016, %v2556, %v2558
      %v2584 = vunpack.c.l.b16 %v2523
      %v2585 = vunpack.c.l.b16 %v2524
      %v2586 = vunpack.c.l.b16 %v2525
      %v2587 = vunpack.c.l.b16 %v2526
      %v2588 = vunpack.c.l.b16 %v2527
      %v2589 = vunpack.c.l.b16 %v2528
      %v2590 = vunpack.c.l.b16 %v2529
      %v2591 = vunpack.c.l.b16 %v2530
      %v2592 = vunpack.c.l.b16 %v2531
      %v2593 = vunpack.c.l.b16 %v2532
      %v2594 = vunpack.c.l.b16 %v2533
      %v2595 = vunpack.c.l.b16 %v2534
      %v2596 = vunpack.c.l.b16 %v2535
      %v2597 = vunpack.c.l.b16 %v2536
      %v2598 = vunpack.c.l.b16 %v2537
      %v2599 = vunpack.c.l.b16 %v2538
      %v2600 = vpack.c.b16 %v2585, %v2584
      %v2601 = vpack.c.b16 %v2587, %v2586
      %v2602 = vpack.c.b16 %v2589, %v2588
      %v2603 = vpack.c.b16 %v2591, %v2590
      %v2604 = vpack.c.b16 %v2593, %v2592
      %v2605 = vpack.c.b16 %v2595, %v2594
      %v2606 = vpack.c.b16 %v2597, %v2596
      %v2607 = vpack.c.b16 %v2599, %v2598
      %2616 = vmatprep.subr.bf16.mxu0 0
      %2617 = vmatpush1.bf16.msra.mxu0 %v2607
      %2618 = vmatprep.subr.bf16.mxu0 0
      %2619 = vmatpush1.bf16.msra.mxu0 %v2606
      %2620 = vmatprep.subr.bf16.mxu0 0
      %2621 = vmatpush1.bf16.msra.mxu0 %v2605
      %2622 = vmatprep.subr.bf16.mxu0 0
      %2623 = vmatpush1.bf16.msra.mxu0 %v2604
      %2624 = vmatprep.subr.bf16.mxu0 0
      %2625 = vmatpush1.bf16.msra.mxu0 %v2603
      %2626 = vmatprep.subr.bf16.mxu0 0
      %2627 = vmatpush1.bf16.msra.mxu0 %v2602
      %2628 = vmatprep.subr.bf16.mxu0 0
      %2629 = vmatpush1.bf16.msra.mxu0 %v2601
      %2630 = vmatprep.subr.bf16.mxu0 0
      %2631 = vmatpush1.bf16.msra.mxu0 %v2600
      %2632 = vmatprep.subr.bf16.mxu0 0
      %2633 = vmatpush2.bf16.msra.mxu0 0
      %2634 = vmatprep.subr.bf16.mxu0 0
      %2635 = vmatpush2.bf16.msra.mxu0 0
      %2636 = vmatprep.subr.bf16.mxu0 0
      %2637 = vmatpush2.bf16.msra.mxu0 0
      %2638 = vmatprep.subr.bf16.mxu0 0
      %2639 = vmatpush2.bf16.msra.mxu0 0
      %2640 = vmatprep.subr.bf16.mxu0 0
      %2641 = vmatpush2.bf16.msra.mxu0 0
      %2642 = vmatprep.subr.bf16.mxu0 0
      %2643 = vmatpush2.bf16.msra.mxu0 0
      %2644 = vmatprep.subr.bf16.mxu0 0
      %2645 = vmatpush2.bf16.msra.mxu0 0
      %2646 = vmatprep.subr.bf16.mxu0 0
      %2647 = vmatpush2.bf16.msra.mxu0 0
      %2648 = vmatprep.mubr.bf16.mxu0 0
      %2649 = vmatmul.mubr.bf16.gmra.mxu0 %v2545
      %v2650 = vpop.f32.mrf.mxu0
      %v2651 = vadd.f32 0.0, %v2650
      %v2652 = vpop.f32.mrf.mxu0
      %v2653 = vpop.f32.mrf.mxu0
      %v2654 = vadd.f32 0.0, %v2653
      %v2655 = vpop.f32.mrf.mxu0
      %2656 = vmatprep.mubr.bf16.mxu0 0
      %2657 = vmatmul.mubr.bf16.gmra.mxu0 %v2547
      %v2658 = vpop.f32.mrf.mxu0
      %v2659 = vadd.f32 0.0, %v2658
      %v2660 = vpop.f32.mrf.mxu0
      %v2661 = vpop.f32.mrf.mxu0
      %v2662 = vadd.f32 0.0, %v2661
      %v2663 = vpop.f32.mrf.mxu0
      %2664 = vmatprep.mubr.bf16.mxu0 0
      %2665 = vmatmul.mubr.bf16.gmra.mxu0 %v2549
      %v2666 = vpop.f32.mrf.mxu0
      %v2667 = vadd.f32 0.0, %v2666
      %v2668 = vpop.f32.mrf.mxu0
      %v2669 = vpop.f32.mrf.mxu0
      %v2670 = vadd.f32 0.0, %v2669
      %v2671 = vpop.f32.mrf.mxu0
      %2672 = vmatprep.mubr.bf16.mxu0 0
      %2673 = vmatmul.mubr.bf16.gmra.mxu0 %v2551
      %v2674 = vpop.f32.mrf.mxu0
      %v2675 = vadd.f32 0.0, %v2674
      %v2676 = vpop.f32.mrf.mxu0
      %v2677 = vpop.f32.mrf.mxu0
      %v2678 = vadd.f32 0.0, %v2677
      %v2679 = vpop.f32.mrf.mxu0
      %2680 = vmatprep.mubr.bf16.mxu0 0
      %2681 = vmatmul.mubr.bf16.gmra.mxu0 %v2553
      %v2682 = vpop.f32.mrf.mxu0
      %v2683 = vadd.f32 0.0, %v2682
      %v2684 = vpop.f32.mrf.mxu0
      %v2685 = vpop.f32.mrf.mxu0
      %v2686 = vadd.f32 0.0, %v2685
      %v2687 = vpop.f32.mrf.mxu0
      %2688 = vmatprep.mubr.bf16.mxu0 0
      %2689 = vmatmul.mubr.bf16.gmra.mxu0 %v2555
      %v2690 = vpop.f32.mrf.mxu0
      %v2691 = vadd.f32 0.0, %v2690
      %v2692 = vpop.f32.mrf.mxu0
      %v2693 = vpop.f32.mrf.mxu0
      %v2694 = vadd.f32 0.0, %v2693
      %v2695 = vpop.f32.mrf.mxu0
      %2696 = vmatprep.mubr.bf16.mxu0 0
      %2697 = vmatmul.mubr.bf16.gmra.mxu0 %v2557
      %v2698 = vpop.f32.mrf.mxu0
      %v2699 = vadd.f32 0.0, %v2698
      %v2700 = vpop.f32.mrf.mxu0
      %v2701 = vpop.f32.mrf.mxu0
      %v2702 = vadd.f32 0.0, %v2701
      %v2703 = vpop.f32.mrf.mxu0
      %2704 = vmatprep.mubr.bf16.mxu0 0
      %2705 = vmatmul.mubr.bf16.gmra.mxu0 %v2559
      %v2706 = vpop.f32.mrf.mxu0
      %v2707 = vadd.f32 0.0, %v2706
      %v2708 = vpop.f32.mrf.mxu0
      %v2709 = vpop.f32.mrf.mxu0
      %v2710 = vadd.f32 0.0, %v2709
      %v2711 = vpop.f32.mrf.mxu0
      %2712 = vdwg.mxu0
      %v2713 = vadd.f32 %v2506, %v2651
      %v2714 = vadd.f32 %v2507, %v2654
      %v2715 = vadd.f32 %v2508, %v2659
      %v2716 = vadd.f32 %v2509, %v2662
      %v2717 = vadd.f32 %v2510, %v2667
      %v2718 = vadd.f32 %v2511, %v2670
      %v2719 = vadd.f32 %v2512, %v2675
      %v2720 = vadd.f32 %v2513, %v2678
      %v2721 = vadd.f32 %v2514, %v2683
      %v2722 = vadd.f32 %v2515, %v2686
      %v2723 = vadd.f32 %v2516, %v2691
      %v2724 = vadd.f32 %v2517, %v2694
      %v2725 = vadd.f32 %v2518, %v2699
      %v2726 = vadd.f32 %v2519, %v2702
      %v2727 = vadd.f32 %v2520, %v2707
      %v2728 = vadd.f32 %v2521, %v2710
      %v2729 = vpack.c.bf16 %v2714, %v2713
      %v2730 = vpack.c.bf16 %v2716, %v2715
      %v2731 = vpack.c.bf16 %v2718, %v2717
      %v2732 = vpack.c.bf16 %v2720, %v2719
      %v2733 = vpack.c.bf16 %v2722, %v2721
      %v2734 = vpack.c.bf16 %v2724, %v2723
      %v2735 = vpack.c.bf16 %v2726, %v2725
      %v2736 = vpack.c.bf16 %v2728, %v2727
      %v2745 = vunpack.c.l.b16 %v2729
      %v2746 = vunpack.c.h.b16 %v2729
      %v2747 = vunpack.c.l.b16 %v2730
      %v2748 = vunpack.c.h.b16 %v2730
      %v2749 = vunpack.c.l.b16 %v2731
      %v2750 = vunpack.c.h.b16 %v2731
      %v2751 = vunpack.c.l.b16 %v2732
      %v2752 = vunpack.c.h.b16 %v2732
      %v2753 = vunpack.c.l.b16 %v2733
      %v2754 = vunpack.c.h.b16 %v2733
      %v2755 = vunpack.c.l.b16 %v2734
      %v2756 = vunpack.c.h.b16 %v2734
      %v2757 = vunpack.c.l.b16 %v2735
      %v2758 = vunpack.c.h.b16 %v2735
      %v2759 = vunpack.c.l.b16 %v2736
      %v2760 = vunpack.c.h.b16 %v2736
      %v2761 = vpack.c.b16 %v2745, %v2745
      %v2762 = vpack.c.b16 %v2746, %v2746
      %v2763 = vpack.c.b16 %v2747, %v2747
      %v2764 = vpack.c.b16 %v2748, %v2748
      %v2765 = vpack.c.b16 %v2749, %v2749
      %v2766 = vpack.c.b16 %v2750, %v2750
      %v2767 = vpack.c.b16 %v2751, %v2751
      %v2768 = vpack.c.b16 %v2752, %v2752
      %v2769 = vpack.c.b16 %v2753, %v2753
      %v2770 = vpack.c.b16 %v2754, %v2754
      %v2771 = vpack.c.b16 %v2755, %v2755
      %v2772 = vpack.c.b16 %v2756, %v2756
      %v2773 = vpack.c.b16 %v2757, %v2757
      %v2774 = vpack.c.b16 %v2758, %v2758
      %v2775 = vpack.c.b16 %v2759, %v2759
      %v2776 = vpack.c.b16 %v2760, %v2760
      %2793 = vst [vmem:[%s440] sm:$0xf] %v2761
      %2794 = vst [vmem:[%s440 + $0x4] sm:$0xf] %v2762
      %2795 = vst [vmem:[%s440 + $0x8] sm:$0xf] %v2763
      %2796 = vst [vmem:[%s440 + $0xc] sm:$0xf] %v2764
      %2797 = vst [vmem:[%s440 + $0x10] sm:$0xf] %v2765
      %2798 = vst [vmem:[%s440 + $0x14] sm:$0xf] %v2766
      %2799 = vst [vmem:[%s440 + $0x18] sm:$0xf] %v2767
      %2800 = vst [vmem:[%s440 + $0x1c] sm:$0xf] %v2768
      %2801 = vst [vmem:[%s440 + $0x20] sm:$0xf] %v2769
      %2802 = vst [vmem:[%s440 + $0x24] sm:$0xf] %v2770
      %2803 = vst [vmem:[%s440 + $0x28] sm:$0xf] %v2771
      %2804 = vst [vmem:[%s440 + $0x2c] sm:$0xf] %v2772
      %2805 = vst [vmem:[%s440 + $0x30] sm:$0xf] %v2773
      %2806 = vst [vmem:[%s440 + $0x34] sm:$0xf] %v2774
      %2807 = vst [vmem:[%s440 + $0x38] sm:$0xf] %v2775
      %2808 = vst [vmem:[%s440 + $0x3c] sm:$0xf] %v2776
      %v2809 = vld [vmem:[%s427] sm:$0xff]
      %v2810 = vld [vmem:[%s427 + $0x8] sm:$0xff]
      %v2811 = vld [vmem:[%s427 + $0x10] sm:$0xff]
      %v2812 = vld [vmem:[%s427 + $0x18] sm:$0xff]
      %v2813 = vld [vmem:[%s427 + $0x20] sm:$0xff]
      %v2814 = vld [vmem:[%s427 + $0x28] sm:$0xff]
      %v2815 = vld [vmem:[%s427 + $0x30] sm:$0xff]
      %v2816 = vld [vmem:[%s427 + $0x38] sm:$0xff]
      %v2817 = vld [vmem:[%s427 + $0x40] sm:$0xff]
      %v2818 = vld [vmem:[%s427 + $0x48] sm:$0xff]
      %v2819 = vld [vmem:[%s427 + $0x50] sm:$0xff]
      %v2820 = vld [vmem:[%s427 + $0x58] sm:$0xff]
      %v2821 = vld [vmem:[%s427 + $0x60] sm:$0xff]
      %v2822 = vld [vmem:[%s427 + $0x68] sm:$0xff]
      %v2823 = vld [vmem:[%s427 + $0x70] sm:$0xff]
      %v2824 = vld [vmem:[%s427 + $0x78] sm:$0xff]
      %2826 = vset.pattern.permute.xlu0 0
      %2827 = vperm.xlu0 %2826, %v2809
      %v2828 = vpop.permute.xlu0 %2827
      %2831 = vset.pattern.permute.xlu0 0
      %2832 = vperm.xlu0 %2831, %v2810
      %v2833 = vpop.permute.xlu0 %2832
      %2836 = vset.pattern.permute.xlu0 0
      %2837 = vperm.xlu0 %2836, %v2811
      %v2838 = vpop.permute.xlu0 %2837
      %2841 = vset.pattern.permute.xlu0 0
      %2842 = vperm.xlu0 %2841, %v2812
      %v2843 = vpop.permute.xlu0 %2842
      %2846 = vset.pattern.permute.xlu0 0
      %2847 = vperm.xlu0 %2846, %v2813
      %v2848 = vpop.permute.xlu0 %2847
      %2851 = vset.pattern.permute.xlu0 0
      %2852 = vperm.xlu0 %2851, %v2814
      %v2853 = vpop.permute.xlu0 %2852
      %2856 = vset.pattern.permute.xlu0 0
      %2857 = vperm.xlu0 %2856, %v2815
      %v2858 = vpop.permute.xlu0 %2857
      %2861 = vset.pattern.permute.xlu0 0
      %2862 = vperm.xlu0 %2861, %v2816
      %v2863 = vpop.permute.xlu0 %2862
      %2866 = vset.pattern.permute.xlu0 0
      %2867 = vperm.xlu0 %2866, %v2817
      %v2868 = vpop.permute.xlu0 %2867
      %2871 = vset.pattern.permute.xlu0 0
      %2872 = vperm.xlu0 %2871, %v2818
      %v2873 = vpop.permute.xlu0 %2872
      %2876 = vset.pattern.permute.xlu0 0
      %2877 = vperm.xlu0 %2876, %v2819
      %v2878 = vpop.permute.xlu0 %2877
      %2881 = vset.pattern.permute.xlu0 0
      %2882 = vperm.xlu0 %2881, %v2820
      %v2883 = vpop.permute.xlu0 %2882
      %2886 = vset.pattern.permute.xlu0 0
      %2887 = vperm.xlu0 %2886, %v2821
      %v2888 = vpop.permute.xlu0 %2887
      %2891 = vset.pattern.permute.xlu0 0
      %2892 = vperm.xlu0 %2891, %v2822
      %v2893 = vpop.permute.xlu0 %2892
      %2896 = vset.pattern.permute.xlu0 0
      %2897 = vperm.xlu0 %2896, %v2823
      %v2898 = vpop.permute.xlu0 %2897
      %2901 = vset.pattern.permute.xlu0 0
      %2902 = vperm.xlu0 %2901, %v2824
      %v2903 = vpop.permute.xlu0 %2902
      %v2905 = vmul.f32 %v2713, %v2828
      %v2906 = vmul.f32 %v2714, %v2833
      %v2907 = vmul.f32 %v2715, %v2838
      %v2908 = vmul.f32 %v2716, %v2843
      %v2909 = vmul.f32 %v2717, %v2848
      %v2910 = vmul.f32 %v2718, %v2853
      %v2911 = vmul.f32 %v2719, %v2858
      %v2912 = vmul.f32 %v2720, %v2863
      %v2913 = vmul.f32 %v2721, %v2868
      %v2914 = vmul.f32 %v2722, %v2873
      %v2915 = vmul.f32 %v2723, %v2878
      %v2916 = vmul.f32 %v2724, %v2883
      %v2917 = vmul.f32 %v2725, %v2888
      %v2918 = vmul.f32 %v2726, %v2893
      %v2919 = vmul.f32 %v2727, %v2898
      %v2920 = vmul.f32 %v2728, %v2903
      %v2921 = vadd.f32 %v2905, %v2906
      %v2922 = vadd.f32 %v2921, %v2907
      %v2923 = vadd.f32 %v2922, %v2908
      %v2924 = vadd.f32 %v2923, %v2909
      %v2925 = vadd.f32 %v2924, %v2910
      %v2926 = vadd.f32 %v2925, %v2911
      %v2927 = vadd.f32 %v2926, %v2912
      %v2928 = vadd.f32 %v2927, %v2913
      %v2929 = vadd.f32 %v2928, %v2914
      %v2930 = vadd.f32 %v2929, %v2915
      %v2931 = vadd.f32 %v2930, %v2916
      %v2932 = vadd.f32 %v2931, %v2917
      %v2933 = vadd.f32 %v2932, %v2918
      %v2934 = vadd.f32 %v2933, %v2919
      %v2935 = vadd.f32 %v2934, %v2920
      %v2936 = vrot.slane %v2935, 4
      %v2937 = vadd.f32 %v2935, %v2936
      %v2938 = vrot.slane %v2937, 2
      %v2939 = vadd.f32 %v2937, %v2938
      %v2940 = vrot.slane %v2939, 1
      %v2941 = vadd.f32 %v2939, %v2940
      %v2942 = vadd.f32 %v2941, 0.0
      %v2943 = vmul.f32 %v2905, %v2713
      %v2944 = vmul.f32 %v2906, %v2714
      %v2945 = vmul.f32 %v2907, %v2715
      %v2946 = vmul.f32 %v2908, %v2716
      %v2947 = vmul.f32 %v2909, %v2717
      %v2948 = vmul.f32 %v2910, %v2718
      %v2949 = vmul.f32 %v2911, %v2719
      %v2950 = vmul.f32 %v2912, %v2720
      %v2951 = vmul.f32 %v2913, %v2721
      %v2952 = vmul.f32 %v2914, %v2722
      %v2953 = vmul.f32 %v2915, %v2723
      %v2954 = vmul.f32 %v2916, %v2724
      %v2955 = vmul.f32 %v2917, %v2725
      %v2956 = vmul.f32 %v2918, %v2726
      %v2957 = vmul.f32 %v2919, %v2727
      %v2958 = vmul.f32 %v2920, %v2728
      %v2959 = vadd.f32 %v2943, %v2944
      %v2960 = vadd.f32 %v2959, %v2945
      %v2961 = vadd.f32 %v2960, %v2946
      %v2962 = vadd.f32 %v2961, %v2947
      %v2963 = vadd.f32 %v2962, %v2948
      %v2964 = vadd.f32 %v2963, %v2949
      %v2965 = vadd.f32 %v2964, %v2950
      %v2966 = vadd.f32 %v2965, %v2951
      %v2967 = vadd.f32 %v2966, %v2952
      %v2968 = vadd.f32 %v2967, %v2953
      %v2969 = vadd.f32 %v2968, %v2954
      %v2970 = vadd.f32 %v2969, %v2955
      %v2971 = vadd.f32 %v2970, %v2956
      %v2972 = vadd.f32 %v2971, %v2957
      %v2973 = vadd.f32 %v2972, %v2958
      %v2974 = vrot.slane %v2973, 4
      %v2975 = vadd.f32 %v2973, %v2974
      %v2976 = vrot.slane %v2975, 2
      %v2977 = vadd.f32 %v2975, %v2976
      %v2978 = vrot.slane %v2977, 1
      %v2979 = vadd.f32 %v2977, %v2978
      %v2980 = vadd.f32 %v2979, 0.0
      %v2981 = vld [vmem:[%s2] sm:$0xf]
      %v2982 = vld [vmem:[%s2 + $0x4] sm:$0xf]
      %v2983 = vld [vmem:[%s2 + $0x8] sm:$0xf]
      %v2984 = vld [vmem:[%s2 + $0xc] sm:$0xf]
      %v2985 = vld [vmem:[%s2 + $0x10] sm:$0xf]
      %v2986 = vld [vmem:[%s2 + $0x14] sm:$0xf]
      %v2987 = vld [vmem:[%s2 + $0x18] sm:$0xf]
      %v2988 = vld [vmem:[%s2 + $0x1c] sm:$0xf]
      %v2989 = vld [vmem:[%s2 + $0x20] sm:$0xf]
      %v2990 = vld [vmem:[%s2 + $0x24] sm:$0xf]
      %v2991 = vld [vmem:[%s2 + $0x28] sm:$0xf]
      %v2992 = vld [vmem:[%s2 + $0x2c] sm:$0xf]
      %v2993 = vld [vmem:[%s2 + $0x30] sm:$0xf]
      %v2994 = vld [vmem:[%s2 + $0x34] sm:$0xf]
      %v2995 = vld [vmem:[%s2 + $0x38] sm:$0xf]
      %v2996 = vld [vmem:[%s2 + $0x3c] sm:$0xf]
      %v2997 = vld [vmem:[#allocation2 + $0x40] sm:$0xf]
      %v2998 = vld [vmem:[#allocation2 + $0x44] sm:$0xf]
      %v2999 = vld [vmem:[#allocation2 + $0x48] sm:$0xf]
      %v3000 = vld [vmem:[#allocation2 + $0x4c] sm:$0xf]
      %v3001 = vld [vmem:[#allocation2 + $0x50] sm:$0xf]
      %v3002 = vld [vmem:[#allocation2 + $0x54] sm:$0xf]
      %v3003 = vld [vmem:[#allocation2 + $0x58] sm:$0xf]
      %v3004 = vld [vmem:[#allocation2 + $0x5c] sm:$0xf]
      %v3005 = vld [vmem:[#allocation2 + $0x60] sm:$0xf]
      %v3006 = vld [vmem:[#allocation2 + $0x64] sm:$0xf]
      %v3007 = vld [vmem:[#allocation2 + $0x68] sm:$0xf]
      %v3008 = vld [vmem:[#allocation2 + $0x6c] sm:$0xf]
      %v3009 = vld [vmem:[#allocation2 + $0x70] sm:$0xf]
      %v3010 = vld [vmem:[#allocation2 + $0x74] sm:$0xf]
      %v3011 = vld [vmem:[%s559] sm:$0xf]
      %v3012 = vld [vmem:[%s559 + $0x4] sm:$0xf]
      %v3013 = vld [vmem:[%s559 + $0x8] sm:$0xf]
      %v3014 = vld [vmem:[%s559 + $0xc] sm:$0xf]
      %v3015 = vld [vmem:[%s559 + $0x10] sm:$0xf]
      %v3016 = vld [vmem:[%s559 + $0x14] sm:$0xf]
      %v3017 = vld [vmem:[%s559 + $0x18] sm:$0xf]
      %v3018 = vld [vmem:[%s559 + $0x1c] sm:$0xf]
      %v3019 = vld [vmem:[%s559 + $0x20] sm:$0xf]
      %v3020 = vld [vmem:[%s559 + $0x24] sm:$0xf]
      %v3021 = vld [vmem:[%s559 + $0x28] sm:$0xf]
      %v3022 = vld [vmem:[%s559 + $0x2c] sm:$0xf]
      %v3023 = vld [vmem:[%s559 + $0x30] sm:$0xf]
      %v3024 = vld [vmem:[%s559 + $0x34] sm:$0xf]
      %v3025 = vld [vmem:[%s559 + $0x38] sm:$0xf]
      %v3026 = vld [vmem:[%s559 + $0x3c] sm:$0xf]
      %v3027 = vld [vmem:[#allocation2 + $0x78] sm:$0x1]
      %v3043 = vunpack.c.l.b16 %v2997
      %v3044 = vunpack.c.l.b16 %v2998
      %v3045 = vunpack.c.l.b16 %v2999
      %v3046 = vunpack.c.l.b16 %v3000
      %v3047 = vunpack.c.l.b16 %v3001
      %v3048 = vunpack.c.l.b16 %v3002
      %v3049 = vunpack.c.l.b16 %v3003
      %v3050 = vunpack.c.l.b16 %v3004
      %v3051 = vunpack.c.l.b16 %v3005
      %v3052 = vunpack.c.l.b16 %v3006
      %v3053 = vunpack.c.l.b16 %v3007
      %v3054 = vunpack.c.l.b16 %v3008
      %v3055 = vunpack.c.l.b16 %v3009
      %v3056 = vunpack.c.l.b16 %v3010
      %v3057 = vunpack.c.l.b16 %v3027
      %v3058 = vpack.c.b16 %v3044, %v3043
      %v3059 = vpack.c.b16 %v3046, %v3045
      %v3060 = vpack.c.b16 %v3048, %v3047
      %v3061 = vpack.c.b16 %v3050, %v3049
      %v3062 = vpack.c.b16 %v3052, %v3051
      %v3063 = vpack.c.b16 %v3054, %v3053
      %v3064 = vpack.c.b16 %v3056, %v3055
      %v3065 = vpack.c.b16 %v3057, %v3057
      %v3067 = vshrl.u32 %v3058, 16
      %v3069 = vshll.u32 %v3058, 16
      %v3071 = vrot.slane %v3069, 1
      %v3072 = vor.u32 %v3067, %v3071
      %v3074 = vshll.u32 %v3059, 16
      %v3076 = vrot.slane %v3074, 1
      %v3077 = vsel %vm620, %v3072, %v3076
      %v3078 = vshrl.u32 %v3059, 16
      %v3080 = vor.u32 %v3078, %v3076
      %v3082 = vshll.u32 %v3060, 16
      %v3084 = vrot.slane %v3082, 1
      %v3085 = vsel %vm620, %v3080, %v3084
      %v3086 = vshrl.u32 %v3060, 16
      %v3088 = vor.u32 %v3086, %v3084
      %v3090 = vshll.u32 %v3061, 16
      %v3092 = vrot.slane %v3090, 1
      %v3093 = vsel %vm620, %v3088, %v3092
      %v3094 = vshrl.u32 %v3061, 16
      %v3096 = vor.u32 %v3094, %v3092
      %v3098 = vshll.u32 %v3062, 16
      %v3100 = vrot.slane %v3098, 1
      %v3101 = vsel %vm620, %v3096, %v3100
      %v3102 = vshrl.u32 %v3062, 16
      %v3104 = vor.u32 %v3102, %v3100
      %v3106 = vshll.u32 %v3063, 16
      %v3108 = vrot.slane %v3106, 1
      %v3109 = vsel %vm620, %v3104, %v3108
      %v3110 = vshrl.u32 %v3063, 16
      %v3112 = vor.u32 %v3110, %v3108
      %v3114 = vshll.u32 %v3064, 16
      %v3116 = vrot.slane %v3114, 1
      %v3117 = vsel %vm620, %v3112, %v3116
      %v3118 = vshrl.u32 %v3064, 16
      %v3120 = vor.u32 %v3118, %v3116
      %v3122 = vshll.u32 %v3065, 16
      %v3124 = vrot.slane %v3122, 1
      %v3125 = vsel %vm620, %v3120, %v3124
      %v3149 = vunpack.c.l.b16 %v3011
      %v3150 = vunpack.c.l.b16 %v3012
      %v3151 = vunpack.c.l.b16 %v3013
      %v3152 = vunpack.c.l.b16 %v3014
      %v3153 = vunpack.c.l.b16 %v3015
      %v3154 = vunpack.c.l.b16 %v3016
      %v3155 = vunpack.c.l.b16 %v3017
      %v3156 = vunpack.c.l.b16 %v3018
      %v3157 = vunpack.c.l.b16 %v3019
      %v3158 = vunpack.c.l.b16 %v3020
      %v3159 = vunpack.c.l.b16 %v3021
      %v3160 = vunpack.c.l.b16 %v3022
      %v3161 = vunpack.c.l.b16 %v3023
      %v3162 = vunpack.c.l.b16 %v3024
      %v3163 = vunpack.c.l.b16 %v3025
      %v3164 = vunpack.c.l.b16 %v3026
      %v3165 = vpack.c.b16 %v3150, %v3149
      %v3166 = vpack.c.b16 %v3152, %v3151
      %v3167 = vpack.c.b16 %v3154, %v3153
      %v3168 = vpack.c.b16 %v3156, %v3155
      %v3169 = vpack.c.b16 %v3158, %v3157
      %v3170 = vpack.c.b16 %v3160, %v3159
      %v3171 = vpack.c.b16 %v3162, %v3161
      %v3172 = vpack.c.b16 %v3164, %v3163
      %3181 = vmatprep.subr.bf16.mxu0 0
      %3182 = vmatpush1.bf16.msra.mxu0 %v3172
      %3183 = vmatprep.subr.bf16.mxu0 0
      %3184 = vmatpush1.bf16.msra.mxu0 %v3171
      %3185 = vmatprep.subr.bf16.mxu0 0
      %3186 = vmatpush1.bf16.msra.mxu0 %v3170
      %3187 = vmatprep.subr.bf16.mxu0 0
      %3188 = vmatpush1.bf16.msra.mxu0 %v3169
      %3189 = vmatprep.subr.bf16.mxu0 0
      %3190 = vmatpush1.bf16.msra.mxu0 %v3168
      %3191 = vmatprep.subr.bf16.mxu0 0
      %3192 = vmatpush1.bf16.msra.mxu0 %v3167
      %3193 = vmatprep.subr.bf16.mxu0 0
      %3194 = vmatpush1.bf16.msra.mxu0 %v3166
      %3195 = vmatprep.subr.bf16.mxu0 0
      %3196 = vmatpush1.bf16.msra.mxu0 %v3165
      %3197 = vmatprep.subr.bf16.mxu0 0
      %3198 = vmatpush2.bf16.msra.mxu0 0
      %3199 = vmatprep.subr.bf16.mxu0 0
      %3200 = vmatpush2.bf16.msra.mxu0 0
      %3201 = vmatprep.subr.bf16.mxu0 0
      %3202 = vmatpush2.bf16.msra.mxu0 0
      %3203 = vmatprep.subr.bf16.mxu0 0
      %3204 = vmatpush2.bf16.msra.mxu0 0
      %3205 = vmatprep.subr.bf16.mxu0 0
      %3206 = vmatpush2.bf16.msra.mxu0 0
      %3207 = vmatprep.subr.bf16.mxu0 0
      %3208 = vmatpush2.bf16.msra.mxu0 0
      %3209 = vmatprep.subr.bf16.mxu0 0
      %3210 = vmatpush2.bf16.msra.mxu0 0
      %3211 = vmatprep.subr.bf16.mxu0 0
      %3212 = vmatpush2.bf16.msra.mxu0 0
      %3213 = vmatprep.mubr.bf16.mxu0 0
      %3214 = vmatmul.mubr.bf16.gmra.mxu0 %v3077
      %v3215 = vpop.f32.mrf.mxu0
      %v3216 = vadd.f32 0.0, %v3215
      %v3217 = vpop.f32.mrf.mxu0
      %v3218 = vpop.f32.mrf.mxu0
      %v3219 = vadd.f32 0.0, %v3218
      %v3220 = vpop.f32.mrf.mxu0
      %3221 = vmatprep.mubr.bf16.mxu0 0
      %3222 = vmatmul.mubr.bf16.gmra.mxu0 %v3085
      %v3223 = vpop.f32.mrf.mxu0
      %v3224 = vadd.f32 0.0, %v3223
      %v3225 = vpop.f32.mrf.mxu0
      %v3226 = vpop.f32.mrf.mxu0
      %v3227 = vadd.f32 0.0, %v3226
      %v3228 = vpop.f32.mrf.mxu0
      %3229 = vmatprep.mubr.bf16.mxu0 0
      %3230 = vmatmul.mubr.bf16.gmra.mxu0 %v3093
      %v3231 = vpop.f32.mrf.mxu0
      %v3232 = vadd.f32 0.0, %v3231
      %v3233 = vpop.f32.mrf.mxu0
      %v3234 = vpop.f32.mrf.mxu0
      %v3235 = vadd.f32 0.0, %v3234
      %v3236 = vpop.f32.mrf.mxu0
      %3237 = vmatprep.mubr.bf16.mxu0 0
      %3238 = vmatmul.mubr.bf16.gmra.mxu0 %v3101
      %v3239 = vpop.f32.mrf.mxu0
      %v3240 = vadd.f32 0.0, %v3239
      %v3241 = vpop.f32.mrf.mxu0
      %v3242 = vpop.f32.mrf.mxu0
      %v3243 = vadd.f32 0.0, %v3242
      %v3244 = vpop.f32.mrf.mxu0
      %3245 = vmatprep.mubr.bf16.mxu0 0
      %3246 = vmatmul.mubr.bf16.gmra.mxu0 %v3109
      %v3247 = vpop.f32.mrf.mxu0
      %v3248 = vadd.f32 0.0, %v3247
      %v3249 = vpop.f32.mrf.mxu0
      %v3250 = vpop.f32.mrf.mxu0
      %v3251 = vadd.f32 0.0, %v3250
      %v3252 = vpop.f32.mrf.mxu0
      %3253 = vmatprep.mubr.bf16.mxu0 0
      %3254 = vmatmul.mubr.bf16.gmra.mxu0 %v3117
      %v3255 = vpop.f32.mrf.mxu0
      %v3256 = vadd.f32 0.0, %v3255
      %v3257 = vpop.f32.mrf.mxu0
      %v3258 = vpop.f32.mrf.mxu0
      %v3259 = vadd.f32 0.0, %v3258
      %v3260 = vpop.f32.mrf.mxu0
      %3261 = vmatprep.mubr.bf16.mxu0 0
      %3262 = vmatmul.mubr.bf16.gmra.mxu0 %v3125
      %v3263 = vpop.f32.mrf.mxu0
      %v3264 = vadd.f32 0.0, %v3263
      %v3265 = vpop.f32.mrf.mxu0
      %v3266 = vpop.f32.mrf.mxu0
      %v3267 = vadd.f32 0.0, %v3266
      %v3268 = vpop.f32.mrf.mxu0
      %3269 = vdwg.mxu0
      %v3293 = vunpack.c.l.b16 %v2981
      %v3294 = vunpack.c.l.b16 %v2982
      %v3295 = vunpack.c.l.b16 %v2983
      %v3296 = vunpack.c.l.b16 %v2984
      %v3297 = vunpack.c.l.b16 %v2985
      %v3298 = vunpack.c.l.b16 %v2986
      %v3299 = vunpack.c.l.b16 %v2987
      %v3300 = vunpack.c.l.b16 %v2988
      %v3301 = vunpack.c.l.b16 %v2989
      %v3302 = vunpack.c.l.b16 %v2990
      %v3303 = vunpack.c.l.b16 %v2991
      %v3304 = vunpack.c.l.b16 %v2992
      %v3305 = vunpack.c.l.b16 %v2993
      %v3306 = vunpack.c.l.b16 %v2994
      %v3307 = vunpack.c.l.b16 %v2995
      %v3308 = vunpack.c.l.b16 %v2996
      %v3309 = vpack.c.b16 %v3294, %v3293
      %v3310 = vpack.c.b16 %v3296, %v3295
      %v3311 = vpack.c.b16 %v3298, %v3297
      %v3312 = vpack.c.b16 %v3300, %v3299
      %v3313 = vpack.c.b16 %v3302, %v3301
      %v3314 = vpack.c.b16 %v3304, %v3303
      %v3315 = vpack.c.b16 %v3306, %v3305
      %v3316 = vpack.c.b16 %v3308, %v3307
      %3325 = vmatprep.subr.bf16.mxu0 0
      %3326 = vmatpush1.bf16.msra.mxu0 %v3316
      %3327 = vmatprep.subr.bf16.mxu0 0
      %3328 = vmatpush1.bf16.msra.mxu0 %v3315
      %3329 = vmatprep.subr.bf16.mxu0 0
      %3330 = vmatpush1.bf16.msra.mxu0 %v3314
      %3331 = vmatprep.subr.bf16.mxu0 0
      %3332 = vmatpush1.bf16.msra.mxu0 %v3313
      %3333 = vmatprep.subr.bf16.mxu0 0
      %3334 = vmatpush1.bf16.msra.mxu0 %v3312
      %3335 = vmatprep.subr.bf16.mxu0 0
      %3336 = vmatpush1.bf16.msra.mxu0 %v3311
      %3337 = vmatprep.subr.bf16.mxu0 0
      %3338 = vmatpush1.bf16.msra.mxu0 %v3310
      %3339 = vmatprep.subr.bf16.mxu0 0
      %3340 = vmatpush1.bf16.msra.mxu0 %v3309
      %3341 = vmatprep.subr.bf16.mxu0 0
      %3342 = vmatpush2.bf16.msra.mxu0 0
      %3343 = vmatprep.subr.bf16.mxu0 0
      %3344 = vmatpush2.bf16.msra.mxu0 0
      %3345 = vmatprep.subr.bf16.mxu0 0
      %3346 = vmatpush2.bf16.msra.mxu0 0
      %3347 = vmatprep.subr.bf16.mxu0 0
      %3348 = vmatpush2.bf16.msra.mxu0 0
      %3349 = vmatprep.subr.bf16.mxu0 0
      %3350 = vmatpush2.bf16.msra.mxu0 0
      %3351 = vmatprep.subr.bf16.mxu0 0
      %3352 = vmatpush2.bf16.msra.mxu0 0
      %3353 = vmatprep.subr.bf16.mxu0 0
      %3354 = vmatpush2.bf16.msra.mxu0 0
      %3355 = vmatprep.subr.bf16.mxu0 0
      %3356 = vmatpush2.bf16.msra.mxu0 0
      %3357 = vmatprep.mubr.bf16.mxu0 0
      %3358 = vmatmul.mubr.bf16.gmra.mxu0 %v3058
      %v3359 = vpop.f32.mrf.mxu0
      %v3360 = vadd.f32 %v3216, %v3359
      %v3361 = vpop.f32.mrf.mxu0
      %v3362 = vpop.f32.mrf.mxu0
      %v3363 = vadd.f32 %v3219, %v3362
      %v3364 = vpop.f32.mrf.mxu0
      %3365 = vmatprep.mubr.bf16.mxu0 0
      %3366 = vmatmul.mubr.bf16.gmra.mxu0 %v3059
      %v3367 = vpop.f32.mrf.mxu0
      %v3368 = vadd.f32 %v3224, %v3367
      %v3369 = vpop.f32.mrf.mxu0
      %v3370 = vpop.f32.mrf.mxu0
      %v3371 = vadd.f32 %v3227, %v3370
      %v3372 = vpop.f32.mrf.mxu0
      %3373 = vmatprep.mubr.bf16.mxu0 0
      %3374 = vmatmul.mubr.bf16.gmra.mxu0 %v3060
      %v3375 = vpop.f32.mrf.mxu0
      %v3376 = vadd.f32 %v3232, %v3375
      %v3377 = vpop.f32.mrf.mxu0
      %v3378 = vpop.f32.mrf.mxu0
      %v3379 = vadd.f32 %v3235, %v3378
      %v3380 = vpop.f32.mrf.mxu0
      %3381 = vmatprep.mubr.bf16.mxu0 0
      %3382 = vmatmul.mubr.bf16.gmra.mxu0 %v3061
      %v3383 = vpop.f32.mrf.mxu0
      %v3384 = vadd.f32 %v3240, %v3383
      %v3385 = vpop.f32.mrf.mxu0
      %v3386 = vpop.f32.mrf.mxu0
      %v3387 = vadd.f32 %v3243, %v3386
      %v3388 = vpop.f32.mrf.mxu0
      %3389 = vmatprep.mubr.bf16.mxu0 0
      %3390 = vmatmul.mubr.bf16.gmra.mxu0 %v3062
      %v3391 = vpop.f32.mrf.mxu0
      %v3392 = vadd.f32 %v3248, %v3391
      %v3393 = vpop.f32.mrf.mxu0
      %v3394 = vpop.f32.mrf.mxu0
      %v3395 = vadd.f32 %v3251, %v3394
      %v3396 = vpop.f32.mrf.mxu0
      %3397 = vmatprep.mubr.bf16.mxu0 0
      %3398 = vmatmul.mubr.bf16.gmra.mxu0 %v3063
      %v3399 = vpop.f32.mrf.mxu0
      %v3400 = vadd.f32 %v3256, %v3399
      %v3401 = vpop.f32.mrf.mxu0
      %v3402 = vpop.f32.mrf.mxu0
      %v3403 = vadd.f32 %v3259, %v3402
      %v3404 = vpop.f32.mrf.mxu0
      %3405 = vmatprep.mubr.bf16.mxu0 0
      %3406 = vmatmul.mubr.bf16.gmra.mxu0 %v3064
      %v3407 = vpop.f32.mrf.mxu0
      %v3408 = vadd.f32 %v3264, %v3407
      %v3409 = vpop.f32.mrf.mxu0
      %v3410 = vpop.f32.mrf.mxu0
      %v3411 = vadd.f32 %v3267, %v3410
      %v3412 = vpop.f32.mrf.mxu0
      %3413 = vdwg.mxu0
      %v3414 = vld [vmem:[%s995] sm:$0xf]
      %v3415 = vld [vmem:[%s995 + $0x4] sm:$0xf]
      %v3416 = vld [vmem:[%s995 + $0x8] sm:$0xf]
      %v3417 = vld [vmem:[%s995 + $0xc] sm:$0xf]
      %v3418 = vld [vmem:[%s995 + $0x10] sm:$0xf]
      %v3419 = vld [vmem:[%s995 + $0x14] sm:$0xf]
      %v3420 = vld [vmem:[%s995 + $0x18] sm:$0xf]
      %v3421 = vld [vmem:[%s995 + $0x1c] sm:$0xf]
      %v3422 = vld [vmem:[%s995 + $0x20] sm:$0xf]
      %v3423 = vld [vmem:[%s995 + $0x24] sm:$0xf]
      %v3424 = vld [vmem:[%s995 + $0x28] sm:$0xf]
      %v3425 = vld [vmem:[%s995 + $0x2c] sm:$0xf]
      %v3426 = vld [vmem:[%s995 + $0x30] sm:$0xf]
      %v3427 = vld [vmem:[%s995 + $0x34] sm:$0xf]
      %v3428 = vld [vmem:[%s995 + $0x38] sm:$0xf]
      %v3429 = vld [vmem:[%s995 + $0x3c] sm:$0xf]
      %v3430 = vld [vmem:[#allocation2 + $0x40] sm:$0xe]
      %v3432 = vunpack.c.l.b16 %v3430
      %v3433 = vpack.c.b16 %v3044, %v3432
      %v3434 = vrot.slane %v3433, 1
      %v3435 = vrot.slane %v3059, 1
      %v3436 = vsel %vm1016, %v3434, %v3435
      %v3437 = vrot.slane %v3060, 1
      %v3438 = vsel %vm1016, %v3435, %v3437
      %v3439 = vrot.slane %v3061, 1
      %v3440 = vsel %vm1016, %v3437, %v3439
      %v3441 = vrot.slane %v3062, 1
      %v3442 = vsel %vm1016, %v3439, %v3441
      %v3443 = vrot.slane %v3063, 1
      %v3444 = vsel %vm1016, %v3441, %v3443
      %v3445 = vrot.slane %v3064, 1
      %v3446 = vsel %vm1016, %v3443, %v3445
      %v3447 = vrot.slane %v3065, 1
      %v3448 = vsel %vm1016, %v3445, %v3447
      %v3472 = vunpack.c.l.b16 %v3414
      %v3473 = vunpack.c.l.b16 %v3415
      %v3474 = vunpack.c.l.b16 %v3416
      %v3475 = vunpack.c.l.b16 %v3417
      %v3476 = vunpack.c.l.b16 %v3418
      %v3477 = vunpack.c.l.b16 %v3419
      %v3478 = vunpack.c.l.b16 %v3420
      %v3479 = vunpack.c.l.b16 %v3421
      %v3480 = vunpack.c.l.b16 %v3422
      %v3481 = vunpack.c.l.b16 %v3423
      %v3482 = vunpack.c.l.b16 %v3424
      %v3483 = vunpack.c.l.b16 %v3425
      %v3484 = vunpack.c.l.b16 %v3426
      %v3485 = vunpack.c.l.b16 %v3427
      %v3486 = vunpack.c.l.b16 %v3428
      %v3487 = vunpack.c.l.b16 %v3429
      %v3488 = vpack.c.b16 %v3473, %v3472
      %v3489 = vpack.c.b16 %v3475, %v3474
      %v3490 = vpack.c.b16 %v3477, %v3476
      %v3491 = vpack.c.b16 %v3479, %v3478
      %v3492 = vpack.c.b16 %v3481, %v3480
      %v3493 = vpack.c.b16 %v3483, %v3482
      %v3494 = vpack.c.b16 %v3485, %v3484
      %v3495 = vpack.c.b16 %v3487, %v3486
      %3504 = vmatprep.subr.bf16.mxu0 0
      %3505 = vmatpush1.bf16.msra.mxu0 %v3495
      %3506 = vmatprep.subr.bf16.mxu0 0
      %3507 = vmatpush1.bf16.msra.mxu0 %v3494
      %3508 = vmatprep.subr.bf16.mxu0 0
      %3509 = vmatpush1.bf16.msra.mxu0 %v3493
      %3510 = vmatprep.subr.bf16.mxu0 0
      %3511 = vmatpush1.bf16.msra.mxu0 %v3492
      %3512 = vmatprep.subr.bf16.mxu0 0
      %3513 = vmatpush1.bf16.msra.mxu0 %v3491
      %3514 = vmatprep.subr.bf16.mxu0 0
      %3515 = vmatpush1.bf16.msra.mxu0 %v3490
      %3516 = vmatprep.subr.bf16.mxu0 0
      %3517 = vmatpush1.bf16.msra.mxu0 %v3489
      %3518 = vmatprep.subr.bf16.mxu0 0
      %3519 = vmatpush1.bf16.msra.mxu0 %v3488
      %3520 = vmatprep.subr.bf16.mxu0 0
      %3521 = vmatpush2.bf16.msra.mxu0 0
      %3522 = vmatprep.subr.bf16.mxu0 0
      %3523 = vmatpush2.bf16.msra.mxu0 0
      %3524 = vmatprep.subr.bf16.mxu0 0
      %3525 = vmatpush2.bf16.msra.mxu0 0
      %3526 = vmatprep.subr.bf16.mxu0 0
      %3527 = vmatpush2.bf16.msra.mxu0 0
      %3528 = vmatprep.subr.bf16.mxu0 0
      %3529 = vmatpush2.bf16.msra.mxu0 0
      %3530 = vmatprep.subr.bf16.mxu0 0
      %3531 = vmatpush2.bf16.msra.mxu0 0
      %3532 = vmatprep.subr.bf16.mxu0 0
      %3533 = vmatpush2.bf16.msra.mxu0 0
      %3534 = vmatprep.subr.bf16.mxu0 0
      %3535 = vmatpush2.bf16.msra.mxu0 0
      %3536 = vmatprep.mubr.bf16.mxu0 0
      %3537 = vmatmul.mubr.bf16.gmra.mxu0 %v3436
      %v3538 = vpop.f32.mrf.mxu0
      %v3539 = vadd.f32 0.0, %v3538
      %v3540 = vpop.f32.mrf.mxu0
      %v3541 = vpop.f32.mrf.mxu0
      %v3542 = vadd.f32 0.0, %v3541
      %v3543 = vpop.f32.mrf.mxu0
      %3544 = vmatprep.mubr.bf16.mxu0 0
      %3545 = vmatmul.mubr.bf16.gmra.mxu0 %v3438
      %v3546 = vpop.f32.mrf.mxu0
      %v3547 = vadd.f32 0.0, %v3546
      %v3548 = vpop.f32.mrf.mxu0
      %v3549 = vpop.f32.mrf.mxu0
      %v3550 = vadd.f32 0.0, %v3549
      %v3551 = vpop.f32.mrf.mxu0
      %3552 = vmatprep.mubr.bf16.mxu0 0
      %3553 = vmatmul.mubr.bf16.gmra.mxu0 %v3440
      %v3554 = vpop.f32.mrf.mxu0
      %v3555 = vadd.f32 0.0, %v3554
      %v3556 = vpop.f32.mrf.mxu0
      %v3557 = vpop.f32.mrf.mxu0
      %v3558 = vadd.f32 0.0, %v3557
      %v3559 = vpop.f32.mrf.mxu0
      %3560 = vmatprep.mubr.bf16.mxu0 0
      %3561 = vmatmul.mubr.bf16.gmra.mxu0 %v3442
      %v3562 = vpop.f32.mrf.mxu0
      %v3563 = vadd.f32 0.0, %v3562
      %v3564 = vpop.f32.mrf.mxu0
      %v3565 = vpop.f32.mrf.mxu0
      %v3566 = vadd.f32 0.0, %v3565
      %v3567 = vpop.f32.mrf.mxu0
      %3568 = vmatprep.mubr.bf16.mxu0 0
      %3569 = vmatmul.mubr.bf16.gmra.mxu0 %v3444
      %v3570 = vpop.f32.mrf.mxu0
      %v3571 = vadd.f32 0.0, %v3570
      %v3572 = vpop.f32.mrf.mxu0
      %v3573 = vpop.f32.mrf.mxu0
      %v3574 = vadd.f32 0.0, %v3573
      %v3575 = vpop.f32.mrf.mxu0
      %3576 = vmatprep.mubr.bf16.mxu0 0
      %3577 = vmatmul.mubr.bf16.gmra.mxu0 %v3446
      %v3578 = vpop.f32.mrf.mxu0
      %v3579 = vadd.f32 0.0, %v3578
      %v3580 = vpop.f32.mrf.mxu0
      %v3581 = vpop.f32.mrf.mxu0
      %v3582 = vadd.f32 0.0, %v3581
      %v3583 = vpop.f32.mrf.mxu0
      %3584 = vmatprep.mubr.bf16.mxu0 0
      %3585 = vmatmul.mubr.bf16.gmra.mxu0 %v3448
      %v3586 = vpop.f32.mrf.mxu0
      %v3587 = vadd.f32 0.0, %v3586
      %v3588 = vpop.f32.mrf.mxu0
      %v3589 = vpop.f32.mrf.mxu0
      %v3590 = vadd.f32 0.0, %v3589
      %v3591 = vpop.f32.mrf.mxu0
      %3592 = vdwg.mxu0
      %v3593 = vadd.f32 %v3360, %v3539
      %v3594 = vadd.f32 %v3363, %v3542
      %v3595 = vadd.f32 %v3368, %v3547
      %v3596 = vadd.f32 %v3371, %v3550
      %v3597 = vadd.f32 %v3376, %v3555
      %v3598 = vadd.f32 %v3379, %v3558
      %v3599 = vadd.f32 %v3384, %v3563
      %v3600 = vadd.f32 %v3387, %v3566
      %v3601 = vadd.f32 %v3392, %v3571
      %v3602 = vadd.f32 %v3395, %v3574
      %v3603 = vadd.f32 %v3400, %v3579
      %v3604 = vadd.f32 %v3403, %v3582
      %v3605 = vadd.f32 %v3408, %v3587
      %v3606 = vadd.f32 %v3411, %v3590
      %v3607 = vld [vmem:[%s1203] sm:$0xf]
      %v3608 = vld [vmem:[%s1203 + $0x4] sm:$0xf]
      %v3609 = vld [vmem:[%s1203 + $0x8] sm:$0xf]
      %v3610 = vld [vmem:[%s1203 + $0xc] sm:$0xf]
      %v3611 = vld [vmem:[%s1203 + $0x10] sm:$0xf]
      %v3612 = vld [vmem:[%s1203 + $0x14] sm:$0xf]
      %v3613 = vld [vmem:[%s1203 + $0x18] sm:$0xf]
      %v3614 = vld [vmem:[%s1203 + $0x1c] sm:$0xf]
      %v3615 = vld [vmem:[%s1203 + $0x20] sm:$0xf]
      %v3616 = vld [vmem:[%s1203 + $0x24] sm:$0xf]
      %v3617 = vld [vmem:[%s1203 + $0x28] sm:$0xf]
      %v3618 = vld [vmem:[%s1203 + $0x2c] sm:$0xf]
      %v3619 = vld [vmem:[%s1203 + $0x30] sm:$0xf]
      %v3620 = vld [vmem:[%s1203 + $0x34] sm:$0xf]
      %v3621 = vld [vmem:[%s1203 + $0x38] sm:$0xf]
      %v3622 = vld [vmem:[%s1203 + $0x3c] sm:$0xf]
      %v3623 = vld [vmem:[#allocation2 + $0x48] sm:$0xf]
      %v3624 = vld [vmem:[#allocation2 + $0x4c] sm:$0xf]
      %v3625 = vld [vmem:[#allocation2 + $0x50] sm:$0xf]
      %v3626 = vld [vmem:[#allocation2 + $0x54] sm:$0xf]
      %v3627 = vld [vmem:[#allocation2 + $0x58] sm:$0xf]
      %v3628 = vld [vmem:[#allocation2 + $0x5c] sm:$0xf]
      %v3629 = vld [vmem:[#allocation2 + $0x60] sm:$0xf]
      %v3630 = vld [vmem:[#allocation2 + $0x64] sm:$0xf]
      %v3631 = vld [vmem:[#allocation2 + $0x68] sm:$0xf]
      %v3632 = vld [vmem:[#allocation2 + $0x6c] sm:$0xf]
      %v3633 = vld [vmem:[#allocation2 + $0x70] sm:$0xf]
      %v3634 = vld [vmem:[#allocation2 + $0x74] sm:$0xf]
      %v3635 = vld [vmem:[#allocation2 + $0x78] sm:$0xf]
      %v3636 = vld [vmem:[#allocation2 + $0x7c] sm:$0xf]
      %v3651 = vunpack.c.l.b16 %v3623
      %v3652 = vunpack.c.l.b16 %v3624
      %v3653 = vunpack.c.l.b16 %v3625
      %v3654 = vunpack.c.l.b16 %v3626
      %v3655 = vunpack.c.l.b16 %v3627
      %v3656 = vunpack.c.l.b16 %v3628
      %v3657 = vunpack.c.l.b16 %v3629
      %v3658 = vunpack.c.l.b16 %v3630
      %v3659 = vunpack.c.l.b16 %v3631
      %v3660 = vunpack.c.l.b16 %v3632
      %v3661 = vunpack.c.l.b16 %v3633
      %v3662 = vunpack.c.l.b16 %v3634
      %v3663 = vunpack.c.l.b16 %v3635
      %v3664 = vunpack.c.l.b16 %v3636
      %v3665 = vpack.c.b16 %v3652, %v3651
      %v3666 = vpack.c.b16 %v3654, %v3653
      %v3667 = vpack.c.b16 %v3656, %v3655
      %v3668 = vpack.c.b16 %v3658, %v3657
      %v3669 = vpack.c.b16 %v3660, %v3659
      %v3670 = vpack.c.b16 %v3662, %v3661
      %v3671 = vpack.c.b16 %v3664, %v3663
      %v3695 = vunpack.c.l.b16 %v3607
      %v3696 = vunpack.c.l.b16 %v3608
      %v3697 = vunpack.c.l.b16 %v3609
      %v3698 = vunpack.c.l.b16 %v3610
      %v3699 = vunpack.c.l.b16 %v3611
      %v3700 = vunpack.c.l.b16 %v3612
      %v3701 = vunpack.c.l.b16 %v3613
      %v3702 = vunpack.c.l.b16 %v3614
      %v3703 = vunpack.c.l.b16 %v3615
      %v3704 = vunpack.c.l.b16 %v3616
      %v3705 = vunpack.c.l.b16 %v3617
      %v3706 = vunpack.c.l.b16 %v3618
      %v3707 = vunpack.c.l.b16 %v3619
      %v3708 = vunpack.c.l.b16 %v3620
      %v3709 = vunpack.c.l.b16 %v3621
      %v3710 = vunpack.c.l.b16 %v3622
      %v3711 = vpack.c.b16 %v3696, %v3695
      %v3712 = vpack.c.b16 %v3698, %v3697
      %v3713 = vpack.c.b16 %v3700, %v3699
      %v3714 = vpack.c.b16 %v3702, %v3701
      %v3715 = vpack.c.b16 %v3704, %v3703
      %v3716 = vpack.c.b16 %v3706, %v3705
      %v3717 = vpack.c.b16 %v3708, %v3707
      %v3718 = vpack.c.b16 %v3710, %v3709
      %3727 = vmatprep.subr.bf16.mxu0 0
      %3728 = vmatpush1.bf16.msra.mxu0 %v3718
      %3729 = vmatprep.subr.bf16.mxu0 0
      %3730 = vmatpush1.bf16.msra.mxu0 %v3717
      %3731 = vmatprep.subr.bf16.mxu0 0
      %3732 = vmatpush1.bf16.msra.mxu0 %v3716
      %3733 = vmatprep.subr.bf16.mxu0 0
      %3734 = vmatpush1.bf16.msra.mxu0 %v3715
      %3735 = vmatprep.subr.bf16.mxu0 0
      %3736 = vmatpush1.bf16.msra.mxu0 %v3714
      %3737 = vmatprep.subr.bf16.mxu0 0
      %3738 = vmatpush1.bf16.msra.mxu0 %v3713
      %3739 = vmatprep.subr.bf16.mxu0 0
      %3740 = vmatpush1.bf16.msra.mxu0 %v3712
      %3741 = vmatprep.subr.bf16.mxu0 0
      %3742 = vmatpush1.bf16.msra.mxu0 %v3711
      %3743 = vmatprep.subr.bf16.mxu0 0
      %3744 = vmatpush2.bf16.msra.mxu0 0
      %3745 = vmatprep.subr.bf16.mxu0 0
      %3746 = vmatpush2.bf16.msra.mxu0 0
      %3747 = vmatprep.subr.bf16.mxu0 0
      %3748 = vmatpush2.bf16.msra.mxu0 0
      %3749 = vmatprep.subr.bf16.mxu0 0
      %3750 = vmatpush2.bf16.msra.mxu0 0
      %3751 = vmatprep.subr.bf16.mxu0 0
      %3752 = vmatpush2.bf16.msra.mxu0 0
      %3753 = vmatprep.subr.bf16.mxu0 0
      %3754 = vmatpush2.bf16.msra.mxu0 0
      %3755 = vmatprep.subr.bf16.mxu0 0
      %3756 = vmatpush2.bf16.msra.mxu0 0
      %3757 = vmatprep.subr.bf16.mxu0 0
      %3758 = vmatpush2.bf16.msra.mxu0 0
      %3759 = vmatprep.mubr.bf16.mxu0 0
      %3760 = vmatmul.mubr.bf16.gmra.mxu0 %v3665
      %v3761 = vpop.f32.mrf.mxu0
      %v3762 = vadd.f32 0.0, %v3761
      %v3763 = vpop.f32.mrf.mxu0
      %v3764 = vpop.f32.mrf.mxu0
      %v3765 = vadd.f32 0.0, %v3764
      %v3766 = vpop.f32.mrf.mxu0
      %3767 = vmatprep.mubr.bf16.mxu0 0
      %3768 = vmatmul.mubr.bf16.gmra.mxu0 %v3666
      %v3769 = vpop.f32.mrf.mxu0
      %v3770 = vadd.f32 0.0, %v3769
      %v3771 = vpop.f32.mrf.mxu0
      %v3772 = vpop.f32.mrf.mxu0
      %v3773 = vadd.f32 0.0, %v3772
      %v3774 = vpop.f32.mrf.mxu0
      %3775 = vmatprep.mubr.bf16.mxu0 0
      %3776 = vmatmul.mubr.bf16.gmra.mxu0 %v3667
      %v3777 = vpop.f32.mrf.mxu0
      %v3778 = vadd.f32 0.0, %v3777
      %v3779 = vpop.f32.mrf.mxu0
      %v3780 = vpop.f32.mrf.mxu0
      %v3781 = vadd.f32 0.0, %v3780
      %v3782 = vpop.f32.mrf.mxu0
      %3783 = vmatprep.mubr.bf16.mxu0 0
      %3784 = vmatmul.mubr.bf16.gmra.mxu0 %v3668
      %v3785 = vpop.f32.mrf.mxu0
      %v3786 = vadd.f32 0.0, %v3785
      %v3787 = vpop.f32.mrf.mxu0
      %v3788 = vpop.f32.mrf.mxu0
      %v3789 = vadd.f32 0.0, %v3788
      %v3790 = vpop.f32.mrf.mxu0
      %3791 = vmatprep.mubr.bf16.mxu0 0
      %3792 = vmatmul.mubr.bf16.gmra.mxu0 %v3669
      %v3793 = vpop.f32.mrf.mxu0
      %v3794 = vadd.f32 0.0, %v3793
      %v3795 = vpop.f32.mrf.mxu0
      %v3796 = vpop.f32.mrf.mxu0
      %v3797 = vadd.f32 0.0, %v3796
      %v3798 = vpop.f32.mrf.mxu0
      %3799 = vmatprep.mubr.bf16.mxu0 0
      %3800 = vmatmul.mubr.bf16.gmra.mxu0 %v3670
      %v3801 = vpop.f32.mrf.mxu0
      %v3802 = vadd.f32 0.0, %v3801
      %v3803 = vpop.f32.mrf.mxu0
      %v3804 = vpop.f32.mrf.mxu0
      %v3805 = vadd.f32 0.0, %v3804
      %v3806 = vpop.f32.mrf.mxu0
      %3807 = vmatprep.mubr.bf16.mxu0 0
      %3808 = vmatmul.mubr.bf16.gmra.mxu0 %v3671
      %v3809 = vpop.f32.mrf.mxu0
      %v3810 = vadd.f32 0.0, %v3809
      %v3811 = vpop.f32.mrf.mxu0
      %v3812 = vpop.f32.mrf.mxu0
      %v3813 = vadd.f32 0.0, %v3812
      %v3814 = vpop.f32.mrf.mxu0
      %3815 = vdwg.mxu0
      %v3816 = vadd.f32 %v3593, %v3762
      %v3817 = vadd.f32 %v3594, %v3765
      %v3818 = vadd.f32 %v3595, %v3770
      %v3819 = vadd.f32 %v3596, %v3773
      %v3820 = vadd.f32 %v3597, %v3778
      %v3821 = vadd.f32 %v3598, %v3781
      %v3822 = vadd.f32 %v3599, %v3786
      %v3823 = vadd.f32 %v3600, %v3789
      %v3824 = vadd.f32 %v3601, %v3794
      %v3825 = vadd.f32 %v3602, %v3797
      %v3826 = vadd.f32 %v3603, %v3802
      %v3827 = vadd.f32 %v3604, %v3805
      %v3828 = vadd.f32 %v3605, %v3810
      %v3829 = vadd.f32 %v3606, %v3813
      %v3830 = vld [vmem:[%s1445] sm:$0xf]
      %v3831 = vld [vmem:[%s1445 + $0x4] sm:$0xf]
      %v3832 = vld [vmem:[%s1445 + $0x8] sm:$0xf]
      %v3833 = vld [vmem:[%s1445 + $0xc] sm:$0xf]
      %v3834 = vld [vmem:[%s1445 + $0x10] sm:$0xf]
      %v3835 = vld [vmem:[%s1445 + $0x14] sm:$0xf]
      %v3836 = vld [vmem:[%s1445 + $0x18] sm:$0xf]
      %v3837 = vld [vmem:[%s1445 + $0x1c] sm:$0xf]
      %v3838 = vld [vmem:[%s1445 + $0x20] sm:$0xf]
      %v3839 = vld [vmem:[%s1445 + $0x24] sm:$0xf]
      %v3840 = vld [vmem:[%s1445 + $0x28] sm:$0xf]
      %v3841 = vld [vmem:[%s1445 + $0x2c] sm:$0xf]
      %v3842 = vld [vmem:[%s1445 + $0x30] sm:$0xf]
      %v3843 = vld [vmem:[%s1445 + $0x34] sm:$0xf]
      %v3844 = vld [vmem:[%s1445 + $0x38] sm:$0xf]
      %v3845 = vld [vmem:[%s1445 + $0x3c] sm:$0xf]
      %v3846 = vld [vmem:[#allocation2 + $0x48] sm:$0xf]
      %v3847 = vld [vmem:[#allocation2 + $0x4c] sm:$0xf]
      %v3848 = vld [vmem:[#allocation2 + $0x50] sm:$0xf]
      %v3849 = vld [vmem:[#allocation2 + $0x54] sm:$0xf]
      %v3850 = vld [vmem:[#allocation2 + $0x58] sm:$0xf]
      %v3851 = vld [vmem:[#allocation2 + $0x5c] sm:$0xf]
      %v3852 = vld [vmem:[#allocation2 + $0x60] sm:$0xf]
      %v3853 = vld [vmem:[#allocation2 + $0x64] sm:$0xf]
      %v3854 = vld [vmem:[#allocation2 + $0x68] sm:$0xf]
      %v3855 = vld [vmem:[#allocation2 + $0x6c] sm:$0xf]
      %v3856 = vld [vmem:[#allocation2 + $0x70] sm:$0xf]
      %v3857 = vld [vmem:[#allocation2 + $0x74] sm:$0xf]
      %v3858 = vld [vmem:[#allocation2 + $0x78] sm:$0xf]
      %v3859 = vld [vmem:[#allocation2 + $0x7c] sm:$0xf]
      %v3860 = vld [vmem:[#allocation2 + $0x80] sm:$0x1]
      %v3876 = vunpack.c.l.b16 %v3846
      %v3877 = vunpack.c.l.b16 %v3847
      %v3878 = vunpack.c.l.b16 %v3848
      %v3879 = vunpack.c.l.b16 %v3849
      %v3880 = vunpack.c.l.b16 %v3850
      %v3881 = vunpack.c.l.b16 %v3851
      %v3882 = vunpack.c.l.b16 %v3852
      %v3883 = vunpack.c.l.b16 %v3853
      %v3884 = vunpack.c.l.b16 %v3854
      %v3885 = vunpack.c.l.b16 %v3855
      %v3886 = vunpack.c.l.b16 %v3856
      %v3887 = vunpack.c.l.b16 %v3857
      %v3888 = vunpack.c.l.b16 %v3858
      %v3889 = vunpack.c.l.b16 %v3859
      %v3890 = vunpack.c.l.b16 %v3860
      %v3891 = vpack.c.b16 %v3877, %v3876
      %v3892 = vpack.c.b16 %v3879, %v3878
      %v3893 = vpack.c.b16 %v3881, %v3880
      %v3894 = vpack.c.b16 %v3883, %v3882
      %v3895 = vpack.c.b16 %v3885, %v3884
      %v3896 = vpack.c.b16 %v3887, %v3886
      %v3897 = vpack.c.b16 %v3889, %v3888
      %v3898 = vpack.c.b16 %v3890, %v3890
      %v3900 = vshrl.u32 %v3891, 16
      %v3902 = vshll.u32 %v3891, 16
      %v3904 = vrot.slane %v3902, 1
      %v3905 = vor.u32 %v3900, %v3904
      %v3907 = vshll.u32 %v3892, 16
      %v3909 = vrot.slane %v3907, 1
      %v3910 = vsel %vm620, %v3905, %v3909
      %v3911 = vshrl.u32 %v3892, 16
      %v3913 = vor.u32 %v3911, %v3909
      %v3915 = vshll.u32 %v3893, 16
      %v3917 = vrot.slane %v3915, 1
      %v3918 = vsel %vm620, %v3913, %v3917
      %v3919 = vshrl.u32 %v3893, 16
      %v3921 = vor.u32 %v3919, %v3917
      %v3923 = vshll.u32 %v3894, 16
      %v3925 = vrot.slane %v3923, 1
      %v3926 = vsel %vm620, %v3921, %v3925
      %v3927 = vshrl.u32 %v3894, 16
      %v3929 = vor.u32 %v3927, %v3925
      %v3931 = vshll.u32 %v3895, 16
      %v3933 = vrot.slane %v3931, 1
      %v3934 = vsel %vm620, %v3929, %v3933
      %v3935 = vshrl.u32 %v3895, 16
      %v3937 = vor.u32 %v3935, %v3933
      %v3939 = vshll.u32 %v3896, 16
      %v3941 = vrot.slane %v3939, 1
      %v3942 = vsel %vm620, %v3937, %v3941
      %v3943 = vshrl.u32 %v3896, 16
      %v3945 = vor.u32 %v3943, %v3941
      %v3947 = vshll.u32 %v3897, 16
      %v3949 = vrot.slane %v3947, 1
      %v3950 = vsel %vm620, %v3945, %v3949
      %v3951 = vshrl.u32 %v3897, 16
      %v3953 = vor.u32 %v3951, %v3949
      %v3955 = vshll.u32 %v3898, 16
      %v3957 = vrot.slane %v3955, 1
      %v3958 = vsel %vm620, %v3953, %v3957
      %v3982 = vunpack.c.l.b16 %v3830
      %v3983 = vunpack.c.l.b16 %v3831
      %v3984 = vunpack.c.l.b16 %v3832
      %v3985 = vunpack.c.l.b16 %v3833
      %v3986 = vunpack.c.l.b16 %v3834
      %v3987 = vunpack.c.l.b16 %v3835
      %v3988 = vunpack.c.l.b16 %v3836
      %v3989 = vunpack.c.l.b16 %v3837
      %v3990 = vunpack.c.l.b16 %v3838
      %v3991 = vunpack.c.l.b16 %v3839
      %v3992 = vunpack.c.l.b16 %v3840
      %v3993 = vunpack.c.l.b16 %v3841
      %v3994 = vunpack.c.l.b16 %v3842
      %v3995 = vunpack.c.l.b16 %v3843
      %v3996 = vunpack.c.l.b16 %v3844
      %v3997 = vunpack.c.l.b16 %v3845
      %v3998 = vpack.c.b16 %v3983, %v3982
      %v3999 = vpack.c.b16 %v3985, %v3984
      %v4000 = vpack.c.b16 %v3987, %v3986
      %v4001 = vpack.c.b16 %v3989, %v3988
      %v4002 = vpack.c.b16 %v3991, %v3990
      %v4003 = vpack.c.b16 %v3993, %v3992
      %v4004 = vpack.c.b16 %v3995, %v3994
      %v4005 = vpack.c.b16 %v3997, %v3996
      %4014 = vmatprep.subr.bf16.mxu0 0
      %4015 = vmatpush1.bf16.msra.mxu0 %v4005
      %4016 = vmatprep.subr.bf16.mxu0 0
      %4017 = vmatpush1.bf16.msra.mxu0 %v4004
      %4018 = vmatprep.subr.bf16.mxu0 0
      %4019 = vmatpush1.bf16.msra.mxu0 %v4003
      %4020 = vmatprep.subr.bf16.mxu0 0
      %4021 = vmatpush1.bf16.msra.mxu0 %v4002
      %4022 = vmatprep.subr.bf16.mxu0 0
      %4023 = vmatpush1.bf16.msra.mxu0 %v4001
      %4024 = vmatprep.subr.bf16.mxu0 0
      %4025 = vmatpush1.bf16.msra.mxu0 %v4000
      %4026 = vmatprep.subr.bf16.mxu0 0
      %4027 = vmatpush1.bf16.msra.mxu0 %v3999
      %4028 = vmatprep.subr.bf16.mxu0 0
      %4029 = vmatpush1.bf16.msra.mxu0 %v3998
      %4030 = vmatprep.subr.bf16.mxu0 0
      %4031 = vmatpush2.bf16.msra.mxu0 0
      %4032 = vmatprep.subr.bf16.mxu0 0
      %4033 = vmatpush2.bf16.msra.mxu0 0
      %4034 = vmatprep.subr.bf16.mxu0 0
      %4035 = vmatpush2.bf16.msra.mxu0 0
      %4036 = vmatprep.subr.bf16.mxu0 0
      %4037 = vmatpush2.bf16.msra.mxu0 0
      %4038 = vmatprep.subr.bf16.mxu0 0
      %4039 = vmatpush2.bf16.msra.mxu0 0
      %4040 = vmatprep.subr.bf16.mxu0 0
      %4041 = vmatpush2.bf16.msra.mxu0 0
      %4042 = vmatprep.subr.bf16.mxu0 0
      %4043 = vmatpush2.bf16.msra.mxu0 0
      %4044 = vmatprep.subr.bf16.mxu0 0
      %4045 = vmatpush2.bf16.msra.mxu0 0
      %4046 = vmatprep.mubr.bf16.mxu0 0
      %4047 = vmatmul.mubr.bf16.gmra.mxu0 %v3910
      %v4048 = vpop.f32.mrf.mxu0
      %v4049 = vadd.f32 0.0, %v4048
      %v4050 = vpop.f32.mrf.mxu0
      %v4051 = vpop.f32.mrf.mxu0
      %v4052 = vadd.f32 0.0, %v4051
      %v4053 = vpop.f32.mrf.mxu0
      %4054 = vmatprep.mubr.bf16.mxu0 0
      %4055 = vmatmul.mubr.bf16.gmra.mxu0 %v3918
      %v4056 = vpop.f32.mrf.mxu0
      %v4057 = vadd.f32 0.0, %v4056
      %v4058 = vpop.f32.mrf.mxu0
      %v4059 = vpop.f32.mrf.mxu0
      %v4060 = vadd.f32 0.0, %v4059
      %v4061 = vpop.f32.mrf.mxu0
      %4062 = vmatprep.mubr.bf16.mxu0 0
      %4063 = vmatmul.mubr.bf16.gmra.mxu0 %v3926
      %v4064 = vpop.f32.mrf.mxu0
      %v4065 = vadd.f32 0.0, %v4064
      %v4066 = vpop.f32.mrf.mxu0
      %v4067 = vpop.f32.mrf.mxu0
      %v4068 = vadd.f32 0.0, %v4067
      %v4069 = vpop.f32.mrf.mxu0
      %4070 = vmatprep.mubr.bf16.mxu0 0
      %4071 = vmatmul.mubr.bf16.gmra.mxu0 %v3934
      %v4072 = vpop.f32.mrf.mxu0
      %v4073 = vadd.f32 0.0, %v4072
      %v4074 = vpop.f32.mrf.mxu0
      %v4075 = vpop.f32.mrf.mxu0
      %v4076 = vadd.f32 0.0, %v4075
      %v4077 = vpop.f32.mrf.mxu0
      %4078 = vmatprep.mubr.bf16.mxu0 0
      %4079 = vmatmul.mubr.bf16.gmra.mxu0 %v3942
      %v4080 = vpop.f32.mrf.mxu0
      %v4081 = vadd.f32 0.0, %v4080
      %v4082 = vpop.f32.mrf.mxu0
      %v4083 = vpop.f32.mrf.mxu0
      %v4084 = vadd.f32 0.0, %v4083
      %v4085 = vpop.f32.mrf.mxu0
      %4086 = vmatprep.mubr.bf16.mxu0 0
      %4087 = vmatmul.mubr.bf16.gmra.mxu0 %v3950
      %v4088 = vpop.f32.mrf.mxu0
      %v4089 = vadd.f32 0.0, %v4088
      %v4090 = vpop.f32.mrf.mxu0
      %v4091 = vpop.f32.mrf.mxu0
      %v4092 = vadd.f32 0.0, %v4091
      %v4093 = vpop.f32.mrf.mxu0
      %4094 = vmatprep.mubr.bf16.mxu0 0
      %4095 = vmatmul.mubr.bf16.gmra.mxu0 %v3958
      %v4096 = vpop.f32.mrf.mxu0
      %v4097 = vadd.f32 0.0, %v4096
      %v4098 = vpop.f32.mrf.mxu0
      %v4099 = vpop.f32.mrf.mxu0
      %v4100 = vadd.f32 0.0, %v4099
      %v4101 = vpop.f32.mrf.mxu0
      %4102 = vdwg.mxu0
      %v4103 = vadd.f32 %v3816, %v4049
      %v4104 = vadd.f32 %v3817, %v4052
      %v4105 = vadd.f32 %v3818, %v4057
      %v4106 = vadd.f32 %v3819, %v4060
      %v4107 = vadd.f32 %v3820, %v4065
      %v4108 = vadd.f32 %v3821, %v4068
      %v4109 = vadd.f32 %v3822, %v4073
      %v4110 = vadd.f32 %v3823, %v4076
      %v4111 = vadd.f32 %v3824, %v4081
      %v4112 = vadd.f32 %v3825, %v4084
      %v4113 = vadd.f32 %v3826, %v4089
      %v4114 = vadd.f32 %v3827, %v4092
      %v4115 = vadd.f32 %v3828, %v4097
      %v4116 = vadd.f32 %v3829, %v4100
      %v4117 = vld [vmem:[%s1759] sm:$0xf]
      %v4118 = vld [vmem:[%s1759 + $0x4] sm:$0xf]
      %v4119 = vld [vmem:[%s1759 + $0x8] sm:$0xf]
      %v4120 = vld [vmem:[%s1759 + $0xc] sm:$0xf]
      %v4121 = vld [vmem:[%s1759 + $0x10] sm:$0xf]
      %v4122 = vld [vmem:[%s1759 + $0x14] sm:$0xf]
      %v4123 = vld [vmem:[%s1759 + $0x18] sm:$0xf]
      %v4124 = vld [vmem:[%s1759 + $0x1c] sm:$0xf]
      %v4125 = vld [vmem:[%s1759 + $0x20] sm:$0xf]
      %v4126 = vld [vmem:[%s1759 + $0x24] sm:$0xf]
      %v4127 = vld [vmem:[%s1759 + $0x28] sm:$0xf]
      %v4128 = vld [vmem:[%s1759 + $0x2c] sm:$0xf]
      %v4129 = vld [vmem:[%s1759 + $0x30] sm:$0xf]
      %v4130 = vld [vmem:[%s1759 + $0x34] sm:$0xf]
      %v4131 = vld [vmem:[%s1759 + $0x38] sm:$0xf]
      %v4132 = vld [vmem:[%s1759 + $0x3c] sm:$0xf]
      %v4133 = vld [vmem:[#allocation2 + $0x48] sm:$0xe]
      %v4135 = vunpack.c.l.b16 %v4133
      %v4136 = vpack.c.b16 %v3877, %v4135
      %v4137 = vrot.slane %v4136, 1
      %v4138 = vrot.slane %v3892, 1
      %v4139 = vsel %vm1016, %v4137, %v4138
      %v4140 = vrot.slane %v3893, 1
      %v4141 = vsel %vm1016, %v4138, %v4140
      %v4142 = vrot.slane %v3894, 1
      %v4143 = vsel %vm1016, %v4140, %v4142
      %v4144 = vrot.slane %v3895, 1
      %v4145 = vsel %vm1016, %v4142, %v4144
      %v4146 = vrot.slane %v3896, 1
      %v4147 = vsel %vm1016, %v4144, %v4146
      %v4148 = vrot.slane %v3897, 1
      %v4149 = vsel %vm1016, %v4146, %v4148
      %v4150 = vrot.slane %v3898, 1
      %v4151 = vsel %vm1016, %v4148, %v4150
      %v4175 = vunpack.c.l.b16 %v4117
      %v4176 = vunpack.c.l.b16 %v4118
      %v4177 = vunpack.c.l.b16 %v4119
      %v4178 = vunpack.c.l.b16 %v4120
      %v4179 = vunpack.c.l.b16 %v4121
      %v4180 = vunpack.c.l.b16 %v4122
      %v4181 = vunpack.c.l.b16 %v4123
      %v4182 = vunpack.c.l.b16 %v4124
      %v4183 = vunpack.c.l.b16 %v4125
      %v4184 = vunpack.c.l.b16 %v4126
      %v4185 = vunpack.c.l.b16 %v4127
      %v4186 = vunpack.c.l.b16 %v4128
      %v4187 = vunpack.c.l.b16 %v4129
      %v4188 = vunpack.c.l.b16 %v4130
      %v4189 = vunpack.c.l.b16 %v4131
      %v4190 = vunpack.c.l.b16 %v4132
      %v4191 = vpack.c.b16 %v4176, %v4175
      %v4192 = vpack.c.b16 %v4178, %v4177
      %v4193 = vpack.c.b16 %v4180, %v4179
      %v4194 = vpack.c.b16 %v4182, %v4181
      %v4195 = vpack.c.b16 %v4184, %v4183
      %v4196 = vpack.c.b16 %v4186, %v4185
      %v4197 = vpack.c.b16 %v4188, %v4187
      %v4198 = vpack.c.b16 %v4190, %v4189
      %4207 = vmatprep.subr.bf16.mxu0 0
      %4208 = vmatpush1.bf16.msra.mxu0 %v4198
      %4209 = vmatprep.subr.bf16.mxu0 0
      %4210 = vmatpush1.bf16.msra.mxu0 %v4197
      %4211 = vmatprep.subr.bf16.mxu0 0
      %4212 = vmatpush1.bf16.msra.mxu0 %v4196
      %4213 = vmatprep.subr.bf16.mxu0 0
      %4214 = vmatpush1.bf16.msra.mxu0 %v4195
      %4215 = vmatprep.subr.bf16.mxu0 0
      %4216 = vmatpush1.bf16.msra.mxu0 %v4194
      %4217 = vmatprep.subr.bf16.mxu0 0
      %4218 = vmatpush1.bf16.msra.mxu0 %v4193
      %4219 = vmatprep.subr.bf16.mxu0 0
      %4220 = vmatpush1.bf16.msra.mxu0 %v4192
      %4221 = vmatprep.subr.bf16.mxu0 0
      %4222 = vmatpush1.bf16.msra.mxu0 %v4191
      %4223 = vmatprep.subr.bf16.mxu0 0
      %4224 = vmatpush2.bf16.msra.mxu0 0
      %4225 = vmatprep.subr.bf16.mxu0 0
      %4226 = vmatpush2.bf16.msra.mxu0 0
      %4227 = vmatprep.subr.bf16.mxu0 0
      %4228 = vmatpush2.bf16.msra.mxu0 0
      %4229 = vmatprep.subr.bf16.mxu0 0
      %4230 = vmatpush2.bf16.msra.mxu0 0
      %4231 = vmatprep.subr.bf16.mxu0 0
      %4232 = vmatpush2.bf16.msra.mxu0 0
      %4233 = vmatprep.subr.bf16.mxu0 0
      %4234 = vmatpush2.bf16.msra.mxu0 0
      %4235 = vmatprep.subr.bf16.mxu0 0
      %4236 = vmatpush2.bf16.msra.mxu0 0
      %4237 = vmatprep.subr.bf16.mxu0 0
      %4238 = vmatpush2.bf16.msra.mxu0 0
      %4239 = vmatprep.mubr.bf16.mxu0 0
      %4240 = vmatmul.mubr.bf16.gmra.mxu0 %v4139
      %v4241 = vpop.f32.mrf.mxu0
      %v4242 = vadd.f32 0.0, %v4241
      %v4243 = vpop.f32.mrf.mxu0
      %v4244 = vpop.f32.mrf.mxu0
      %v4245 = vadd.f32 0.0, %v4244
      %v4246 = vpop.f32.mrf.mxu0
      %4247 = vmatprep.mubr.bf16.mxu0 0
      %4248 = vmatmul.mubr.bf16.gmra.mxu0 %v4141
      %v4249 = vpop.f32.mrf.mxu0
      %v4250 = vadd.f32 0.0, %v4249
      %v4251 = vpop.f32.mrf.mxu0
      %v4252 = vpop.f32.mrf.mxu0
      %v4253 = vadd.f32 0.0, %v4252
      %v4254 = vpop.f32.mrf.mxu0
      %4255 = vmatprep.mubr.bf16.mxu0 0
      %4256 = vmatmul.mubr.bf16.gmra.mxu0 %v4143
      %v4257 = vpop.f32.mrf.mxu0
      %v4258 = vadd.f32 0.0, %v4257
      %v4259 = vpop.f32.mrf.mxu0
      %v4260 = vpop.f32.mrf.mxu0
      %v4261 = vadd.f32 0.0, %v4260
      %v4262 = vpop.f32.mrf.mxu0
      %4263 = vmatprep.mubr.bf16.mxu0 0
      %4264 = vmatmul.mubr.bf16.gmra.mxu0 %v4145
      %v4265 = vpop.f32.mrf.mxu0
      %v4266 = vadd.f32 0.0, %v4265
      %v4267 = vpop.f32.mrf.mxu0
      %v4268 = vpop.f32.mrf.mxu0
      %v4269 = vadd.f32 0.0, %v4268
      %v4270 = vpop.f32.mrf.mxu0
      %4271 = vmatprep.mubr.bf16.mxu0 0
      %4272 = vmatmul.mubr.bf16.gmra.mxu0 %v4147
      %v4273 = vpop.f32.mrf.mxu0
      %v4274 = vadd.f32 0.0, %v4273
      %v4275 = vpop.f32.mrf.mxu0
      %v4276 = vpop.f32.mrf.mxu0
      %v4277 = vadd.f32 0.0, %v4276
      %v4278 = vpop.f32.mrf.mxu0
      %4279 = vmatprep.mubr.bf16.mxu0 0
      %4280 = vmatmul.mubr.bf16.gmra.mxu0 %v4149
      %v4281 = vpop.f32.mrf.mxu0
      %v4282 = vadd.f32 0.0, %v4281
      %v4283 = vpop.f32.mrf.mxu0
      %v4284 = vpop.f32.mrf.mxu0
      %v4285 = vadd.f32 0.0, %v4284
      %v4286 = vpop.f32.mrf.mxu0
      %4287 = vmatprep.mubr.bf16.mxu0 0
      %4288 = vmatmul.mubr.bf16.gmra.mxu0 %v4151
      %v4289 = vpop.f32.mrf.mxu0
      %v4290 = vadd.f32 0.0, %v4289
      %v4291 = vpop.f32.mrf.mxu0
      %v4292 = vpop.f32.mrf.mxu0
      %v4293 = vadd.f32 0.0, %v4292
      %v4294 = vpop.f32.mrf.mxu0
      %4295 = vdwg.mxu0
      %v4296 = vadd.f32 %v4103, %v4242
      %v4297 = vadd.f32 %v4104, %v4245
      %v4298 = vadd.f32 %v4105, %v4250
      %v4299 = vadd.f32 %v4106, %v4253
      %v4300 = vadd.f32 %v4107, %v4258
      %v4301 = vadd.f32 %v4108, %v4261
      %v4302 = vadd.f32 %v4109, %v4266
      %v4303 = vadd.f32 %v4110, %v4269
      %v4304 = vadd.f32 %v4111, %v4274
      %v4305 = vadd.f32 %v4112, %v4277
      %v4306 = vadd.f32 %v4113, %v4282
      %v4307 = vadd.f32 %v4114, %v4285
      %v4308 = vadd.f32 %v4115, %v4290
      %v4309 = vadd.f32 %v4116, %v4293
      %v4310 = vld [vmem:[%s1966] sm:$0xf]
      %v4311 = vld [vmem:[%s1966 + $0x4] sm:$0xf]
      %v4312 = vld [vmem:[%s1966 + $0x8] sm:$0xf]
      %v4313 = vld [vmem:[%s1966 + $0xc] sm:$0xf]
      %v4314 = vld [vmem:[%s1966 + $0x10] sm:$0xf]
      %v4315 = vld [vmem:[%s1966 + $0x14] sm:$0xf]
      %v4316 = vld [vmem:[%s1966 + $0x18] sm:$0xf]
      %v4317 = vld [vmem:[%s1966 + $0x1c] sm:$0xf]
      %v4318 = vld [vmem:[%s1966 + $0x20] sm:$0xf]
      %v4319 = vld [vmem:[%s1966 + $0x24] sm:$0xf]
      %v4320 = vld [vmem:[%s1966 + $0x28] sm:$0xf]
      %v4321 = vld [vmem:[%s1966 + $0x2c] sm:$0xf]
      %v4322 = vld [vmem:[%s1966 + $0x30] sm:$0xf]
      %v4323 = vld [vmem:[%s1966 + $0x34] sm:$0xf]
      %v4324 = vld [vmem:[%s1966 + $0x38] sm:$0xf]
      %v4325 = vld [vmem:[%s1966 + $0x3c] sm:$0xf]
      %v4326 = vld [vmem:[#allocation2 + $0x50] sm:$0xf]
      %v4327 = vld [vmem:[#allocation2 + $0x54] sm:$0xf]
      %v4328 = vld [vmem:[#allocation2 + $0x58] sm:$0xf]
      %v4329 = vld [vmem:[#allocation2 + $0x5c] sm:$0xf]
      %v4330 = vld [vmem:[#allocation2 + $0x60] sm:$0xf]
      %v4331 = vld [vmem:[#allocation2 + $0x64] sm:$0xf]
      %v4332 = vld [vmem:[#allocation2 + $0x68] sm:$0xf]
      %v4333 = vld [vmem:[#allocation2 + $0x6c] sm:$0xf]
      %v4334 = vld [vmem:[#allocation2 + $0x70] sm:$0xf]
      %v4335 = vld [vmem:[#allocation2 + $0x74] sm:$0xf]
      %v4336 = vld [vmem:[#allocation2 + $0x78] sm:$0xf]
      %v4337 = vld [vmem:[#allocation2 + $0x7c] sm:$0xf]
      %v4338 = vld [vmem:[#allocation2 + $0x80] sm:$0xf]
      %v4339 = vld [vmem:[#allocation2 + $0x84] sm:$0xf]
      %v4354 = vunpack.c.l.b16 %v4326
      %v4355 = vunpack.c.l.b16 %v4327
      %v4356 = vunpack.c.l.b16 %v4328
      %v4357 = vunpack.c.l.b16 %v4329
      %v4358 = vunpack.c.l.b16 %v4330
      %v4359 = vunpack.c.l.b16 %v4331
      %v4360 = vunpack.c.l.b16 %v4332
      %v4361 = vunpack.c.l.b16 %v4333
      %v4362 = vunpack.c.l.b16 %v4334
      %v4363 = vunpack.c.l.b16 %v4335
      %v4364 = vunpack.c.l.b16 %v4336
      %v4365 = vunpack.c.l.b16 %v4337
      %v4366 = vunpack.c.l.b16 %v4338
      %v4367 = vunpack.c.l.b16 %v4339
      %v4368 = vpack.c.b16 %v4355, %v4354
      %v4369 = vpack.c.b16 %v4357, %v4356
      %v4370 = vpack.c.b16 %v4359, %v4358
      %v4371 = vpack.c.b16 %v4361, %v4360
      %v4372 = vpack.c.b16 %v4363, %v4362
      %v4373 = vpack.c.b16 %v4365, %v4364
      %v4374 = vpack.c.b16 %v4367, %v4366
      %v4398 = vunpack.c.l.b16 %v4310
      %v4399 = vunpack.c.l.b16 %v4311
      %v4400 = vunpack.c.l.b16 %v4312
      %v4401 = vunpack.c.l.b16 %v4313
      %v4402 = vunpack.c.l.b16 %v4314
      %v4403 = vunpack.c.l.b16 %v4315
      %v4404 = vunpack.c.l.b16 %v4316
      %v4405 = vunpack.c.l.b16 %v4317
      %v4406 = vunpack.c.l.b16 %v4318
      %v4407 = vunpack.c.l.b16 %v4319
      %v4408 = vunpack.c.l.b16 %v4320
      %v4409 = vunpack.c.l.b16 %v4321
      %v4410 = vunpack.c.l.b16 %v4322
      %v4411 = vunpack.c.l.b16 %v4323
      %v4412 = vunpack.c.l.b16 %v4324
      %v4413 = vunpack.c.l.b16 %v4325
      %v4414 = vpack.c.b16 %v4399, %v4398
      %v4415 = vpack.c.b16 %v4401, %v4400
      %v4416 = vpack.c.b16 %v4403, %v4402
      %v4417 = vpack.c.b16 %v4405, %v4404
      %v4418 = vpack.c.b16 %v4407, %v4406
      %v4419 = vpack.c.b16 %v4409, %v4408
      %v4420 = vpack.c.b16 %v4411, %v4410
      %v4421 = vpack.c.b16 %v4413, %v4412
      %4430 = vmatprep.subr.bf16.mxu0 0
      %4431 = vmatpush1.bf16.msra.mxu0 %v4421
      %4432 = vmatprep.subr.bf16.mxu0 0
      %4433 = vmatpush1.bf16.msra.mxu0 %v4420
      %4434 = vmatprep.subr.bf16.mxu0 0
      %4435 = vmatpush1.bf16.msra.mxu0 %v4419
      %4436 = vmatprep.subr.bf16.mxu0 0
      %4437 = vmatpush1.bf16.msra.mxu0 %v4418
      %4438 = vmatprep.subr.bf16.mxu0 0
      %4439 = vmatpush1.bf16.msra.mxu0 %v4417
      %4440 = vmatprep.subr.bf16.mxu0 0
      %4441 = vmatpush1.bf16.msra.mxu0 %v4416
      %4442 = vmatprep.subr.bf16.mxu0 0
      %4443 = vmatpush1.bf16.msra.mxu0 %v4415
      %4444 = vmatprep.subr.bf16.mxu0 0
      %4445 = vmatpush1.bf16.msra.mxu0 %v4414
      %4446 = vmatprep.subr.bf16.mxu0 0
      %4447 = vmatpush2.bf16.msra.mxu0 0
      %4448 = vmatprep.subr.bf16.mxu0 0
      %4449 = vmatpush2.bf16.msra.mxu0 0
      %4450 = vmatprep.subr.bf16.mxu0 0
      %4451 = vmatpush2.bf16.msra.mxu0 0
      %4452 = vmatprep.subr.bf16.mxu0 0
      %4453 = vmatpush2.bf16.msra.mxu0 0
      %4454 = vmatprep.subr.bf16.mxu0 0
      %4455 = vmatpush2.bf16.msra.mxu0 0
      %4456 = vmatprep.subr.bf16.mxu0 0
      %4457 = vmatpush2.bf16.msra.mxu0 0
      %4458 = vmatprep.subr.bf16.mxu0 0
      %4459 = vmatpush2.bf16.msra.mxu0 0
      %4460 = vmatprep.subr.bf16.mxu0 0
      %4461 = vmatpush2.bf16.msra.mxu0 0
      %4462 = vmatprep.mubr.bf16.mxu0 0
      %4463 = vmatmul.mubr.bf16.gmra.mxu0 %v4368
      %v4464 = vpop.f32.mrf.mxu0
      %v4465 = vadd.f32 0.0, %v4464
      %v4466 = vpop.f32.mrf.mxu0
      %v4467 = vpop.f32.mrf.mxu0
      %v4468 = vadd.f32 0.0, %v4467
      %v4469 = vpop.f32.mrf.mxu0
      %4470 = vmatprep.mubr.bf16.mxu0 0
      %4471 = vmatmul.mubr.bf16.gmra.mxu0 %v4369
      %v4472 = vpop.f32.mrf.mxu0
      %v4473 = vadd.f32 0.0, %v4472
      %v4474 = vpop.f32.mrf.mxu0
      %v4475 = vpop.f32.mrf.mxu0
      %v4476 = vadd.f32 0.0, %v4475
      %v4477 = vpop.f32.mrf.mxu0
      %4478 = vmatprep.mubr.bf16.mxu0 0
      %4479 = vmatmul.mubr.bf16.gmra.mxu0 %v4370
      %v4480 = vpop.f32.mrf.mxu0
      %v4481 = vadd.f32 0.0, %v4480
      %v4482 = vpop.f32.mrf.mxu0
      %v4483 = vpop.f32.mrf.mxu0
      %v4484 = vadd.f32 0.0, %v4483
      %v4485 = vpop.f32.mrf.mxu0
      %4486 = vmatprep.mubr.bf16.mxu0 0
      %4487 = vmatmul.mubr.bf16.gmra.mxu0 %v4371
      %v4488 = vpop.f32.mrf.mxu0
      %v4489 = vadd.f32 0.0, %v4488
      %v4490 = vpop.f32.mrf.mxu0
      %v4491 = vpop.f32.mrf.mxu0
      %v4492 = vadd.f32 0.0, %v4491
      %v4493 = vpop.f32.mrf.mxu0
      %4494 = vmatprep.mubr.bf16.mxu0 0
      %4495 = vmatmul.mubr.bf16.gmra.mxu0 %v4372
      %v4496 = vpop.f32.mrf.mxu0
      %v4497 = vadd.f32 0.0, %v4496
      %v4498 = vpop.f32.mrf.mxu0
      %v4499 = vpop.f32.mrf.mxu0
      %v4500 = vadd.f32 0.0, %v4499
      %v4501 = vpop.f32.mrf.mxu0
      %4502 = vmatprep.mubr.bf16.mxu0 0
      %4503 = vmatmul.mubr.bf16.gmra.mxu0 %v4373
      %v4504 = vpop.f32.mrf.mxu0
      %v4505 = vadd.f32 0.0, %v4504
      %v4506 = vpop.f32.mrf.mxu0
      %v4507 = vpop.f32.mrf.mxu0
      %v4508 = vadd.f32 0.0, %v4507
      %v4509 = vpop.f32.mrf.mxu0
      %4510 = vmatprep.mubr.bf16.mxu0 0
      %4511 = vmatmul.mubr.bf16.gmra.mxu0 %v4374
      %v4512 = vpop.f32.mrf.mxu0
      %v4513 = vadd.f32 0.0, %v4512
      %v4514 = vpop.f32.mrf.mxu0
      %v4515 = vpop.f32.mrf.mxu0
      %v4516 = vadd.f32 0.0, %v4515
      %v4517 = vpop.f32.mrf.mxu0
      %4518 = vdwg.mxu0
      %v4519 = vadd.f32 %v4296, %v4465
      %v4520 = vadd.f32 %v4297, %v4468
      %v4521 = vadd.f32 %v4298, %v4473
      %v4522 = vadd.f32 %v4299, %v4476
      %v4523 = vadd.f32 %v4300, %v4481
      %v4524 = vadd.f32 %v4301, %v4484
      %v4525 = vadd.f32 %v4302, %v4489
      %v4526 = vadd.f32 %v4303, %v4492
      %v4527 = vadd.f32 %v4304, %v4497
      %v4528 = vadd.f32 %v4305, %v4500
      %v4529 = vadd.f32 %v4306, %v4505
      %v4530 = vadd.f32 %v4307, %v4508
      %v4531 = vadd.f32 %v4308, %v4513
      %v4532 = vadd.f32 %v4309, %v4516
      %v4533 = vld [vmem:[%s2208] sm:$0xf]
      %v4534 = vld [vmem:[%s2208 + $0x4] sm:$0xf]
      %v4535 = vld [vmem:[%s2208 + $0x8] sm:$0xf]
      %v4536 = vld [vmem:[%s2208 + $0xc] sm:$0xf]
      %v4537 = vld [vmem:[%s2208 + $0x10] sm:$0xf]
      %v4538 = vld [vmem:[%s2208 + $0x14] sm:$0xf]
      %v4539 = vld [vmem:[%s2208 + $0x18] sm:$0xf]
      %v4540 = vld [vmem:[%s2208 + $0x1c] sm:$0xf]
      %v4541 = vld [vmem:[%s2208 + $0x20] sm:$0xf]
      %v4542 = vld [vmem:[%s2208 + $0x24] sm:$0xf]
      %v4543 = vld [vmem:[%s2208 + $0x28] sm:$0xf]
      %v4544 = vld [vmem:[%s2208 + $0x2c] sm:$0xf]
      %v4545 = vld [vmem:[%s2208 + $0x30] sm:$0xf]
      %v4546 = vld [vmem:[%s2208 + $0x34] sm:$0xf]
      %v4547 = vld [vmem:[%s2208 + $0x38] sm:$0xf]
      %v4548 = vld [vmem:[%s2208 + $0x3c] sm:$0xf]
      %v4549 = vld [vmem:[#allocation2 + $0x50] sm:$0xf]
      %v4550 = vld [vmem:[#allocation2 + $0x54] sm:$0xf]
      %v4551 = vld [vmem:[#allocation2 + $0x58] sm:$0xf]
      %v4552 = vld [vmem:[#allocation2 + $0x5c] sm:$0xf]
      %v4553 = vld [vmem:[#allocation2 + $0x60] sm:$0xf]
      %v4554 = vld [vmem:[#allocation2 + $0x64] sm:$0xf]
      %v4555 = vld [vmem:[#allocation2 + $0x68] sm:$0xf]
      %v4556 = vld [vmem:[#allocation2 + $0x6c] sm:$0xf]
      %v4557 = vld [vmem:[#allocation2 + $0x70] sm:$0xf]
      %v4558 = vld [vmem:[#allocation2 + $0x74] sm:$0xf]
      %v4559 = vld [vmem:[#allocation2 + $0x78] sm:$0xf]
      %v4560 = vld [vmem:[#allocation2 + $0x7c] sm:$0xf]
      %v4561 = vld [vmem:[#allocation2 + $0x80] sm:$0xf]
      %v4562 = vld [vmem:[#allocation2 + $0x84] sm:$0xf]
      %v4563 = vld [vmem:[#allocation2 + $0x88] sm:$0x1]
      %v4579 = vunpack.c.l.b16 %v4549
      %v4580 = vunpack.c.l.b16 %v4550
      %v4581 = vunpack.c.l.b16 %v4551
      %v4582 = vunpack.c.l.b16 %v4552
      %v4583 = vunpack.c.l.b16 %v4553
      %v4584 = vunpack.c.l.b16 %v4554
      %v4585 = vunpack.c.l.b16 %v4555
      %v4586 = vunpack.c.l.b16 %v4556
      %v4587 = vunpack.c.l.b16 %v4557
      %v4588 = vunpack.c.l.b16 %v4558
      %v4589 = vunpack.c.l.b16 %v4559
      %v4590 = vunpack.c.l.b16 %v4560
      %v4591 = vunpack.c.l.b16 %v4561
      %v4592 = vunpack.c.l.b16 %v4562
      %v4593 = vunpack.c.l.b16 %v4563
      %v4594 = vpack.c.b16 %v4580, %v4579
      %v4595 = vpack.c.b16 %v4582, %v4581
      %v4596 = vpack.c.b16 %v4584, %v4583
      %v4597 = vpack.c.b16 %v4586, %v4585
      %v4598 = vpack.c.b16 %v4588, %v4587
      %v4599 = vpack.c.b16 %v4590, %v4589
      %v4600 = vpack.c.b16 %v4592, %v4591
      %v4601 = vpack.c.b16 %v4593, %v4593
      %v4603 = vshrl.u32 %v4594, 16
      %v4605 = vshll.u32 %v4594, 16
      %v4607 = vrot.slane %v4605, 1
      %v4608 = vor.u32 %v4603, %v4607
      %v4610 = vshll.u32 %v4595, 16
      %v4612 = vrot.slane %v4610, 1
      %v4613 = vsel %vm620, %v4608, %v4612
      %v4614 = vshrl.u32 %v4595, 16
      %v4616 = vor.u32 %v4614, %v4612
      %v4618 = vshll.u32 %v4596, 16
      %v4620 = vrot.slane %v4618, 1
      %v4621 = vsel %vm620, %v4616, %v4620
      %v4622 = vshrl.u32 %v4596, 16
      %v4624 = vor.u32 %v4622, %v4620
      %v4626 = vshll.u32 %v4597, 16
      %v4628 = vrot.slane %v4626, 1
      %v4629 = vsel %vm620, %v4624, %v4628
      %v4630 = vshrl.u32 %v4597, 16
      %v4632 = vor.u32 %v4630, %v4628
      %v4634 = vshll.u32 %v4598, 16
      %v4636 = vrot.slane %v4634, 1
      %v4637 = vsel %vm620, %v4632, %v4636
      %v4638 = vshrl.u32 %v4598, 16
      %v4640 = vor.u32 %v4638, %v4636
      %v4642 = vshll.u32 %v4599, 16
      %v4644 = vrot.slane %v4642, 1
      %v4645 = vsel %vm620, %v4640, %v4644
      %v4646 = vshrl.u32 %v4599, 16
      %v4648 = vor.u32 %v4646, %v4644
      %v4650 = vshll.u32 %v4600, 16
      %v4652 = vrot.slane %v4650, 1
      %v4653 = vsel %vm620, %v4648, %v4652
      %v4654 = vshrl.u32 %v4600, 16
      %v4656 = vor.u32 %v4654, %v4652
      %v4658 = vshll.u32 %v4601, 16
      %v4660 = vrot.slane %v4658, 1
      %v4661 = vsel %vm620, %v4656, %v4660
      %v4685 = vunpack.c.l.b16 %v4533
      %v4686 = vunpack.c.l.b16 %v4534
      %v4687 = vunpack.c.l.b16 %v4535
      %v4688 = vunpack.c.l.b16 %v4536
      %v4689 = vunpack.c.l.b16 %v4537
      %v4690 = vunpack.c.l.b16 %v4538
      %v4691 = vunpack.c.l.b16 %v4539
      %v4692 = vunpack.c.l.b16 %v4540
      %v4693 = vunpack.c.l.b16 %v4541
      %v4694 = vunpack.c.l.b16 %v4542
      %v4695 = vunpack.c.l.b16 %v4543
      %v4696 = vunpack.c.l.b16 %v4544
      %v4697 = vunpack.c.l.b16 %v4545
      %v4698 = vunpack.c.l.b16 %v4546
      %v4699 = vunpack.c.l.b16 %v4547
      %v4700 = vunpack.c.l.b16 %v4548
      %v4701 = vpack.c.b16 %v4686, %v4685
      %v4702 = vpack.c.b16 %v4688, %v4687
      %v4703 = vpack.c.b16 %v4690, %v4689
      %v4704 = vpack.c.b16 %v4692, %v4691
      %v4705 = vpack.c.b16 %v4694, %v4693
      %v4706 = vpack.c.b16 %v4696, %v4695
      %v4707 = vpack.c.b16 %v4698, %v4697
      %v4708 = vpack.c.b16 %v4700, %v4699
      %4717 = vmatprep.subr.bf16.mxu0 0
      %4718 = vmatpush1.bf16.msra.mxu0 %v4708
      %4719 = vmatprep.subr.bf16.mxu0 0
      %4720 = vmatpush1.bf16.msra.mxu0 %v4707
      %4721 = vmatprep.subr.bf16.mxu0 0
      %4722 = vmatpush1.bf16.msra.mxu0 %v4706
      %4723 = vmatprep.subr.bf16.mxu0 0
      %4724 = vmatpush1.bf16.msra.mxu0 %v4705
      %4725 = vmatprep.subr.bf16.mxu0 0
      %4726 = vmatpush1.bf16.msra.mxu0 %v4704
      %4727 = vmatprep.subr.bf16.mxu0 0
      %4728 = vmatpush1.bf16.msra.mxu0 %v4703
      %4729 = vmatprep.subr.bf16.mxu0 0
      %4730 = vmatpush1.bf16.msra.mxu0 %v4702
      %4731 = vmatprep.subr.bf16.mxu0 0
      %4732 = vmatpush1.bf16.msra.mxu0 %v4701
      %4733 = vmatprep.subr.bf16.mxu0 0
      %4734 = vmatpush2.bf16.msra.mxu0 0
      %4735 = vmatprep.subr.bf16.mxu0 0
      %4736 = vmatpush2.bf16.msra.mxu0 0
      %4737 = vmatprep.subr.bf16.mxu0 0
      %4738 = vmatpush2.bf16.msra.mxu0 0
      %4739 = vmatprep.subr.bf16.mxu0 0
      %4740 = vmatpush2.bf16.msra.mxu0 0
      %4741 = vmatprep.subr.bf16.mxu0 0
      %4742 = vmatpush2.bf16.msra.mxu0 0
      %4743 = vmatprep.subr.bf16.mxu0 0
      %4744 = vmatpush2.bf16.msra.mxu0 0
      %4745 = vmatprep.subr.bf16.mxu0 0
      %4746 = vmatpush2.bf16.msra.mxu0 0
      %4747 = vmatprep.subr.bf16.mxu0 0
      %4748 = vmatpush2.bf16.msra.mxu0 0
      %4749 = vmatprep.mubr.bf16.mxu0 0
      %4750 = vmatmul.mubr.bf16.gmra.mxu0 %v4613
      %v4751 = vpop.f32.mrf.mxu0
      %v4752 = vadd.f32 0.0, %v4751
      %v4753 = vpop.f32.mrf.mxu0
      %v4754 = vpop.f32.mrf.mxu0
      %v4755 = vadd.f32 0.0, %v4754
      %v4756 = vpop.f32.mrf.mxu0
      %4757 = vmatprep.mubr.bf16.mxu0 0
      %4758 = vmatmul.mubr.bf16.gmra.mxu0 %v4621
      %v4759 = vpop.f32.mrf.mxu0
      %v4760 = vadd.f32 0.0, %v4759
      %v4761 = vpop.f32.mrf.mxu0
      %v4762 = vpop.f32.mrf.mxu0
      %v4763 = vadd.f32 0.0, %v4762
      %v4764 = vpop.f32.mrf.mxu0
      %4765 = vmatprep.mubr.bf16.mxu0 0
      %4766 = vmatmul.mubr.bf16.gmra.mxu0 %v4629
      %v4767 = vpop.f32.mrf.mxu0
      %v4768 = vadd.f32 0.0, %v4767
      %v4769 = vpop.f32.mrf.mxu0
      %v4770 = vpop.f32.mrf.mxu0
      %v4771 = vadd.f32 0.0, %v4770
      %v4772 = vpop.f32.mrf.mxu0
      %4773 = vmatprep.mubr.bf16.mxu0 0
      %4774 = vmatmul.mubr.bf16.gmra.mxu0 %v4637
      %v4775 = vpop.f32.mrf.mxu0
      %v4776 = vadd.f32 0.0, %v4775
      %v4777 = vpop.f32.mrf.mxu0
      %v4778 = vpop.f32.mrf.mxu0
      %v4779 = vadd.f32 0.0, %v4778
      %v4780 = vpop.f32.mrf.mxu0
      %4781 = vmatprep.mubr.bf16.mxu0 0
      %4782 = vmatmul.mubr.bf16.gmra.mxu0 %v4645
      %v4783 = vpop.f32.mrf.mxu0
      %v4784 = vadd.f32 0.0, %v4783
      %v4785 = vpop.f32.mrf.mxu0
      %v4786 = vpop.f32.mrf.mxu0
      %v4787 = vadd.f32 0.0, %v4786
      %v4788 = vpop.f32.mrf.mxu0
      %4789 = vmatprep.mubr.bf16.mxu0 0
      %4790 = vmatmul.mubr.bf16.gmra.mxu0 %v4653
      %v4791 = vpop.f32.mrf.mxu0
      %v4792 = vadd.f32 0.0, %v4791
      %v4793 = vpop.f32.mrf.mxu0
      %v4794 = vpop.f32.mrf.mxu0
      %v4795 = vadd.f32 0.0, %v4794
      %v4796 = vpop.f32.mrf.mxu0
      %4797 = vmatprep.mubr.bf16.mxu0 0
      %4798 = vmatmul.mubr.bf16.gmra.mxu0 %v4661
      %v4799 = vpop.f32.mrf.mxu0
      %v4800 = vadd.f32 0.0, %v4799
      %v4801 = vpop.f32.mrf.mxu0
      %v4802 = vpop.f32.mrf.mxu0
      %v4803 = vadd.f32 0.0, %v4802
      %v4804 = vpop.f32.mrf.mxu0
      %4805 = vdwg.mxu0
      %v4806 = vadd.f32 %v4519, %v4752
      %v4807 = vadd.f32 %v4520, %v4755
      %v4808 = vadd.f32 %v4521, %v4760
      %v4809 = vadd.f32 %v4522, %v4763
      %v4810 = vadd.f32 %v4523, %v4768
      %v4811 = vadd.f32 %v4524, %v4771
      %v4812 = vadd.f32 %v4525, %v4776
      %v4813 = vadd.f32 %v4526, %v4779
      %v4814 = vadd.f32 %v4527, %v4784
      %v4815 = vadd.f32 %v4528, %v4787
      %v4816 = vadd.f32 %v4529, %v4792
      %v4817 = vadd.f32 %v4530, %v4795
      %v4818 = vadd.f32 %v4531, %v4800
      %v4819 = vadd.f32 %v4532, %v4803
      %v4820 = vld [vmem:[%s2522] sm:$0xf]
      %v4821 = vld [vmem:[%s2522 + $0x4] sm:$0xf]
      %v4822 = vld [vmem:[%s2522 + $0x8] sm:$0xf]
      %v4823 = vld [vmem:[%s2522 + $0xc] sm:$0xf]
      %v4824 = vld [vmem:[%s2522 + $0x10] sm:$0xf]
      %v4825 = vld [vmem:[%s2522 + $0x14] sm:$0xf]
      %v4826 = vld [vmem:[%s2522 + $0x18] sm:$0xf]
      %v4827 = vld [vmem:[%s2522 + $0x1c] sm:$0xf]
      %v4828 = vld [vmem:[%s2522 + $0x20] sm:$0xf]
      %v4829 = vld [vmem:[%s2522 + $0x24] sm:$0xf]
      %v4830 = vld [vmem:[%s2522 + $0x28] sm:$0xf]
      %v4831 = vld [vmem:[%s2522 + $0x2c] sm:$0xf]
      %v4832 = vld [vmem:[%s2522 + $0x30] sm:$0xf]
      %v4833 = vld [vmem:[%s2522 + $0x34] sm:$0xf]
      %v4834 = vld [vmem:[%s2522 + $0x38] sm:$0xf]
      %v4835 = vld [vmem:[%s2522 + $0x3c] sm:$0xf]
      %v4836 = vld [vmem:[#allocation2 + $0x50] sm:$0xe]
      %v4838 = vunpack.c.l.b16 %v4836
      %v4839 = vpack.c.b16 %v4580, %v4838
      %v4840 = vrot.slane %v4839, 1
      %v4841 = vrot.slane %v4595, 1
      %v4842 = vsel %vm1016, %v4840, %v4841
      %v4843 = vrot.slane %v4596, 1
      %v4844 = vsel %vm1016, %v4841, %v4843
      %v4845 = vrot.slane %v4597, 1
      %v4846 = vsel %vm1016, %v4843, %v4845
      %v4847 = vrot.slane %v4598, 1
      %v4848 = vsel %vm1016, %v4845, %v4847
      %v4849 = vrot.slane %v4599, 1
      %v4850 = vsel %vm1016, %v4847, %v4849
      %v4851 = vrot.slane %v4600, 1
      %v4852 = vsel %vm1016, %v4849, %v4851
      %v4853 = vrot.slane %v4601, 1
      %v4854 = vsel %vm1016, %v4851, %v4853
      %v4878 = vunpack.c.l.b16 %v4820
      %v4879 = vunpack.c.l.b16 %v4821
      %v4880 = vunpack.c.l.b16 %v4822
      %v4881 = vunpack.c.l.b16 %v4823
      %v4882 = vunpack.c.l.b16 %v4824
      %v4883 = vunpack.c.l.b16 %v4825
      %v4884 = vunpack.c.l.b16 %v4826
      %v4885 = vunpack.c.l.b16 %v4827
      %v4886 = vunpack.c.l.b16 %v4828
      %v4887 = vunpack.c.l.b16 %v4829
      %v4888 = vunpack.c.l.b16 %v4830
      %v4889 = vunpack.c.l.b16 %v4831
      %v4890 = vunpack.c.l.b16 %v4832
      %v4891 = vunpack.c.l.b16 %v4833
      %v4892 = vunpack.c.l.b16 %v4834
      %v4893 = vunpack.c.l.b16 %v4835
      %v4894 = vpack.c.b16 %v4879, %v4878
      %v4895 = vpack.c.b16 %v4881, %v4880
      %v4896 = vpack.c.b16 %v4883, %v4882
      %v4897 = vpack.c.b16 %v4885, %v4884
      %v4898 = vpack.c.b16 %v4887, %v4886
      %v4899 = vpack.c.b16 %v4889, %v4888
      %v4900 = vpack.c.b16 %v4891, %v4890
      %v4901 = vpack.c.b16 %v4893, %v4892
      %4910 = vmatprep.subr.bf16.mxu0 0
      %4911 = vmatpush1.bf16.msra.mxu0 %v4901
      %4912 = vmatprep.subr.bf16.mxu0 0
      %4913 = vmatpush1.bf16.msra.mxu0 %v4900
      %4914 = vmatprep.subr.bf16.mxu0 0
      %4915 = vmatpush1.bf16.msra.mxu0 %v4899
      %4916 = vmatprep.subr.bf16.mxu0 0
      %4917 = vmatpush1.bf16.msra.mxu0 %v4898
      %4918 = vmatprep.subr.bf16.mxu0 0
      %4919 = vmatpush1.bf16.msra.mxu0 %v4897
      %4920 = vmatprep.subr.bf16.mxu0 0
      %4921 = vmatpush1.bf16.msra.mxu0 %v4896
      %4922 = vmatprep.subr.bf16.mxu0 0
      %4923 = vmatpush1.bf16.msra.mxu0 %v4895
      %4924 = vmatprep.subr.bf16.mxu0 0
      %4925 = vmatpush1.bf16.msra.mxu0 %v4894
      %4926 = vmatprep.subr.bf16.mxu0 0
      %4927 = vmatpush2.bf16.msra.mxu0 0
      %4928 = vmatprep.subr.bf16.mxu0 0
      %4929 = vmatpush2.bf16.msra.mxu0 0
      %4930 = vmatprep.subr.bf16.mxu0 0
      %4931 = vmatpush2.bf16.msra.mxu0 0
      %4932 = vmatprep.subr.bf16.mxu0 0
      %4933 = vmatpush2.bf16.msra.mxu0 0
      %4934 = vmatprep.subr.bf16.mxu0 0
      %4935 = vmatpush2.bf16.msra.mxu0 0
      %4936 = vmatprep.subr.bf16.mxu0 0
      %4937 = vmatpush2.bf16.msra.mxu0 0
      %4938 = vmatprep.subr.bf16.mxu0 0
      %4939 = vmatpush2.bf16.msra.mxu0 0
      %4940 = vmatprep.subr.bf16.mxu0 0
      %4941 = vmatpush2.bf16.msra.mxu0 0
      %4942 = vmatprep.mubr.bf16.mxu0 0
      %4943 = vmatmul.mubr.bf16.gmra.mxu0 %v4842
      %v4944 = vpop.f32.mrf.mxu0
      %v4945 = vadd.f32 0.0, %v4944
      %v4946 = vpop.f32.mrf.mxu0
      %v4947 = vpop.f32.mrf.mxu0
      %v4948 = vadd.f32 0.0, %v4947
      %v4949 = vpop.f32.mrf.mxu0
      %4950 = vmatprep.mubr.bf16.mxu0 0
      %4951 = vmatmul.mubr.bf16.gmra.mxu0 %v4844
      %v4952 = vpop.f32.mrf.mxu0
      %v4953 = vadd.f32 0.0, %v4952
      %v4954 = vpop.f32.mrf.mxu0
      %v4955 = vpop.f32.mrf.mxu0
      %v4956 = vadd.f32 0.0, %v4955
      %v4957 = vpop.f32.mrf.mxu0
      %4958 = vmatprep.mubr.bf16.mxu0 0
      %4959 = vmatmul.mubr.bf16.gmra.mxu0 %v4846
      %v4960 = vpop.f32.mrf.mxu0
      %v4961 = vadd.f32 0.0, %v4960
      %v4962 = vpop.f32.mrf.mxu0
      %v4963 = vpop.f32.mrf.mxu0
      %v4964 = vadd.f32 0.0, %v4963
      %v4965 = vpop.f32.mrf.mxu0
      %4966 = vmatprep.mubr.bf16.mxu0 0
      %4967 = vmatmul.mubr.bf16.gmra.mxu0 %v4848
      %v4968 = vpop.f32.mrf.mxu0
      %v4969 = vadd.f32 0.0, %v4968
      %v4970 = vpop.f32.mrf.mxu0
      %v4971 = vpop.f32.mrf.mxu0
      %v4972 = vadd.f32 0.0, %v4971
      %v4973 = vpop.f32.mrf.mxu0
      %4974 = vmatprep.mubr.bf16.mxu0 0
      %4975 = vmatmul.mubr.bf16.gmra.mxu0 %v4850
      %v4976 = vpop.f32.mrf.mxu0
      %v4977 = vadd.f32 0.0, %v4976
      %v4978 = vpop.f32.mrf.mxu0
      %v4979 = vpop.f32.mrf.mxu0
      %v4980 = vadd.f32 0.0, %v4979
      %v4981 = vpop.f32.mrf.mxu0
      %4982 = vmatprep.mubr.bf16.mxu0 0
      %4983 = vmatmul.mubr.bf16.gmra.mxu0 %v4852
      %v4984 = vpop.f32.mrf.mxu0
      %v4985 = vadd.f32 0.0, %v4984
      %v4986 = vpop.f32.mrf.mxu0
      %v4987 = vpop.f32.mrf.mxu0
      %v4988 = vadd.f32 0.0, %v4987
      %v4989 = vpop.f32.mrf.mxu0
      %4990 = vmatprep.mubr.bf16.mxu0 0
      %4991 = vmatmul.mubr.bf16.gmra.mxu0 %v4854
      %v4992 = vpop.f32.mrf.mxu0
      %v4993 = vadd.f32 0.0, %v4992
      %v4994 = vpop.f32.mrf.mxu0
      %v4995 = vpop.f32.mrf.mxu0
      %v4996 = vadd.f32 0.0, %v4995
      %v4997 = vpop.f32.mrf.mxu0
      %4998 = vdwg.mxu0
      %v4999 = vadd.f32 %v4806, %v4945
      %v5000 = vadd.f32 %v4807, %v4948
      %v5001 = vadd.f32 %v4808, %v4953
      %v5002 = vadd.f32 %v4809, %v4956
      %v5003 = vadd.f32 %v4810, %v4961
      %v5004 = vadd.f32 %v4811, %v4964
      %v5005 = vadd.f32 %v4812, %v4969
      %v5006 = vadd.f32 %v4813, %v4972
      %v5007 = vadd.f32 %v4814, %v4977
      %v5008 = vadd.f32 %v4815, %v4980
      %v5009 = vadd.f32 %v4816, %v4985
      %v5010 = vadd.f32 %v4817, %v4988
      %v5011 = vadd.f32 %v4818, %v4993
      %v5012 = vadd.f32 %v4819, %v4996
      %v5013 = vpack.c.bf16 %v5000, %v4999
      %v5014 = vpack.c.bf16 %v5002, %v5001
      %v5015 = vpack.c.bf16 %v5004, %v5003
      %v5016 = vpack.c.bf16 %v5006, %v5005
      %v5017 = vpack.c.bf16 %v5008, %v5007
      %v5018 = vpack.c.bf16 %v5010, %v5009
      %v5019 = vpack.c.bf16 %v5012, %v5011
      %v5027 = vunpack.c.l.b16 %v5013
      %v5028 = vunpack.c.h.b16 %v5013
      %v5029 = vunpack.c.l.b16 %v5014
      %v5030 = vunpack.c.h.b16 %v5014
      %v5031 = vunpack.c.l.b16 %v5015
      %v5032 = vunpack.c.h.b16 %v5015
      %v5033 = vunpack.c.l.b16 %v5016
      %v5034 = vunpack.c.h.b16 %v5016
      %v5035 = vunpack.c.l.b16 %v5017
      %v5036 = vunpack.c.h.b16 %v5017
      %v5037 = vunpack.c.l.b16 %v5018
      %v5038 = vunpack.c.h.b16 %v5018
      %v5039 = vunpack.c.l.b16 %v5019
      %v5040 = vunpack.c.h.b16 %v5019
      %v5041 = vpack.c.b16 %v5027, %v5027
      %v5042 = vpack.c.b16 %v5028, %v5028
      %v5043 = vpack.c.b16 %v5029, %v5029
      %v5044 = vpack.c.b16 %v5030, %v5030
      %v5045 = vpack.c.b16 %v5031, %v5031
      %v5046 = vpack.c.b16 %v5032, %v5032
      %v5047 = vpack.c.b16 %v5033, %v5033
      %v5048 = vpack.c.b16 %v5034, %v5034
      %v5049 = vpack.c.b16 %v5035, %v5035
      %v5050 = vpack.c.b16 %v5036, %v5036
      %v5051 = vpack.c.b16 %v5037, %v5037
      %v5052 = vpack.c.b16 %v5038, %v5038
      %v5053 = vpack.c.b16 %v5039, %v5039
      %v5054 = vpack.c.b16 %v5040, %v5040
      %5069 = vst [vmem:[%s440 + $0x40] sm:$0xf] %v5041
      %5070 = vst [vmem:[%s440 + $0x44] sm:$0xf] %v5042
      %5071 = vst [vmem:[%s440 + $0x48] sm:$0xf] %v5043
      %5072 = vst [vmem:[%s440 + $0x4c] sm:$0xf] %v5044
      %5073 = vst [vmem:[%s440 + $0x50] sm:$0xf] %v5045
      %5074 = vst [vmem:[%s440 + $0x54] sm:$0xf] %v5046
      %5075 = vst [vmem:[%s440 + $0x58] sm:$0xf] %v5047
      %5076 = vst [vmem:[%s440 + $0x5c] sm:$0xf] %v5048
      %5077 = vst [vmem:[%s440 + $0x60] sm:$0xf] %v5049
      %5078 = vst [vmem:[%s440 + $0x64] sm:$0xf] %v5050
      %5079 = vst [vmem:[%s440 + $0x68] sm:$0xf] %v5051
      %5080 = vst [vmem:[%s440 + $0x6c] sm:$0xf] %v5052
      %5081 = vst [vmem:[%s440 + $0x70] sm:$0xf] %v5053
      %5082 = vst [vmem:[%s440 + $0x74] sm:$0xf] %v5054
      %v5083 = vld [vmem:[%s427 + $0x80] sm:$0xff]
      %v5084 = vld [vmem:[%s427 + $0x88] sm:$0xff]
      %v5085 = vld [vmem:[%s427 + $0x90] sm:$0xff]
      %v5086 = vld [vmem:[%s427 + $0x98] sm:$0xff]
      %v5087 = vld [vmem:[%s427 + $0xa0] sm:$0xff]
      %v5088 = vld [vmem:[%s427 + $0xa8] sm:$0xff]
      %v5089 = vld [vmem:[%s427 + $0xb0] sm:$0xff]
      %v5090 = vld [vmem:[%s427 + $0xb8] sm:$0xff]
      %v5091 = vld [vmem:[%s427 + $0xc0] sm:$0xff]
      %v5092 = vld [vmem:[%s427 + $0xc8] sm:$0xff]
      %v5093 = vld [vmem:[%s427 + $0xd0] sm:$0xff]
      %v5094 = vld [vmem:[%s427 + $0xd8] sm:$0xff]
      %v5095 = vld [vmem:[%s427 + $0xe0] sm:$0xff]
      %v5096 = vld [vmem:[%s427 + $0xe8] sm:$0xff]
      %5098 = vset.pattern.permute.xlu0 0
      %5099 = vperm.xlu0 %5098, %v5083
      %v5100 = vpop.permute.xlu0 %5099
      %5103 = vset.pattern.permute.xlu0 0
      %5104 = vperm.xlu0 %5103, %v5084
      %v5105 = vpop.permute.xlu0 %5104
      %5108 = vset.pattern.permute.xlu0 0
      %5109 = vperm.xlu0 %5108, %v5085
      %v5110 = vpop.permute.xlu0 %5109
      %5113 = vset.pattern.permute.xlu0 0
      %5114 = vperm.xlu0 %5113, %v5086
      %v5115 = vpop.permute.xlu0 %5114
      %5118 = vset.pattern.permute.xlu0 0
      %5119 = vperm.xlu0 %5118, %v5087
      %v5120 = vpop.permute.xlu0 %5119
      %5123 = vset.pattern.permute.xlu0 0
      %5124 = vperm.xlu0 %5123, %v5088
      %v5125 = vpop.permute.xlu0 %5124
      %5128 = vset.pattern.permute.xlu0 0
      %5129 = vperm.xlu0 %5128, %v5089
      %v5130 = vpop.permute.xlu0 %5129
      %5133 = vset.pattern.permute.xlu0 0
      %5134 = vperm.xlu0 %5133, %v5090
      %v5135 = vpop.permute.xlu0 %5134
      %5138 = vset.pattern.permute.xlu0 0
      %5139 = vperm.xlu0 %5138, %v5091
      %v5140 = vpop.permute.xlu0 %5139
      %5143 = vset.pattern.permute.xlu0 0
      %5144 = vperm.xlu0 %5143, %v5092
      %v5145 = vpop.permute.xlu0 %5144
      %5148 = vset.pattern.permute.xlu0 0
      %5149 = vperm.xlu0 %5148, %v5093
      %v5150 = vpop.permute.xlu0 %5149
      %5153 = vset.pattern.permute.xlu0 0
      %5154 = vperm.xlu0 %5153, %v5094
      %v5155 = vpop.permute.xlu0 %5154
      %5158 = vset.pattern.permute.xlu0 0
      %5159 = vperm.xlu0 %5158, %v5095
      %v5160 = vpop.permute.xlu0 %5159
      %5163 = vset.pattern.permute.xlu0 0
      %5164 = vperm.xlu0 %5163, %v5096
      %v5165 = vpop.permute.xlu0 %5164
      %v5167 = vmul.f32 %v4999, %v5100
      %v5168 = vmul.f32 %v5000, %v5105
      %v5169 = vmul.f32 %v5001, %v5110
      %v5170 = vmul.f32 %v5002, %v5115
      %v5171 = vmul.f32 %v5003, %v5120
      %v5172 = vmul.f32 %v5004, %v5125
      %v5173 = vmul.f32 %v5005, %v5130
      %v5174 = vmul.f32 %v5006, %v5135
      %v5175 = vmul.f32 %v5007, %v5140
      %v5176 = vmul.f32 %v5008, %v5145
      %v5177 = vmul.f32 %v5009, %v5150
      %v5178 = vmul.f32 %v5010, %v5155
      %v5179 = vmul.f32 %v5011, %v5160
      %v5180 = vmul.f32 %v5012, %v5165
      %v5181 = vadd.f32 %v5167, %v5168
      %v5182 = vadd.f32 %v5181, %v5169
      %v5183 = vadd.f32 %v5182, %v5170
      %v5184 = vadd.f32 %v5183, %v5171
      %v5185 = vadd.f32 %v5184, %v5172
      %v5186 = vadd.f32 %v5185, %v5173
      %v5187 = vadd.f32 %v5186, %v5174
      %v5188 = vadd.f32 %v5187, %v5175
      %v5189 = vadd.f32 %v5188, %v5176
      %v5190 = vadd.f32 %v5189, %v5177
      %v5191 = vadd.f32 %v5190, %v5178
      %v5192 = vadd.f32 %v5191, %v5179
      %v5193 = vadd.f32 %v5192, %v5180
      %v5194 = vrot.slane %v5193, 4
      %v5195 = vadd.f32 %v5193, %v5194
      %v5196 = vrot.slane %v5195, 2
      %v5197 = vadd.f32 %v5195, %v5196
      %v5198 = vrot.slane %v5197, 1
      %v5199 = vadd.f32 %v5197, %v5198
      %v5200 = vadd.f32 %v2942, %v5199
      %v5201 = vmul.f32 %v5167, %v4999
      %v5202 = vmul.f32 %v5168, %v5000
      %v5203 = vmul.f32 %v5169, %v5001
      %v5204 = vmul.f32 %v5170, %v5002
      %v5205 = vmul.f32 %v5171, %v5003
      %v5206 = vmul.f32 %v5172, %v5004
      %v5207 = vmul.f32 %v5173, %v5005
      %v5208 = vmul.f32 %v5174, %v5006
      %v5209 = vmul.f32 %v5175, %v5007
      %v5210 = vmul.f32 %v5176, %v5008
      %v5211 = vmul.f32 %v5177, %v5009
      %v5212 = vmul.f32 %v5178, %v5010
      %v5213 = vmul.f32 %v5179, %v5011
      %v5214 = vmul.f32 %v5180, %v5012
      %v5215 = vadd.f32 %v5201, %v5202
      %v5216 = vadd.f32 %v5215, %v5203
      %v5217 = vadd.f32 %v5216, %v5204
      %v5218 = vadd.f32 %v5217, %v5205
      %v5219 = vadd.f32 %v5218, %v5206
      %v5220 = vadd.f32 %v5219, %v5207
      %v5221 = vadd.f32 %v5220, %v5208
      %v5222 = vadd.f32 %v5221, %v5209
      %v5223 = vadd.f32 %v5222, %v5210
      %v5224 = vadd.f32 %v5223, %v5211
      %v5225 = vadd.f32 %v5224, %v5212
      %v5226 = vadd.f32 %v5225, %v5213
      %v5227 = vadd.f32 %v5226, %v5214
      %v5228 = vrot.slane %v5227, 4
      %v5229 = vadd.f32 %v5227, %v5228
      %v5230 = vrot.slane %v5229, 2
      %v5231 = vadd.f32 %v5229, %v5230
      %v5232 = vrot.slane %v5231, 1
      %v5233 = vadd.f32 %v5231, %v5232
      %v5234 = vadd.f32 %v2980, %v5233
      %vm5235 = vcmask 1040384
      %v5236 = vsel %vm5235, %v5200, %v5234
      %vm5237 = vcmask 1041408
      %v5238 = vsel %vm5237, %v5236, 0.0
      %5239 = vst [vmem:[%s451] sm:$0xff] %v5238
      %s5240 = smul.u32 30, %s25
      %p5241 = scmp.lt.s32.totalorder %s24, 1
      %s5242 = scalar_select %p5241, %s24, 1
      %p5243 = scmp.lt.s32.totalorder %s5240, 29
      %s5244 = scalar_select %p5243, %s5240, 29
      %p5245 = scmp.lt.s32.totalorder %s26, 0
      %s5246 = scalar_select %p5245, %s26, 0
      %s5247 = sadd.s32 %s5246, %s5244
      %s5248 = smul.addr %s5242, 30
      %s5249 = sadd.s32 %s5247, %s5248
      %s5250 = smul.addr %s5249, 4
      %s5251 = scalar_lea.vmem %s6, %s5250
      %p5252 = scmp.lt.s32.totalorder %s24, 1
      %s5253 = scalar_select %p5252, %s24, 1
      %p5254 = scmp.lt.s32.totalorder %s25, 0
      %s5255 = scalar_select %p5254, %s25, 0
      %p5256 = scmp.lt.s32.totalorder %s26, 0
      %s5257 = scalar_select %p5256, %s26, 0
      %s5258 = sadd.s32 %s5257, %s5255
      %s5259 = sadd.s32 %s5258, %s5253
      %s5260 = smul.addr %s5259, 8
      %s5261 = scalar_lea.vmem %s7, %s5260
      // Predicated region
      $region49: #{double_conv_forward.3} parent=43 // pred_check
        %p5262 = pneg %p209
      $region50: #{double_conv_forward.3} parent=43 // pred_check_branch
        %5264 = sbr.rel (%p5262) target = $region52
      $region51: #{double_conv_forward.3} parent=43 // pred_region
        %s5265 = smul.u32 30, %s25
      $region52: #{double_conv_forward.3} parent=43 // pred_fallthru
        _
      // Predicated region
      $region53: #{double_conv_forward.3} parent=43 // pred_check
        %p5266 = pneg %p239
      $region54: #{double_conv_forward.3} parent=43 // pred_check_branch
        %5268 = sbr.rel (%p5266) target = $region56
      $region55: #{double_conv_forward.3} parent=43 // pred_region
        _
      $region56: #{double_conv_forward.3} parent=43 // pred_fallthru
        _
    $region44: #{double_conv_forward.3} parent=5 // pred_fallthru
      _
    %p5269 = scmp.le.s32.totalorder 2, %s14
    // Predicated region
    $region57: #{double_conv_forward.3} parent=5 // pred_check
      %p5270 = pneg %p5269
    $region58: #{double_conv_forward.3} parent=5 // pred_check_branch
      %5272 = sbr.rel (%p5270) target = $region60
    $region59: #{double_conv_forward.3} parent=5 // pred_region
      %s5273 = ssub.s32 %s14, 2
      // Predicated region
      $region61: #{double_conv_forward.3} parent=59 // pred_check
        %p5274 = pneg %p215
      $region62: #{double_conv_forward.3} parent=59 // pred_check_branch
        %5276 = sbr.rel (%p5274) target = $region64
      $region63: #{double_conv_forward.3} parent=59 // pred_region
        %s5277 = smul.u32 30, %s28
        %p5278 = scmp.lt.s32.totalorder %s27, 1
        %s5279 = scalar_select %p5278, %s27, 1
        %p5280 = scmp.lt.s32.totalorder %s5277, 29
        %s5281 = scalar_select %p5280, %s5277, 29
        %p5282 = scmp.lt.s32.totalorder %s29, 0
        %s5283 = scalar_select %p5282, %s29, 0
        %s5284 = sadd.s32 %s5283, %s5281
        %s5285 = smul.addr %s5279, 30
        %s5286 = sadd.s32 %s5284, %s5285
        %s5287 = smul.addr %s5286, 4
        %s5288 = scalar_lea.vmem %s6, %s5287
      $region64: #{double_conv_forward.3} parent=59 // pred_fallthru
        _
      // Predicated region
      $region65: #{double_conv_forward.3} parent=59 // pred_check
        %p5289 = pneg %p245
      $region66: #{double_conv_forward.3} parent=59 // pred_check_branch
        %5291 = sbr.rel (%p5289) target = $region68
      $region67: #{double_conv_forward.3} parent=59 // pred_region
        %p5292 = scmp.lt.s32.totalorder %s27, 1
        %s5293 = scalar_select %p5292, %s27, 1
        %p5294 = scmp.lt.s32.totalorder %s28, 0
        %s5295 = scalar_select %p5294, %s28, 0
        %p5296 = scmp.lt.s32.totalorder %s29, 0
        %s5297 = scalar_select %p5296, %s29, 0
        %s5298 = sadd.s32 %s5297, %s5295
        %s5299 = sadd.s32 %s5298, %s5293
        %s5300 = smul.addr %s5299, 8
        %s5301 = scalar_lea.vmem %s7, %s5300
      $region68: #{double_conv_forward.3} parent=59 // pred_fallthru
        _
    $region60: #{double_conv_forward.3} parent=5 // pred_fallthru
      _
  $region6: #{double_conv_forward.3} parent=0 // loop_footer
    %s18 = sadd.s32 1, %s14
  $region7: #{double_conv_forward.3} parent=0 // loop_footer_branch
    %13 = sbr.rel target = $region3
  $region8: #{double_conv_forward.3} parent=0 // loop_exit
    _

// kernel: double_conv_forward.4
$region0: #{double_conv_forward.4}
  #allocation0 [shape = 'u32[]', space=smem, size = 0x4, offset = 0x4, fixed_abs, tag = 'smem constant byte address 0x4 - core index']
  #allocation1 [shape = 'u32[144,128]{1,0:T(1,128)}', space=vmem, size = 0x12000, scoped, tag = 'internal scratch']
  #allocation2 [shape = 'bf16[240,128]{1,0:T(8,128)(2,1)}', space=vmem, size = 0xf000, scoped, tag = 'scratch operand']
  %s0 = inlined_call_operand.vmem [shape: bf16[2,240,128], index: 0, kind: input, shape index: {}, may-alias: {0,1}]
  %s1 = inlined_call_operand.vmem [shape: bf16[2,240,128], index: 1, kind: input, shape index: {}, may-alias: {0,1}]
  %s2 = inlined_call_operand.vmem [shape: bf16[9,128,128], index: 2, kind: input, shape index: {}]
  %s3 = inlined_call_operand.vmem [shape: f32[1,128], index: 3, kind: input, shape index: {}]
  %s4 = inlined_call_operand.vmem [shape: f32[1,128], index: 4, kind: input, shape index: {}]
  %s5 = inlined_call_operand.vmem [shape: f32[200,1], index: 5, kind: input, shape index: {}]
  %s6 = inlined_call_operand.vmem [shape: bf16[2,200,128], index: 6, kind: output, shape index: {0}]
  %s7 = inlined_call_operand.vmem [shape: f32[2,1,8,128], index: 7, kind: output, shape index: {1}]
  %8 = xla_tuple %s6, %s7
  %s9 = sld [smem:[#allocation0]]
  $region69: #{double_conv_forward.4} parent=0
    _
  %s11 = ssub.s32 1, %s9
  %s12 = scalar_select 0, %s11, %s9
  loop: start=0, step=1, limit=4
  $region2: #{double_conv_forward.4} parent=0 // loop_pre_header
    _
  $region3: #{double_conv_forward.4} parent=0 // loop_header
    %s14 = sphi 0, %s18
    %p15 = scmp.ge.s32.totalorder %s14, 4
    %s21 = sphi 0, %s40
    %s22 = sphi 0, %s36
    %s23 = sphi 0, %s32
    %s24 = sphi 0, %s21
    %s25 = sphi 0, %s22
    %s26 = sphi 0, %s23
    %s27 = sphi 0, %s24
    %s28 = sphi 0, %s25
    %s29 = sphi 0, %s26
    %s45 = sphi 0, %s47
    %s48 = sphi 0, %s45
    %s49 = sphi 0, %s48
    %s65 = sphi 0, %s49
    %s77 = sphi 0, %s79
    %s80 = sphi 0, %s77
    %s81 = sphi 0, %s80
    %s97 = sphi 0, %s81
    %s101 = sphi 0, %s101
    %s103 = sphi 0, %s101
    %s104 = sphi 0, %s103
    %s118 = sphi 0, %s104
    %s122 = sphi 0, %s122
    %s124 = sphi 0, %s122
    %s125 = sphi 0, %s124
    %s139 = sphi 0, %s125
    %s143 = sphi 0, %s143
    %s145 = sphi 0, %s143
    %s146 = sphi 0, %s145
    %s160 = sphi 0, %s146
    %s166 = sphi 0, %s168
    %s169 = sphi 0, %s166
    %s170 = sphi 0, %s169
    %s186 = sphi 0, %s170
    %s196 = sphi 0, %s198
    %s199 = sphi 0, %s196
    %s200 = sphi 0, %s199
    %s216 = sphi 0, %s200
    %s226 = sphi 0, %s228
    %s229 = sphi 0, %s226
    %s230 = sphi 0, %s229
    %s246 = sphi 0, %s230
  $region4: #{double_conv_forward.4} parent=0 // loop_header_branch
    %17 = sbr.rel (%p15) target = $region8
  $region5: #{double_conv_forward.4} parent=0 // loop_body
    %s19 = ssub.s32 %s14, 1
    %s20 = ssub.s32 %s14, 2
    %s30 = sadd.s32 1, %s23
    %p31 = scmp.ge.s32.totalorder %s30, 1
    %s32 = scalar_select %p31, 0, %s30
    %s33 = sadd.s32 1, %s22
    %s34 = scalar_select %p31, %s33, %s22
    %p35 = scmp.ge.s32.totalorder %s34, 1
    %s36 = scalar_select %p35, 0, %s34
    %s37 = sadd.s32 1, %s21
    %s38 = scalar_select %p35, %s37, %s21
    %p39 = scmp.ge.s32.totalorder %s38, 2
    %s40 = scalar_select %p39, 0, %s38
    %s41 = ssub.s32 %s21, %s40
    %s42 = ssub.s32 %s22, %s36
    %s43 = sor.u32 %s41, %s42
    %p44 = scmp.eq.s32.totalorder %s43, 0
    %s46 = sadd.s32 %s45, 1
    %s47 = scalar_select %p44, %s45, %s46
    %p50 = pneg %p44
    %p51 = scmp.eq.s32.totalorder %s14, 1
    %p52 = por %p50, %p51
    %p53 = scmp.ne.s32.totalorder %s45, %s48
    %p54 = scmp.eq.s32.totalorder %s14, 0
    %p55 = por %p53, %p54
    %p56 = scmp.ne.s32.totalorder %s45, %s48
    %p57 = scmp.eq.s32.totalorder %s19, 1
    %p58 = por %p56, %p57
    %p59 = scmp.ne.s32.totalorder %s48, %s49
    %p60 = scmp.eq.s32.totalorder %s19, 0
    %p61 = por %p59, %p60
    %p62 = scmp.ne.s32.totalorder %s48, %s49
    %p63 = scmp.eq.s32.totalorder %s20, 1
    %p64 = por %p62, %p63
    %p66 = scmp.ne.s32.totalorder %s49, %s65
    %p67 = scmp.eq.s32.totalorder %s20, 0
    %p68 = por %p66, %p67
    %s69 = sadd.s32 %s22, 1
    %s70 = smul.u32 %s69, 5
    %s71 = sadd.s32 %s36, 1
    %s72 = smul.u32 %s71, 5
    %s73 = ssub.s32 %s21, %s40
    %s74 = ssub.s32 %s70, %s72
    %s75 = sor.u32 %s73, %s74
    %p76 = scmp.eq.s32.totalorder %s75, 0
    %s78 = sadd.s32 %s77, 1
    %s79 = scalar_select %p76, %s77, %s78
    %p82 = pneg %p76
    %p83 = scmp.eq.s32.totalorder %s14, 1
    %p84 = por %p82, %p83
    %p85 = scmp.ne.s32.totalorder %s77, %s80
    %p86 = scmp.eq.s32.totalorder %s14, 0
    %p87 = por %p85, %p86
    %p88 = scmp.ne.s32.totalorder %s77, %s80
    %p89 = scmp.eq.s32.totalorder %s19, 1
    %p90 = por %p88, %p89
    %p91 = scmp.ne.s32.totalorder %s80, %s81
    %p92 = scmp.eq.s32.totalorder %s19, 0
    %p93 = por %p91, %p92
    %p94 = scmp.ne.s32.totalorder %s80, %s81
    %p95 = scmp.eq.s32.totalorder %s20, 1
    %p96 = por %p94, %p95
    %p98 = scmp.ne.s32.totalorder %s81, %s97
    %p99 = scmp.eq.s32.totalorder %s20, 0
    %p100 = por %p98, %p99
    %s102 = sadd.s32 %s101, 1
    %p105 = scmp.eq.s32.totalorder %s14, 1
    %p106 = scmp.ne.s32.totalorder %s101, %s103
    %p107 = scmp.eq.s32.totalorder %s14, 0
    %p108 = por %p106, %p107
    %p109 = scmp.ne.s32.totalorder %s101, %s103
    %p110 = scmp.eq.s32.totalorder %s19, 1
    %p111 = por %p109, %p110
    %p112 = scmp.ne.s32.totalorder %s103, %s104
    %p113 = scmp.eq.s32.totalorder %s19, 0
    %p114 = por %p112, %p113
    %p115 = scmp.ne.s32.totalorder %s103, %s104
    %p116 = scmp.eq.s32.totalorder %s20, 1
    %p117 = por %p115, %p116
    %p119 = scmp.ne.s32.totalorder %s104, %s118
    %p120 = scmp.eq.s32.totalorder %s20, 0
    %p121 = por %p119, %p120
    %s123 = sadd.s32 %s122, 1
    %p126 = scmp.eq.s32.totalorder %s14, 1
    %p127 = scmp.ne.s32.totalorder %s122, %s124
    %p128 = scmp.eq.s32.totalorder %s14, 0
    %p129 = por %p127, %p128
    %p130 = scmp.ne.s32.totalorder %s122, %s124
    %p131 = scmp.eq.s32.totalorder %s19, 1
    %p132 = por %p130, %p131
    %p133 = scmp.ne.s32.totalorder %s124, %s125
    %p134 = scmp.eq.s32.totalorder %s19, 0
    %p135 = por %p133, %p134
    %p136 = scmp.ne.s32.totalorder %s124, %s125
    %p137 = scmp.eq.s32.totalorder %s20, 1
    %p138 = por %p136, %p137
    %p140 = scmp.ne.s32.totalorder %s125, %s139
    %p141 = scmp.eq.s32.totalorder %s20, 0
    %p142 = por %p140, %p141
    %s144 = sadd.s32 %s143, 1
    %p147 = scmp.eq.s32.totalorder %s14, 1
    %p148 = scmp.ne.s32.totalorder %s143, %s145
    %p149 = scmp.eq.s32.totalorder %s14, 0
    %p150 = por %p148, %p149
    %p151 = scmp.ne.s32.totalorder %s143, %s145
    %p152 = scmp.eq.s32.totalorder %s19, 1
    %p153 = por %p151, %p152
    %p154 = scmp.ne.s32.totalorder %s145, %s146
    %p155 = scmp.eq.s32.totalorder %s19, 0
    %p156 = por %p154, %p155
    %p157 = scmp.ne.s32.totalorder %s145, %s146
    %p158 = scmp.eq.s32.totalorder %s20, 1
    %p159 = por %p157, %p158
    %p161 = scmp.ne.s32.totalorder %s146, %s160
    %p162 = scmp.eq.s32.totalorder %s20, 0
    %p163 = por %p161, %p162
    %s164 = ssub.s32 %s22, %s36
    %p165 = scmp.eq.s32.totalorder %s164, 0
    %s167 = sadd.s32 %s166, 1
    %s168 = scalar_select %p165, %s166, %s167
    %p171 = pneg %p165
    %p172 = scmp.eq.s32.totalorder %s14, 1
    %p173 = por %p171, %p172
    %p174 = scmp.ne.s32.totalorder %s166, %s169
    %p175 = scmp.eq.s32.totalorder %s14, 0
    %p176 = por %p174, %p175
    %p177 = scmp.ne.s32.totalorder %s166, %s169
    %p178 = scmp.eq.s32.totalorder %s19, 1
    %p179 = por %p177, %p178
    %p180 = scmp.ne.s32.totalorder %s169, %s170
    %p181 = scmp.eq.s32.totalorder %s19, 0
    %p182 = por %p180, %p181
    %p183 = scmp.ne.s32.totalorder %s169, %s170
    %p184 = scmp.eq.s32.totalorder %s20, 1
    %p185 = por %p183, %p184
    %p187 = scmp.ne.s32.totalorder %s170, %s186
    %p188 = scmp.eq.s32.totalorder %s20, 0
    %p189 = por %p187, %p188
    %s190 = ssub.s32 %s21, %s40
    %s191 = ssub.s32 %s22, %s36
    %s192 = sor.u32 %s190, %s191
    %s193 = ssub.s32 %s23, %s32
    %s194 = sor.u32 %s192, %s193
    %p195 = scmp.eq.s32.totalorder %s194, 0
    %s197 = sadd.s32 %s196, 1
    %s198 = scalar_select %p195, %s196, %s197
    %p201 = pneg %p195
    %p202 = scmp.eq.s32.totalorder %s14, 1
    %p203 = por %p201, %p202
    %p204 = scmp.ne.s32.totalorder %s196, %s199
    %p205 = scmp.eq.s32.totalorder %s14, 0
    %p206 = por %p204, %p205
    %p207 = scmp.ne.s32.totalorder %s196, %s199
    %p208 = scmp.eq.s32.totalorder %s19, 1
    %p209 = por %p207, %p208
    %p210 = scmp.ne.s32.totalorder %s199, %s200
    %p211 = scmp.eq.s32.totalorder %s19, 0
    %p212 = por %p210, %p211
    %p213 = scmp.ne.s32.totalorder %s199, %s200
    %p214 = scmp.eq.s32.totalorder %s20, 1
    %p215 = por %p213, %p214
    %p217 = scmp.ne.s32.totalorder %s200, %s216
    %p218 = scmp.eq.s32.totalorder %s20, 0
    %p219 = por %p217, %p218
    %s220 = ssub.s32 %s21, %s40
    %s221 = ssub.s32 %s22, %s36
    %s222 = sor.u32 %s220, %s221
    %s223 = ssub.s32 %s23, %s32
    %s224 = sor.u32 %s222, %s223
    %p225 = scmp.eq.s32.totalorder %s224, 0
    %s227 = sadd.s32 %s226, 1
    %s228 = scalar_select %p225, %s226, %s227
    %p231 = pneg %p225
    %p232 = scmp.eq.s32.totalorder %s14, 1
    %p233 = por %p231, %p232
    %p234 = scmp.ne.s32.totalorder %s226, %s229
    %p235 = scmp.eq.s32.totalorder %s14, 0
    %p236 = por %p234, %p235
    %p237 = scmp.ne.s32.totalorder %s226, %s229
    %p238 = scmp.eq.s32.totalorder %s19, 1
    %p239 = por %p237, %p238
    %p240 = scmp.ne.s32.totalorder %s229, %s230
    %p241 = scmp.eq.s32.totalorder %s19, 0
    %p242 = por %p240, %p241
    %p243 = scmp.ne.s32.totalorder %s229, %s230
    %p244 = scmp.eq.s32.totalorder %s20, 1
    %p245 = por %p243, %p244
    %p247 = scmp.ne.s32.totalorder %s230, %s246
    %p248 = scmp.eq.s32.totalorder %s20, 0
    %p249 = por %p247, %p248
    %p250 = scmp.le.s32.totalorder 1, %s14
    %p251 = scmp.lt.s32.totalorder %s14, 3
    %p252 = pnand %p250, %p251
    %p253 = pneg %p252
    // Predicated region
    $region9: #{double_conv_forward.4} parent=5 // pred_check
      _
    $region10: #{double_conv_forward.4} parent=5 // pred_check_branch
      %255 = sbr.rel (%p252) target = $region12
    $region11: #{double_conv_forward.4} parent=5 // pred_region
      %s256 = ssub.s32 %s14, 1
      // Predicated region
      $region13: #{double_conv_forward.4} parent=11 // pred_check
        %p257 = pneg %p114
      $region14: #{double_conv_forward.4} parent=11 // pred_check_branch
        %259 = sbr.rel (%p257) target = $region16
      $region15: #{double_conv_forward.4} parent=11 // pred_region
        _
      $region16: #{double_conv_forward.4} parent=11 // pred_fallthru
        _
      // Predicated region
      $region17: #{double_conv_forward.4} parent=11 // pred_check
        %p260 = pneg %p135
      $region18: #{double_conv_forward.4} parent=11 // pred_check_branch
        %262 = sbr.rel (%p260) target = $region20
      $region19: #{double_conv_forward.4} parent=11 // pred_region
        _
      $region20: #{double_conv_forward.4} parent=11 // pred_fallthru
        _
      // Predicated region
      $region21: #{double_conv_forward.4} parent=11 // pred_check
        %p263 = pneg %p156
      $region22: #{double_conv_forward.4} parent=11 // pred_check_branch
        %265 = sbr.rel (%p263) target = $region24
      $region23: #{double_conv_forward.4} parent=11 // pred_region
        _
      $region24: #{double_conv_forward.4} parent=11 // pred_fallthru
        _
      // Predicated region
      $region25: #{double_conv_forward.4} parent=11 // pred_check
        %p266 = pneg %p182
      $region26: #{double_conv_forward.4} parent=11 // pred_check_branch
        %268 = sbr.rel (%p266) target = $region28
      $region27: #{double_conv_forward.4} parent=11 // pred_region
        %s269 = smul.u32 25, %s25
        %p270 = scmp.lt.s32.totalorder %s269, 24
        %s271 = scalar_select %p270, %s269, 24
        %s272 = smul.addr %s271, 8
        %s273 = scalar_lea.vmem %s5, %s272
        %s274 = smul.u32 25, %s25
      $region28: #{double_conv_forward.4} parent=11 // pred_fallthru
        _
    $region12: #{double_conv_forward.4} parent=5 // pred_fallthru
      _
    %p275 = scmp.lt.s32.totalorder %s14, 2
    // Predicated region
    $region29: #{double_conv_forward.4} parent=5 // pred_check
      %p276 = pneg %p275
    $region30: #{double_conv_forward.4} parent=5 // pred_check_branch
      %278 = sbr.rel (%p276) target = $region32
    $region31: #{double_conv_forward.4} parent=5 // pred_region
      // Predicated region
      $region33: #{double_conv_forward.4} parent=31 // pred_check
        %p279 = pneg %p55
      $region34: #{double_conv_forward.4} parent=31 // pred_check_branch
        %281 = sbr.rel (%p279) target = $region36
      $region35: #{double_conv_forward.4} parent=31 // pred_region
        %s282 = smul.u32 25, %s22
        %s283 = ssub.s32 30, %s282
        %p284 = scmp.lt.s32.totalorder %s283, 25
        %s285 = scalar_select %p284, %s283, 25
        %s286 = smul.u32 64, %s285
        %p287 = scmp.lt.s32.totalorder %s21, 1
        %s288 = scalar_select %p287, %s21, 1
        %p289 = scmp.lt.s32.totalorder %s282, 29
        %s290 = scalar_select %p289, %s282, 29
        %s291 = smul.addr %s288, 30
        %s292 = sadd.s32 %s290, %s291
        %s293 = smul.addr %s292, 4
        %s294 = scalar_lea.vmem %s0, %s293
        %s295 = smul.u32 25, %s22
        %s296 = ssub.s32 30, %s295
        %p297 = scmp.lt.s32.totalorder %s296, 25
        %s298 = scalar_select %p297, %s296, 25
        %s299 = smul.u32 64, %s298
      $region36: #{double_conv_forward.4} parent=31 // pred_fallthru
        _
      // Predicated region
      $region37: #{double_conv_forward.4} parent=31 // pred_check
        %p300 = pneg %p87
      $region38: #{double_conv_forward.4} parent=31 // pred_check_branch
        %302 = sbr.rel (%p300) target = $region40
      $region39: #{double_conv_forward.4} parent=31 // pred_region
        %s303 = sadd.s32 %s22, 1
        %s304 = smul.u32 %s303, 5
        %s305 = smul.u32 5, %s304
        %p306 = scmp.lt.s32.totalorder %s21, 1
        %s307 = scalar_select %p306, %s21, 1
        %p308 = scmp.lt.s32.totalorder %s305, 29
        %s309 = scalar_select %p308, %s305, 29
        %s310 = smul.addr %s307, 30
        %s311 = sadd.s32 %s309, %s310
        %s312 = smul.addr %s311, 4
        %s313 = scalar_lea.vmem %s1, %s312
        %s314 = sadd.s32 %s22, 1
        %s315 = smul.u32 %s314, 5
        %s316 = smul.u32 5, %s315
      $region40: #{double_conv_forward.4} parent=31 // pred_fallthru
        _
    $region32: #{double_conv_forward.4} parent=5 // pred_fallthru
      _
    %p317 = scmp.le.s32.totalorder 1, %s14
    %p318 = scmp.lt.s32.totalorder %s14, 3
    %p319 = pnand %p317, %p318
    %p320 = pneg %p319
    // Predicated region
    $region41: #{double_conv_forward.4} parent=5 // pred_check
      _
    $region42: #{double_conv_forward.4} parent=5 // pred_check_branch
      %322 = sbr.rel (%p319) target = $region44
    $region43: #{double_conv_forward.4} parent=5 // pred_region
      %s323 = ssub.s32 %s14, 1
      %s324 = smul.u32 25, %s25
      %s325 = ssub.s32 30, %s324
      %p326 = scmp.lt.s32.totalorder %s325, 25
      %s327 = scalar_select %p326, %s325, 25
      %s328 = smul.u32 64, %s327
      %p329 = scmp.lt.s32.totalorder %s24, 1
      %s330 = scalar_select %p329, %s24, 1
      %p331 = scmp.lt.s32.totalorder %s324, 29
      %s332 = scalar_select %p331, %s324, 29
      %s333 = smul.addr %s330, 30
      %s334 = sadd.s32 %s332, %s333
      %s335 = smul.addr %s334, 4
      %s336 = scalar_lea.vmem %s0, %s335
      %p337 = pneg %p61
      %p338 = pneg %p58
      %s339 = sadd.s32 %s25, 1
      %s340 = smul.u32 %s339, 5
      %s341 = smul.u32 5, %s340
      %p342 = scmp.lt.s32.totalorder %s24, 1
      %s343 = scalar_select %p342, %s24, 1
      %p344 = scmp.lt.s32.totalorder %s341, 29
      %s345 = scalar_select %p344, %s341, 29
      %s346 = smul.addr %s343, 30
      %s347 = sadd.s32 %s345, %s346
      %s348 = smul.addr %s347, 4
      %s349 = scalar_lea.vmem %s1, %s348
      %p350 = pneg %p93
      %p351 = pneg %p90
      %p352 = pneg %p114
      %p353 = pneg %p111
      %p354 = pneg %p135
      %p355 = pneg %p132
      %p356 = pneg %p156
      %p357 = pneg %p153
      %s358 = smul.u32 25, %s25
      %p359 = scmp.lt.s32.totalorder %s358, 24
      %s360 = scalar_select %p359, %s358, 24
      %s361 = smul.addr %s360, 8
      %s362 = scalar_lea.vmem %s5, %s361
      %p363 = pneg %p182
      %p364 = pneg %p179
      %p365 = pneg %p212
      %p366 = pneg %p209
      %s367 = smul.u32 25, %s25
      %p368 = scmp.lt.s32.totalorder %s24, 1
      %s369 = scalar_select %p368, %s24, 1
      %p370 = scmp.lt.s32.totalorder %s367, 24
      %s371 = scalar_select %p370, %s367, 24
      %p372 = scmp.lt.s32.totalorder %s26, 0
      %s373 = scalar_select %p372, %s26, 0
      %s374 = sadd.s32 %s373, %s371
      %s375 = smul.addr %s369, 25
      %s376 = sadd.s32 %s374, %s375
      %s377 = smul.addr %s376, 4
      %s378 = scalar_lea.vmem %s6, %s377
      %p379 = pneg %p242
      %p380 = pneg %p239
      %p381 = scmp.lt.s32.totalorder %s24, 1
      %s382 = scalar_select %p381, %s24, 1
      %p383 = scmp.lt.s32.totalorder %s25, 0
      %s384 = scalar_select %p383, %s25, 0
      %p385 = scmp.lt.s32.totalorder %s26, 0
      %s386 = scalar_select %p385, %s26, 0
      %s387 = sadd.s32 %s386, %s384
      %s388 = sadd.s32 %s387, %s382
      %s389 = smul.addr %s388, 8
      %s390 = scalar_lea.vmem %s7, %s389
      %s391 = smul.u32 25, %s25
      %s392 = ssub.s32 30, %s391
      %p393 = scmp.lt.s32.totalorder %s392, 25
      %s394 = scalar_select %p393, %s392, 25
      %s395 = smul.u32 64, %s394
      %p396 = scmp.lt.s32.totalorder %s24, 1
      %s397 = scalar_select %p396, %s24, 1
      %p398 = scmp.lt.s32.totalorder %s391, 29
      %s399 = scalar_select %p398, %s391, 29
      %s400 = smul.addr %s397, 30
      %s401 = sadd.s32 %s399, %s400
      %s402 = smul.addr %s401, 4
      %s403 = scalar_lea.vmem %s0, %s402
      %s404 = smul.u32 25, %s25
      %s405 = ssub.s32 30, %s404
      %p406 = scmp.lt.s32.totalorder %s405, 25
      %s407 = scalar_select %p406, %s405, 25
      %s408 = smul.u32 64, %s407
      %s409 = sadd.s32 %s25, 1
      %s410 = smul.u32 %s409, 5
      %s411 = smul.u32 5, %s410
      %p412 = scmp.lt.s32.totalorder %s24, 1
      %s413 = scalar_select %p412, %s24, 1
      %p414 = scmp.lt.s32.totalorder %s411, 29
      %s415 = scalar_select %p414, %s411, 29
      %s416 = smul.addr %s413, 30
      %s417 = sadd.s32 %s415, %s416
      %s418 = smul.addr %s417, 4
      %s419 = scalar_lea.vmem %s1, %s418
      %s420 = sadd.s32 %s25, 1
      %s421 = smul.u32 %s420, 5
      %s422 = smul.u32 5, %s421
      %s423 = smul.u32 25, %s25
      %p424 = scmp.lt.s32.totalorder %s423, 24
      %s425 = scalar_select %p424, %s423, 24
      %s426 = smul.addr %s425, 8
      %s427 = scalar_lea.vmem %s5, %s426
      %s428 = smul.u32 25, %s25
      %s429 = smul.u32 25, %s25
      %p430 = scmp.lt.s32.totalorder %s24, 1
      %s431 = scalar_select %p430, %s24, 1
      %p432 = scmp.lt.s32.totalorder %s429, 24
      %s433 = scalar_select %p432, %s429, 24
      %p434 = scmp.lt.s32.totalorder %s26, 0
      %s435 = scalar_select %p434, %s26, 0
      %s436 = sadd.s32 %s435, %s433
      %s437 = smul.addr %s431, 25
      %s438 = sadd.s32 %s436, %s437
      %s439 = smul.addr %s438, 4
      %s440 = scalar_lea.vmem %s6, %s439
      %s441 = smul.u32 25, %s25
      %p442 = scmp.lt.s32.totalorder %s24, 1
      %s443 = scalar_select %p442, %s24, 1
      %p444 = scmp.lt.s32.totalorder %s25, 0
      %s445 = scalar_select %p444, %s25, 0
      %p446 = scmp.lt.s32.totalorder %s26, 0
      %s447 = scalar_select %p446, %s26, 0
      %s448 = sadd.s32 %s447, %s445
      %s449 = sadd.s32 %s448, %s443
      %s450 = smul.addr %s449, 8
      %s451 = scalar_lea.vmem %s7, %s450
      %p453 = scmp.eq.s32.totalorder %s26, 0
      // Predicated region
      $region45: #{double_conv_forward.4} parent=43 // pred_check
        %p454 = pneg %p453
      $region46: #{double_conv_forward.4} parent=43 // pred_check_branch
        %456 = sbr.rel (%p454) target = $region48
      $region47: #{double_conv_forward.4} parent=43 // pred_region
        %v457 = vld [vmem:[%s403] sm:$0xf]
        %v458 = vld [vmem:[%s403 + $0x4] sm:$0xf]
        %v459 = vld [vmem:[%s403 + $0x8] sm:$0xf]
        %v460 = vld [vmem:[%s403 + $0xc] sm:$0xf]
        %v461 = vld [vmem:[%s403 + $0x10] sm:$0xf]
        %v462 = vld [vmem:[%s403 + $0x14] sm:$0xf]
        %v463 = vld [vmem:[%s403 + $0x18] sm:$0xf]
        %v464 = vld [vmem:[%s403 + $0x1c] sm:$0xf]
        %v465 = vld [vmem:[%s403 + $0x20] sm:$0xf]
        %v466 = vld [vmem:[%s403 + $0x24] sm:$0xf]
        %v467 = vld [vmem:[%s403 + $0x28] sm:$0xf]
        %v468 = vld [vmem:[%s403 + $0x2c] sm:$0xf]
        %v469 = vld [vmem:[%s403 + $0x30] sm:$0xf]
        %v470 = vld [vmem:[%s403 + $0x34] sm:$0xf]
        %v471 = vld [vmem:[%s403 + $0x38] sm:$0xf]
        %v472 = vld [vmem:[%s403 + $0x3c] sm:$0xf]
        %v473 = vunpack.c.l.bf16 %v457
        %v474 = vunpack.c.l.bf16 %v458
        %v475 = vunpack.c.l.bf16 %v459
        %v476 = vunpack.c.l.bf16 %v460
        %v477 = vunpack.c.l.bf16 %v461
        %v478 = vunpack.c.l.bf16 %v462
        %v479 = vunpack.c.l.bf16 %v463
        %v480 = vunpack.c.l.bf16 %v464
        %v481 = vunpack.c.l.bf16 %v465
        %v482 = vunpack.c.l.bf16 %v466
        %v483 = vunpack.c.l.bf16 %v467
        %v484 = vunpack.c.l.bf16 %v468
        %v485 = vunpack.c.l.bf16 %v469
        %v486 = vunpack.c.l.bf16 %v470
        %v487 = vunpack.c.l.bf16 %v471
        %v488 = vunpack.c.l.bf16 %v472
        %v489 = vld [vmem:[%s3] sm:$0x1]
        %v491 = vlaneseq
        %v492 = vshrl.u32 %v491, 7
        %v493 = vsub.s32 0, %v492
        %v494 = vrot.slane %v489, %v493
        %v496 = vmul.f32 %v473, %v494
        %v497 = vmul.f32 %v474, %v494
        %v498 = vmul.f32 %v475, %v494
        %v499 = vmul.f32 %v476, %v494
        %v500 = vmul.f32 %v477, %v494
        %v501 = vmul.f32 %v478, %v494
        %v502 = vmul.f32 %v479, %v494
        %v503 = vmul.f32 %v480, %v494
        %v504 = vmul.f32 %v481, %v494
        %v505 = vmul.f32 %v482, %v494
        %v506 = vmul.f32 %v483, %v494
        %v507 = vmul.f32 %v484, %v494
        %v508 = vmul.f32 %v485, %v494
        %v509 = vmul.f32 %v486, %v494
        %v510 = vmul.f32 %v487, %v494
        %v511 = vmul.f32 %v488, %v494
        %v512 = vld [vmem:[%s4] sm:$0x1]
        %v514 = vlaneseq
        %v515 = vshrl.u32 %v514, 7
        %v516 = vsub.s32 0, %v515
        %v517 = vrot.slane %v512, %v516
        %v519 = vadd.f32 %v496, %v517
        %v520 = vadd.f32 %v497, %v517
        %v521 = vadd.f32 %v498, %v517
        %v522 = vadd.f32 %v499, %v517
        %v523 = vadd.f32 %v500, %v517
        %v524 = vadd.f32 %v501, %v517
        %v525 = vadd.f32 %v502, %v517
        %v526 = vadd.f32 %v503, %v517
        %v527 = vadd.f32 %v504, %v517
        %v528 = vadd.f32 %v505, %v517
        %v529 = vadd.f32 %v506, %v517
        %v530 = vadd.f32 %v507, %v517
        %v531 = vadd.f32 %v508, %v517
        %v532 = vadd.f32 %v509, %v517
        %v533 = vadd.f32 %v510, %v517
        %v534 = vadd.f32 %v511, %v517
        %v535 = vmax.f32 %v519, 0.0
        %v536 = vmax.f32 %v520, 0.0
        %v537 = vmax.f32 %v521, 0.0
        %v538 = vmax.f32 %v522, 0.0
        %v539 = vmax.f32 %v523, 0.0
        %v540 = vmax.f32 %v524, 0.0
        %v541 = vmax.f32 %v525, 0.0
        %v542 = vmax.f32 %v526, 0.0
        %v543 = vmax.f32 %v527, 0.0
        %v544 = vmax.f32 %v528, 0.0
        %v545 = vmax.f32 %v529, 0.0
        %v546 = vmax.f32 %v530, 0.0
        %v547 = vmax.f32 %v531, 0.0
        %v548 = vmax.f32 %v532, 0.0
        %v549 = vmax.f32 %v533, 0.0
        %v550 = vmax.f32 %v534, 0.0
        %v551 = vpack.c.bf16 %v536, %v535
        %v552 = vpack.c.bf16 %v538, %v537
        %v553 = vpack.c.bf16 %v540, %v539
        %v554 = vpack.c.bf16 %v542, %v541
        %v555 = vpack.c.bf16 %v544, %v543
        %v556 = vpack.c.bf16 %v546, %v545
        %v557 = vpack.c.bf16 %v548, %v547
        %v558 = vpack.c.bf16 %v550, %v549
        %v567 = vunpack.c.l.b16 %v551
        %v568 = vunpack.c.h.b16 %v551
        %v569 = vunpack.c.l.b16 %v552
        %v570 = vunpack.c.h.b16 %v552
        %v571 = vunpack.c.l.b16 %v553
        %v572 = vunpack.c.h.b16 %v553
        %v573 = vunpack.c.l.b16 %v554
        %v574 = vunpack.c.h.b16 %v554
        %v575 = vunpack.c.l.b16 %v555
        %v576 = vunpack.c.h.b16 %v555
        %v577 = vunpack.c.l.b16 %v556
        %v578 = vunpack.c.h.b16 %v556
        %v579 = vunpack.c.l.b16 %v557
        %v580 = vunpack.c.h.b16 %v557
        %v581 = vunpack.c.l.b16 %v558
        %v582 = vunpack.c.h.b16 %v558
        %v583 = vpack.c.b16 %v567, %v567
        %v584 = vpack.c.b16 %v568, %v568
        %v585 = vpack.c.b16 %v569, %v569
        %v586 = vpack.c.b16 %v570, %v570
        %v587 = vpack.c.b16 %v571, %v571
        %v588 = vpack.c.b16 %v572, %v572
        %v589 = vpack.c.b16 %v573, %v573
        %v590 = vpack.c.b16 %v574, %v574
        %v591 = vpack.c.b16 %v575, %v575
        %v592 = vpack.c.b16 %v576, %v576
        %v593 = vpack.c.b16 %v577, %v577
        %v594 = vpack.c.b16 %v578, %v578
        %v595 = vpack.c.b16 %v579, %v579
        %v596 = vpack.c.b16 %v580, %v580
        %v597 = vpack.c.b16 %v581, %v581
        %v598 = vpack.c.b16 %v582, %v582
        %615 = vst [vmem:[#allocation2] sm:$0xf] %v583
        %616 = vst [vmem:[#allocation2 + $0x4] sm:$0xf] %v584
        %617 = vst [vmem:[#allocation2 + $0x8] sm:$0xf] %v585
        %618 = vst [vmem:[#allocation2 + $0xc] sm:$0xf] %v586
        %619 = vst [vmem:[#allocation2 + $0x10] sm:$0xf] %v587
        %620 = vst [vmem:[#allocation2 + $0x14] sm:$0xf] %v588
        %621 = vst [vmem:[#allocation2 + $0x18] sm:$0xf] %v589
        %622 = vst [vmem:[#allocation2 + $0x1c] sm:$0xf] %v590
        %623 = vst [vmem:[#allocation2 + $0x20] sm:$0xf] %v591
        %624 = vst [vmem:[#allocation2 + $0x24] sm:$0xf] %v592
        %625 = vst [vmem:[#allocation2 + $0x28] sm:$0xf] %v593
        %626 = vst [vmem:[#allocation2 + $0x2c] sm:$0xf] %v594
        %627 = vst [vmem:[#allocation2 + $0x30] sm:$0xf] %v595
        %628 = vst [vmem:[#allocation2 + $0x34] sm:$0xf] %v596
        %629 = vst [vmem:[#allocation2 + $0x38] sm:$0xf] %v597
        %630 = vst [vmem:[#allocation2 + $0x3c] sm:$0xf] %v598
        %v631 = vld [vmem:[%s403 + $0x40] sm:$0xf]
        %v632 = vld [vmem:[%s403 + $0x44] sm:$0xf]
        %v633 = vld [vmem:[%s403 + $0x48] sm:$0xf]
        %v634 = vld [vmem:[%s403 + $0x4c] sm:$0xf]
        %v635 = vld [vmem:[%s403 + $0x50] sm:$0xf]
        %v636 = vld [vmem:[%s403 + $0x54] sm:$0xf]
        %v637 = vld [vmem:[%s403 + $0x58] sm:$0xf]
        %v638 = vld [vmem:[%s403 + $0x5c] sm:$0xf]
        %v639 = vld [vmem:[%s403 + $0x60] sm:$0xf]
        %v640 = vunpack.c.l.bf16 %v631
        %v641 = vunpack.c.l.bf16 %v632
        %v642 = vunpack.c.l.bf16 %v633
        %v643 = vunpack.c.l.bf16 %v634
        %v644 = vunpack.c.l.bf16 %v635
        %v645 = vunpack.c.l.bf16 %v636
        %v646 = vunpack.c.l.bf16 %v637
        %v647 = vunpack.c.l.bf16 %v638
        %v648 = vunpack.c.l.bf16 %v639
        %v649 = vld [vmem:[%s3] sm:$0x1]
        %v651 = vlaneseq
        %v652 = vshrl.u32 %v651, 7
        %v653 = vsub.s32 0, %v652
        %v654 = vrot.slane %v649, %v653
        %v656 = vmul.f32 %v640, %v654
        %v657 = vmul.f32 %v641, %v654
        %v658 = vmul.f32 %v642, %v654
        %v659 = vmul.f32 %v643, %v654
        %v660 = vmul.f32 %v644, %v654
        %v661 = vmul.f32 %v645, %v654
        %v662 = vmul.f32 %v646, %v654
        %v663 = vmul.f32 %v647, %v654
        %v664 = vmul.f32 %v648, %v654
        %v665 = vld [vmem:[%s4] sm:$0x1]
        %v667 = vlaneseq
        %v668 = vshrl.u32 %v667, 7
        %v669 = vsub.s32 0, %v668
        %v670 = vrot.slane %v665, %v669
        %v672 = vadd.f32 %v656, %v670
        %v673 = vadd.f32 %v657, %v670
        %v674 = vadd.f32 %v658, %v670
        %v675 = vadd.f32 %v659, %v670
        %v676 = vadd.f32 %v660, %v670
        %v677 = vadd.f32 %v661, %v670
        %v678 = vadd.f32 %v662, %v670
        %v679 = vadd.f32 %v663, %v670
        %v680 = vadd.f32 %v664, %v670
        %v681 = vmax.f32 %v672, 0.0
        %v682 = vmax.f32 %v673, 0.0
        %v683 = vmax.f32 %v674, 0.0
        %v684 = vmax.f32 %v675, 0.0
        %v685 = vmax.f32 %v676, 0.0
        %v686 = vmax.f32 %v677, 0.0
        %v687 = vmax.f32 %v678, 0.0
        %v688 = vmax.f32 %v679, 0.0
        %v689 = vmax.f32 %v680, 0.0
        %v690 = vpack.c.bf16 %v682, %v681
        %v691 = vpack.c.bf16 %v684, %v683
        %v692 = vpack.c.bf16 %v686, %v685
        %v693 = vpack.c.bf16 %v688, %v687
        %v694 = vpack.c.bf16 %v689, %v689
        %v700 = vunpack.c.l.b16 %v690
        %v701 = vunpack.c.h.b16 %v690
        %v702 = vunpack.c.l.b16 %v691
        %v703 = vunpack.c.h.b16 %v691
        %v704 = vunpack.c.l.b16 %v692
        %v705 = vunpack.c.h.b16 %v692
        %v706 = vunpack.c.l.b16 %v693
        %v707 = vunpack.c.h.b16 %v693
        %v708 = vunpack.c.l.b16 %v694
        %v709 = vpack.c.b16 %v700, %v700
        %v710 = vpack.c.b16 %v701, %v701
        %v711 = vpack.c.b16 %v702, %v702
        %v712 = vpack.c.b16 %v703, %v703
        %v713 = vpack.c.b16 %v704, %v704
        %v714 = vpack.c.b16 %v705, %v705
        %v715 = vpack.c.b16 %v706, %v706
        %v716 = vpack.c.b16 %v707, %v707
        %v717 = vpack.c.b16 %v708, %v708
        %727 = vst [vmem:[#allocation2 + $0x40] sm:$0xf] %v709
        %728 = vst [vmem:[#allocation2 + $0x44] sm:$0xf] %v710
        %729 = vst [vmem:[#allocation2 + $0x48] sm:$0xf] %v711
        %730 = vst [vmem:[#allocation2 + $0x4c] sm:$0xf] %v712
        %731 = vst [vmem:[#allocation2 + $0x50] sm:$0xf] %v713
        %732 = vst [vmem:[#allocation2 + $0x54] sm:$0xf] %v714
        %733 = vst [vmem:[#allocation2 + $0x58] sm:$0xf] %v715
        %734 = vst [vmem:[#allocation2 + $0x5c] sm:$0xf] %v716
        %735 = vst [vmem:[#allocation2 + $0x60] sm:$0xf] %v717
        %v736 = vld [vmem:[%s419] sm:$0xf]
        %v737 = vld [vmem:[%s419 + $0x4] sm:$0xf]
        %v738 = vld [vmem:[%s419 + $0x8] sm:$0xf]
        %v739 = vld [vmem:[%s419 + $0xc] sm:$0xf]
        %v740 = vld [vmem:[%s419 + $0x10] sm:$0xf]
        %v741 = vunpack.c.l.bf16 %v736
        %v742 = vunpack.c.l.bf16 %v737
        %v743 = vunpack.c.l.bf16 %v738
        %v744 = vunpack.c.l.bf16 %v739
        %v745 = vunpack.c.l.bf16 %v740
        %v746 = vld [vmem:[%s3] sm:$0x1]
        %v748 = vlaneseq
        %v749 = vshrl.u32 %v748, 7
        %v750 = vsub.s32 0, %v749
        %v751 = vrot.slane %v746, %v750
        %v753 = vmul.f32 %v741, %v751
        %v754 = vmul.f32 %v742, %v751
        %v755 = vmul.f32 %v743, %v751
        %v756 = vmul.f32 %v744, %v751
        %v757 = vmul.f32 %v745, %v751
        %v758 = vld [vmem:[%s4] sm:$0x1]
        %v760 = vlaneseq
        %v761 = vshrl.u32 %v760, 7
        %v762 = vsub.s32 0, %v761
        %v763 = vrot.slane %v758, %v762
        %v765 = vadd.f32 %v753, %v763
        %v766 = vadd.f32 %v754, %v763
        %v767 = vadd.f32 %v755, %v763
        %v768 = vadd.f32 %v756, %v763
        %v769 = vadd.f32 %v757, %v763
        %v770 = vmax.f32 %v765, 0.0
        %v771 = vmax.f32 %v766, 0.0
        %v772 = vmax.f32 %v767, 0.0
        %v773 = vmax.f32 %v768, 0.0
        %v774 = vmax.f32 %v769, 0.0
        %v775 = vpack.c.bf16 %v771, %v770
        %v776 = vpack.c.bf16 %v773, %v772
        %v777 = vpack.c.bf16 %v774, %v774
        %v781 = vunpack.c.l.b16 %v775
        %v782 = vunpack.c.h.b16 %v775
        %v783 = vunpack.c.l.b16 %v776
        %v784 = vunpack.c.h.b16 %v776
        %v785 = vunpack.c.l.b16 %v777
        %v786 = vpack.c.b16 %v781, %v781
        %v787 = vpack.c.b16 %v782, %v782
        %v788 = vpack.c.b16 %v783, %v783
        %v789 = vpack.c.b16 %v784, %v784
        %v790 = vpack.c.b16 %v785, %v785
        %796 = vst [vmem:[#allocation2 + $0x64] sm:$0xf] %v786
        %797 = vst [vmem:[#allocation2 + $0x68] sm:$0xf] %v787
        %798 = vst [vmem:[#allocation2 + $0x6c] sm:$0xf] %v788
        %799 = vst [vmem:[#allocation2 + $0x70] sm:$0xf] %v789
        %800 = vst [vmem:[#allocation2 + $0x74] sm:$0xf] %v790
      $region48: #{double_conv_forward.4} parent=43 // pred_fallthru
        _
      %v801 = vld [vmem:[%s2] sm:$0xf]
      %v802 = vld [vmem:[%s2 + $0x4] sm:$0xf]
      %v803 = vld [vmem:[%s2 + $0x8] sm:$0xf]
      %v804 = vld [vmem:[%s2 + $0xc] sm:$0xf]
      %v805 = vld [vmem:[%s2 + $0x10] sm:$0xf]
      %v806 = vld [vmem:[%s2 + $0x14] sm:$0xf]
      %v807 = vld [vmem:[%s2 + $0x18] sm:$0xf]
      %v808 = vld [vmem:[%s2 + $0x1c] sm:$0xf]
      %v809 = vld [vmem:[%s2 + $0x20] sm:$0xf]
      %v810 = vld [vmem:[%s2 + $0x24] sm:$0xf]
      %v811 = vld [vmem:[%s2 + $0x28] sm:$0xf]
      %v812 = vld [vmem:[%s2 + $0x2c] sm:$0xf]
      %v813 = vld [vmem:[%s2 + $0x30] sm:$0xf]
      %v814 = vld [vmem:[%s2 + $0x34] sm:$0xf]
      %v815 = vld [vmem:[%s2 + $0x38] sm:$0xf]
      %v816 = vld [vmem:[%s2 + $0x3c] sm:$0xf]
      %v817 = vld [vmem:[#allocation2] sm:$0xf]
      %v818 = vld [vmem:[#allocation2 + $0x4] sm:$0xf]
      %v819 = vld [vmem:[#allocation2 + $0x8] sm:$0xf]
      %v820 = vld [vmem:[#allocation2 + $0xc] sm:$0xf]
      %v821 = vld [vmem:[#allocation2 + $0x10] sm:$0xf]
      %v822 = vld [vmem:[#allocation2 + $0x14] sm:$0xf]
      %v823 = vld [vmem:[#allocation2 + $0x18] sm:$0xf]
      %v824 = vld [vmem:[#allocation2 + $0x1c] sm:$0xf]
      %v825 = vld [vmem:[#allocation2 + $0x20] sm:$0xf]
      %v826 = vld [vmem:[#allocation2 + $0x24] sm:$0xf]
      %v827 = vld [vmem:[#allocation2 + $0x28] sm:$0xf]
      %v828 = vld [vmem:[#allocation2 + $0x2c] sm:$0xf]
      %v829 = vld [vmem:[#allocation2 + $0x30] sm:$0xf]
      %v830 = vld [vmem:[#allocation2 + $0x34] sm:$0xf]
      %v831 = vld [vmem:[#allocation2 + $0x38] sm:$0xf]
      %v832 = vld [vmem:[#allocation2 + $0x3c] sm:$0xf]
      %s833 = scalar_lea.vmem %s2, 64
      %v834 = vld [vmem:[%s833] sm:$0xf]
      %v835 = vld [vmem:[%s833 + $0x4] sm:$0xf]
      %v836 = vld [vmem:[%s833 + $0x8] sm:$0xf]
      %v837 = vld [vmem:[%s833 + $0xc] sm:$0xf]
      %v838 = vld [vmem:[%s833 + $0x10] sm:$0xf]
      %v839 = vld [vmem:[%s833 + $0x14] sm:$0xf]
      %v840 = vld [vmem:[%s833 + $0x18] sm:$0xf]
      %v841 = vld [vmem:[%s833 + $0x1c] sm:$0xf]
      %v842 = vld [vmem:[%s833 + $0x20] sm:$0xf]
      %v843 = vld [vmem:[%s833 + $0x24] sm:$0xf]
      %v844 = vld [vmem:[%s833 + $0x28] sm:$0xf]
      %v845 = vld [vmem:[%s833 + $0x2c] sm:$0xf]
      %v846 = vld [vmem:[%s833 + $0x30] sm:$0xf]
      %v847 = vld [vmem:[%s833 + $0x34] sm:$0xf]
      %v848 = vld [vmem:[%s833 + $0x38] sm:$0xf]
      %v849 = vld [vmem:[%s833 + $0x3c] sm:$0xf]
      %v850 = vld [vmem:[#allocation2 + $0x40] sm:$0x1]
      %v868 = vunpack.c.l.b16 %v817
      %v869 = vunpack.c.l.b16 %v818
      %v870 = vunpack.c.l.b16 %v819
      %v871 = vunpack.c.l.b16 %v820
      %v872 = vunpack.c.l.b16 %v821
      %v873 = vunpack.c.l.b16 %v822
      %v874 = vunpack.c.l.b16 %v823
      %v875 = vunpack.c.l.b16 %v824
      %v876 = vunpack.c.l.b16 %v825
      %v877 = vunpack.c.l.b16 %v826
      %v878 = vunpack.c.l.b16 %v827
      %v879 = vunpack.c.l.b16 %v828
      %v880 = vunpack.c.l.b16 %v829
      %v881 = vunpack.c.l.b16 %v830
      %v882 = vunpack.c.l.b16 %v831
      %v883 = vunpack.c.l.b16 %v832
      %v884 = vunpack.c.l.b16 %v850
      %v885 = vpack.c.b16 %v869, %v868
      %v886 = vpack.c.b16 %v871, %v870
      %v887 = vpack.c.b16 %v873, %v872
      %v888 = vpack.c.b16 %v875, %v874
      %v889 = vpack.c.b16 %v877, %v876
      %v890 = vpack.c.b16 %v879, %v878
      %v891 = vpack.c.b16 %v881, %v880
      %v892 = vpack.c.b16 %v883, %v882
      %v893 = vpack.c.b16 %v884, %v884
      %vm894 = vsmask.f32 7424
      %v896 = vshrl.u32 %v885, 16
      %v898 = vshll.u32 %v885, 16
      %v900 = vrot.slane %v898, 1
      %v901 = vor.u32 %v896, %v900
      %v903 = vshll.u32 %v886, 16
      %v905 = vrot.slane %v903, 1
      %v906 = vsel %vm894, %v901, %v905
      %v907 = vshrl.u32 %v886, 16
      %v909 = vor.u32 %v907, %v905
      %v911 = vshll.u32 %v887, 16
      %v913 = vrot.slane %v911, 1
      %v914 = vsel %vm894, %v909, %v913
      %v915 = vshrl.u32 %v887, 16
      %v917 = vor.u32 %v915, %v913
      %v919 = vshll.u32 %v888, 16
      %v921 = vrot.slane %v919, 1
      %v922 = vsel %vm894, %v917, %v921
      %v923 = vshrl.u32 %v888, 16
      %v925 = vor.u32 %v923, %v921
      %v927 = vshll.u32 %v889, 16
      %v929 = vrot.slane %v927, 1
      %v930 = vsel %vm894, %v925, %v929
      %v931 = vshrl.u32 %v889, 16
      %v933 = vor.u32 %v931, %v929
      %v935 = vshll.u32 %v890, 16
      %v937 = vrot.slane %v935, 1
      %v938 = vsel %vm894, %v933, %v937
      %v939 = vshrl.u32 %v890, 16
      %v941 = vor.u32 %v939, %v937
      %v943 = vshll.u32 %v891, 16
      %v945 = vrot.slane %v943, 1
      %v946 = vsel %vm894, %v941, %v945
      %v947 = vshrl.u32 %v891, 16
      %v949 = vor.u32 %v947, %v945
      %v951 = vshll.u32 %v892, 16
      %v953 = vrot.slane %v951, 1
      %v954 = vsel %vm894, %v949, %v953
      %v955 = vshrl.u32 %v892, 16
      %v957 = vor.u32 %v955, %v953
      %v959 = vshll.u32 %v893, 16
      %v961 = vrot.slane %v959, 1
      %v962 = vsel %vm894, %v957, %v961
      %v987 = vunpack.c.l.b16 %v834
      %v988 = vunpack.c.l.b16 %v835
      %v989 = vunpack.c.l.b16 %v836
      %v990 = vunpack.c.l.b16 %v837
      %v991 = vunpack.c.l.b16 %v838
      %v992 = vunpack.c.l.b16 %v839
      %v993 = vunpack.c.l.b16 %v840
      %v994 = vunpack.c.l.b16 %v841
      %v995 = vunpack.c.l.b16 %v842
      %v996 = vunpack.c.l.b16 %v843
      %v997 = vunpack.c.l.b16 %v844
      %v998 = vunpack.c.l.b16 %v845
      %v999 = vunpack.c.l.b16 %v846
      %v1000 = vunpack.c.l.b16 %v847
      %v1001 = vunpack.c.l.b16 %v848
      %v1002 = vunpack.c.l.b16 %v849
      %v1003 = vpack.c.b16 %v988, %v987
      %v1004 = vpack.c.b16 %v990, %v989
      %v1005 = vpack.c.b16 %v992, %v991
      %v1006 = vpack.c.b16 %v994, %v993
      %v1007 = vpack.c.b16 %v996, %v995
      %v1008 = vpack.c.b16 %v998, %v997
      %v1009 = vpack.c.b16 %v1000, %v999
      %v1010 = vpack.c.b16 %v1002, %v1001
      %1019 = vmatprep.subr.bf16.mxu0 0
      %1020 = vmatpush1.bf16.msra.mxu0 %v1010
      %1021 = vmatprep.subr.bf16.mxu0 0
      %1022 = vmatpush1.bf16.msra.mxu0 %v1009
      %1023 = vmatprep.subr.bf16.mxu0 0
      %1024 = vmatpush1.bf16.msra.mxu0 %v1008
      %1025 = vmatprep.subr.bf16.mxu0 0
      %1026 = vmatpush1.bf16.msra.mxu0 %v1007
      %1027 = vmatprep.subr.bf16.mxu0 0
      %1028 = vmatpush1.bf16.msra.mxu0 %v1006
      %1029 = vmatprep.subr.bf16.mxu0 0
      %1030 = vmatpush1.bf16.msra.mxu0 %v1005
      %1031 = vmatprep.subr.bf16.mxu0 0
      %1032 = vmatpush1.bf16.msra.mxu0 %v1004
      %1033 = vmatprep.subr.bf16.mxu0 0
      %1034 = vmatpush1.bf16.msra.mxu0 %v1003
      %1035 = vmatprep.subr.bf16.mxu0 0
      %1036 = vmatpush2.bf16.msra.mxu0 0
      %1037 = vmatprep.subr.bf16.mxu0 0
      %1038 = vmatpush2.bf16.msra.mxu0 0
      %1039 = vmatprep.subr.bf16.mxu0 0
      %1040 = vmatpush2.bf16.msra.mxu0 0
      %1041 = vmatprep.subr.bf16.mxu0 0
      %1042 = vmatpush2.bf16.msra.mxu0 0
      %1043 = vmatprep.subr.bf16.mxu0 0
      %1044 = vmatpush2.bf16.msra.mxu0 0
      %1045 = vmatprep.subr.bf16.mxu0 0
      %1046 = vmatpush2.bf16.msra.mxu0 0
      %1047 = vmatprep.subr.bf16.mxu0 0
      %1048 = vmatpush2.bf16.msra.mxu0 0
      %1049 = vmatprep.subr.bf16.mxu0 0
      %1050 = vmatpush2.bf16.msra.mxu0 0
      %1051 = vmatprep.mubr.bf16.mxu0 0
      %1052 = vmatmul.mubr.bf16.gmra.mxu0 %v906
      %v1053 = vpop.f32.mrf.mxu0
      %v1054 = vadd.f32 0.0, %v1053
      %v1055 = vpop.f32.mrf.mxu0
      %v1056 = vpop.f32.mrf.mxu0
      %v1057 = vadd.f32 0.0, %v1056
      %v1058 = vpop.f32.mrf.mxu0
      %1059 = vmatprep.mubr.bf16.mxu0 0
      %1060 = vmatmul.mubr.bf16.gmra.mxu0 %v914
      %v1061 = vpop.f32.mrf.mxu0
      %v1062 = vadd.f32 0.0, %v1061
      %v1063 = vpop.f32.mrf.mxu0
      %v1064 = vpop.f32.mrf.mxu0
      %v1065 = vadd.f32 0.0, %v1064
      %v1066 = vpop.f32.mrf.mxu0
      %1067 = vmatprep.mubr.bf16.mxu0 0
      %1068 = vmatmul.mubr.bf16.gmra.mxu0 %v922
      %v1069 = vpop.f32.mrf.mxu0
      %v1070 = vadd.f32 0.0, %v1069
      %v1071 = vpop.f32.mrf.mxu0
      %v1072 = vpop.f32.mrf.mxu0
      %v1073 = vadd.f32 0.0, %v1072
      %v1074 = vpop.f32.mrf.mxu0
      %1075 = vmatprep.mubr.bf16.mxu0 0
      %1076 = vmatmul.mubr.bf16.gmra.mxu0 %v930
      %v1077 = vpop.f32.mrf.mxu0
      %v1078 = vadd.f32 0.0, %v1077
      %v1079 = vpop.f32.mrf.mxu0
      %v1080 = vpop.f32.mrf.mxu0
      %v1081 = vadd.f32 0.0, %v1080
      %v1082 = vpop.f32.mrf.mxu0
      %1083 = vmatprep.mubr.bf16.mxu0 0
      %1084 = vmatmul.mubr.bf16.gmra.mxu0 %v938
      %v1085 = vpop.f32.mrf.mxu0
      %v1086 = vadd.f32 0.0, %v1085
      %v1087 = vpop.f32.mrf.mxu0
      %v1088 = vpop.f32.mrf.mxu0
      %v1089 = vadd.f32 0.0, %v1088
      %v1090 = vpop.f32.mrf.mxu0
      %1091 = vmatprep.mubr.bf16.mxu0 0
      %1092 = vmatmul.mubr.bf16.gmra.mxu0 %v946
      %v1093 = vpop.f32.mrf.mxu0
      %v1094 = vadd.f32 0.0, %v1093
      %v1095 = vpop.f32.mrf.mxu0
      %v1096 = vpop.f32.mrf.mxu0
      %v1097 = vadd.f32 0.0, %v1096
      %v1098 = vpop.f32.mrf.mxu0
      %1099 = vmatprep.mubr.bf16.mxu0 0
      %1100 = vmatmul.mubr.bf16.gmra.mxu0 %v954
      %v1101 = vpop.f32.mrf.mxu0
      %v1102 = vadd.f32 0.0, %v1101
      %v1103 = vpop.f32.mrf.mxu0
      %v1104 = vpop.f32.mrf.mxu0
      %v1105 = vadd.f32 0.0, %v1104
      %v1106 = vpop.f32.mrf.mxu0
      %1107 = vmatprep.mubr.bf16.mxu0 0
      %1108 = vmatmul.mubr.bf16.gmra.mxu0 %v962
      %v1109 = vpop.f32.mrf.mxu0
      %v1110 = vadd.f32 0.0, %v1109
      %v1111 = vpop.f32.mrf.mxu0
      %v1112 = vpop.f32.mrf.mxu0
      %v1113 = vadd.f32 0.0, %v1112
      %v1114 = vpop.f32.mrf.mxu0
      %1115 = vdwg.mxu0
      %v1140 = vunpack.c.l.b16 %v801
      %v1141 = vunpack.c.l.b16 %v802
      %v1142 = vunpack.c.l.b16 %v803
      %v1143 = vunpack.c.l.b16 %v804
      %v1144 = vunpack.c.l.b16 %v805
      %v1145 = vunpack.c.l.b16 %v806
      %v1146 = vunpack.c.l.b16 %v807
      %v1147 = vunpack.c.l.b16 %v808
      %v1148 = vunpack.c.l.b16 %v809
      %v1149 = vunpack.c.l.b16 %v810
      %v1150 = vunpack.c.l.b16 %v811
      %v1151 = vunpack.c.l.b16 %v812
      %v1152 = vunpack.c.l.b16 %v813
      %v1153 = vunpack.c.l.b16 %v814
      %v1154 = vunpack.c.l.b16 %v815
      %v1155 = vunpack.c.l.b16 %v816
      %v1156 = vpack.c.b16 %v1141, %v1140
      %v1157 = vpack.c.b16 %v1143, %v1142
      %v1158 = vpack.c.b16 %v1145, %v1144
      %v1159 = vpack.c.b16 %v1147, %v1146
      %v1160 = vpack.c.b16 %v1149, %v1148
      %v1161 = vpack.c.b16 %v1151, %v1150
      %v1162 = vpack.c.b16 %v1153, %v1152
      %v1163 = vpack.c.b16 %v1155, %v1154
      %1172 = vmatprep.subr.bf16.mxu0 0
      %1173 = vmatpush1.bf16.msra.mxu0 %v1163
      %1174 = vmatprep.subr.bf16.mxu0 0
      %1175 = vmatpush1.bf16.msra.mxu0 %v1162
      %1176 = vmatprep.subr.bf16.mxu0 0
      %1177 = vmatpush1.bf16.msra.mxu0 %v1161
      %1178 = vmatprep.subr.bf16.mxu0 0
      %1179 = vmatpush1.bf16.msra.mxu0 %v1160
      %1180 = vmatprep.subr.bf16.mxu0 0
      %1181 = vmatpush1.bf16.msra.mxu0 %v1159
      %1182 = vmatprep.subr.bf16.mxu0 0
      %1183 = vmatpush1.bf16.msra.mxu0 %v1158
      %1184 = vmatprep.subr.bf16.mxu0 0
      %1185 = vmatpush1.bf16.msra.mxu0 %v1157
      %1186 = vmatprep.subr.bf16.mxu0 0
      %1187 = vmatpush1.bf16.msra.mxu0 %v1156
      %1188 = vmatprep.subr.bf16.mxu0 0
      %1189 = vmatpush2.bf16.msra.mxu0 0
      %1190 = vmatprep.subr.bf16.mxu0 0
      %1191 = vmatpush2.bf16.msra.mxu0 0
      %1192 = vmatprep.subr.bf16.mxu0 0
      %1193 = vmatpush2.bf16.msra.mxu0 0
      %1194 = vmatprep.subr.bf16.mxu0 0
      %1195 = vmatpush2.bf16.msra.mxu0 0
      %1196 = vmatprep.subr.bf16.mxu0 0
      %1197 = vmatpush2.bf16.msra.mxu0 0
      %1198 = vmatprep.subr.bf16.mxu0 0
      %1199 = vmatpush2.bf16.msra.mxu0 0
      %1200 = vmatprep.subr.bf16.mxu0 0
      %1201 = vmatpush2.bf16.msra.mxu0 0
      %1202 = vmatprep.subr.bf16.mxu0 0
      %1203 = vmatpush2.bf16.msra.mxu0 0
      %1204 = vmatprep.mubr.bf16.mxu0 0
      %1205 = vmatmul.mubr.bf16.gmra.mxu0 %v885
      %v1206 = vpop.f32.mrf.mxu0
      %v1207 = vadd.f32 %v1054, %v1206
      %v1208 = vpop.f32.mrf.mxu0
      %v1209 = vpop.f32.mrf.mxu0
      %v1210 = vadd.f32 %v1057, %v1209
      %v1211 = vpop.f32.mrf.mxu0
      %1212 = vmatprep.mubr.bf16.mxu0 0
      %1213 = vmatmul.mubr.bf16.gmra.mxu0 %v886
      %v1214 = vpop.f32.mrf.mxu0
      %v1215 = vadd.f32 %v1062, %v1214
      %v1216 = vpop.f32.mrf.mxu0
      %v1217 = vpop.f32.mrf.mxu0
      %v1218 = vadd.f32 %v1065, %v1217
      %v1219 = vpop.f32.mrf.mxu0
      %1220 = vmatprep.mubr.bf16.mxu0 0
      %1221 = vmatmul.mubr.bf16.gmra.mxu0 %v887
      %v1222 = vpop.f32.mrf.mxu0
      %v1223 = vadd.f32 %v1070, %v1222
      %v1224 = vpop.f32.mrf.mxu0
      %v1225 = vpop.f32.mrf.mxu0
      %v1226 = vadd.f32 %v1073, %v1225
      %v1227 = vpop.f32.mrf.mxu0
      %1228 = vmatprep.mubr.bf16.mxu0 0
      %1229 = vmatmul.mubr.bf16.gmra.mxu0 %v888
      %v1230 = vpop.f32.mrf.mxu0
      %v1231 = vadd.f32 %v1078, %v1230
      %v1232 = vpop.f32.mrf.mxu0
      %v1233 = vpop.f32.mrf.mxu0
      %v1234 = vadd.f32 %v1081, %v1233
      %v1235 = vpop.f32.mrf.mxu0
      %1236 = vmatprep.mubr.bf16.mxu0 0
      %1237 = vmatmul.mubr.bf16.gmra.mxu0 %v889
      %v1238 = vpop.f32.mrf.mxu0
      %v1239 = vadd.f32 %v1086, %v1238
      %v1240 = vpop.f32.mrf.mxu0
      %v1241 = vpop.f32.mrf.mxu0
      %v1242 = vadd.f32 %v1089, %v1241
      %v1243 = vpop.f32.mrf.mxu0
      %1244 = vmatprep.mubr.bf16.mxu0 0
      %1245 = vmatmul.mubr.bf16.gmra.mxu0 %v890
      %v1246 = vpop.f32.mrf.mxu0
      %v1247 = vadd.f32 %v1094, %v1246
      %v1248 = vpop.f32.mrf.mxu0
      %v1249 = vpop.f32.mrf.mxu0
      %v1250 = vadd.f32 %v1097, %v1249
      %v1251 = vpop.f32.mrf.mxu0
      %1252 = vmatprep.mubr.bf16.mxu0 0
      %1253 = vmatmul.mubr.bf16.gmra.mxu0 %v891
      %v1254 = vpop.f32.mrf.mxu0
      %v1255 = vadd.f32 %v1102, %v1254
      %v1256 = vpop.f32.mrf.mxu0
      %v1257 = vpop.f32.mrf.mxu0
      %v1258 = vadd.f32 %v1105, %v1257
      %v1259 = vpop.f32.mrf.mxu0
      %1260 = vmatprep.mubr.bf16.mxu0 0
      %1261 = vmatmul.mubr.bf16.gmra.mxu0 %v892
      %v1262 = vpop.f32.mrf.mxu0
      %v1263 = vadd.f32 %v1110, %v1262
      %v1264 = vpop.f32.mrf.mxu0
      %v1265 = vpop.f32.mrf.mxu0
      %v1266 = vadd.f32 %v1113, %v1265
      %v1267 = vpop.f32.mrf.mxu0
      %1268 = vdwg.mxu0
      %s1269 = scalar_lea.vmem %s2, 128
      %v1270 = vld [vmem:[%s1269] sm:$0xf]
      %v1271 = vld [vmem:[%s1269 + $0x4] sm:$0xf]
      %v1272 = vld [vmem:[%s1269 + $0x8] sm:$0xf]
      %v1273 = vld [vmem:[%s1269 + $0xc] sm:$0xf]
      %v1274 = vld [vmem:[%s1269 + $0x10] sm:$0xf]
      %v1275 = vld [vmem:[%s1269 + $0x14] sm:$0xf]
      %v1276 = vld [vmem:[%s1269 + $0x18] sm:$0xf]
      %v1277 = vld [vmem:[%s1269 + $0x1c] sm:$0xf]
      %v1278 = vld [vmem:[%s1269 + $0x20] sm:$0xf]
      %v1279 = vld [vmem:[%s1269 + $0x24] sm:$0xf]
      %v1280 = vld [vmem:[%s1269 + $0x28] sm:$0xf]
      %v1281 = vld [vmem:[%s1269 + $0x2c] sm:$0xf]
      %v1282 = vld [vmem:[%s1269 + $0x30] sm:$0xf]
      %v1283 = vld [vmem:[%s1269 + $0x34] sm:$0xf]
      %v1284 = vld [vmem:[%s1269 + $0x38] sm:$0xf]
      %v1285 = vld [vmem:[%s1269 + $0x3c] sm:$0xf]
      %v1286 = vld [vmem:[#allocation2] sm:$0xe]
      %v1288 = vunpack.c.l.b16 %v1286
      %v1289 = vpack.c.b16 %v869, %v1288
      %vm1290 = vcmask 1046528
      %v1291 = vrot.slane %v1289, 1
      %v1292 = vrot.slane %v886, 1
      %v1293 = vsel %vm1290, %v1291, %v1292
      %v1294 = vrot.slane %v887, 1
      %v1295 = vsel %vm1290, %v1292, %v1294
      %v1296 = vrot.slane %v888, 1
      %v1297 = vsel %vm1290, %v1294, %v1296
      %v1298 = vrot.slane %v889, 1
      %v1299 = vsel %vm1290, %v1296, %v1298
      %v1300 = vrot.slane %v890, 1
      %v1301 = vsel %vm1290, %v1298, %v1300
      %v1302 = vrot.slane %v891, 1
      %v1303 = vsel %vm1290, %v1300, %v1302
      %v1304 = vrot.slane %v892, 1
      %v1305 = vsel %vm1290, %v1302, %v1304
      %v1306 = vrot.slane %v893, 1
      %v1307 = vsel %vm1290, %v1304, %v1306
      %v1332 = vunpack.c.l.b16 %v1270
      %v1333 = vunpack.c.l.b16 %v1271
      %v1334 = vunpack.c.l.b16 %v1272
      %v1335 = vunpack.c.l.b16 %v1273
      %v1336 = vunpack.c.l.b16 %v1274
      %v1337 = vunpack.c.l.b16 %v1275
      %v1338 = vunpack.c.l.b16 %v1276
      %v1339 = vunpack.c.l.b16 %v1277
      %v1340 = vunpack.c.l.b16 %v1278
      %v1341 = vunpack.c.l.b16 %v1279
      %v1342 = vunpack.c.l.b16 %v1280
      %v1343 = vunpack.c.l.b16 %v1281
      %v1344 = vunpack.c.l.b16 %v1282
      %v1345 = vunpack.c.l.b16 %v1283
      %v1346 = vunpack.c.l.b16 %v1284
      %v1347 = vunpack.c.l.b16 %v1285
      %v1348 = vpack.c.b16 %v1333, %v1332
      %v1349 = vpack.c.b16 %v1335, %v1334
      %v1350 = vpack.c.b16 %v1337, %v1336
      %v1351 = vpack.c.b16 %v1339, %v1338
      %v1352 = vpack.c.b16 %v1341, %v1340
      %v1353 = vpack.c.b16 %v1343, %v1342
      %v1354 = vpack.c.b16 %v1345, %v1344
      %v1355 = vpack.c.b16 %v1347, %v1346
      %1364 = vmatprep.subr.bf16.mxu0 0
      %1365 = vmatpush1.bf16.msra.mxu0 %v1355
      %1366 = vmatprep.subr.bf16.mxu0 0
      %1367 = vmatpush1.bf16.msra.mxu0 %v1354
      %1368 = vmatprep.subr.bf16.mxu0 0
      %1369 = vmatpush1.bf16.msra.mxu0 %v1353
      %1370 = vmatprep.subr.bf16.mxu0 0
      %1371 = vmatpush1.bf16.msra.mxu0 %v1352
      %1372 = vmatprep.subr.bf16.mxu0 0
      %1373 = vmatpush1.bf16.msra.mxu0 %v1351
      %1374 = vmatprep.subr.bf16.mxu0 0
      %1375 = vmatpush1.bf16.msra.mxu0 %v1350
      %1376 = vmatprep.subr.bf16.mxu0 0
      %1377 = vmatpush1.bf16.msra.mxu0 %v1349
      %1378 = vmatprep.subr.bf16.mxu0 0
      %1379 = vmatpush1.bf16.msra.mxu0 %v1348
      %1380 = vmatprep.subr.bf16.mxu0 0
      %1381 = vmatpush2.bf16.msra.mxu0 0
      %1382 = vmatprep.subr.bf16.mxu0 0
      %1383 = vmatpush2.bf16.msra.mxu0 0
      %1384 = vmatprep.subr.bf16.mxu0 0
      %1385 = vmatpush2.bf16.msra.mxu0 0
      %1386 = vmatprep.subr.bf16.mxu0 0
      %1387 = vmatpush2.bf16.msra.mxu0 0
      %1388 = vmatprep.subr.bf16.mxu0 0
      %1389 = vmatpush2.bf16.msra.mxu0 0
      %1390 = vmatprep.subr.bf16.mxu0 0
      %1391 = vmatpush2.bf16.msra.mxu0 0
      %1392 = vmatprep.subr.bf16.mxu0 0
      %1393 = vmatpush2.bf16.msra.mxu0 0
      %1394 = vmatprep.subr.bf16.mxu0 0
      %1395 = vmatpush2.bf16.msra.mxu0 0
      %1396 = vmatprep.mubr.bf16.mxu0 0
      %1397 = vmatmul.mubr.bf16.gmra.mxu0 %v1293
      %v1398 = vpop.f32.mrf.mxu0
      %v1399 = vadd.f32 0.0, %v1398
      %v1400 = vpop.f32.mrf.mxu0
      %v1401 = vpop.f32.mrf.mxu0
      %v1402 = vadd.f32 0.0, %v1401
      %v1403 = vpop.f32.mrf.mxu0
      %1404 = vmatprep.mubr.bf16.mxu0 0
      %1405 = vmatmul.mubr.bf16.gmra.mxu0 %v1295
      %v1406 = vpop.f32.mrf.mxu0
      %v1407 = vadd.f32 0.0, %v1406
      %v1408 = vpop.f32.mrf.mxu0
      %v1409 = vpop.f32.mrf.mxu0
      %v1410 = vadd.f32 0.0, %v1409
      %v1411 = vpop.f32.mrf.mxu0
      %1412 = vmatprep.mubr.bf16.mxu0 0
      %1413 = vmatmul.mubr.bf16.gmra.mxu0 %v1297
      %v1414 = vpop.f32.mrf.mxu0
      %v1415 = vadd.f32 0.0, %v1414
      %v1416 = vpop.f32.mrf.mxu0
      %v1417 = vpop.f32.mrf.mxu0
      %v1418 = vadd.f32 0.0, %v1417
      %v1419 = vpop.f32.mrf.mxu0
      %1420 = vmatprep.mubr.bf16.mxu0 0
      %1421 = vmatmul.mubr.bf16.gmra.mxu0 %v1299
      %v1422 = vpop.f32.mrf.mxu0
      %v1423 = vadd.f32 0.0, %v1422
      %v1424 = vpop.f32.mrf.mxu0
      %v1425 = vpop.f32.mrf.mxu0
      %v1426 = vadd.f32 0.0, %v1425
      %v1427 = vpop.f32.mrf.mxu0
      %1428 = vmatprep.mubr.bf16.mxu0 0
      %1429 = vmatmul.mubr.bf16.gmra.mxu0 %v1301
      %v1430 = vpop.f32.mrf.mxu0
      %v1431 = vadd.f32 0.0, %v1430
      %v1432 = vpop.f32.mrf.mxu0
      %v1433 = vpop.f32.mrf.mxu0
      %v1434 = vadd.f32 0.0, %v1433
      %v1435 = vpop.f32.mrf.mxu0
      %1436 = vmatprep.mubr.bf16.mxu0 0
      %1437 = vmatmul.mubr.bf16.gmra.mxu0 %v1303
      %v1438 = vpop.f32.mrf.mxu0
      %v1439 = vadd.f32 0.0, %v1438
      %v1440 = vpop.f32.mrf.mxu0
      %v1441 = vpop.f32.mrf.mxu0
      %v1442 = vadd.f32 0.0, %v1441
      %v1443 = vpop.f32.mrf.mxu0
      %1444 = vmatprep.mubr.bf16.mxu0 0
      %1445 = vmatmul.mubr.bf16.gmra.mxu0 %v1305
      %v1446 = vpop.f32.mrf.mxu0
      %v1447 = vadd.f32 0.0, %v1446
      %v1448 = vpop.f32.mrf.mxu0
      %v1449 = vpop.f32.mrf.mxu0
      %v1450 = vadd.f32 0.0, %v1449
      %v1451 = vpop.f32.mrf.mxu0
      %1452 = vmatprep.mubr.bf16.mxu0 0
      %1453 = vmatmul.mubr.bf16.gmra.mxu0 %v1307
      %v1454 = vpop.f32.mrf.mxu0
      %v1455 = vadd.f32 0.0, %v1454
      %v1456 = vpop.f32.mrf.mxu0
      %v1457 = vpop.f32.mrf.mxu0
      %v1458 = vadd.f32 0.0, %v1457
      %v1459 = vpop.f32.mrf.mxu0
      %1460 = vdwg.mxu0
      %v1461 = vadd.f32 %v1207, %v1399
      %v1462 = vadd.f32 %v1210, %v1402
      %v1463 = vadd.f32 %v1215, %v1407
      %v1464 = vadd.f32 %v1218, %v1410
      %v1465 = vadd.f32 %v1223, %v1415
      %v1466 = vadd.f32 %v1226, %v1418
      %v1467 = vadd.f32 %v1231, %v1423
      %v1468 = vadd.f32 %v1234, %v1426
      %v1469 = vadd.f32 %v1239, %v1431
      %v1470 = vadd.f32 %v1242, %v1434
      %v1471 = vadd.f32 %v1247, %v1439
      %v1472 = vadd.f32 %v1250, %v1442
      %v1473 = vadd.f32 %v1255, %v1447
      %v1474 = vadd.f32 %v1258, %v1450
      %v1475 = vadd.f32 %v1263, %v1455
      %v1476 = vadd.f32 %v1266, %v1458
      %s1477 = scalar_lea.vmem %s2, 192
      %v1478 = vld [vmem:[%s1477] sm:$0xf]
      %v1479 = vld [vmem:[%s1477 + $0x4] sm:$0xf]
      %v1480 = vld [vmem:[%s1477 + $0x8] sm:$0xf]
      %v1481 = vld [vmem:[%s1477 + $0xc] sm:$0xf]
      %v1482 = vld [vmem:[%s1477 + $0x10] sm:$0xf]
      %v1483 = vld [vmem:[%s1477 + $0x14] sm:$0xf]
      %v1484 = vld [vmem:[%s1477 + $0x18] sm:$0xf]
      %v1485 = vld [vmem:[%s1477 + $0x1c] sm:$0xf]
      %v1486 = vld [vmem:[%s1477 + $0x20] sm:$0xf]
      %v1487 = vld [vmem:[%s1477 + $0x24] sm:$0xf]
      %v1488 = vld [vmem:[%s1477 + $0x28] sm:$0xf]
      %v1489 = vld [vmem:[%s1477 + $0x2c] sm:$0xf]
      %v1490 = vld [vmem:[%s1477 + $0x30] sm:$0xf]
      %v1491 = vld [vmem:[%s1477 + $0x34] sm:$0xf]
      %v1492 = vld [vmem:[%s1477 + $0x38] sm:$0xf]
      %v1493 = vld [vmem:[%s1477 + $0x3c] sm:$0xf]
      %v1494 = vld [vmem:[#allocation2 + $0x8] sm:$0xf]
      %v1495 = vld [vmem:[#allocation2 + $0xc] sm:$0xf]
      %v1496 = vld [vmem:[#allocation2 + $0x10] sm:$0xf]
      %v1497 = vld [vmem:[#allocation2 + $0x14] sm:$0xf]
      %v1498 = vld [vmem:[#allocation2 + $0x18] sm:$0xf]
      %v1499 = vld [vmem:[#allocation2 + $0x1c] sm:$0xf]
      %v1500 = vld [vmem:[#allocation2 + $0x20] sm:$0xf]
      %v1501 = vld [vmem:[#allocation2 + $0x24] sm:$0xf]
      %v1502 = vld [vmem:[#allocation2 + $0x28] sm:$0xf]
      %v1503 = vld [vmem:[#allocation2 + $0x2c] sm:$0xf]
      %v1504 = vld [vmem:[#allocation2 + $0x30] sm:$0xf]
      %v1505 = vld [vmem:[#allocation2 + $0x34] sm:$0xf]
      %v1506 = vld [vmem:[#allocation2 + $0x38] sm:$0xf]
      %v1507 = vld [vmem:[#allocation2 + $0x3c] sm:$0xf]
      %v1508 = vld [vmem:[#allocation2 + $0x40] sm:$0xf]
      %v1509 = vld [vmem:[#allocation2 + $0x44] sm:$0xf]
      %v1526 = vunpack.c.l.b16 %v1494
      %v1527 = vunpack.c.l.b16 %v1495
      %v1528 = vunpack.c.l.b16 %v1496
      %v1529 = vunpack.c.l.b16 %v1497
      %v1530 = vunpack.c.l.b16 %v1498
      %v1531 = vunpack.c.l.b16 %v1499
      %v1532 = vunpack.c.l.b16 %v1500
      %v1533 = vunpack.c.l.b16 %v1501
      %v1534 = vunpack.c.l.b16 %v1502
      %v1535 = vunpack.c.l.b16 %v1503
      %v1536 = vunpack.c.l.b16 %v1504
      %v1537 = vunpack.c.l.b16 %v1505
      %v1538 = vunpack.c.l.b16 %v1506
      %v1539 = vunpack.c.l.b16 %v1507
      %v1540 = vunpack.c.l.b16 %v1508
      %v1541 = vunpack.c.l.b16 %v1509
      %v1542 = vpack.c.b16 %v1527, %v1526
      %v1543 = vpack.c.b16 %v1529, %v1528
      %v1544 = vpack.c.b16 %v1531, %v1530
      %v1545 = vpack.c.b16 %v1533, %v1532
      %v1546 = vpack.c.b16 %v1535, %v1534
      %v1547 = vpack.c.b16 %v1537, %v1536
      %v1548 = vpack.c.b16 %v1539, %v1538
      %v1549 = vpack.c.b16 %v1541, %v1540
      %v1574 = vunpack.c.l.b16 %v1478
      %v1575 = vunpack.c.l.b16 %v1479
      %v1576 = vunpack.c.l.b16 %v1480
      %v1577 = vunpack.c.l.b16 %v1481
      %v1578 = vunpack.c.l.b16 %v1482
      %v1579 = vunpack.c.l.b16 %v1483
      %v1580 = vunpack.c.l.b16 %v1484
      %v1581 = vunpack.c.l.b16 %v1485
      %v1582 = vunpack.c.l.b16 %v1486
      %v1583 = vunpack.c.l.b16 %v1487
      %v1584 = vunpack.c.l.b16 %v1488
      %v1585 = vunpack.c.l.b16 %v1489
      %v1586 = vunpack.c.l.b16 %v1490
      %v1587 = vunpack.c.l.b16 %v1491
      %v1588 = vunpack.c.l.b16 %v1492
      %v1589 = vunpack.c.l.b16 %v1493
      %v1590 = vpack.c.b16 %v1575, %v1574
      %v1591 = vpack.c.b16 %v1577, %v1576
      %v1592 = vpack.c.b16 %v1579, %v1578
      %v1593 = vpack.c.b16 %v1581, %v1580
      %v1594 = vpack.c.b16 %v1583, %v1582
      %v1595 = vpack.c.b16 %v1585, %v1584
      %v1596 = vpack.c.b16 %v1587, %v1586
      %v1597 = vpack.c.b16 %v1589, %v1588
      %1606 = vmatprep.subr.bf16.mxu0 0
      %1607 = vmatpush1.bf16.msra.mxu0 %v1597
      %1608 = vmatprep.subr.bf16.mxu0 0
      %1609 = vmatpush1.bf16.msra.mxu0 %v1596
      %1610 = vmatprep.subr.bf16.mxu0 0
      %1611 = vmatpush1.bf16.msra.mxu0 %v1595
      %1612 = vmatprep.subr.bf16.mxu0 0
      %1613 = vmatpush1.bf16.msra.mxu0 %v1594
      %1614 = vmatprep.subr.bf16.mxu0 0
      %1615 = vmatpush1.bf16.msra.mxu0 %v1593
      %1616 = vmatprep.subr.bf16.mxu0 0
      %1617 = vmatpush1.bf16.msra.mxu0 %v1592
      %1618 = vmatprep.subr.bf16.mxu0 0
      %1619 = vmatpush1.bf16.msra.mxu0 %v1591
      %1620 = vmatprep.subr.bf16.mxu0 0
      %1621 = vmatpush1.bf16.msra.mxu0 %v1590
      %1622 = vmatprep.subr.bf16.mxu0 0
      %1623 = vmatpush2.bf16.msra.mxu0 0
      %1624 = vmatprep.subr.bf16.mxu0 0
      %1625 = vmatpush2.bf16.msra.mxu0 0
      %1626 = vmatprep.subr.bf16.mxu0 0
      %1627 = vmatpush2.bf16.msra.mxu0 0
      %1628 = vmatprep.subr.bf16.mxu0 0
      %1629 = vmatpush2.bf16.msra.mxu0 0
      %1630 = vmatprep.subr.bf16.mxu0 0
      %1631 = vmatpush2.bf16.msra.mxu0 0
      %1632 = vmatprep.subr.bf16.mxu0 0
      %1633 = vmatpush2.bf16.msra.mxu0 0
      %1634 = vmatprep.subr.bf16.mxu0 0
      %1635 = vmatpush2.bf16.msra.mxu0 0
      %1636 = vmatprep.subr.bf16.mxu0 0
      %1637 = vmatpush2.bf16.msra.mxu0 0
      %1638 = vmatprep.mubr.bf16.mxu0 0
      %1639 = vmatmul.mubr.bf16.gmra.mxu0 %v1542
      %v1640 = vpop.f32.mrf.mxu0
      %v1641 = vadd.f32 0.0, %v1640
      %v1642 = vpop.f32.mrf.mxu0
      %v1643 = vpop.f32.mrf.mxu0
      %v1644 = vadd.f32 0.0, %v1643
      %v1645 = vpop.f32.mrf.mxu0
      %1646 = vmatprep.mubr.bf16.mxu0 0
      %1647 = vmatmul.mubr.bf16.gmra.mxu0 %v1543
      %v1648 = vpop.f32.mrf.mxu0
      %v1649 = vadd.f32 0.0, %v1648
      %v1650 = vpop.f32.mrf.mxu0
      %v1651 = vpop.f32.mrf.mxu0
      %v1652 = vadd.f32 0.0, %v1651
      %v1653 = vpop.f32.mrf.mxu0
      %1654 = vmatprep.mubr.bf16.mxu0 0
      %1655 = vmatmul.mubr.bf16.gmra.mxu0 %v1544
      %v1656 = vpop.f32.mrf.mxu0
      %v1657 = vadd.f32 0.0, %v1656
      %v1658 = vpop.f32.mrf.mxu0
      %v1659 = vpop.f32.mrf.mxu0
      %v1660 = vadd.f32 0.0, %v1659
      %v1661 = vpop.f32.mrf.mxu0
      %1662 = vmatprep.mubr.bf16.mxu0 0
      %1663 = vmatmul.mubr.bf16.gmra.mxu0 %v1545
      %v1664 = vpop.f32.mrf.mxu0
      %v1665 = vadd.f32 0.0, %v1664
      %v1666 = vpop.f32.mrf.mxu0
      %v1667 = vpop.f32.mrf.mxu0
      %v1668 = vadd.f32 0.0, %v1667
      %v1669 = vpop.f32.mrf.mxu0
      %1670 = vmatprep.mubr.bf16.mxu0 0
      %1671 = vmatmul.mubr.bf16.gmra.mxu0 %v1546
      %v1672 = vpop.f32.mrf.mxu0
      %v1673 = vadd.f32 0.0, %v1672
      %v1674 = vpop.f32.mrf.mxu0
      %v1675 = vpop.f32.mrf.mxu0
      %v1676 = vadd.f32 0.0, %v1675
      %v1677 = vpop.f32.mrf.mxu0
      %1678 = vmatprep.mubr.bf16.mxu0 0
      %1679 = vmatmul.mubr.bf16.gmra.mxu0 %v1547
      %v1680 = vpop.f32.mrf.mxu0
      %v1681 = vadd.f32 0.0, %v1680
      %v1682 = vpop.f32.mrf.mxu0
      %v1683 = vpop.f32.mrf.mxu0
      %v1684 = vadd.f32 0.0, %v1683
      %v1685 = vpop.f32.mrf.mxu0
      %1686 = vmatprep.mubr.bf16.mxu0 0
      %1687 = vmatmul.mubr.bf16.gmra.mxu0 %v1548
      %v1688 = vpop.f32.mrf.mxu0
      %v1689 = vadd.f32 0.0, %v1688
      %v1690 = vpop.f32.mrf.mxu0
      %v1691 = vpop.f32.mrf.mxu0
      %v1692 = vadd.f32 0.0, %v1691
      %v1693 = vpop.f32.mrf.mxu0
      %1694 = vmatprep.mubr.bf16.mxu0 0
      %1695 = vmatmul.mubr.bf16.gmra.mxu0 %v1549
      %v1696 = vpop.f32.mrf.mxu0
      %v1697 = vadd.f32 0.0, %v1696
      %v1698 = vpop.f32.mrf.mxu0
      %v1699 = vpop.f32.mrf.mxu0
      %v1700 = vadd.f32 0.0, %v1699
      %v1701 = vpop.f32.mrf.mxu0
      %1702 = vdwg.mxu0
      %v1703 = vadd.f32 %v1461, %v1641
      %v1704 = vadd.f32 %v1462, %v1644
      %v1705 = vadd.f32 %v1463, %v1649
      %v1706 = vadd.f32 %v1464, %v1652
      %v1707 = vadd.f32 %v1465, %v1657
      %v1708 = vadd.f32 %v1466, %v1660
      %v1709 = vadd.f32 %v1467, %v1665
      %v1710 = vadd.f32 %v1468, %v1668
      %v1711 = vadd.f32 %v1469, %v1673
      %v1712 = vadd.f32 %v1470, %v1676
      %v1713 = vadd.f32 %v1471, %v1681
      %v1714 = vadd.f32 %v1472, %v1684
      %v1715 = vadd.f32 %v1473, %v1689
      %v1716 = vadd.f32 %v1474, %v1692
      %v1717 = vadd.f32 %v1475, %v1697
      %v1718 = vadd.f32 %v1476, %v1700
      %s1719 = scalar_lea.vmem %s2, 256
      %v1720 = vld [vmem:[%s1719] sm:$0xf]
      %v1721 = vld [vmem:[%s1719 + $0x4] sm:$0xf]
      %v1722 = vld [vmem:[%s1719 + $0x8] sm:$0xf]
      %v1723 = vld [vmem:[%s1719 + $0xc] sm:$0xf]
      %v1724 = vld [vmem:[%s1719 + $0x10] sm:$0xf]
      %v1725 = vld [vmem:[%s1719 + $0x14] sm:$0xf]
      %v1726 = vld [vmem:[%s1719 + $0x18] sm:$0xf]
      %v1727 = vld [vmem:[%s1719 + $0x1c] sm:$0xf]
      %v1728 = vld [vmem:[%s1719 + $0x20] sm:$0xf]
      %v1729 = vld [vmem:[%s1719 + $0x24] sm:$0xf]
      %v1730 = vld [vmem:[%s1719 + $0x28] sm:$0xf]
      %v1731 = vld [vmem:[%s1719 + $0x2c] sm:$0xf]
      %v1732 = vld [vmem:[%s1719 + $0x30] sm:$0xf]
      %v1733 = vld [vmem:[%s1719 + $0x34] sm:$0xf]
      %v1734 = vld [vmem:[%s1719 + $0x38] sm:$0xf]
      %v1735 = vld [vmem:[%s1719 + $0x3c] sm:$0xf]
      %v1736 = vld [vmem:[#allocation2 + $0x8] sm:$0xf]
      %v1737 = vld [vmem:[#allocation2 + $0xc] sm:$0xf]
      %v1738 = vld [vmem:[#allocation2 + $0x10] sm:$0xf]
      %v1739 = vld [vmem:[#allocation2 + $0x14] sm:$0xf]
      %v1740 = vld [vmem:[#allocation2 + $0x18] sm:$0xf]
      %v1741 = vld [vmem:[#allocation2 + $0x1c] sm:$0xf]
      %v1742 = vld [vmem:[#allocation2 + $0x20] sm:$0xf]
      %v1743 = vld [vmem:[#allocation2 + $0x24] sm:$0xf]
      %v1744 = vld [vmem:[#allocation2 + $0x28] sm:$0xf]
      %v1745 = vld [vmem:[#allocation2 + $0x2c] sm:$0xf]
      %v1746 = vld [vmem:[#allocation2 + $0x30] sm:$0xf]
      %v1747 = vld [vmem:[#allocation2 + $0x34] sm:$0xf]
      %v1748 = vld [vmem:[#allocation2 + $0x38] sm:$0xf]
      %v1749 = vld [vmem:[#allocation2 + $0x3c] sm:$0xf]
      %v1750 = vld [vmem:[#allocation2 + $0x40] sm:$0xf]
      %v1751 = vld [vmem:[#allocation2 + $0x44] sm:$0xf]
      %v1752 = vld [vmem:[#allocation2 + $0x48] sm:$0x1]
      %v1770 = vunpack.c.l.b16 %v1736
      %v1771 = vunpack.c.l.b16 %v1737
      %v1772 = vunpack.c.l.b16 %v1738
      %v1773 = vunpack.c.l.b16 %v1739
      %v1774 = vunpack.c.l.b16 %v1740
      %v1775 = vunpack.c.l.b16 %v1741
      %v1776 = vunpack.c.l.b16 %v1742
      %v1777 = vunpack.c.l.b16 %v1743
      %v1778 = vunpack.c.l.b16 %v1744
      %v1779 = vunpack.c.l.b16 %v1745
      %v1780 = vunpack.c.l.b16 %v1746
      %v1781 = vunpack.c.l.b16 %v1747
      %v1782 = vunpack.c.l.b16 %v1748
      %v1783 = vunpack.c.l.b16 %v1749
      %v1784 = vunpack.c.l.b16 %v1750
      %v1785 = vunpack.c.l.b16 %v1751
      %v1786 = vunpack.c.l.b16 %v1752
      %v1787 = vpack.c.b16 %v1771, %v1770
      %v1788 = vpack.c.b16 %v1773, %v1772
      %v1789 = vpack.c.b16 %v1775, %v1774
      %v1790 = vpack.c.b16 %v1777, %v1776
      %v1791 = vpack.c.b16 %v1779, %v1778
      %v1792 = vpack.c.b16 %v1781, %v1780
      %v1793 = vpack.c.b16 %v1783, %v1782
      %v1794 = vpack.c.b16 %v1785, %v1784
      %v1795 = vpack.c.b16 %v1786, %v1786
      %v1797 = vshrl.u32 %v1787, 16
      %v1799 = vshll.u32 %v1787, 16
      %v1801 = vrot.slane %v1799, 1
      %v1802 = vor.u32 %v1797, %v1801
      %v1804 = vshll.u32 %v1788, 16
      %v1806 = vrot.slane %v1804, 1
      %v1807 = vsel %vm894, %v1802, %v1806
      %v1808 = vshrl.u32 %v1788, 16
      %v1810 = vor.u32 %v1808, %v1806
      %v1812 = vshll.u32 %v1789, 16
      %v1814 = vrot.slane %v1812, 1
      %v1815 = vsel %vm894, %v1810, %v1814
      %v1816 = vshrl.u32 %v1789, 16
      %v1818 = vor.u32 %v1816, %v1814
      %v1820 = vshll.u32 %v1790, 16
      %v1822 = vrot.slane %v1820, 1
      %v1823 = vsel %vm894, %v1818, %v1822
      %v1824 = vshrl.u32 %v1790, 16
      %v1826 = vor.u32 %v1824, %v1822
      %v1828 = vshll.u32 %v1791, 16
      %v1830 = vrot.slane %v1828, 1
      %v1831 = vsel %vm894, %v1826, %v1830
      %v1832 = vshrl.u32 %v1791, 16
      %v1834 = vor.u32 %v1832, %v1830
      %v1836 = vshll.u32 %v1792, 16
      %v1838 = vrot.slane %v1836, 1
      %v1839 = vsel %vm894, %v1834, %v1838
      %v1840 = vshrl.u32 %v1792, 16
      %v1842 = vor.u32 %v1840, %v1838
      %v1844 = vshll.u32 %v1793, 16
      %v1846 = vrot.slane %v1844, 1
      %v1847 = vsel %vm894, %v1842, %v1846
      %v1848 = vshrl.u32 %v1793, 16
      %v1850 = vor.u32 %v1848, %v1846
      %v1852 = vshll.u32 %v1794, 16
      %v1854 = vrot.slane %v1852, 1
      %v1855 = vsel %vm894, %v1850, %v1854
      %v1856 = vshrl.u32 %v1794, 16
      %v1858 = vor.u32 %v1856, %v1854
      %v1860 = vshll.u32 %v1795, 16
      %v1862 = vrot.slane %v1860, 1
      %v1863 = vsel %vm894, %v1858, %v1862
      %v1888 = vunpack.c.l.b16 %v1720
      %v1889 = vunpack.c.l.b16 %v1721
      %v1890 = vunpack.c.l.b16 %v1722
      %v1891 = vunpack.c.l.b16 %v1723
      %v1892 = vunpack.c.l.b16 %v1724
      %v1893 = vunpack.c.l.b16 %v1725
      %v1894 = vunpack.c.l.b16 %v1726
      %v1895 = vunpack.c.l.b16 %v1727
      %v1896 = vunpack.c.l.b16 %v1728
      %v1897 = vunpack.c.l.b16 %v1729
      %v1898 = vunpack.c.l.b16 %v1730
      %v1899 = vunpack.c.l.b16 %v1731
      %v1900 = vunpack.c.l.b16 %v1732
      %v1901 = vunpack.c.l.b16 %v1733
      %v1902 = vunpack.c.l.b16 %v1734
      %v1903 = vunpack.c.l.b16 %v1735
      %v1904 = vpack.c.b16 %v1889, %v1888
      %v1905 = vpack.c.b16 %v1891, %v1890
      %v1906 = vpack.c.b16 %v1893, %v1892
      %v1907 = vpack.c.b16 %v1895, %v1894
      %v1908 = vpack.c.b16 %v1897, %v1896
      %v1909 = vpack.c.b16 %v1899, %v1898
      %v1910 = vpack.c.b16 %v1901, %v1900
      %v1911 = vpack.c.b16 %v1903, %v1902
      %1920 = vmatprep.subr.bf16.mxu0 0
      %1921 = vmatpush1.bf16.msra.mxu0 %v1911
      %1922 = vmatprep.subr.bf16.mxu0 0
      %1923 = vmatpush1.bf16.msra.mxu0 %v1910
      %1924 = vmatprep.subr.bf16.mxu0 0
      %1925 = vmatpush1.bf16.msra.mxu0 %v1909
      %1926 = vmatprep.subr.bf16.mxu0 0
      %1927 = vmatpush1.bf16.msra.mxu0 %v1908
      %1928 = vmatprep.subr.bf16.mxu0 0
      %1929 = vmatpush1.bf16.msra.mxu0 %v1907
      %1930 = vmatprep.subr.bf16.mxu0 0
      %1931 = vmatpush1.bf16.msra.mxu0 %v1906
      %1932 = vmatprep.subr.bf16.mxu0 0
      %1933 = vmatpush1.bf16.msra.mxu0 %v1905
      %1934 = vmatprep.subr.bf16.mxu0 0
      %1935 = vmatpush1.bf16.msra.mxu0 %v1904
      %1936 = vmatprep.subr.bf16.mxu0 0
      %1937 = vmatpush2.bf16.msra.mxu0 0
      %1938 = vmatprep.subr.bf16.mxu0 0
      %1939 = vmatpush2.bf16.msra.mxu0 0
      %1940 = vmatprep.subr.bf16.mxu0 0
      %1941 = vmatpush2.bf16.msra.mxu0 0
      %1942 = vmatprep.subr.bf16.mxu0 0
      %1943 = vmatpush2.bf16.msra.mxu0 0
      %1944 = vmatprep.subr.bf16.mxu0 0
      %1945 = vmatpush2.bf16.msra.mxu0 0
      %1946 = vmatprep.subr.bf16.mxu0 0
      %1947 = vmatpush2.bf16.msra.mxu0 0
      %1948 = vmatprep.subr.bf16.mxu0 0
      %1949 = vmatpush2.bf16.msra.mxu0 0
      %1950 = vmatprep.subr.bf16.mxu0 0
      %1951 = vmatpush2.bf16.msra.mxu0 0
      %1952 = vmatprep.mubr.bf16.mxu0 0
      %1953 = vmatmul.mubr.bf16.gmra.mxu0 %v1807
      %v1954 = vpop.f32.mrf.mxu0
      %v1955 = vadd.f32 0.0, %v1954
      %v1956 = vpop.f32.mrf.mxu0
      %v1957 = vpop.f32.mrf.mxu0
      %v1958 = vadd.f32 0.0, %v1957
      %v1959 = vpop.f32.mrf.mxu0
      %1960 = vmatprep.mubr.bf16.mxu0 0
      %1961 = vmatmul.mubr.bf16.gmra.mxu0 %v1815
      %v1962 = vpop.f32.mrf.mxu0
      %v1963 = vadd.f32 0.0, %v1962
      %v1964 = vpop.f32.mrf.mxu0
      %v1965 = vpop.f32.mrf.mxu0
      %v1966 = vadd.f32 0.0, %v1965
      %v1967 = vpop.f32.mrf.mxu0
      %1968 = vmatprep.mubr.bf16.mxu0 0
      %1969 = vmatmul.mubr.bf16.gmra.mxu0 %v1823
      %v1970 = vpop.f32.mrf.mxu0
      %v1971 = vadd.f32 0.0, %v1970
      %v1972 = vpop.f32.mrf.mxu0
      %v1973 = vpop.f32.mrf.mxu0
      %v1974 = vadd.f32 0.0, %v1973
      %v1975 = vpop.f32.mrf.mxu0
      %1976 = vmatprep.mubr.bf16.mxu0 0
      %1977 = vmatmul.mubr.bf16.gmra.mxu0 %v1831
      %v1978 = vpop.f32.mrf.mxu0
      %v1979 = vadd.f32 0.0, %v1978
      %v1980 = vpop.f32.mrf.mxu0
      %v1981 = vpop.f32.mrf.mxu0
      %v1982 = vadd.f32 0.0, %v1981
      %v1983 = vpop.f32.mrf.mxu0
      %1984 = vmatprep.mubr.bf16.mxu0 0
      %1985 = vmatmul.mubr.bf16.gmra.mxu0 %v1839
      %v1986 = vpop.f32.mrf.mxu0
      %v1987 = vadd.f32 0.0, %v1986
      %v1988 = vpop.f32.mrf.mxu0
      %v1989 = vpop.f32.mrf.mxu0
      %v1990 = vadd.f32 0.0, %v1989
      %v1991 = vpop.f32.mrf.mxu0
      %1992 = vmatprep.mubr.bf16.mxu0 0
      %1993 = vmatmul.mubr.bf16.gmra.mxu0 %v1847
      %v1994 = vpop.f32.mrf.mxu0
      %v1995 = vadd.f32 0.0, %v1994
      %v1996 = vpop.f32.mrf.mxu0
      %v1997 = vpop.f32.mrf.mxu0
      %v1998 = vadd.f32 0.0, %v1997
      %v1999 = vpop.f32.mrf.mxu0
      %2000 = vmatprep.mubr.bf16.mxu0 0
      %2001 = vmatmul.mubr.bf16.gmra.mxu0 %v1855
      %v2002 = vpop.f32.mrf.mxu0
      %v2003 = vadd.f32 0.0, %v2002
      %v2004 = vpop.f32.mrf.mxu0
      %v2005 = vpop.f32.mrf.mxu0
      %v2006 = vadd.f32 0.0, %v2005
      %v2007 = vpop.f32.mrf.mxu0
      %2008 = vmatprep.mubr.bf16.mxu0 0
      %2009 = vmatmul.mubr.bf16.gmra.mxu0 %v1863
      %v2010 = vpop.f32.mrf.mxu0
      %v2011 = vadd.f32 0.0, %v2010
      %v2012 = vpop.f32.mrf.mxu0
      %v2013 = vpop.f32.mrf.mxu0
      %v2014 = vadd.f32 0.0, %v2013
      %v2015 = vpop.f32.mrf.mxu0
      %2016 = vdwg.mxu0
      %v2017 = vadd.f32 %v1703, %v1955
      %v2018 = vadd.f32 %v1704, %v1958
      %v2019 = vadd.f32 %v1705, %v1963
      %v2020 = vadd.f32 %v1706, %v1966
      %v2021 = vadd.f32 %v1707, %v1971
      %v2022 = vadd.f32 %v1708, %v1974
      %v2023 = vadd.f32 %v1709, %v1979
      %v2024 = vadd.f32 %v1710, %v1982
      %v2025 = vadd.f32 %v1711, %v1987
      %v2026 = vadd.f32 %v1712, %v1990
      %v2027 = vadd.f32 %v1713, %v1995
      %v2028 = vadd.f32 %v1714, %v1998
      %v2029 = vadd.f32 %v1715, %v2003
      %v2030 = vadd.f32 %v1716, %v2006
      %v2031 = vadd.f32 %v1717, %v2011
      %v2032 = vadd.f32 %v1718, %v2014
      %s2033 = scalar_lea.vmem %s2, 320
      %v2034 = vld [vmem:[%s2033] sm:$0xf]
      %v2035 = vld [vmem:[%s2033 + $0x4] sm:$0xf]
      %v2036 = vld [vmem:[%s2033 + $0x8] sm:$0xf]
      %v2037 = vld [vmem:[%s2033 + $0xc] sm:$0xf]
      %v2038 = vld [vmem:[%s2033 + $0x10] sm:$0xf]
      %v2039 = vld [vmem:[%s2033 + $0x14] sm:$0xf]
      %v2040 = vld [vmem:[%s2033 + $0x18] sm:$0xf]
      %v2041 = vld [vmem:[%s2033 + $0x1c] sm:$0xf]
      %v2042 = vld [vmem:[%s2033 + $0x20] sm:$0xf]
      %v2043 = vld [vmem:[%s2033 + $0x24] sm:$0xf]
      %v2044 = vld [vmem:[%s2033 + $0x28] sm:$0xf]
      %v2045 = vld [vmem:[%s2033 + $0x2c] sm:$0xf]
      %v2046 = vld [vmem:[%s2033 + $0x30] sm:$0xf]
      %v2047 = vld [vmem:[%s2033 + $0x34] sm:$0xf]
      %v2048 = vld [vmem:[%s2033 + $0x38] sm:$0xf]
      %v2049 = vld [vmem:[%s2033 + $0x3c] sm:$0xf]
      %v2050 = vld [vmem:[#allocation2 + $0x8] sm:$0xe]
      %v2052 = vunpack.c.l.b16 %v2050
      %v2053 = vpack.c.b16 %v1771, %v2052
      %v2054 = vrot.slane %v2053, 1
      %v2055 = vrot.slane %v1788, 1
      %v2056 = vsel %vm1290, %v2054, %v2055
      %v2057 = vrot.slane %v1789, 1
      %v2058 = vsel %vm1290, %v2055, %v2057
      %v2059 = vrot.slane %v1790, 1
      %v2060 = vsel %vm1290, %v2057, %v2059
      %v2061 = vrot.slane %v1791, 1
      %v2062 = vsel %vm1290, %v2059, %v2061
      %v2063 = vrot.slane %v1792, 1
      %v2064 = vsel %vm1290, %v2061, %v2063
      %v2065 = vrot.slane %v1793, 1
      %v2066 = vsel %vm1290, %v2063, %v2065
      %v2067 = vrot.slane %v1794, 1
      %v2068 = vsel %vm1290, %v2065, %v2067
      %v2069 = vrot.slane %v1795, 1
      %v2070 = vsel %vm1290, %v2067, %v2069
      %v2095 = vunpack.c.l.b16 %v2034
      %v2096 = vunpack.c.l.b16 %v2035
      %v2097 = vunpack.c.l.b16 %v2036
      %v2098 = vunpack.c.l.b16 %v2037
      %v2099 = vunpack.c.l.b16 %v2038
      %v2100 = vunpack.c.l.b16 %v2039
      %v2101 = vunpack.c.l.b16 %v2040
      %v2102 = vunpack.c.l.b16 %v2041
      %v2103 = vunpack.c.l.b16 %v2042
      %v2104 = vunpack.c.l.b16 %v2043
      %v2105 = vunpack.c.l.b16 %v2044
      %v2106 = vunpack.c.l.b16 %v2045
      %v2107 = vunpack.c.l.b16 %v2046
      %v2108 = vunpack.c.l.b16 %v2047
      %v2109 = vunpack.c.l.b16 %v2048
      %v2110 = vunpack.c.l.b16 %v2049
      %v2111 = vpack.c.b16 %v2096, %v2095
      %v2112 = vpack.c.b16 %v2098, %v2097
      %v2113 = vpack.c.b16 %v2100, %v2099
      %v2114 = vpack.c.b16 %v2102, %v2101
      %v2115 = vpack.c.b16 %v2104, %v2103
      %v2116 = vpack.c.b16 %v2106, %v2105
      %v2117 = vpack.c.b16 %v2108, %v2107
      %v2118 = vpack.c.b16 %v2110, %v2109
      %2127 = vmatprep.subr.bf16.mxu0 0
      %2128 = vmatpush1.bf16.msra.mxu0 %v2118
      %2129 = vmatprep.subr.bf16.mxu0 0
      %2130 = vmatpush1.bf16.msra.mxu0 %v2117
      %2131 = vmatprep.subr.bf16.mxu0 0
      %2132 = vmatpush1.bf16.msra.mxu0 %v2116
      %2133 = vmatprep.subr.bf16.mxu0 0
      %2134 = vmatpush1.bf16.msra.mxu0 %v2115
      %2135 = vmatprep.subr.bf16.mxu0 0
      %2136 = vmatpush1.bf16.msra.mxu0 %v2114
      %2137 = vmatprep.subr.bf16.mxu0 0
      %2138 = vmatpush1.bf16.msra.mxu0 %v2113
      %2139 = vmatprep.subr.bf16.mxu0 0
      %2140 = vmatpush1.bf16.msra.mxu0 %v2112
      %2141 = vmatprep.subr.bf16.mxu0 0
      %2142 = vmatpush1.bf16.msra.mxu0 %v2111
      %2143 = vmatprep.subr.bf16.mxu0 0
      %2144 = vmatpush2.bf16.msra.mxu0 0
      %2145 = vmatprep.subr.bf16.mxu0 0
      %2146 = vmatpush2.bf16.msra.mxu0 0
      %2147 = vmatprep.subr.bf16.mxu0 0
      %2148 = vmatpush2.bf16.msra.mxu0 0
      %2149 = vmatprep.subr.bf16.mxu0 0
      %2150 = vmatpush2.bf16.msra.mxu0 0
      %2151 = vmatprep.subr.bf16.mxu0 0
      %2152 = vmatpush2.bf16.msra.mxu0 0
      %2153 = vmatprep.subr.bf16.mxu0 0
      %2154 = vmatpush2.bf16.msra.mxu0 0
      %2155 = vmatprep.subr.bf16.mxu0 0
      %2156 = vmatpush2.bf16.msra.mxu0 0
      %2157 = vmatprep.subr.bf16.mxu0 0
      %2158 = vmatpush2.bf16.msra.mxu0 0
      %2159 = vmatprep.mubr.bf16.mxu0 0
      %2160 = vmatmul.mubr.bf16.gmra.mxu0 %v2056
      %v2161 = vpop.f32.mrf.mxu0
      %v2162 = vadd.f32 0.0, %v2161
      %v2163 = vpop.f32.mrf.mxu0
      %v2164 = vpop.f32.mrf.mxu0
      %v2165 = vadd.f32 0.0, %v2164
      %v2166 = vpop.f32.mrf.mxu0
      %2167 = vmatprep.mubr.bf16.mxu0 0
      %2168 = vmatmul.mubr.bf16.gmra.mxu0 %v2058
      %v2169 = vpop.f32.mrf.mxu0
      %v2170 = vadd.f32 0.0, %v2169
      %v2171 = vpop.f32.mrf.mxu0
      %v2172 = vpop.f32.mrf.mxu0
      %v2173 = vadd.f32 0.0, %v2172
      %v2174 = vpop.f32.mrf.mxu0
      %2175 = vmatprep.mubr.bf16.mxu0 0
      %2176 = vmatmul.mubr.bf16.gmra.mxu0 %v2060
      %v2177 = vpop.f32.mrf.mxu0
      %v2178 = vadd.f32 0.0, %v2177
      %v2179 = vpop.f32.mrf.mxu0
      %v2180 = vpop.f32.mrf.mxu0
      %v2181 = vadd.f32 0.0, %v2180
      %v2182 = vpop.f32.mrf.mxu0
      %2183 = vmatprep.mubr.bf16.mxu0 0
      %2184 = vmatmul.mubr.bf16.gmra.mxu0 %v2062
      %v2185 = vpop.f32.mrf.mxu0
      %v2186 = vadd.f32 0.0, %v2185
      %v2187 = vpop.f32.mrf.mxu0
      %v2188 = vpop.f32.mrf.mxu0
      %v2189 = vadd.f32 0.0, %v2188
      %v2190 = vpop.f32.mrf.mxu0
      %2191 = vmatprep.mubr.bf16.mxu0 0
      %2192 = vmatmul.mubr.bf16.gmra.mxu0 %v2064
      %v2193 = vpop.f32.mrf.mxu0
      %v2194 = vadd.f32 0.0, %v2193
      %v2195 = vpop.f32.mrf.mxu0
      %v2196 = vpop.f32.mrf.mxu0
      %v2197 = vadd.f32 0.0, %v2196
      %v2198 = vpop.f32.mrf.mxu0
      %2199 = vmatprep.mubr.bf16.mxu0 0
      %2200 = vmatmul.mubr.bf16.gmra.mxu0 %v2066
      %v2201 = vpop.f32.mrf.mxu0
      %v2202 = vadd.f32 0.0, %v2201
      %v2203 = vpop.f32.mrf.mxu0
      %v2204 = vpop.f32.mrf.mxu0
      %v2205 = vadd.f32 0.0, %v2204
      %v2206 = vpop.f32.mrf.mxu0
      %2207 = vmatprep.mubr.bf16.mxu0 0
      %2208 = vmatmul.mubr.bf16.gmra.mxu0 %v2068
      %v2209 = vpop.f32.mrf.mxu0
      %v2210 = vadd.f32 0.0, %v2209
      %v2211 = vpop.f32.mrf.mxu0
      %v2212 = vpop.f32.mrf.mxu0
      %v2213 = vadd.f32 0.0, %v2212
      %v2214 = vpop.f32.mrf.mxu0
      %2215 = vmatprep.mubr.bf16.mxu0 0
      %2216 = vmatmul.mubr.bf16.gmra.mxu0 %v2070
      %v2217 = vpop.f32.mrf.mxu0
      %v2218 = vadd.f32 0.0, %v2217
      %v2219 = vpop.f32.mrf.mxu0
      %v2220 = vpop.f32.mrf.mxu0
      %v2221 = vadd.f32 0.0, %v2220
      %v2222 = vpop.f32.mrf.mxu0
      %2223 = vdwg.mxu0
      %v2224 = vadd.f32 %v2017, %v2162
      %v2225 = vadd.f32 %v2018, %v2165
      %v2226 = vadd.f32 %v2019, %v2170
      %v2227 = vadd.f32 %v2020, %v2173
      %v2228 = vadd.f32 %v2021, %v2178
      %v2229 = vadd.f32 %v2022, %v2181
      %v2230 = vadd.f32 %v2023, %v2186
      %v2231 = vadd.f32 %v2024, %v2189
      %v2232 = vadd.f32 %v2025, %v2194
      %v2233 = vadd.f32 %v2026, %v2197
      %v2234 = vadd.f32 %v2027, %v2202
      %v2235 = vadd.f32 %v2028, %v2205
      %v2236 = vadd.f32 %v2029, %v2210
      %v2237 = vadd.f32 %v2030, %v2213
      %v2238 = vadd.f32 %v2031, %v2218
      %v2239 = vadd.f32 %v2032, %v2221
      %s2240 = scalar_lea.vmem %s2, 384
      %v2241 = vld [vmem:[%s2240] sm:$0xf]
      %v2242 = vld [vmem:[%s2240 + $0x4] sm:$0xf]
      %v2243 = vld [vmem:[%s2240 + $0x8] sm:$0xf]
      %v2244 = vld [vmem:[%s2240 + $0xc] sm:$0xf]
      %v2245 = vld [vmem:[%s2240 + $0x10] sm:$0xf]
      %v2246 = vld [vmem:[%s2240 + $0x14] sm:$0xf]
      %v2247 = vld [vmem:[%s2240 + $0x18] sm:$0xf]
      %v2248 = vld [vmem:[%s2240 + $0x1c] sm:$0xf]
      %v2249 = vld [vmem:[%s2240 + $0x20] sm:$0xf]
      %v2250 = vld [vmem:[%s2240 + $0x24] sm:$0xf]
      %v2251 = vld [vmem:[%s2240 + $0x28] sm:$0xf]
      %v2252 = vld [vmem:[%s2240 + $0x2c] sm:$0xf]
      %v2253 = vld [vmem:[%s2240 + $0x30] sm:$0xf]
      %v2254 = vld [vmem:[%s2240 + $0x34] sm:$0xf]
      %v2255 = vld [vmem:[%s2240 + $0x38] sm:$0xf]
      %v2256 = vld [vmem:[%s2240 + $0x3c] sm:$0xf]
      %v2257 = vld [vmem:[#allocation2 + $0x10] sm:$0xf]
      %v2258 = vld [vmem:[#allocation2 + $0x14] sm:$0xf]
      %v2259 = vld [vmem:[#allocation2 + $0x18] sm:$0xf]
      %v2260 = vld [vmem:[#allocation2 + $0x1c] sm:$0xf]
      %v2261 = vld [vmem:[#allocation2 + $0x20] sm:$0xf]
      %v2262 = vld [vmem:[#allocation2 + $0x24] sm:$0xf]
      %v2263 = vld [vmem:[#allocation2 + $0x28] sm:$0xf]
      %v2264 = vld [vmem:[#allocation2 + $0x2c] sm:$0xf]
      %v2265 = vld [vmem:[#allocation2 + $0x30] sm:$0xf]
      %v2266 = vld [vmem:[#allocation2 + $0x34] sm:$0xf]
      %v2267 = vld [vmem:[#allocation2 + $0x38] sm:$0xf]
      %v2268 = vld [vmem:[#allocation2 + $0x3c] sm:$0xf]
      %v2269 = vld [vmem:[#allocation2 + $0x40] sm:$0xf]
      %v2270 = vld [vmem:[#allocation2 + $0x44] sm:$0xf]
      %v2271 = vld [vmem:[#allocation2 + $0x48] sm:$0xf]
      %v2272 = vld [vmem:[#allocation2 + $0x4c] sm:$0xf]
      %v2289 = vunpack.c.l.b16 %v2257
      %v2290 = vunpack.c.l.b16 %v2258
      %v2291 = vunpack.c.l.b16 %v2259
      %v2292 = vunpack.c.l.b16 %v2260
      %v2293 = vunpack.c.l.b16 %v2261
      %v2294 = vunpack.c.l.b16 %v2262
      %v2295 = vunpack.c.l.b16 %v2263
      %v2296 = vunpack.c.l.b16 %v2264
      %v2297 = vunpack.c.l.b16 %v2265
      %v2298 = vunpack.c.l.b16 %v2266
      %v2299 = vunpack.c.l.b16 %v2267
      %v2300 = vunpack.c.l.b16 %v2268
      %v2301 = vunpack.c.l.b16 %v2269
      %v2302 = vunpack.c.l.b16 %v2270
      %v2303 = vunpack.c.l.b16 %v2271
      %v2304 = vunpack.c.l.b16 %v2272
      %v2305 = vpack.c.b16 %v2290, %v2289
      %v2306 = vpack.c.b16 %v2292, %v2291
      %v2307 = vpack.c.b16 %v2294, %v2293
      %v2308 = vpack.c.b16 %v2296, %v2295
      %v2309 = vpack.c.b16 %v2298, %v2297
      %v2310 = vpack.c.b16 %v2300, %v2299
      %v2311 = vpack.c.b16 %v2302, %v2301
      %v2312 = vpack.c.b16 %v2304, %v2303
      %v2337 = vunpack.c.l.b16 %v2241
      %v2338 = vunpack.c.l.b16 %v2242
      %v2339 = vunpack.c.l.b16 %v2243
      %v2340 = vunpack.c.l.b16 %v2244
      %v2341 = vunpack.c.l.b16 %v2245
      %v2342 = vunpack.c.l.b16 %v2246
      %v2343 = vunpack.c.l.b16 %v2247
      %v2344 = vunpack.c.l.b16 %v2248
      %v2345 = vunpack.c.l.b16 %v2249
      %v2346 = vunpack.c.l.b16 %v2250
      %v2347 = vunpack.c.l.b16 %v2251
      %v2348 = vunpack.c.l.b16 %v2252
      %v2349 = vunpack.c.l.b16 %v2253
      %v2350 = vunpack.c.l.b16 %v2254
      %v2351 = vunpack.c.l.b16 %v2255
      %v2352 = vunpack.c.l.b16 %v2256
      %v2353 = vpack.c.b16 %v2338, %v2337
      %v2354 = vpack.c.b16 %v2340, %v2339
      %v2355 = vpack.c.b16 %v2342, %v2341
      %v2356 = vpack.c.b16 %v2344, %v2343
      %v2357 = vpack.c.b16 %v2346, %v2345
      %v2358 = vpack.c.b16 %v2348, %v2347
      %v2359 = vpack.c.b16 %v2350, %v2349
      %v2360 = vpack.c.b16 %v2352, %v2351
      %2369 = vmatprep.subr.bf16.mxu0 0
      %2370 = vmatpush1.bf16.msra.mxu0 %v2360
      %2371 = vmatprep.subr.bf16.mxu0 0
      %2372 = vmatpush1.bf16.msra.mxu0 %v2359
      %2373 = vmatprep.subr.bf16.mxu0 0
      %2374 = vmatpush1.bf16.msra.mxu0 %v2358
      %2375 = vmatprep.subr.bf16.mxu0 0
      %2376 = vmatpush1.bf16.msra.mxu0 %v2357
      %2377 = vmatprep.subr.bf16.mxu0 0
      %2378 = vmatpush1.bf16.msra.mxu0 %v2356
      %2379 = vmatprep.subr.bf16.mxu0 0
      %2380 = vmatpush1.bf16.msra.mxu0 %v2355
      %2381 = vmatprep.subr.bf16.mxu0 0
      %2382 = vmatpush1.bf16.msra.mxu0 %v2354
      %2383 = vmatprep.subr.bf16.mxu0 0
      %2384 = vmatpush1.bf16.msra.mxu0 %v2353
      %2385 = vmatprep.subr.bf16.mxu0 0
      %2386 = vmatpush2.bf16.msra.mxu0 0
      %2387 = vmatprep.subr.bf16.mxu0 0
      %2388 = vmatpush2.bf16.msra.mxu0 0
      %2389 = vmatprep.subr.bf16.mxu0 0
      %2390 = vmatpush2.bf16.msra.mxu0 0
      %2391 = vmatprep.subr.bf16.mxu0 0
      %2392 = vmatpush2.bf16.msra.mxu0 0
      %2393 = vmatprep.subr.bf16.mxu0 0
      %2394 = vmatpush2.bf16.msra.mxu0 0
      %2395 = vmatprep.subr.bf16.mxu0 0
      %2396 = vmatpush2.bf16.msra.mxu0 0
      %2397 = vmatprep.subr.bf16.mxu0 0
      %2398 = vmatpush2.bf16.msra.mxu0 0
      %2399 = vmatprep.subr.bf16.mxu0 0
      %2400 = vmatpush2.bf16.msra.mxu0 0
      %2401 = vmatprep.mubr.bf16.mxu0 0
      %2402 = vmatmul.mubr.bf16.gmra.mxu0 %v2305
      %v2403 = vpop.f32.mrf.mxu0
      %v2404 = vadd.f32 0.0, %v2403
      %v2405 = vpop.f32.mrf.mxu0
      %v2406 = vpop.f32.mrf.mxu0
      %v2407 = vadd.f32 0.0, %v2406
      %v2408 = vpop.f32.mrf.mxu0
      %2409 = vmatprep.mubr.bf16.mxu0 0
      %2410 = vmatmul.mubr.bf16.gmra.mxu0 %v2306
      %v2411 = vpop.f32.mrf.mxu0
      %v2412 = vadd.f32 0.0, %v2411
      %v2413 = vpop.f32.mrf.mxu0
      %v2414 = vpop.f32.mrf.mxu0
      %v2415 = vadd.f32 0.0, %v2414
      %v2416 = vpop.f32.mrf.mxu0
      %2417 = vmatprep.mubr.bf16.mxu0 0
      %2418 = vmatmul.mubr.bf16.gmra.mxu0 %v2307
      %v2419 = vpop.f32.mrf.mxu0
      %v2420 = vadd.f32 0.0, %v2419
      %v2421 = vpop.f32.mrf.mxu0
      %v2422 = vpop.f32.mrf.mxu0
      %v2423 = vadd.f32 0.0, %v2422
      %v2424 = vpop.f32.mrf.mxu0
      %2425 = vmatprep.mubr.bf16.mxu0 0
      %2426 = vmatmul.mubr.bf16.gmra.mxu0 %v2308
      %v2427 = vpop.f32.mrf.mxu0
      %v2428 = vadd.f32 0.0, %v2427
      %v2429 = vpop.f32.mrf.mxu0
      %v2430 = vpop.f32.mrf.mxu0
      %v2431 = vadd.f32 0.0, %v2430
      %v2432 = vpop.f32.mrf.mxu0
      %2433 = vmatprep.mubr.bf16.mxu0 0
      %2434 = vmatmul.mubr.bf16.gmra.mxu0 %v2309
      %v2435 = vpop.f32.mrf.mxu0
      %v2436 = vadd.f32 0.0, %v2435
      %v2437 = vpop.f32.mrf.mxu0
      %v2438 = vpop.f32.mrf.mxu0
      %v2439 = vadd.f32 0.0, %v2438
      %v2440 = vpop.f32.mrf.mxu0
      %2441 = vmatprep.mubr.bf16.mxu0 0
      %2442 = vmatmul.mubr.bf16.gmra.mxu0 %v2310
      %v2443 = vpop.f32.mrf.mxu0
      %v2444 = vadd.f32 0.0, %v2443
      %v2445 = vpop.f32.mrf.mxu0
      %v2446 = vpop.f32.mrf.mxu0
      %v2447 = vadd.f32 0.0, %v2446
      %v2448 = vpop.f32.mrf.mxu0
      %2449 = vmatprep.mubr.bf16.mxu0 0
      %2450 = vmatmul.mubr.bf16.gmra.mxu0 %v2311
      %v2451 = vpop.f32.mrf.mxu0
      %v2452 = vadd.f32 0.0, %v2451
      %v2453 = vpop.f32.mrf.mxu0
      %v2454 = vpop.f32.mrf.mxu0
      %v2455 = vadd.f32 0.0, %v2454
      %v2456 = vpop.f32.mrf.mxu0
      %2457 = vmatprep.mubr.bf16.mxu0 0
      %2458 = vmatmul.mubr.bf16.gmra.mxu0 %v2312
      %v2459 = vpop.f32.mrf.mxu0
      %v2460 = vadd.f32 0.0, %v2459
      %v2461 = vpop.f32.mrf.mxu0
      %v2462 = vpop.f32.mrf.mxu0
      %v2463 = vadd.f32 0.0, %v2462
      %v2464 = vpop.f32.mrf.mxu0
      %2465 = vdwg.mxu0
      %v2466 = vadd.f32 %v2224, %v2404
      %v2467 = vadd.f32 %v2225, %v2407
      %v2468 = vadd.f32 %v2226, %v2412
      %v2469 = vadd.f32 %v2227, %v2415
      %v2470 = vadd.f32 %v2228, %v2420
      %v2471 = vadd.f32 %v2229, %v2423
      %v2472 = vadd.f32 %v2230, %v2428
      %v2473 = vadd.f32 %v2231, %v2431
      %v2474 = vadd.f32 %v2232, %v2436
      %v2475 = vadd.f32 %v2233, %v2439
      %v2476 = vadd.f32 %v2234, %v2444
      %v2477 = vadd.f32 %v2235, %v2447
      %v2478 = vadd.f32 %v2236, %v2452
      %v2479 = vadd.f32 %v2237, %v2455
      %v2480 = vadd.f32 %v2238, %v2460
      %v2481 = vadd.f32 %v2239, %v2463
      %s2482 = scalar_lea.vmem %s2, 448
      %v2483 = vld [vmem:[%s2482] sm:$0xf]
      %v2484 = vld [vmem:[%s2482 + $0x4] sm:$0xf]
      %v2485 = vld [vmem:[%s2482 + $0x8] sm:$0xf]
      %v2486 = vld [vmem:[%s2482 + $0xc] sm:$0xf]
      %v2487 = vld [vmem:[%s2482 + $0x10] sm:$0xf]
      %v2488 = vld [vmem:[%s2482 + $0x14] sm:$0xf]
      %v2489 = vld [vmem:[%s2482 + $0x18] sm:$0xf]
      %v2490 = vld [vmem:[%s2482 + $0x1c] sm:$0xf]
      %v2491 = vld [vmem:[%s2482 + $0x20] sm:$0xf]
      %v2492 = vld [vmem:[%s2482 + $0x24] sm:$0xf]
      %v2493 = vld [vmem:[%s2482 + $0x28] sm:$0xf]
      %v2494 = vld [vmem:[%s2482 + $0x2c] sm:$0xf]
      %v2495 = vld [vmem:[%s2482 + $0x30] sm:$0xf]
      %v2496 = vld [vmem:[%s2482 + $0x34] sm:$0xf]
      %v2497 = vld [vmem:[%s2482 + $0x38] sm:$0xf]
      %v2498 = vld [vmem:[%s2482 + $0x3c] sm:$0xf]
      %v2499 = vld [vmem:[#allocation2 + $0x10] sm:$0xf]
      %v2500 = vld [vmem:[#allocation2 + $0x14] sm:$0xf]
      %v2501 = vld [vmem:[#allocation2 + $0x18] sm:$0xf]
      %v2502 = vld [vmem:[#allocation2 + $0x1c] sm:$0xf]
      %v2503 = vld [vmem:[#allocation2 + $0x20] sm:$0xf]
      %v2504 = vld [vmem:[#allocation2 + $0x24] sm:$0xf]
      %v2505 = vld [vmem:[#allocation2 + $0x28] sm:$0xf]
      %v2506 = vld [vmem:[#allocation2 + $0x2c] sm:$0xf]
      %v2507 = vld [vmem:[#allocation2 + $0x30] sm:$0xf]
      %v2508 = vld [vmem:[#allocation2 + $0x34] sm:$0xf]
      %v2509 = vld [vmem:[#allocation2 + $0x38] sm:$0xf]
      %v2510 = vld [vmem:[#allocation2 + $0x3c] sm:$0xf]
      %v2511 = vld [vmem:[#allocation2 + $0x40] sm:$0xf]
      %v2512 = vld [vmem:[#allocation2 + $0x44] sm:$0xf]
      %v2513 = vld [vmem:[#allocation2 + $0x48] sm:$0xf]
      %v2514 = vld [vmem:[#allocation2 + $0x4c] sm:$0xf]
      %v2515 = vld [vmem:[#allocation2 + $0x50] sm:$0x1]
      %v2533 = vunpack.c.l.b16 %v2499
      %v2534 = vunpack.c.l.b16 %v2500
      %v2535 = vunpack.c.l.b16 %v2501
      %v2536 = vunpack.c.l.b16 %v2502
      %v2537 = vunpack.c.l.b16 %v2503
      %v2538 = vunpack.c.l.b16 %v2504
      %v2539 = vunpack.c.l.b16 %v2505
      %v2540 = vunpack.c.l.b16 %v2506
      %v2541 = vunpack.c.l.b16 %v2507
      %v2542 = vunpack.c.l.b16 %v2508
      %v2543 = vunpack.c.l.b16 %v2509
      %v2544 = vunpack.c.l.b16 %v2510
      %v2545 = vunpack.c.l.b16 %v2511
      %v2546 = vunpack.c.l.b16 %v2512
      %v2547 = vunpack.c.l.b16 %v2513
      %v2548 = vunpack.c.l.b16 %v2514
      %v2549 = vunpack.c.l.b16 %v2515
      %v2550 = vpack.c.b16 %v2534, %v2533
      %v2551 = vpack.c.b16 %v2536, %v2535
      %v2552 = vpack.c.b16 %v2538, %v2537
      %v2553 = vpack.c.b16 %v2540, %v2539
      %v2554 = vpack.c.b16 %v2542, %v2541
      %v2555 = vpack.c.b16 %v2544, %v2543
      %v2556 = vpack.c.b16 %v2546, %v2545
      %v2557 = vpack.c.b16 %v2548, %v2547
      %v2558 = vpack.c.b16 %v2549, %v2549
      %v2560 = vshrl.u32 %v2550, 16
      %v2562 = vshll.u32 %v2550, 16
      %v2564 = vrot.slane %v2562, 1
      %v2565 = vor.u32 %v2560, %v2564
      %v2567 = vshll.u32 %v2551, 16
      %v2569 = vrot.slane %v2567, 1
      %v2570 = vsel %vm894, %v2565, %v2569
      %v2571 = vshrl.u32 %v2551, 16
      %v2573 = vor.u32 %v2571, %v2569
      %v2575 = vshll.u32 %v2552, 16
      %v2577 = vrot.slane %v2575, 1
      %v2578 = vsel %vm894, %v2573, %v2577
      %v2579 = vshrl.u32 %v2552, 16
      %v2581 = vor.u32 %v2579, %v2577
      %v2583 = vshll.u32 %v2553, 16
      %v2585 = vrot.slane %v2583, 1
      %v2586 = vsel %vm894, %v2581, %v2585
      %v2587 = vshrl.u32 %v2553, 16
      %v2589 = vor.u32 %v2587, %v2585
      %v2591 = vshll.u32 %v2554, 16
      %v2593 = vrot.slane %v2591, 1
      %v2594 = vsel %vm894, %v2589, %v2593
      %v2595 = vshrl.u32 %v2554, 16
      %v2597 = vor.u32 %v2595, %v2593
      %v2599 = vshll.u32 %v2555, 16
      %v2601 = vrot.slane %v2599, 1
      %v2602 = vsel %vm894, %v2597, %v2601
      %v2603 = vshrl.u32 %v2555, 16
      %v2605 = vor.u32 %v2603, %v2601
      %v2607 = vshll.u32 %v2556, 16
      %v2609 = vrot.slane %v2607, 1
      %v2610 = vsel %vm894, %v2605, %v2609
      %v2611 = vshrl.u32 %v2556, 16
      %v2613 = vor.u32 %v2611, %v2609
      %v2615 = vshll.u32 %v2557, 16
      %v2617 = vrot.slane %v2615, 1
      %v2618 = vsel %vm894, %v2613, %v2617
      %v2619 = vshrl.u32 %v2557, 16
      %v2621 = vor.u32 %v2619, %v2617
      %v2623 = vshll.u32 %v2558, 16
      %v2625 = vrot.slane %v2623, 1
      %v2626 = vsel %vm894, %v2621, %v2625
      %v2651 = vunpack.c.l.b16 %v2483
      %v2652 = vunpack.c.l.b16 %v2484
      %v2653 = vunpack.c.l.b16 %v2485
      %v2654 = vunpack.c.l.b16 %v2486
      %v2655 = vunpack.c.l.b16 %v2487
      %v2656 = vunpack.c.l.b16 %v2488
      %v2657 = vunpack.c.l.b16 %v2489
      %v2658 = vunpack.c.l.b16 %v2490
      %v2659 = vunpack.c.l.b16 %v2491
      %v2660 = vunpack.c.l.b16 %v2492
      %v2661 = vunpack.c.l.b16 %v2493
      %v2662 = vunpack.c.l.b16 %v2494
      %v2663 = vunpack.c.l.b16 %v2495
      %v2664 = vunpack.c.l.b16 %v2496
      %v2665 = vunpack.c.l.b16 %v2497
      %v2666 = vunpack.c.l.b16 %v2498
      %v2667 = vpack.c.b16 %v2652, %v2651
      %v2668 = vpack.c.b16 %v2654, %v2653
      %v2669 = vpack.c.b16 %v2656, %v2655
      %v2670 = vpack.c.b16 %v2658, %v2657
      %v2671 = vpack.c.b16 %v2660, %v2659
      %v2672 = vpack.c.b16 %v2662, %v2661
      %v2673 = vpack.c.b16 %v2664, %v2663
      %v2674 = vpack.c.b16 %v2666, %v2665
      %2683 = vmatprep.subr.bf16.mxu0 0
      %2684 = vmatpush1.bf16.msra.mxu0 %v2674
      %2685 = vmatprep.subr.bf16.mxu0 0
      %2686 = vmatpush1.bf16.msra.mxu0 %v2673
      %2687 = vmatprep.subr.bf16.mxu0 0
      %2688 = vmatpush1.bf16.msra.mxu0 %v2672
      %2689 = vmatprep.subr.bf16.mxu0 0
      %2690 = vmatpush1.bf16.msra.mxu0 %v2671
      %2691 = vmatprep.subr.bf16.mxu0 0
      %2692 = vmatpush1.bf16.msra.mxu0 %v2670
      %2693 = vmatprep.subr.bf16.mxu0 0
      %2694 = vmatpush1.bf16.msra.mxu0 %v2669
      %2695 = vmatprep.subr.bf16.mxu0 0
      %2696 = vmatpush1.bf16.msra.mxu0 %v2668
      %2697 = vmatprep.subr.bf16.mxu0 0
      %2698 = vmatpush1.bf16.msra.mxu0 %v2667
      %2699 = vmatprep.subr.bf16.mxu0 0
      %2700 = vmatpush2.bf16.msra.mxu0 0
      %2701 = vmatprep.subr.bf16.mxu0 0
      %2702 = vmatpush2.bf16.msra.mxu0 0
      %2703 = vmatprep.subr.bf16.mxu0 0
      %2704 = vmatpush2.bf16.msra.mxu0 0
      %2705 = vmatprep.subr.bf16.mxu0 0
      %2706 = vmatpush2.bf16.msra.mxu0 0
      %2707 = vmatprep.subr.bf16.mxu0 0
      %2708 = vmatpush2.bf16.msra.mxu0 0
      %2709 = vmatprep.subr.bf16.mxu0 0
      %2710 = vmatpush2.bf16.msra.mxu0 0
      %2711 = vmatprep.subr.bf16.mxu0 0
      %2712 = vmatpush2.bf16.msra.mxu0 0
      %2713 = vmatprep.subr.bf16.mxu0 0
      %2714 = vmatpush2.bf16.msra.mxu0 0
      %2715 = vmatprep.mubr.bf16.mxu0 0
      %2716 = vmatmul.mubr.bf16.gmra.mxu0 %v2570
      %v2717 = vpop.f32.mrf.mxu0
      %v2718 = vadd.f32 0.0, %v2717
      %v2719 = vpop.f32.mrf.mxu0
      %v2720 = vpop.f32.mrf.mxu0
      %v2721 = vadd.f32 0.0, %v2720
      %v2722 = vpop.f32.mrf.mxu0
      %2723 = vmatprep.mubr.bf16.mxu0 0
      %2724 = vmatmul.mubr.bf16.gmra.mxu0 %v2578
      %v2725 = vpop.f32.mrf.mxu0
      %v2726 = vadd.f32 0.0, %v2725
      %v2727 = vpop.f32.mrf.mxu0
      %v2728 = vpop.f32.mrf.mxu0
      %v2729 = vadd.f32 0.0, %v2728
      %v2730 = vpop.f32.mrf.mxu0
      %2731 = vmatprep.mubr.bf16.mxu0 0
      %2732 = vmatmul.mubr.bf16.gmra.mxu0 %v2586
      %v2733 = vpop.f32.mrf.mxu0
      %v2734 = vadd.f32 0.0, %v2733
      %v2735 = vpop.f32.mrf.mxu0
      %v2736 = vpop.f32.mrf.mxu0
      %v2737 = vadd.f32 0.0, %v2736
      %v2738 = vpop.f32.mrf.mxu0
      %2739 = vmatprep.mubr.bf16.mxu0 0
      %2740 = vmatmul.mubr.bf16.gmra.mxu0 %v2594
      %v2741 = vpop.f32.mrf.mxu0
      %v2742 = vadd.f32 0.0, %v2741
      %v2743 = vpop.f32.mrf.mxu0
      %v2744 = vpop.f32.mrf.mxu0
      %v2745 = vadd.f32 0.0, %v2744
      %v2746 = vpop.f32.mrf.mxu0
      %2747 = vmatprep.mubr.bf16.mxu0 0
      %2748 = vmatmul.mubr.bf16.gmra.mxu0 %v2602
      %v2749 = vpop.f32.mrf.mxu0
      %v2750 = vadd.f32 0.0, %v2749
      %v2751 = vpop.f32.mrf.mxu0
      %v2752 = vpop.f32.mrf.mxu0
      %v2753 = vadd.f32 0.0, %v2752
      %v2754 = vpop.f32.mrf.mxu0
      %2755 = vmatprep.mubr.bf16.mxu0 0
      %2756 = vmatmul.mubr.bf16.gmra.mxu0 %v2610
      %v2757 = vpop.f32.mrf.mxu0
      %v2758 = vadd.f32 0.0, %v2757
      %v2759 = vpop.f32.mrf.mxu0
      %v2760 = vpop.f32.mrf.mxu0
      %v2761 = vadd.f32 0.0, %v2760
      %v2762 = vpop.f32.mrf.mxu0
      %2763 = vmatprep.mubr.bf16.mxu0 0
      %2764 = vmatmul.mubr.bf16.gmra.mxu0 %v2618
      %v2765 = vpop.f32.mrf.mxu0
      %v2766 = vadd.f32 0.0, %v2765
      %v2767 = vpop.f32.mrf.mxu0
      %v2768 = vpop.f32.mrf.mxu0
      %v2769 = vadd.f32 0.0, %v2768
      %v2770 = vpop.f32.mrf.mxu0
      %2771 = vmatprep.mubr.bf16.mxu0 0
      %2772 = vmatmul.mubr.bf16.gmra.mxu0 %v2626
      %v2773 = vpop.f32.mrf.mxu0
      %v2774 = vadd.f32 0.0, %v2773
      %v2775 = vpop.f32.mrf.mxu0
      %v2776 = vpop.f32.mrf.mxu0
      %v2777 = vadd.f32 0.0, %v2776
      %v2778 = vpop.f32.mrf.mxu0
      %2779 = vdwg.mxu0
      %v2780 = vadd.f32 %v2466, %v2718
      %v2781 = vadd.f32 %v2467, %v2721
      %v2782 = vadd.f32 %v2468, %v2726
      %v2783 = vadd.f32 %v2469, %v2729
      %v2784 = vadd.f32 %v2470, %v2734
      %v2785 = vadd.f32 %v2471, %v2737
      %v2786 = vadd.f32 %v2472, %v2742
      %v2787 = vadd.f32 %v2473, %v2745
      %v2788 = vadd.f32 %v2474, %v2750
      %v2789 = vadd.f32 %v2475, %v2753
      %v2790 = vadd.f32 %v2476, %v2758
      %v2791 = vadd.f32 %v2477, %v2761
      %v2792 = vadd.f32 %v2478, %v2766
      %v2793 = vadd.f32 %v2479, %v2769
      %v2794 = vadd.f32 %v2480, %v2774
      %v2795 = vadd.f32 %v2481, %v2777
      %s2796 = scalar_lea.vmem %s2, 512
      %v2797 = vld [vmem:[%s2796] sm:$0xf]
      %v2798 = vld [vmem:[%s2796 + $0x4] sm:$0xf]
      %v2799 = vld [vmem:[%s2796 + $0x8] sm:$0xf]
      %v2800 = vld [vmem:[%s2796 + $0xc] sm:$0xf]
      %v2801 = vld [vmem:[%s2796 + $0x10] sm:$0xf]
      %v2802 = vld [vmem:[%s2796 + $0x14] sm:$0xf]
      %v2803 = vld [vmem:[%s2796 + $0x18] sm:$0xf]
      %v2804 = vld [vmem:[%s2796 + $0x1c] sm:$0xf]
      %v2805 = vld [vmem:[%s2796 + $0x20] sm:$0xf]
      %v2806 = vld [vmem:[%s2796 + $0x24] sm:$0xf]
      %v2807 = vld [vmem:[%s2796 + $0x28] sm:$0xf]
      %v2808 = vld [vmem:[%s2796 + $0x2c] sm:$0xf]
      %v2809 = vld [vmem:[%s2796 + $0x30] sm:$0xf]
      %v2810 = vld [vmem:[%s2796 + $0x34] sm:$0xf]
      %v2811 = vld [vmem:[%s2796 + $0x38] sm:$0xf]
      %v2812 = vld [vmem:[%s2796 + $0x3c] sm:$0xf]
      %v2813 = vld [vmem:[#allocation2 + $0x10] sm:$0xe]
      %v2815 = vunpack.c.l.b16 %v2813
      %v2816 = vpack.c.b16 %v2534, %v2815
      %v2817 = vrot.slane %v2816, 1
      %v2818 = vrot.slane %v2551, 1
      %v2819 = vsel %vm1290, %v2817, %v2818
      %v2820 = vrot.slane %v2552, 1
      %v2821 = vsel %vm1290, %v2818, %v2820
      %v2822 = vrot.slane %v2553, 1
      %v2823 = vsel %vm1290, %v2820, %v2822
      %v2824 = vrot.slane %v2554, 1
      %v2825 = vsel %vm1290, %v2822, %v2824
      %v2826 = vrot.slane %v2555, 1
      %v2827 = vsel %vm1290, %v2824, %v2826
      %v2828 = vrot.slane %v2556, 1
      %v2829 = vsel %vm1290, %v2826, %v2828
      %v2830 = vrot.slane %v2557, 1
      %v2831 = vsel %vm1290, %v2828, %v2830
      %v2832 = vrot.slane %v2558, 1
      %v2833 = vsel %vm1290, %v2830, %v2832
      %v2858 = vunpack.c.l.b16 %v2797
      %v2859 = vunpack.c.l.b16 %v2798
      %v2860 = vunpack.c.l.b16 %v2799
      %v2861 = vunpack.c.l.b16 %v2800
      %v2862 = vunpack.c.l.b16 %v2801
      %v2863 = vunpack.c.l.b16 %v2802
      %v2864 = vunpack.c.l.b16 %v2803
      %v2865 = vunpack.c.l.b16 %v2804
      %v2866 = vunpack.c.l.b16 %v2805
      %v2867 = vunpack.c.l.b16 %v2806
      %v2868 = vunpack.c.l.b16 %v2807
      %v2869 = vunpack.c.l.b16 %v2808
      %v2870 = vunpack.c.l.b16 %v2809
      %v2871 = vunpack.c.l.b16 %v2810
      %v2872 = vunpack.c.l.b16 %v2811
      %v2873 = vunpack.c.l.b16 %v2812
      %v2874 = vpack.c.b16 %v2859, %v2858
      %v2875 = vpack.c.b16 %v2861, %v2860
      %v2876 = vpack.c.b16 %v2863, %v2862
      %v2877 = vpack.c.b16 %v2865, %v2864
      %v2878 = vpack.c.b16 %v2867, %v2866
      %v2879 = vpack.c.b16 %v2869, %v2868
      %v2880 = vpack.c.b16 %v2871, %v2870
      %v2881 = vpack.c.b16 %v2873, %v2872
      %2890 = vmatprep.subr.bf16.mxu0 0
      %2891 = vmatpush1.bf16.msra.mxu0 %v2881
      %2892 = vmatprep.subr.bf16.mxu0 0
      %2893 = vmatpush1.bf16.msra.mxu0 %v2880
      %2894 = vmatprep.subr.bf16.mxu0 0
      %2895 = vmatpush1.bf16.msra.mxu0 %v2879
      %2896 = vmatprep.subr.bf16.mxu0 0
      %2897 = vmatpush1.bf16.msra.mxu0 %v2878
      %2898 = vmatprep.subr.bf16.mxu0 0
      %2899 = vmatpush1.bf16.msra.mxu0 %v2877
      %2900 = vmatprep.subr.bf16.mxu0 0
      %2901 = vmatpush1.bf16.msra.mxu0 %v2876
      %2902 = vmatprep.subr.bf16.mxu0 0
      %2903 = vmatpush1.bf16.msra.mxu0 %v2875
      %2904 = vmatprep.subr.bf16.mxu0 0
      %2905 = vmatpush1.bf16.msra.mxu0 %v2874
      %2906 = vmatprep.subr.bf16.mxu0 0
      %2907 = vmatpush2.bf16.msra.mxu0 0
      %2908 = vmatprep.subr.bf16.mxu0 0
      %2909 = vmatpush2.bf16.msra.mxu0 0
      %2910 = vmatprep.subr.bf16.mxu0 0
      %2911 = vmatpush2.bf16.msra.mxu0 0
      %2912 = vmatprep.subr.bf16.mxu0 0
      %2913 = vmatpush2.bf16.msra.mxu0 0
      %2914 = vmatprep.subr.bf16.mxu0 0
      %2915 = vmatpush2.bf16.msra.mxu0 0
      %2916 = vmatprep.subr.bf16.mxu0 0
      %2917 = vmatpush2.bf16.msra.mxu0 0
      %2918 = vmatprep.subr.bf16.mxu0 0
      %2919 = vmatpush2.bf16.msra.mxu0 0
      %2920 = vmatprep.subr.bf16.mxu0 0
      %2921 = vmatpush2.bf16.msra.mxu0 0
      %2922 = vmatprep.mubr.bf16.mxu0 0
      %2923 = vmatmul.mubr.bf16.gmra.mxu0 %v2819
      %v2924 = vpop.f32.mrf.mxu0
      %v2925 = vadd.f32 0.0, %v2924
      %v2926 = vpop.f32.mrf.mxu0
      %v2927 = vpop.f32.mrf.mxu0
      %v2928 = vadd.f32 0.0, %v2927
      %v2929 = vpop.f32.mrf.mxu0
      %2930 = vmatprep.mubr.bf16.mxu0 0
      %2931 = vmatmul.mubr.bf16.gmra.mxu0 %v2821
      %v2932 = vpop.f32.mrf.mxu0
      %v2933 = vadd.f32 0.0, %v2932
      %v2934 = vpop.f32.mrf.mxu0
      %v2935 = vpop.f32.mrf.mxu0
      %v2936 = vadd.f32 0.0, %v2935
      %v2937 = vpop.f32.mrf.mxu0
      %2938 = vmatprep.mubr.bf16.mxu0 0
      %2939 = vmatmul.mubr.bf16.gmra.mxu0 %v2823
      %v2940 = vpop.f32.mrf.mxu0
      %v2941 = vadd.f32 0.0, %v2940
      %v2942 = vpop.f32.mrf.mxu0
      %v2943 = vpop.f32.mrf.mxu0
      %v2944 = vadd.f32 0.0, %v2943
      %v2945 = vpop.f32.mrf.mxu0
      %2946 = vmatprep.mubr.bf16.mxu0 0
      %2947 = vmatmul.mubr.bf16.gmra.mxu0 %v2825
      %v2948 = vpop.f32.mrf.mxu0
      %v2949 = vadd.f32 0.0, %v2948
      %v2950 = vpop.f32.mrf.mxu0
      %v2951 = vpop.f32.mrf.mxu0
      %v2952 = vadd.f32 0.0, %v2951
      %v2953 = vpop.f32.mrf.mxu0
      %2954 = vmatprep.mubr.bf16.mxu0 0
      %2955 = vmatmul.mubr.bf16.gmra.mxu0 %v2827
      %v2956 = vpop.f32.mrf.mxu0
      %v2957 = vadd.f32 0.0, %v2956
      %v2958 = vpop.f32.mrf.mxu0
      %v2959 = vpop.f32.mrf.mxu0
      %v2960 = vadd.f32 0.0, %v2959
      %v2961 = vpop.f32.mrf.mxu0
      %2962 = vmatprep.mubr.bf16.mxu0 0
      %2963 = vmatmul.mubr.bf16.gmra.mxu0 %v2829
      %v2964 = vpop.f32.mrf.mxu0
      %v2965 = vadd.f32 0.0, %v2964
      %v2966 = vpop.f32.mrf.mxu0
      %v2967 = vpop.f32.mrf.mxu0
      %v2968 = vadd.f32 0.0, %v2967
      %v2969 = vpop.f32.mrf.mxu0
      %2970 = vmatprep.mubr.bf16.mxu0 0
      %2971 = vmatmul.mubr.bf16.gmra.mxu0 %v2831
      %v2972 = vpop.f32.mrf.mxu0
      %v2973 = vadd.f32 0.0, %v2972
      %v2974 = vpop.f32.mrf.mxu0
      %v2975 = vpop.f32.mrf.mxu0
      %v2976 = vadd.f32 0.0, %v2975
      %v2977 = vpop.f32.mrf.mxu0
      %2978 = vmatprep.mubr.bf16.mxu0 0
      %2979 = vmatmul.mubr.bf16.gmra.mxu0 %v2833
      %v2980 = vpop.f32.mrf.mxu0
      %v2981 = vadd.f32 0.0, %v2980
      %v2982 = vpop.f32.mrf.mxu0
      %v2983 = vpop.f32.mrf.mxu0
      %v2984 = vadd.f32 0.0, %v2983
      %v2985 = vpop.f32.mrf.mxu0
      %2986 = vdwg.mxu0
      %v2987 = vadd.f32 %v2780, %v2925
      %v2988 = vadd.f32 %v2781, %v2928
      %v2989 = vadd.f32 %v2782, %v2933
      %v2990 = vadd.f32 %v2783, %v2936
      %v2991 = vadd.f32 %v2784, %v2941
      %v2992 = vadd.f32 %v2785, %v2944
      %v2993 = vadd.f32 %v2786, %v2949
      %v2994 = vadd.f32 %v2787, %v2952
      %v2995 = vadd.f32 %v2788, %v2957
      %v2996 = vadd.f32 %v2789, %v2960
      %v2997 = vadd.f32 %v2790, %v2965
      %v2998 = vadd.f32 %v2791, %v2968
      %v2999 = vadd.f32 %v2792, %v2973
      %v3000 = vadd.f32 %v2793, %v2976
      %v3001 = vadd.f32 %v2794, %v2981
      %v3002 = vadd.f32 %v2795, %v2984
      %v3003 = vpack.c.bf16 %v2988, %v2987
      %v3004 = vpack.c.bf16 %v2990, %v2989
      %v3005 = vpack.c.bf16 %v2992, %v2991
      %v3006 = vpack.c.bf16 %v2994, %v2993
      %v3007 = vpack.c.bf16 %v2996, %v2995
      %v3008 = vpack.c.bf16 %v2998, %v2997
      %v3009 = vpack.c.bf16 %v3000, %v2999
      %v3010 = vpack.c.bf16 %v3002, %v3001
      %v3019 = vunpack.c.l.b16 %v3003
      %v3020 = vunpack.c.h.b16 %v3003
      %v3021 = vunpack.c.l.b16 %v3004
      %v3022 = vunpack.c.h.b16 %v3004
      %v3023 = vunpack.c.l.b16 %v3005
      %v3024 = vunpack.c.h.b16 %v3005
      %v3025 = vunpack.c.l.b16 %v3006
      %v3026 = vunpack.c.h.b16 %v3006
      %v3027 = vunpack.c.l.b16 %v3007
      %v3028 = vunpack.c.h.b16 %v3007
      %v3029 = vunpack.c.l.b16 %v3008
      %v3030 = vunpack.c.h.b16 %v3008
      %v3031 = vunpack.c.l.b16 %v3009
      %v3032 = vunpack.c.h.b16 %v3009
      %v3033 = vunpack.c.l.b16 %v3010
      %v3034 = vunpack.c.h.b16 %v3010
      %v3035 = vpack.c.b16 %v3019, %v3019
      %v3036 = vpack.c.b16 %v3020, %v3020
      %v3037 = vpack.c.b16 %v3021, %v3021
      %v3038 = vpack.c.b16 %v3022, %v3022
      %v3039 = vpack.c.b16 %v3023, %v3023
      %v3040 = vpack.c.b16 %v3024, %v3024
      %v3041 = vpack.c.b16 %v3025, %v3025
      %v3042 = vpack.c.b16 %v3026, %v3026
      %v3043 = vpack.c.b16 %v3027, %v3027
      %v3044 = vpack.c.b16 %v3028, %v3028
      %v3045 = vpack.c.b16 %v3029, %v3029
      %v3046 = vpack.c.b16 %v3030, %v3030
      %v3047 = vpack.c.b16 %v3031, %v3031
      %v3048 = vpack.c.b16 %v3032, %v3032
      %v3049 = vpack.c.b16 %v3033, %v3033
      %v3050 = vpack.c.b16 %v3034, %v3034
      %3067 = vst [vmem:[%s440] sm:$0xf] %v3035
      %3068 = vst [vmem:[%s440 + $0x4] sm:$0xf] %v3036
      %3069 = vst [vmem:[%s440 + $0x8] sm:$0xf] %v3037
      %3070 = vst [vmem:[%s440 + $0xc] sm:$0xf] %v3038
      %3071 = vst [vmem:[%s440 + $0x10] sm:$0xf] %v3039
      %3072 = vst [vmem:[%s440 + $0x14] sm:$0xf] %v3040
      %3073 = vst [vmem:[%s440 + $0x18] sm:$0xf] %v3041
      %3074 = vst [vmem:[%s440 + $0x1c] sm:$0xf] %v3042
      %3075 = vst [vmem:[%s440 + $0x20] sm:$0xf] %v3043
      %3076 = vst [vmem:[%s440 + $0x24] sm:$0xf] %v3044
      %3077 = vst [vmem:[%s440 + $0x28] sm:$0xf] %v3045
      %3078 = vst [vmem:[%s440 + $0x2c] sm:$0xf] %v3046
      %3079 = vst [vmem:[%s440 + $0x30] sm:$0xf] %v3047
      %3080 = vst [vmem:[%s440 + $0x34] sm:$0xf] %v3048
      %3081 = vst [vmem:[%s440 + $0x38] sm:$0xf] %v3049
      %3082 = vst [vmem:[%s440 + $0x3c] sm:$0xf] %v3050
      %v3083 = vld [vmem:[%s427] sm:$0xff]
      %v3084 = vld [vmem:[%s427 + $0x8] sm:$0xff]
      %v3085 = vld [vmem:[%s427 + $0x10] sm:$0xff]
      %v3086 = vld [vmem:[%s427 + $0x18] sm:$0xff]
      %v3087 = vld [vmem:[%s427 + $0x20] sm:$0xff]
      %v3088 = vld [vmem:[%s427 + $0x28] sm:$0xff]
      %v3089 = vld [vmem:[%s427 + $0x30] sm:$0xff]
      %v3090 = vld [vmem:[%s427 + $0x38] sm:$0xff]
      %v3091 = vld [vmem:[%s427 + $0x40] sm:$0xff]
      %v3092 = vld [vmem:[%s427 + $0x48] sm:$0xff]
      %v3093 = vld [vmem:[%s427 + $0x50] sm:$0xff]
      %v3094 = vld [vmem:[%s427 + $0x58] sm:$0xff]
      %v3095 = vld [vmem:[%s427 + $0x60] sm:$0xff]
      %v3096 = vld [vmem:[%s427 + $0x68] sm:$0xff]
      %v3097 = vld [vmem:[%s427 + $0x70] sm:$0xff]
      %v3098 = vld [vmem:[%s427 + $0x78] sm:$0xff]
      %3100 = vset.pattern.permute.xlu0 0
      %3101 = vperm.xlu0 %3100, %v3083
      %v3102 = vpop.permute.xlu0 %3101
      %3105 = vset.pattern.permute.xlu0 0
      %3106 = vperm.xlu0 %3105, %v3084
      %v3107 = vpop.permute.xlu0 %3106
      %3110 = vset.pattern.permute.xlu0 0
      %3111 = vperm.xlu0 %3110, %v3085
      %v3112 = vpop.permute.xlu0 %3111
      %3115 = vset.pattern.permute.xlu0 0
      %3116 = vperm.xlu0 %3115, %v3086
      %v3117 = vpop.permute.xlu0 %3116
      %3120 = vset.pattern.permute.xlu0 0
      %3121 = vperm.xlu0 %3120, %v3087
      %v3122 = vpop.permute.xlu0 %3121
      %3125 = vset.pattern.permute.xlu0 0
      %3126 = vperm.xlu0 %3125, %v3088
      %v3127 = vpop.permute.xlu0 %3126
      %3130 = vset.pattern.permute.xlu0 0
      %3131 = vperm.xlu0 %3130, %v3089
      %v3132 = vpop.permute.xlu0 %3131
      %3135 = vset.pattern.permute.xlu0 0
      %3136 = vperm.xlu0 %3135, %v3090
      %v3137 = vpop.permute.xlu0 %3136
      %3140 = vset.pattern.permute.xlu0 0
      %3141 = vperm.xlu0 %3140, %v3091
      %v3142 = vpop.permute.xlu0 %3141
      %3145 = vset.pattern.permute.xlu0 0
      %3146 = vperm.xlu0 %3145, %v3092
      %v3147 = vpop.permute.xlu0 %3146
      %3150 = vset.pattern.permute.xlu0 0
      %3151 = vperm.xlu0 %3150, %v3093
      %v3152 = vpop.permute.xlu0 %3151
      %3155 = vset.pattern.permute.xlu0 0
      %3156 = vperm.xlu0 %3155, %v3094
      %v3157 = vpop.permute.xlu0 %3156
      %3160 = vset.pattern.permute.xlu0 0
      %3161 = vperm.xlu0 %3160, %v3095
      %v3162 = vpop.permute.xlu0 %3161
      %3165 = vset.pattern.permute.xlu0 0
      %3166 = vperm.xlu0 %3165, %v3096
      %v3167 = vpop.permute.xlu0 %3166
      %3170 = vset.pattern.permute.xlu0 0
      %3171 = vperm.xlu0 %3170, %v3097
      %v3172 = vpop.permute.xlu0 %3171
      %3175 = vset.pattern.permute.xlu0 0
      %3176 = vperm.xlu0 %3175, %v3098
      %v3177 = vpop.permute.xlu0 %3176
      %v3179 = vmul.f32 %v2987, %v3102
      %v3180 = vmul.f32 %v2988, %v3107
      %v3181 = vmul.f32 %v2989, %v3112
      %v3182 = vmul.f32 %v2990, %v3117
      %v3183 = vmul.f32 %v2991, %v3122
      %v3184 = vmul.f32 %v2992, %v3127
      %v3185 = vmul.f32 %v2993, %v3132
      %v3186 = vmul.f32 %v2994, %v3137
      %v3187 = vmul.f32 %v2995, %v3142
      %v3188 = vmul.f32 %v2996, %v3147
      %v3189 = vmul.f32 %v2997, %v3152
      %v3190 = vmul.f32 %v2998, %v3157
      %v3191 = vmul.f32 %v2999, %v3162
      %v3192 = vmul.f32 %v3000, %v3167
      %v3193 = vmul.f32 %v3001, %v3172
      %v3194 = vmul.f32 %v3002, %v3177
      %v3195 = vadd.f32 %v3179, %v3180
      %v3196 = vadd.f32 %v3195, %v3181
      %v3197 = vadd.f32 %v3196, %v3182
      %v3198 = vadd.f32 %v3197, %v3183
      %v3199 = vadd.f32 %v3198, %v3184
      %v3200 = vadd.f32 %v3199, %v3185
      %v3201 = vadd.f32 %v3200, %v3186
      %v3202 = vadd.f32 %v3201, %v3187
      %v3203 = vadd.f32 %v3202, %v3188
      %v3204 = vadd.f32 %v3203, %v3189
      %v3205 = vadd.f32 %v3204, %v3190
      %v3206 = vadd.f32 %v3205, %v3191
      %v3207 = vadd.f32 %v3206, %v3192
      %v3208 = vadd.f32 %v3207, %v3193
      %v3209 = vadd.f32 %v3208, %v3194
      %v3210 = vrot.slane %v3209, 4
      %v3211 = vadd.f32 %v3209, %v3210
      %v3212 = vrot.slane %v3211, 2
      %v3213 = vadd.f32 %v3211, %v3212
      %v3214 = vrot.slane %v3213, 1
      %v3215 = vadd.f32 %v3213, %v3214
      %v3216 = vadd.f32 %v3215, 0.0
      %v3217 = vmul.f32 %v3179, %v2987
      %v3218 = vmul.f32 %v3180, %v2988
      %v3219 = vmul.f32 %v3181, %v2989
      %v3220 = vmul.f32 %v3182, %v2990
      %v3221 = vmul.f32 %v3183, %v2991
      %v3222 = vmul.f32 %v3184, %v2992
      %v3223 = vmul.f32 %v3185, %v2993
      %v3224 = vmul.f32 %v3186, %v2994
      %v3225 = vmul.f32 %v3187, %v2995
      %v3226 = vmul.f32 %v3188, %v2996
      %v3227 = vmul.f32 %v3189, %v2997
      %v3228 = vmul.f32 %v3190, %v2998
      %v3229 = vmul.f32 %v3191, %v2999
      %v3230 = vmul.f32 %v3192, %v3000
      %v3231 = vmul.f32 %v3193, %v3001
      %v3232 = vmul.f32 %v3194, %v3002
      %v3233 = vadd.f32 %v3217, %v3218
      %v3234 = vadd.f32 %v3233, %v3219
      %v3235 = vadd.f32 %v3234, %v3220
      %v3236 = vadd.f32 %v3235, %v3221
      %v3237 = vadd.f32 %v3236, %v3222
      %v3238 = vadd.f32 %v3237, %v3223
      %v3239 = vadd.f32 %v3238, %v3224
      %v3240 = vadd.f32 %v3239, %v3225
      %v3241 = vadd.f32 %v3240, %v3226
      %v3242 = vadd.f32 %v3241, %v3227
      %v3243 = vadd.f32 %v3242, %v3228
      %v3244 = vadd.f32 %v3243, %v3229
      %v3245 = vadd.f32 %v3244, %v3230
      %v3246 = vadd.f32 %v3245, %v3231
      %v3247 = vadd.f32 %v3246, %v3232
      %v3248 = vrot.slane %v3247, 4
      %v3249 = vadd.f32 %v3247, %v3248
      %v3250 = vrot.slane %v3249, 2
      %v3251 = vadd.f32 %v3249, %v3250
      %v3252 = vrot.slane %v3251, 1
      %v3253 = vadd.f32 %v3251, %v3252
      %v3254 = vadd.f32 %v3253, 0.0
      %v3255 = vld [vmem:[%s2] sm:$0xf]
      %v3256 = vld [vmem:[%s2 + $0x4] sm:$0xf]
      %v3257 = vld [vmem:[%s2 + $0x8] sm:$0xf]
      %v3258 = vld [vmem:[%s2 + $0xc] sm:$0xf]
      %v3259 = vld [vmem:[%s2 + $0x10] sm:$0xf]
      %v3260 = vld [vmem:[%s2 + $0x14] sm:$0xf]
      %v3261 = vld [vmem:[%s2 + $0x18] sm:$0xf]
      %v3262 = vld [vmem:[%s2 + $0x1c] sm:$0xf]
      %v3263 = vld [vmem:[%s2 + $0x20] sm:$0xf]
      %v3264 = vld [vmem:[%s2 + $0x24] sm:$0xf]
      %v3265 = vld [vmem:[%s2 + $0x28] sm:$0xf]
      %v3266 = vld [vmem:[%s2 + $0x2c] sm:$0xf]
      %v3267 = vld [vmem:[%s2 + $0x30] sm:$0xf]
      %v3268 = vld [vmem:[%s2 + $0x34] sm:$0xf]
      %v3269 = vld [vmem:[%s2 + $0x38] sm:$0xf]
      %v3270 = vld [vmem:[%s2 + $0x3c] sm:$0xf]
      %v3271 = vld [vmem:[#allocation2 + $0x40] sm:$0xf]
      %v3272 = vld [vmem:[#allocation2 + $0x44] sm:$0xf]
      %v3273 = vld [vmem:[#allocation2 + $0x48] sm:$0xf]
      %v3274 = vld [vmem:[#allocation2 + $0x4c] sm:$0xf]
      %v3275 = vld [vmem:[#allocation2 + $0x50] sm:$0xf]
      %v3276 = vld [vmem:[#allocation2 + $0x54] sm:$0xf]
      %v3277 = vld [vmem:[#allocation2 + $0x58] sm:$0xf]
      %v3278 = vld [vmem:[#allocation2 + $0x5c] sm:$0xf]
      %v3279 = vld [vmem:[#allocation2 + $0x60] sm:$0xf]
      %v3280 = vld [vmem:[%s833] sm:$0xf]
      %v3281 = vld [vmem:[%s833 + $0x4] sm:$0xf]
      %v3282 = vld [vmem:[%s833 + $0x8] sm:$0xf]
      %v3283 = vld [vmem:[%s833 + $0xc] sm:$0xf]
      %v3284 = vld [vmem:[%s833 + $0x10] sm:$0xf]
      %v3285 = vld [vmem:[%s833 + $0x14] sm:$0xf]
      %v3286 = vld [vmem:[%s833 + $0x18] sm:$0xf]
      %v3287 = vld [vmem:[%s833 + $0x1c] sm:$0xf]
      %v3288 = vld [vmem:[%s833 + $0x20] sm:$0xf]
      %v3289 = vld [vmem:[%s833 + $0x24] sm:$0xf]
      %v3290 = vld [vmem:[%s833 + $0x28] sm:$0xf]
      %v3291 = vld [vmem:[%s833 + $0x2c] sm:$0xf]
      %v3292 = vld [vmem:[%s833 + $0x30] sm:$0xf]
      %v3293 = vld [vmem:[%s833 + $0x34] sm:$0xf]
      %v3294 = vld [vmem:[%s833 + $0x38] sm:$0xf]
      %v3295 = vld [vmem:[%s833 + $0x3c] sm:$0xf]
      %v3296 = vld [vmem:[#allocation2 + $0x64] sm:$0x1]
      %v3307 = vunpack.c.l.b16 %v3271
      %v3308 = vunpack.c.l.b16 %v3272
      %v3309 = vunpack.c.l.b16 %v3273
      %v3310 = vunpack.c.l.b16 %v3274
      %v3311 = vunpack.c.l.b16 %v3275
      %v3312 = vunpack.c.l.b16 %v3276
      %v3313 = vunpack.c.l.b16 %v3277
      %v3314 = vunpack.c.l.b16 %v3278
      %v3315 = vunpack.c.l.b16 %v3279
      %v3316 = vunpack.c.l.b16 %v3296
      %v3317 = vpack.c.b16 %v3308, %v3307
      %v3318 = vpack.c.b16 %v3310, %v3309
      %v3319 = vpack.c.b16 %v3312, %v3311
      %v3320 = vpack.c.b16 %v3314, %v3313
      %v3321 = vpack.c.b16 %v3316, %v3315
      %v3323 = vshrl.u32 %v3317, 16
      %v3325 = vshll.u32 %v3317, 16
      %v3327 = vrot.slane %v3325, 1
      %v3328 = vor.u32 %v3323, %v3327
      %v3330 = vshll.u32 %v3318, 16
      %v3332 = vrot.slane %v3330, 1
      %v3333 = vsel %vm894, %v3328, %v3332
      %v3334 = vshrl.u32 %v3318, 16
      %v3336 = vor.u32 %v3334, %v3332
      %v3338 = vshll.u32 %v3319, 16
      %v3340 = vrot.slane %v3338, 1
      %v3341 = vsel %vm894, %v3336, %v3340
      %v3342 = vshrl.u32 %v3319, 16
      %v3344 = vor.u32 %v3342, %v3340
      %v3346 = vshll.u32 %v3320, 16
      %v3348 = vrot.slane %v3346, 1
      %v3349 = vsel %vm894, %v3344, %v3348
      %v3350 = vshrl.u32 %v3320, 16
      %v3352 = vor.u32 %v3350, %v3348
      %v3354 = vshll.u32 %v3321, 16
      %v3356 = vrot.slane %v3354, 1
      %v3357 = vsel %vm894, %v3352, %v3356
      %v3358 = vshrl.u32 %v3321, 16
      %v3360 = vor.u32 %v3358, %v3356
      %v3382 = vunpack.c.l.b16 %v3280
      %v3383 = vunpack.c.l.b16 %v3281
      %v3384 = vunpack.c.l.b16 %v3282
      %v3385 = vunpack.c.l.b16 %v3283
      %v3386 = vunpack.c.l.b16 %v3284
      %v3387 = vunpack.c.l.b16 %v3285
      %v3388 = vunpack.c.l.b16 %v3286
      %v3389 = vunpack.c.l.b16 %v3287
      %v3390 = vunpack.c.l.b16 %v3288
      %v3391 = vunpack.c.l.b16 %v3289
      %v3392 = vunpack.c.l.b16 %v3290
      %v3393 = vunpack.c.l.b16 %v3291
      %v3394 = vunpack.c.l.b16 %v3292
      %v3395 = vunpack.c.l.b16 %v3293
      %v3396 = vunpack.c.l.b16 %v3294
      %v3397 = vunpack.c.l.b16 %v3295
      %v3398 = vpack.c.b16 %v3383, %v3382
      %v3399 = vpack.c.b16 %v3385, %v3384
      %v3400 = vpack.c.b16 %v3387, %v3386
      %v3401 = vpack.c.b16 %v3389, %v3388
      %v3402 = vpack.c.b16 %v3391, %v3390
      %v3403 = vpack.c.b16 %v3393, %v3392
      %v3404 = vpack.c.b16 %v3395, %v3394
      %v3405 = vpack.c.b16 %v3397, %v3396
      %3414 = vmatprep.subr.bf16.mxu0 0
      %3415 = vmatpush1.bf16.msra.mxu0 %v3405
      %3416 = vmatprep.subr.bf16.mxu0 0
      %3417 = vmatpush1.bf16.msra.mxu0 %v3404
      %3418 = vmatprep.subr.bf16.mxu0 0
      %3419 = vmatpush1.bf16.msra.mxu0 %v3403
      %3420 = vmatprep.subr.bf16.mxu0 0
      %3421 = vmatpush1.bf16.msra.mxu0 %v3402
      %3422 = vmatprep.subr.bf16.mxu0 0
      %3423 = vmatpush1.bf16.msra.mxu0 %v3401
      %3424 = vmatprep.subr.bf16.mxu0 0
      %3425 = vmatpush1.bf16.msra.mxu0 %v3400
      %3426 = vmatprep.subr.bf16.mxu0 0
      %3427 = vmatpush1.bf16.msra.mxu0 %v3399
      %3428 = vmatprep.subr.bf16.mxu0 0
      %3429 = vmatpush1.bf16.msra.mxu0 %v3398
      %3430 = vmatprep.subr.bf16.mxu0 0
      %3431 = vmatpush2.bf16.msra.mxu0 0
      %3432 = vmatprep.subr.bf16.mxu0 0
      %3433 = vmatpush2.bf16.msra.mxu0 0
      %3434 = vmatprep.subr.bf16.mxu0 0
      %3435 = vmatpush2.bf16.msra.mxu0 0
      %3436 = vmatprep.subr.bf16.mxu0 0
      %3437 = vmatpush2.bf16.msra.mxu0 0
      %3438 = vmatprep.subr.bf16.mxu0 0
      %3439 = vmatpush2.bf16.msra.mxu0 0
      %3440 = vmatprep.subr.bf16.mxu0 0
      %3441 = vmatpush2.bf16.msra.mxu0 0
      %3442 = vmatprep.subr.bf16.mxu0 0
      %3443 = vmatpush2.bf16.msra.mxu0 0
      %3444 = vmatprep.subr.bf16.mxu0 0
      %3445 = vmatpush2.bf16.msra.mxu0 0
      %3446 = vmatprep.mubr.bf16.mxu0 0
      %3447 = vmatmul.mubr.bf16.gmra.mxu0 %v3333
      %v3448 = vpop.f32.mrf.mxu0
      %v3449 = vadd.f32 0.0, %v3448
      %v3450 = vpop.f32.mrf.mxu0
      %v3451 = vpop.f32.mrf.mxu0
      %v3452 = vadd.f32 0.0, %v3451
      %v3453 = vpop.f32.mrf.mxu0
      %3454 = vmatprep.mubr.bf16.mxu0 0
      %3455 = vmatmul.mubr.bf16.gmra.mxu0 %v3341
      %v3456 = vpop.f32.mrf.mxu0
      %v3457 = vadd.f32 0.0, %v3456
      %v3458 = vpop.f32.mrf.mxu0
      %v3459 = vpop.f32.mrf.mxu0
      %v3460 = vadd.f32 0.0, %v3459
      %v3461 = vpop.f32.mrf.mxu0
      %3462 = vmatprep.mubr.bf16.mxu0 0
      %3463 = vmatmul.mubr.bf16.gmra.mxu0 %v3349
      %v3464 = vpop.f32.mrf.mxu0
      %v3465 = vadd.f32 0.0, %v3464
      %v3466 = vpop.f32.mrf.mxu0
      %v3467 = vpop.f32.mrf.mxu0
      %v3468 = vadd.f32 0.0, %v3467
      %v3469 = vpop.f32.mrf.mxu0
      %3470 = vmatprep.mubr.bf16.mxu0 0
      %3471 = vmatmul.mubr.bf16.gmra.mxu0 %v3357
      %v3472 = vpop.f32.mrf.mxu0
      %v3473 = vadd.f32 0.0, %v3472
      %v3474 = vpop.f32.mrf.mxu0
      %v3475 = vpop.f32.mrf.mxu0
      %v3476 = vadd.f32 0.0, %v3475
      %v3477 = vpop.f32.mrf.mxu0
      %3478 = vmatprep.mubr.bf16.mxu0 0
      %3479 = vmatmul.mubr.bf16.gmra.mxu0 %v3360
      %v3480 = vpop.f32.mrf.mxu0
      %v3481 = vadd.f32 0.0, %v3480
      %v3482 = vpop.f32.mrf.mxu0
      %v3483 = vpop.f32.mrf.mxu0
      %v3484 = vpop.f32.mrf.mxu0
      %3485 = vdwg.mxu0
      %v3486 = vpack.c.b16 %v3315, %v3315
      %v3508 = vunpack.c.l.b16 %v3255
      %v3509 = vunpack.c.l.b16 %v3256
      %v3510 = vunpack.c.l.b16 %v3257
      %v3511 = vunpack.c.l.b16 %v3258
      %v3512 = vunpack.c.l.b16 %v3259
      %v3513 = vunpack.c.l.b16 %v3260
      %v3514 = vunpack.c.l.b16 %v3261
      %v3515 = vunpack.c.l.b16 %v3262
      %v3516 = vunpack.c.l.b16 %v3263
      %v3517 = vunpack.c.l.b16 %v3264
      %v3518 = vunpack.c.l.b16 %v3265
      %v3519 = vunpack.c.l.b16 %v3266
      %v3520 = vunpack.c.l.b16 %v3267
      %v3521 = vunpack.c.l.b16 %v3268
      %v3522 = vunpack.c.l.b16 %v3269
      %v3523 = vunpack.c.l.b16 %v3270
      %v3524 = vpack.c.b16 %v3509, %v3508
      %v3525 = vpack.c.b16 %v3511, %v3510
      %v3526 = vpack.c.b16 %v3513, %v3512
      %v3527 = vpack.c.b16 %v3515, %v3514
      %v3528 = vpack.c.b16 %v3517, %v3516
      %v3529 = vpack.c.b16 %v3519, %v3518
      %v3530 = vpack.c.b16 %v3521, %v3520
      %v3531 = vpack.c.b16 %v3523, %v3522
      %3540 = vmatprep.subr.bf16.mxu0 0
      %3541 = vmatpush1.bf16.msra.mxu0 %v3531
      %3542 = vmatprep.subr.bf16.mxu0 0
      %3543 = vmatpush1.bf16.msra.mxu0 %v3530
      %3544 = vmatprep.subr.bf16.mxu0 0
      %3545 = vmatpush1.bf16.msra.mxu0 %v3529
      %3546 = vmatprep.subr.bf16.mxu0 0
      %3547 = vmatpush1.bf16.msra.mxu0 %v3528
      %3548 = vmatprep.subr.bf16.mxu0 0
      %3549 = vmatpush1.bf16.msra.mxu0 %v3527
      %3550 = vmatprep.subr.bf16.mxu0 0
      %3551 = vmatpush1.bf16.msra.mxu0 %v3526
      %3552 = vmatprep.subr.bf16.mxu0 0
      %3553 = vmatpush1.bf16.msra.mxu0 %v3525
      %3554 = vmatprep.subr.bf16.mxu0 0
      %3555 = vmatpush1.bf16.msra.mxu0 %v3524
      %3556 = vmatprep.subr.bf16.mxu0 0
      %3557 = vmatpush2.bf16.msra.mxu0 0
      %3558 = vmatprep.subr.bf16.mxu0 0
      %3559 = vmatpush2.bf16.msra.mxu0 0
      %3560 = vmatprep.subr.bf16.mxu0 0
      %3561 = vmatpush2.bf16.msra.mxu0 0
      %3562 = vmatprep.subr.bf16.mxu0 0
      %3563 = vmatpush2.bf16.msra.mxu0 0
      %3564 = vmatprep.subr.bf16.mxu0 0
      %3565 = vmatpush2.bf16.msra.mxu0 0
      %3566 = vmatprep.subr.bf16.mxu0 0
      %3567 = vmatpush2.bf16.msra.mxu0 0
      %3568 = vmatprep.subr.bf16.mxu0 0
      %3569 = vmatpush2.bf16.msra.mxu0 0
      %3570 = vmatprep.subr.bf16.mxu0 0
      %3571 = vmatpush2.bf16.msra.mxu0 0
      %3572 = vmatprep.mubr.bf16.mxu0 0
      %3573 = vmatmul.mubr.bf16.gmra.mxu0 %v3317
      %v3574 = vpop.f32.mrf.mxu0
      %v3575 = vadd.f32 %v3449, %v3574
      %v3576 = vpop.f32.mrf.mxu0
      %v3577 = vpop.f32.mrf.mxu0
      %v3578 = vadd.f32 %v3452, %v3577
      %v3579 = vpop.f32.mrf.mxu0
      %3580 = vmatprep.mubr.bf16.mxu0 0
      %3581 = vmatmul.mubr.bf16.gmra.mxu0 %v3318
      %v3582 = vpop.f32.mrf.mxu0
      %v3583 = vadd.f32 %v3457, %v3582
      %v3584 = vpop.f32.mrf.mxu0
      %v3585 = vpop.f32.mrf.mxu0
      %v3586 = vadd.f32 %v3460, %v3585
      %v3587 = vpop.f32.mrf.mxu0
      %3588 = vmatprep.mubr.bf16.mxu0 0
      %3589 = vmatmul.mubr.bf16.gmra.mxu0 %v3319
      %v3590 = vpop.f32.mrf.mxu0
      %v3591 = vadd.f32 %v3465, %v3590
      %v3592 = vpop.f32.mrf.mxu0
      %v3593 = vpop.f32.mrf.mxu0
      %v3594 = vadd.f32 %v3468, %v3593
      %v3595 = vpop.f32.mrf.mxu0
      %3596 = vmatprep.mubr.bf16.mxu0 0
      %3597 = vmatmul.mubr.bf16.gmra.mxu0 %v3320
      %v3598 = vpop.f32.mrf.mxu0
      %v3599 = vadd.f32 %v3473, %v3598
      %v3600 = vpop.f32.mrf.mxu0
      %v3601 = vpop.f32.mrf.mxu0
      %v3602 = vadd.f32 %v3476, %v3601
      %v3603 = vpop.f32.mrf.mxu0
      %3604 = vmatprep.mubr.bf16.mxu0 0
      %3605 = vmatmul.mubr.bf16.gmra.mxu0 %v3486
      %v3606 = vpop.f32.mrf.mxu0
      %v3607 = vadd.f32 %v3481, %v3606
      %v3608 = vpop.f32.mrf.mxu0
      %v3609 = vpop.f32.mrf.mxu0
      %v3610 = vpop.f32.mrf.mxu0
      %3611 = vdwg.mxu0
      %v3612 = vld [vmem:[%s1269] sm:$0xf]
      %v3613 = vld [vmem:[%s1269 + $0x4] sm:$0xf]
      %v3614 = vld [vmem:[%s1269 + $0x8] sm:$0xf]
      %v3615 = vld [vmem:[%s1269 + $0xc] sm:$0xf]
      %v3616 = vld [vmem:[%s1269 + $0x10] sm:$0xf]
      %v3617 = vld [vmem:[%s1269 + $0x14] sm:$0xf]
      %v3618 = vld [vmem:[%s1269 + $0x18] sm:$0xf]
      %v3619 = vld [vmem:[%s1269 + $0x1c] sm:$0xf]
      %v3620 = vld [vmem:[%s1269 + $0x20] sm:$0xf]
      %v3621 = vld [vmem:[%s1269 + $0x24] sm:$0xf]
      %v3622 = vld [vmem:[%s1269 + $0x28] sm:$0xf]
      %v3623 = vld [vmem:[%s1269 + $0x2c] sm:$0xf]
      %v3624 = vld [vmem:[%s1269 + $0x30] sm:$0xf]
      %v3625 = vld [vmem:[%s1269 + $0x34] sm:$0xf]
      %v3626 = vld [vmem:[%s1269 + $0x38] sm:$0xf]
      %v3627 = vld [vmem:[%s1269 + $0x3c] sm:$0xf]
      %v3628 = vld [vmem:[#allocation2 + $0x40] sm:$0xe]
      %v3630 = vunpack.c.l.b16 %v3628
      %v3631 = vpack.c.b16 %v3308, %v3630
      %v3632 = vrot.slane %v3631, 1
      %v3633 = vrot.slane %v3318, 1
      %v3634 = vsel %vm1290, %v3632, %v3633
      %v3635 = vrot.slane %v3319, 1
      %v3636 = vsel %vm1290, %v3633, %v3635
      %v3637 = vrot.slane %v3320, 1
      %v3638 = vsel %vm1290, %v3635, %v3637
      %v3639 = vrot.slane %v3321, 1
      %v3640 = vsel %vm1290, %v3637, %v3639
      %v3662 = vunpack.c.l.b16 %v3612
      %v3663 = vunpack.c.l.b16 %v3613
      %v3664 = vunpack.c.l.b16 %v3614
      %v3665 = vunpack.c.l.b16 %v3615
      %v3666 = vunpack.c.l.b16 %v3616
      %v3667 = vunpack.c.l.b16 %v3617
      %v3668 = vunpack.c.l.b16 %v3618
      %v3669 = vunpack.c.l.b16 %v3619
      %v3670 = vunpack.c.l.b16 %v3620
      %v3671 = vunpack.c.l.b16 %v3621
      %v3672 = vunpack.c.l.b16 %v3622
      %v3673 = vunpack.c.l.b16 %v3623
      %v3674 = vunpack.c.l.b16 %v3624
      %v3675 = vunpack.c.l.b16 %v3625
      %v3676 = vunpack.c.l.b16 %v3626
      %v3677 = vunpack.c.l.b16 %v3627
      %v3678 = vpack.c.b16 %v3663, %v3662
      %v3679 = vpack.c.b16 %v3665, %v3664
      %v3680 = vpack.c.b16 %v3667, %v3666
      %v3681 = vpack.c.b16 %v3669, %v3668
      %v3682 = vpack.c.b16 %v3671, %v3670
      %v3683 = vpack.c.b16 %v3673, %v3672
      %v3684 = vpack.c.b16 %v3675, %v3674
      %v3685 = vpack.c.b16 %v3677, %v3676
      %3694 = vmatprep.subr.bf16.mxu0 0
      %3695 = vmatpush1.bf16.msra.mxu0 %v3685
      %3696 = vmatprep.subr.bf16.mxu0 0
      %3697 = vmatpush1.bf16.msra.mxu0 %v3684
      %3698 = vmatprep.subr.bf16.mxu0 0
      %3699 = vmatpush1.bf16.msra.mxu0 %v3683
      %3700 = vmatprep.subr.bf16.mxu0 0
      %3701 = vmatpush1.bf16.msra.mxu0 %v3682
      %3702 = vmatprep.subr.bf16.mxu0 0
      %3703 = vmatpush1.bf16.msra.mxu0 %v3681
      %3704 = vmatprep.subr.bf16.mxu0 0
      %3705 = vmatpush1.bf16.msra.mxu0 %v3680
      %3706 = vmatprep.subr.bf16.mxu0 0
      %3707 = vmatpush1.bf16.msra.mxu0 %v3679
      %3708 = vmatprep.subr.bf16.mxu0 0
      %3709 = vmatpush1.bf16.msra.mxu0 %v3678
      %3710 = vmatprep.subr.bf16.mxu0 0
      %3711 = vmatpush2.bf16.msra.mxu0 0
      %3712 = vmatprep.subr.bf16.mxu0 0
      %3713 = vmatpush2.bf16.msra.mxu0 0
      %3714 = vmatprep.subr.bf16.mxu0 0
      %3715 = vmatpush2.bf16.msra.mxu0 0
      %3716 = vmatprep.subr.bf16.mxu0 0
      %3717 = vmatpush2.bf16.msra.mxu0 0
      %3718 = vmatprep.subr.bf16.mxu0 0
      %3719 = vmatpush2.bf16.msra.mxu0 0
      %3720 = vmatprep.subr.bf16.mxu0 0
      %3721 = vmatpush2.bf16.msra.mxu0 0
      %3722 = vmatprep.subr.bf16.mxu0 0
      %3723 = vmatpush2.bf16.msra.mxu0 0
      %3724 = vmatprep.subr.bf16.mxu0 0
      %3725 = vmatpush2.bf16.msra.mxu0 0
      %3726 = vmatprep.mubr.bf16.mxu0 0
      %3727 = vmatmul.mubr.bf16.gmra.mxu0 %v3634
      %v3728 = vpop.f32.mrf.mxu0
      %v3729 = vadd.f32 0.0, %v3728
      %v3730 = vpop.f32.mrf.mxu0
      %v3731 = vpop.f32.mrf.mxu0
      %v3732 = vadd.f32 0.0, %v3731
      %v3733 = vpop.f32.mrf.mxu0
      %3734 = vmatprep.mubr.bf16.mxu0 0
      %3735 = vmatmul.mubr.bf16.gmra.mxu0 %v3636
      %v3736 = vpop.f32.mrf.mxu0
      %v3737 = vadd.f32 0.0, %v3736
      %v3738 = vpop.f32.mrf.mxu0
      %v3739 = vpop.f32.mrf.mxu0
      %v3740 = vadd.f32 0.0, %v3739
      %v3741 = vpop.f32.mrf.mxu0
      %3742 = vmatprep.mubr.bf16.mxu0 0
      %3743 = vmatmul.mubr.bf16.gmra.mxu0 %v3638
      %v3744 = vpop.f32.mrf.mxu0
      %v3745 = vadd.f32 0.0, %v3744
      %v3746 = vpop.f32.mrf.mxu0
      %v3747 = vpop.f32.mrf.mxu0
      %v3748 = vadd.f32 0.0, %v3747
      %v3749 = vpop.f32.mrf.mxu0
      %3750 = vmatprep.mubr.bf16.mxu0 0
      %3751 = vmatmul.mubr.bf16.gmra.mxu0 %v3640
      %v3752 = vpop.f32.mrf.mxu0
      %v3753 = vadd.f32 0.0, %v3752
      %v3754 = vpop.f32.mrf.mxu0
      %v3755 = vpop.f32.mrf.mxu0
      %v3756 = vadd.f32 0.0, %v3755
      %v3757 = vpop.f32.mrf.mxu0
      %3758 = vmatprep.mubr.bf16.mxu0 0
      %3759 = vmatmul.mubr.bf16.gmra.mxu0 %v3639
      %v3760 = vpop.f32.mrf.mxu0
      %v3761 = vadd.f32 0.0, %v3760
      %v3762 = vpop.f32.mrf.mxu0
      %v3763 = vpop.f32.mrf.mxu0
      %v3764 = vpop.f32.mrf.mxu0
      %3765 = vdwg.mxu0
      %v3766 = vadd.f32 %v3575, %v3729
      %v3767 = vadd.f32 %v3578, %v3732
      %v3768 = vadd.f32 %v3583, %v3737
      %v3769 = vadd.f32 %v3586, %v3740
      %v3770 = vadd.f32 %v3591, %v3745
      %v3771 = vadd.f32 %v3594, %v3748
      %v3772 = vadd.f32 %v3599, %v3753
      %v3773 = vadd.f32 %v3602, %v3756
      %v3774 = vadd.f32 %v3607, %v3761
      %v3775 = vld [vmem:[%s1477] sm:$0xf]
      %v3776 = vld [vmem:[%s1477 + $0x4] sm:$0xf]
      %v3777 = vld [vmem:[%s1477 + $0x8] sm:$0xf]
      %v3778 = vld [vmem:[%s1477 + $0xc] sm:$0xf]
      %v3779 = vld [vmem:[%s1477 + $0x10] sm:$0xf]
      %v3780 = vld [vmem:[%s1477 + $0x14] sm:$0xf]
      %v3781 = vld [vmem:[%s1477 + $0x18] sm:$0xf]
      %v3782 = vld [vmem:[%s1477 + $0x1c] sm:$0xf]
      %v3783 = vld [vmem:[%s1477 + $0x20] sm:$0xf]
      %v3784 = vld [vmem:[%s1477 + $0x24] sm:$0xf]
      %v3785 = vld [vmem:[%s1477 + $0x28] sm:$0xf]
      %v3786 = vld [vmem:[%s1477 + $0x2c] sm:$0xf]
      %v3787 = vld [vmem:[%s1477 + $0x30] sm:$0xf]
      %v3788 = vld [vmem:[%s1477 + $0x34] sm:$0xf]
      %v3789 = vld [vmem:[%s1477 + $0x38] sm:$0xf]
      %v3790 = vld [vmem:[%s1477 + $0x3c] sm:$0xf]
      %v3791 = vld [vmem:[#allocation2 + $0x48] sm:$0xf]
      %v3792 = vld [vmem:[#allocation2 + $0x4c] sm:$0xf]
      %v3793 = vld [vmem:[#allocation2 + $0x50] sm:$0xf]
      %v3794 = vld [vmem:[#allocation2 + $0x54] sm:$0xf]
      %v3795 = vld [vmem:[#allocation2 + $0x58] sm:$0xf]
      %v3796 = vld [vmem:[#allocation2 + $0x5c] sm:$0xf]
      %v3797 = vld [vmem:[#allocation2 + $0x60] sm:$0xf]
      %v3798 = vld [vmem:[#allocation2 + $0x64] sm:$0xf]
      %v3799 = vld [vmem:[#allocation2 + $0x68] sm:$0xf]
      %v3809 = vunpack.c.l.b16 %v3791
      %v3810 = vunpack.c.l.b16 %v3792
      %v3811 = vunpack.c.l.b16 %v3793
      %v3812 = vunpack.c.l.b16 %v3794
      %v3813 = vunpack.c.l.b16 %v3795
      %v3814 = vunpack.c.l.b16 %v3796
      %v3815 = vunpack.c.l.b16 %v3797
      %v3816 = vunpack.c.l.b16 %v3798
      %v3817 = vunpack.c.l.b16 %v3799
      %v3818 = vpack.c.b16 %v3810, %v3809
      %v3819 = vpack.c.b16 %v3812, %v3811
      %v3820 = vpack.c.b16 %v3814, %v3813
      %v3821 = vpack.c.b16 %v3816, %v3815
      %v3822 = vpack.c.b16 %v3817, %v3817
      %v3844 = vunpack.c.l.b16 %v3775
      %v3845 = vunpack.c.l.b16 %v3776
      %v3846 = vunpack.c.l.b16 %v3777
      %v3847 = vunpack.c.l.b16 %v3778
      %v3848 = vunpack.c.l.b16 %v3779
      %v3849 = vunpack.c.l.b16 %v3780
      %v3850 = vunpack.c.l.b16 %v3781
      %v3851 = vunpack.c.l.b16 %v3782
      %v3852 = vunpack.c.l.b16 %v3783
      %v3853 = vunpack.c.l.b16 %v3784
      %v3854 = vunpack.c.l.b16 %v3785
      %v3855 = vunpack.c.l.b16 %v3786
      %v3856 = vunpack.c.l.b16 %v3787
      %v3857 = vunpack.c.l.b16 %v3788
      %v3858 = vunpack.c.l.b16 %v3789
      %v3859 = vunpack.c.l.b16 %v3790
      %v3860 = vpack.c.b16 %v3845, %v3844
      %v3861 = vpack.c.b16 %v3847, %v3846
      %v3862 = vpack.c.b16 %v3849, %v3848
      %v3863 = vpack.c.b16 %v3851, %v3850
      %v3864 = vpack.c.b16 %v3853, %v3852
      %v3865 = vpack.c.b16 %v3855, %v3854
      %v3866 = vpack.c.b16 %v3857, %v3856
      %v3867 = vpack.c.b16 %v3859, %v3858
      %3876 = vmatprep.subr.bf16.mxu0 0
      %3877 = vmatpush1.bf16.msra.mxu0 %v3867
      %3878 = vmatprep.subr.bf16.mxu0 0
      %3879 = vmatpush1.bf16.msra.mxu0 %v3866
      %3880 = vmatprep.subr.bf16.mxu0 0
      %3881 = vmatpush1.bf16.msra.mxu0 %v3865
      %3882 = vmatprep.subr.bf16.mxu0 0
      %3883 = vmatpush1.bf16.msra.mxu0 %v3864
      %3884 = vmatprep.subr.bf16.mxu0 0
      %3885 = vmatpush1.bf16.msra.mxu0 %v3863
      %3886 = vmatprep.subr.bf16.mxu0 0
      %3887 = vmatpush1.bf16.msra.mxu0 %v3862
      %3888 = vmatprep.subr.bf16.mxu0 0
      %3889 = vmatpush1.bf16.msra.mxu0 %v3861
      %3890 = vmatprep.subr.bf16.mxu0 0
      %3891 = vmatpush1.bf16.msra.mxu0 %v3860
      %3892 = vmatprep.subr.bf16.mxu0 0
      %3893 = vmatpush2.bf16.msra.mxu0 0
      %3894 = vmatprep.subr.bf16.mxu0 0
      %3895 = vmatpush2.bf16.msra.mxu0 0
      %3896 = vmatprep.subr.bf16.mxu0 0
      %3897 = vmatpush2.bf16.msra.mxu0 0
      %3898 = vmatprep.subr.bf16.mxu0 0
      %3899 = vmatpush2.bf16.msra.mxu0 0
      %3900 = vmatprep.subr.bf16.mxu0 0
      %3901 = vmatpush2.bf16.msra.mxu0 0
      %3902 = vmatprep.subr.bf16.mxu0 0
      %3903 = vmatpush2.bf16.msra.mxu0 0
      %3904 = vmatprep.subr.bf16.mxu0 0
      %3905 = vmatpush2.bf16.msra.mxu0 0
      %3906 = vmatprep.subr.bf16.mxu0 0
      %3907 = vmatpush2.bf16.msra.mxu0 0
      %3908 = vmatprep.mubr.bf16.mxu0 0
      %3909 = vmatmul.mubr.bf16.gmra.mxu0 %v3818
      %v3910 = vpop.f32.mrf.mxu0
      %v3911 = vadd.f32 0.0, %v3910
      %v3912 = vpop.f32.mrf.mxu0
      %v3913 = vpop.f32.mrf.mxu0
      %v3914 = vadd.f32 0.0, %v3913
      %v3915 = vpop.f32.mrf.mxu0
      %3916 = vmatprep.mubr.bf16.mxu0 0
      %3917 = vmatmul.mubr.bf16.gmra.mxu0 %v3819
      %v3918 = vpop.f32.mrf.mxu0
      %v3919 = vadd.f32 0.0, %v3918
      %v3920 = vpop.f32.mrf.mxu0
      %v3921 = vpop.f32.mrf.mxu0
      %v3922 = vadd.f32 0.0, %v3921
      %v3923 = vpop.f32.mrf.mxu0
      %3924 = vmatprep.mubr.bf16.mxu0 0
      %3925 = vmatmul.mubr.bf16.gmra.mxu0 %v3820
      %v3926 = vpop.f32.mrf.mxu0
      %v3927 = vadd.f32 0.0, %v3926
      %v3928 = vpop.f32.mrf.mxu0
      %v3929 = vpop.f32.mrf.mxu0
      %v3930 = vadd.f32 0.0, %v3929
      %v3931 = vpop.f32.mrf.mxu0
      %3932 = vmatprep.mubr.bf16.mxu0 0
      %3933 = vmatmul.mubr.bf16.gmra.mxu0 %v3821
      %v3934 = vpop.f32.mrf.mxu0
      %v3935 = vadd.f32 0.0, %v3934
      %v3936 = vpop.f32.mrf.mxu0
      %v3937 = vpop.f32.mrf.mxu0
      %v3938 = vadd.f32 0.0, %v3937
      %v3939 = vpop.f32.mrf.mxu0
      %3940 = vmatprep.mubr.bf16.mxu0 0
      %3941 = vmatmul.mubr.bf16.gmra.mxu0 %v3822
      %v3942 = vpop.f32.mrf.mxu0
      %v3943 = vadd.f32 0.0, %v3942
      %v3944 = vpop.f32.mrf.mxu0
      %v3945 = vpop.f32.mrf.mxu0
      %v3946 = vpop.f32.mrf.mxu0
      %3947 = vdwg.mxu0
      %v3948 = vadd.f32 %v3766, %v3911
      %v3949 = vadd.f32 %v3767, %v3914
      %v3950 = vadd.f32 %v3768, %v3919
      %v3951 = vadd.f32 %v3769, %v3922
      %v3952 = vadd.f32 %v3770, %v3927
      %v3953 = vadd.f32 %v3771, %v3930
      %v3954 = vadd.f32 %v3772, %v3935
      %v3955 = vadd.f32 %v3773, %v3938
      %v3956 = vadd.f32 %v3774, %v3943
      %v3957 = vld [vmem:[%s1719] sm:$0xf]
      %v3958 = vld [vmem:[%s1719 + $0x4] sm:$0xf]
      %v3959 = vld [vmem:[%s1719 + $0x8] sm:$0xf]
      %v3960 = vld [vmem:[%s1719 + $0xc] sm:$0xf]
      %v3961 = vld [vmem:[%s1719 + $0x10] sm:$0xf]
      %v3962 = vld [vmem:[%s1719 + $0x14] sm:$0xf]
      %v3963 = vld [vmem:[%s1719 + $0x18] sm:$0xf]
      %v3964 = vld [vmem:[%s1719 + $0x1c] sm:$0xf]
      %v3965 = vld [vmem:[%s1719 + $0x20] sm:$0xf]
      %v3966 = vld [vmem:[%s1719 + $0x24] sm:$0xf]
      %v3967 = vld [vmem:[%s1719 + $0x28] sm:$0xf]
      %v3968 = vld [vmem:[%s1719 + $0x2c] sm:$0xf]
      %v3969 = vld [vmem:[%s1719 + $0x30] sm:$0xf]
      %v3970 = vld [vmem:[%s1719 + $0x34] sm:$0xf]
      %v3971 = vld [vmem:[%s1719 + $0x38] sm:$0xf]
      %v3972 = vld [vmem:[%s1719 + $0x3c] sm:$0xf]
      %v3973 = vld [vmem:[#allocation2 + $0x48] sm:$0xf]
      %v3974 = vld [vmem:[#allocation2 + $0x4c] sm:$0xf]
      %v3975 = vld [vmem:[#allocation2 + $0x50] sm:$0xf]
      %v3976 = vld [vmem:[#allocation2 + $0x54] sm:$0xf]
      %v3977 = vld [vmem:[#allocation2 + $0x58] sm:$0xf]
      %v3978 = vld [vmem:[#allocation2 + $0x5c] sm:$0xf]
      %v3979 = vld [vmem:[#allocation2 + $0x60] sm:$0xf]
      %v3980 = vld [vmem:[#allocation2 + $0x64] sm:$0xf]
      %v3981 = vld [vmem:[#allocation2 + $0x68] sm:$0xf]
      %v3982 = vld [vmem:[#allocation2 + $0x6c] sm:$0x1]
      %v3993 = vunpack.c.l.b16 %v3973
      %v3994 = vunpack.c.l.b16 %v3974
      %v3995 = vunpack.c.l.b16 %v3975
      %v3996 = vunpack.c.l.b16 %v3976
      %v3997 = vunpack.c.l.b16 %v3977
      %v3998 = vunpack.c.l.b16 %v3978
      %v3999 = vunpack.c.l.b16 %v3979
      %v4000 = vunpack.c.l.b16 %v3980
      %v4001 = vunpack.c.l.b16 %v3981
      %v4002 = vunpack.c.l.b16 %v3982
      %v4003 = vpack.c.b16 %v3994, %v3993
      %v4004 = vpack.c.b16 %v3996, %v3995
      %v4005 = vpack.c.b16 %v3998, %v3997
      %v4006 = vpack.c.b16 %v4000, %v3999
      %v4007 = vpack.c.b16 %v4002, %v4001
      %v4009 = vshrl.u32 %v4003, 16
      %v4011 = vshll.u32 %v4003, 16
      %v4013 = vrot.slane %v4011, 1
      %v4014 = vor.u32 %v4009, %v4013
      %v4016 = vshll.u32 %v4004, 16
      %v4018 = vrot.slane %v4016, 1
      %v4019 = vsel %vm894, %v4014, %v4018
      %v4020 = vshrl.u32 %v4004, 16
      %v4022 = vor.u32 %v4020, %v4018
      %v4024 = vshll.u32 %v4005, 16
      %v4026 = vrot.slane %v4024, 1
      %v4027 = vsel %vm894, %v4022, %v4026
      %v4028 = vshrl.u32 %v4005, 16
      %v4030 = vor.u32 %v4028, %v4026
      %v4032 = vshll.u32 %v4006, 16
      %v4034 = vrot.slane %v4032, 1
      %v4035 = vsel %vm894, %v4030, %v4034
      %v4036 = vshrl.u32 %v4006, 16
      %v4038 = vor.u32 %v4036, %v4034
      %v4040 = vshll.u32 %v4007, 16
      %v4042 = vrot.slane %v4040, 1
      %v4043 = vsel %vm894, %v4038, %v4042
      %v4044 = vshrl.u32 %v4007, 16
      %v4046 = vor.u32 %v4044, %v4042
      %v4068 = vunpack.c.l.b16 %v3957
      %v4069 = vunpack.c.l.b16 %v3958
      %v4070 = vunpack.c.l.b16 %v3959
      %v4071 = vunpack.c.l.b16 %v3960
      %v4072 = vunpack.c.l.b16 %v3961
      %v4073 = vunpack.c.l.b16 %v3962
      %v4074 = vunpack.c.l.b16 %v3963
      %v4075 = vunpack.c.l.b16 %v3964
      %v4076 = vunpack.c.l.b16 %v3965
      %v4077 = vunpack.c.l.b16 %v3966
      %v4078 = vunpack.c.l.b16 %v3967
      %v4079 = vunpack.c.l.b16 %v3968
      %v4080 = vunpack.c.l.b16 %v3969
      %v4081 = vunpack.c.l.b16 %v3970
      %v4082 = vunpack.c.l.b16 %v3971
      %v4083 = vunpack.c.l.b16 %v3972
      %v4084 = vpack.c.b16 %v4069, %v4068
      %v4085 = vpack.c.b16 %v4071, %v4070
      %v4086 = vpack.c.b16 %v4073, %v4072
      %v4087 = vpack.c.b16 %v4075, %v4074
      %v4088 = vpack.c.b16 %v4077, %v4076
      %v4089 = vpack.c.b16 %v4079, %v4078
      %v4090 = vpack.c.b16 %v4081, %v4080
      %v4091 = vpack.c.b16 %v4083, %v4082
      %4100 = vmatprep.subr.bf16.mxu0 0
      %4101 = vmatpush1.bf16.msra.mxu0 %v4091
      %4102 = vmatprep.subr.bf16.mxu0 0
      %4103 = vmatpush1.bf16.msra.mxu0 %v4090
      %4104 = vmatprep.subr.bf16.mxu0 0
      %4105 = vmatpush1.bf16.msra.mxu0 %v4089
      %4106 = vmatprep.subr.bf16.mxu0 0
      %4107 = vmatpush1.bf16.msra.mxu0 %v4088
      %4108 = vmatprep.subr.bf16.mxu0 0
      %4109 = vmatpush1.bf16.msra.mxu0 %v4087
      %4110 = vmatprep.subr.bf16.mxu0 0
      %4111 = vmatpush1.bf16.msra.mxu0 %v4086
      %4112 = vmatprep.subr.bf16.mxu0 0
      %4113 = vmatpush1.bf16.msra.mxu0 %v4085
      %4114 = vmatprep.subr.bf16.mxu0 0
      %4115 = vmatpush1.bf16.msra.mxu0 %v4084
      %4116 = vmatprep.subr.bf16.mxu0 0
      %4117 = vmatpush2.bf16.msra.mxu0 0
      %4118 = vmatprep.subr.bf16.mxu0 0
      %4119 = vmatpush2.bf16.msra.mxu0 0
      %4120 = vmatprep.subr.bf16.mxu0 0
      %4121 = vmatpush2.bf16.msra.mxu0 0
      %4122 = vmatprep.subr.bf16.mxu0 0
      %4123 = vmatpush2.bf16.msra.mxu0 0
      %4124 = vmatprep.subr.bf16.mxu0 0
      %4125 = vmatpush2.bf16.msra.mxu0 0
      %4126 = vmatprep.subr.bf16.mxu0 0
      %4127 = vmatpush2.bf16.msra.mxu0 0
      %4128 = vmatprep.subr.bf16.mxu0 0
      %4129 = vmatpush2.bf16.msra.mxu0 0
      %4130 = vmatprep.subr.bf16.mxu0 0
      %4131 = vmatpush2.bf16.msra.mxu0 0
      %4132 = vmatprep.mubr.bf16.mxu0 0
      %4133 = vmatmul.mubr.bf16.gmra.mxu0 %v4019
      %v4134 = vpop.f32.mrf.mxu0
      %v4135 = vadd.f32 0.0, %v4134
      %v4136 = vpop.f32.mrf.mxu0
      %v4137 = vpop.f32.mrf.mxu0
      %v4138 = vadd.f32 0.0, %v4137
      %v4139 = vpop.f32.mrf.mxu0
      %4140 = vmatprep.mubr.bf16.mxu0 0
      %4141 = vmatmul.mubr.bf16.gmra.mxu0 %v4027
      %v4142 = vpop.f32.mrf.mxu0
      %v4143 = vadd.f32 0.0, %v4142
      %v4144 = vpop.f32.mrf.mxu0
      %v4145 = vpop.f32.mrf.mxu0
      %v4146 = vadd.f32 0.0, %v4145
      %v4147 = vpop.f32.mrf.mxu0
      %4148 = vmatprep.mubr.bf16.mxu0 0
      %4149 = vmatmul.mubr.bf16.gmra.mxu0 %v4035
      %v4150 = vpop.f32.mrf.mxu0
      %v4151 = vadd.f32 0.0, %v4150
      %v4152 = vpop.f32.mrf.mxu0
      %v4153 = vpop.f32.mrf.mxu0
      %v4154 = vadd.f32 0.0, %v4153
      %v4155 = vpop.f32.mrf.mxu0
      %4156 = vmatprep.mubr.bf16.mxu0 0
      %4157 = vmatmul.mubr.bf16.gmra.mxu0 %v4043
      %v4158 = vpop.f32.mrf.mxu0
      %v4159 = vadd.f32 0.0, %v4158
      %v4160 = vpop.f32.mrf.mxu0
      %v4161 = vpop.f32.mrf.mxu0
      %v4162 = vadd.f32 0.0, %v4161
      %v4163 = vpop.f32.mrf.mxu0
      %4164 = vmatprep.mubr.bf16.mxu0 0
      %4165 = vmatmul.mubr.bf16.gmra.mxu0 %v4046
      %v4166 = vpop.f32.mrf.mxu0
      %v4167 = vadd.f32 0.0, %v4166
      %v4168 = vpop.f32.mrf.mxu0
      %v4169 = vpop.f32.mrf.mxu0
      %v4170 = vpop.f32.mrf.mxu0
      %4171 = vdwg.mxu0
      %v4172 = vadd.f32 %v3948, %v4135
      %v4173 = vadd.f32 %v3949, %v4138
      %v4174 = vadd.f32 %v3950, %v4143
      %v4175 = vadd.f32 %v3951, %v4146
      %v4176 = vadd.f32 %v3952, %v4151
      %v4177 = vadd.f32 %v3953, %v4154
      %v4178 = vadd.f32 %v3954, %v4159
      %v4179 = vadd.f32 %v3955, %v4162
      %v4180 = vadd.f32 %v3956, %v4167
      %v4181 = vld [vmem:[%s2033] sm:$0xf]
      %v4182 = vld [vmem:[%s2033 + $0x4] sm:$0xf]
      %v4183 = vld [vmem:[%s2033 + $0x8] sm:$0xf]
      %v4184 = vld [vmem:[%s2033 + $0xc] sm:$0xf]
      %v4185 = vld [vmem:[%s2033 + $0x10] sm:$0xf]
      %v4186 = vld [vmem:[%s2033 + $0x14] sm:$0xf]
      %v4187 = vld [vmem:[%s2033 + $0x18] sm:$0xf]
      %v4188 = vld [vmem:[%s2033 + $0x1c] sm:$0xf]
      %v4189 = vld [vmem:[%s2033 + $0x20] sm:$0xf]
      %v4190 = vld [vmem:[%s2033 + $0x24] sm:$0xf]
      %v4191 = vld [vmem:[%s2033 + $0x28] sm:$0xf]
      %v4192 = vld [vmem:[%s2033 + $0x2c] sm:$0xf]
      %v4193 = vld [vmem:[%s2033 + $0x30] sm:$0xf]
      %v4194 = vld [vmem:[%s2033 + $0x34] sm:$0xf]
      %v4195 = vld [vmem:[%s2033 + $0x38] sm:$0xf]
      %v4196 = vld [vmem:[%s2033 + $0x3c] sm:$0xf]
      %v4197 = vld [vmem:[#allocation2 + $0x48] sm:$0xe]
      %v4199 = vunpack.c.l.b16 %v4197
      %v4200 = vpack.c.b16 %v3994, %v4199
      %v4201 = vrot.slane %v4200, 1
      %v4202 = vrot.slane %v4004, 1
      %v4203 = vsel %vm1290, %v4201, %v4202
      %v4204 = vrot.slane %v4005, 1
      %v4205 = vsel %vm1290, %v4202, %v4204
      %v4206 = vrot.slane %v4006, 1
      %v4207 = vsel %vm1290, %v4204, %v4206
      %v4208 = vrot.slane %v4007, 1
      %v4209 = vsel %vm1290, %v4206, %v4208
      %v4231 = vunpack.c.l.b16 %v4181
      %v4232 = vunpack.c.l.b16 %v4182
      %v4233 = vunpack.c.l.b16 %v4183
      %v4234 = vunpack.c.l.b16 %v4184
      %v4235 = vunpack.c.l.b16 %v4185
      %v4236 = vunpack.c.l.b16 %v4186
      %v4237 = vunpack.c.l.b16 %v4187
      %v4238 = vunpack.c.l.b16 %v4188
      %v4239 = vunpack.c.l.b16 %v4189
      %v4240 = vunpack.c.l.b16 %v4190
      %v4241 = vunpack.c.l.b16 %v4191
      %v4242 = vunpack.c.l.b16 %v4192
      %v4243 = vunpack.c.l.b16 %v4193
      %v4244 = vunpack.c.l.b16 %v4194
      %v4245 = vunpack.c.l.b16 %v4195
      %v4246 = vunpack.c.l.b16 %v4196
      %v4247 = vpack.c.b16 %v4232, %v4231
      %v4248 = vpack.c.b16 %v4234, %v4233
      %v4249 = vpack.c.b16 %v4236, %v4235
      %v4250 = vpack.c.b16 %v4238, %v4237
      %v4251 = vpack.c.b16 %v4240, %v4239
      %v4252 = vpack.c.b16 %v4242, %v4241
      %v4253 = vpack.c.b16 %v4244, %v4243
      %v4254 = vpack.c.b16 %v4246, %v4245
      %4263 = vmatprep.subr.bf16.mxu0 0
      %4264 = vmatpush1.bf16.msra.mxu0 %v4254
      %4265 = vmatprep.subr.bf16.mxu0 0
      %4266 = vmatpush1.bf16.msra.mxu0 %v4253
      %4267 = vmatprep.subr.bf16.mxu0 0
      %4268 = vmatpush1.bf16.msra.mxu0 %v4252
      %4269 = vmatprep.subr.bf16.mxu0 0
      %4270 = vmatpush1.bf16.msra.mxu0 %v4251
      %4271 = vmatprep.subr.bf16.mxu0 0
      %4272 = vmatpush1.bf16.msra.mxu0 %v4250
      %4273 = vmatprep.subr.bf16.mxu0 0
      %4274 = vmatpush1.bf16.msra.mxu0 %v4249
      %4275 = vmatprep.subr.bf16.mxu0 0
      %4276 = vmatpush1.bf16.msra.mxu0 %v4248
      %4277 = vmatprep.subr.bf16.mxu0 0
      %4278 = vmatpush1.bf16.msra.mxu0 %v4247
      %4279 = vmatprep.subr.bf16.mxu0 0
      %4280 = vmatpush2.bf16.msra.mxu0 0
      %4281 = vmatprep.subr.bf16.mxu0 0
      %4282 = vmatpush2.bf16.msra.mxu0 0
      %4283 = vmatprep.subr.bf16.mxu0 0
      %4284 = vmatpush2.bf16.msra.mxu0 0
      %4285 = vmatprep.subr.bf16.mxu0 0
      %4286 = vmatpush2.bf16.msra.mxu0 0
      %4287 = vmatprep.subr.bf16.mxu0 0
      %4288 = vmatpush2.bf16.msra.mxu0 0
      %4289 = vmatprep.subr.bf16.mxu0 0
      %4290 = vmatpush2.bf16.msra.mxu0 0
      %4291 = vmatprep.subr.bf16.mxu0 0
      %4292 = vmatpush2.bf16.msra.mxu0 0
      %4293 = vmatprep.subr.bf16.mxu0 0
      %4294 = vmatpush2.bf16.msra.mxu0 0
      %4295 = vmatprep.mubr.bf16.mxu0 0
      %4296 = vmatmul.mubr.bf16.gmra.mxu0 %v4203
      %v4297 = vpop.f32.mrf.mxu0
      %v4298 = vadd.f32 0.0, %v4297
      %v4299 = vpop.f32.mrf.mxu0
      %v4300 = vpop.f32.mrf.mxu0
      %v4301 = vadd.f32 0.0, %v4300
      %v4302 = vpop.f32.mrf.mxu0
      %4303 = vmatprep.mubr.bf16.mxu0 0
      %4304 = vmatmul.mubr.bf16.gmra.mxu0 %v4205
      %v4305 = vpop.f32.mrf.mxu0
      %v4306 = vadd.f32 0.0, %v4305
      %v4307 = vpop.f32.mrf.mxu0
      %v4308 = vpop.f32.mrf.mxu0
      %v4309 = vadd.f32 0.0, %v4308
      %v4310 = vpop.f32.mrf.mxu0
      %4311 = vmatprep.mubr.bf16.mxu0 0
      %4312 = vmatmul.mubr.bf16.gmra.mxu0 %v4207
      %v4313 = vpop.f32.mrf.mxu0
      %v4314 = vadd.f32 0.0, %v4313
      %v4315 = vpop.f32.mrf.mxu0
      %v4316 = vpop.f32.mrf.mxu0
      %v4317 = vadd.f32 0.0, %v4316
      %v4318 = vpop.f32.mrf.mxu0
      %4319 = vmatprep.mubr.bf16.mxu0 0
      %4320 = vmatmul.mubr.bf16.gmra.mxu0 %v4209
      %v4321 = vpop.f32.mrf.mxu0
      %v4322 = vadd.f32 0.0, %v4321
      %v4323 = vpop.f32.mrf.mxu0
      %v4324 = vpop.f32.mrf.mxu0
      %v4325 = vadd.f32 0.0, %v4324
      %v4326 = vpop.f32.mrf.mxu0
      %4327 = vmatprep.mubr.bf16.mxu0 0
      %4328 = vmatmul.mubr.bf16.gmra.mxu0 %v4208
      %v4329 = vpop.f32.mrf.mxu0
      %v4330 = vadd.f32 0.0, %v4329
      %v4331 = vpop.f32.mrf.mxu0
      %v4332 = vpop.f32.mrf.mxu0
      %v4333 = vpop.f32.mrf.mxu0
      %4334 = vdwg.mxu0
      %v4335 = vadd.f32 %v4172, %v4298
      %v4336 = vadd.f32 %v4173, %v4301
      %v4337 = vadd.f32 %v4174, %v4306
      %v4338 = vadd.f32 %v4175, %v4309
      %v4339 = vadd.f32 %v4176, %v4314
      %v4340 = vadd.f32 %v4177, %v4317
      %v4341 = vadd.f32 %v4178, %v4322
      %v4342 = vadd.f32 %v4179, %v4325
      %v4343 = vadd.f32 %v4180, %v4330
      %v4344 = vld [vmem:[%s2240] sm:$0xf]
      %v4345 = vld [vmem:[%s2240 + $0x4] sm:$0xf]
      %v4346 = vld [vmem:[%s2240 + $0x8] sm:$0xf]
      %v4347 = vld [vmem:[%s2240 + $0xc] sm:$0xf]
      %v4348 = vld [vmem:[%s2240 + $0x10] sm:$0xf]
      %v4349 = vld [vmem:[%s2240 + $0x14] sm:$0xf]
      %v4350 = vld [vmem:[%s2240 + $0x18] sm:$0xf]
      %v4351 = vld [vmem:[%s2240 + $0x1c] sm:$0xf]
      %v4352 = vld [vmem:[%s2240 + $0x20] sm:$0xf]
      %v4353 = vld [vmem:[%s2240 + $0x24] sm:$0xf]
      %v4354 = vld [vmem:[%s2240 + $0x28] sm:$0xf]
      %v4355 = vld [vmem:[%s2240 + $0x2c] sm:$0xf]
      %v4356 = vld [vmem:[%s2240 + $0x30] sm:$0xf]
      %v4357 = vld [vmem:[%s2240 + $0x34] sm:$0xf]
      %v4358 = vld [vmem:[%s2240 + $0x38] sm:$0xf]
      %v4359 = vld [vmem:[%s2240 + $0x3c] sm:$0xf]
      %v4360 = vld [vmem:[#allocation2 + $0x50] sm:$0xf]
      %v4361 = vld [vmem:[#allocation2 + $0x54] sm:$0xf]
      %v4362 = vld [vmem:[#allocation2 + $0x58] sm:$0xf]
      %v4363 = vld [vmem:[#allocation2 + $0x5c] sm:$0xf]
      %v4364 = vld [vmem:[#allocation2 + $0x60] sm:$0xf]
      %v4365 = vld [vmem:[#allocation2 + $0x64] sm:$0xf]
      %v4366 = vld [vmem:[#allocation2 + $0x68] sm:$0xf]
      %v4367 = vld [vmem:[#allocation2 + $0x6c] sm:$0xf]
      %v4368 = vld [vmem:[#allocation2 + $0x70] sm:$0xf]
      %v4378 = vunpack.c.l.b16 %v4360
      %v4379 = vunpack.c.l.b16 %v4361
      %v4380 = vunpack.c.l.b16 %v4362
      %v4381 = vunpack.c.l.b16 %v4363
      %v4382 = vunpack.c.l.b16 %v4364
      %v4383 = vunpack.c.l.b16 %v4365
      %v4384 = vunpack.c.l.b16 %v4366
      %v4385 = vunpack.c.l.b16 %v4367
      %v4386 = vunpack.c.l.b16 %v4368
      %v4387 = vpack.c.b16 %v4379, %v4378
      %v4388 = vpack.c.b16 %v4381, %v4380
      %v4389 = vpack.c.b16 %v4383, %v4382
      %v4390 = vpack.c.b16 %v4385, %v4384
      %v4391 = vpack.c.b16 %v4386, %v4386
      %v4413 = vunpack.c.l.b16 %v4344
      %v4414 = vunpack.c.l.b16 %v4345
      %v4415 = vunpack.c.l.b16 %v4346
      %v4416 = vunpack.c.l.b16 %v4347
      %v4417 = vunpack.c.l.b16 %v4348
      %v4418 = vunpack.c.l.b16 %v4349
      %v4419 = vunpack.c.l.b16 %v4350
      %v4420 = vunpack.c.l.b16 %v4351
      %v4421 = vunpack.c.l.b16 %v4352
      %v4422 = vunpack.c.l.b16 %v4353
      %v4423 = vunpack.c.l.b16 %v4354
      %v4424 = vunpack.c.l.b16 %v4355
      %v4425 = vunpack.c.l.b16 %v4356
      %v4426 = vunpack.c.l.b16 %v4357
      %v4427 = vunpack.c.l.b16 %v4358
      %v4428 = vunpack.c.l.b16 %v4359
      %v4429 = vpack.c.b16 %v4414, %v4413
      %v4430 = vpack.c.b16 %v4416, %v4415
      %v4431 = vpack.c.b16 %v4418, %v4417
      %v4432 = vpack.c.b16 %v4420, %v4419
      %v4433 = vpack.c.b16 %v4422, %v4421
      %v4434 = vpack.c.b16 %v4424, %v4423
      %v4435 = vpack.c.b16 %v4426, %v4425
      %v4436 = vpack.c.b16 %v4428, %v4427
      %4445 = vmatprep.subr.bf16.mxu0 0
      %4446 = vmatpush1.bf16.msra.mxu0 %v4436
      %4447 = vmatprep.subr.bf16.mxu0 0
      %4448 = vmatpush1.bf16.msra.mxu0 %v4435
      %4449 = vmatprep.subr.bf16.mxu0 0
      %4450 = vmatpush1.bf16.msra.mxu0 %v4434
      %4451 = vmatprep.subr.bf16.mxu0 0
      %4452 = vmatpush1.bf16.msra.mxu0 %v4433
      %4453 = vmatprep.subr.bf16.mxu0 0
      %4454 = vmatpush1.bf16.msra.mxu0 %v4432
      %4455 = vmatprep.subr.bf16.mxu0 0
      %4456 = vmatpush1.bf16.msra.mxu0 %v4431
      %4457 = vmatprep.subr.bf16.mxu0 0
      %4458 = vmatpush1.bf16.msra.mxu0 %v4430
      %4459 = vmatprep.subr.bf16.mxu0 0
      %4460 = vmatpush1.bf16.msra.mxu0 %v4429
      %4461 = vmatprep.subr.bf16.mxu0 0
      %4462 = vmatpush2.bf16.msra.mxu0 0
      %4463 = vmatprep.subr.bf16.mxu0 0
      %4464 = vmatpush2.bf16.msra.mxu0 0
      %4465 = vmatprep.subr.bf16.mxu0 0
      %4466 = vmatpush2.bf16.msra.mxu0 0
      %4467 = vmatprep.subr.bf16.mxu0 0
      %4468 = vmatpush2.bf16.msra.mxu0 0
      %4469 = vmatprep.subr.bf16.mxu0 0
      %4470 = vmatpush2.bf16.msra.mxu0 0
      %4471 = vmatprep.subr.bf16.mxu0 0
      %4472 = vmatpush2.bf16.msra.mxu0 0
      %4473 = vmatprep.subr.bf16.mxu0 0
      %4474 = vmatpush2.bf16.msra.mxu0 0
      %4475 = vmatprep.subr.bf16.mxu0 0
      %4476 = vmatpush2.bf16.msra.mxu0 0
      %4477 = vmatprep.mubr.bf16.mxu0 0
      %4478 = vmatmul.mubr.bf16.gmra.mxu0 %v4387
      %v4479 = vpop.f32.mrf.mxu0
      %v4480 = vadd.f32 0.0, %v4479
      %v4481 = vpop.f32.mrf.mxu0
      %v4482 = vpop.f32.mrf.mxu0
      %v4483 = vadd.f32 0.0, %v4482
      %v4484 = vpop.f32.mrf.mxu0
      %4485 = vmatprep.mubr.bf16.mxu0 0
      %4486 = vmatmul.mubr.bf16.gmra.mxu0 %v4388
      %v4487 = vpop.f32.mrf.mxu0
      %v4488 = vadd.f32 0.0, %v4487
      %v4489 = vpop.f32.mrf.mxu0
      %v4490 = vpop.f32.mrf.mxu0
      %v4491 = vadd.f32 0.0, %v4490
      %v4492 = vpop.f32.mrf.mxu0
      %4493 = vmatprep.mubr.bf16.mxu0 0
      %4494 = vmatmul.mubr.bf16.gmra.mxu0 %v4389
      %v4495 = vpop.f32.mrf.mxu0
      %v4496 = vadd.f32 0.0, %v4495
      %v4497 = vpop.f32.mrf.mxu0
      %v4498 = vpop.f32.mrf.mxu0
      %v4499 = vadd.f32 0.0, %v4498
      %v4500 = vpop.f32.mrf.mxu0
      %4501 = vmatprep.mubr.bf16.mxu0 0
      %4502 = vmatmul.mubr.bf16.gmra.mxu0 %v4390
      %v4503 = vpop.f32.mrf.mxu0
      %v4504 = vadd.f32 0.0, %v4503
      %v4505 = vpop.f32.mrf.mxu0
      %v4506 = vpop.f32.mrf.mxu0
      %v4507 = vadd.f32 0.0, %v4506
      %v4508 = vpop.f32.mrf.mxu0
      %4509 = vmatprep.mubr.bf16.mxu0 0
      %4510 = vmatmul.mubr.bf16.gmra.mxu0 %v4391
      %v4511 = vpop.f32.mrf.mxu0
      %v4512 = vadd.f32 0.0, %v4511
      %v4513 = vpop.f32.mrf.mxu0
      %v4514 = vpop.f32.mrf.mxu0
      %v4515 = vpop.f32.mrf.mxu0
      %4516 = vdwg.mxu0
      %v4517 = vadd.f32 %v4335, %v4480
      %v4518 = vadd.f32 %v4336, %v4483
      %v4519 = vadd.f32 %v4337, %v4488
      %v4520 = vadd.f32 %v4338, %v4491
      %v4521 = vadd.f32 %v4339, %v4496
      %v4522 = vadd.f32 %v4340, %v4499
      %v4523 = vadd.f32 %v4341, %v4504
      %v4524 = vadd.f32 %v4342, %v4507
      %v4525 = vadd.f32 %v4343, %v4512
      %v4526 = vld [vmem:[%s2482] sm:$0xf]
      %v4527 = vld [vmem:[%s2482 + $0x4] sm:$0xf]
      %v4528 = vld [vmem:[%s2482 + $0x8] sm:$0xf]
      %v4529 = vld [vmem:[%s2482 + $0xc] sm:$0xf]
      %v4530 = vld [vmem:[%s2482 + $0x10] sm:$0xf]
      %v4531 = vld [vmem:[%s2482 + $0x14] sm:$0xf]
      %v4532 = vld [vmem:[%s2482 + $0x18] sm:$0xf]
      %v4533 = vld [vmem:[%s2482 + $0x1c] sm:$0xf]
      %v4534 = vld [vmem:[%s2482 + $0x20] sm:$0xf]
      %v4535 = vld [vmem:[%s2482 + $0x24] sm:$0xf]
      %v4536 = vld [vmem:[%s2482 + $0x28] sm:$0xf]
      %v4537 = vld [vmem:[%s2482 + $0x2c] sm:$0xf]
      %v4538 = vld [vmem:[%s2482 + $0x30] sm:$0xf]
      %v4539 = vld [vmem:[%s2482 + $0x34] sm:$0xf]
      %v4540 = vld [vmem:[%s2482 + $0x38] sm:$0xf]
      %v4541 = vld [vmem:[%s2482 + $0x3c] sm:$0xf]
      %v4542 = vld [vmem:[#allocation2 + $0x50] sm:$0xf]
      %v4543 = vld [vmem:[#allocation2 + $0x54] sm:$0xf]
      %v4544 = vld [vmem:[#allocation2 + $0x58] sm:$0xf]
      %v4545 = vld [vmem:[#allocation2 + $0x5c] sm:$0xf]
      %v4546 = vld [vmem:[#allocation2 + $0x60] sm:$0xf]
      %v4547 = vld [vmem:[#allocation2 + $0x64] sm:$0xf]
      %v4548 = vld [vmem:[#allocation2 + $0x68] sm:$0xf]
      %v4549 = vld [vmem:[#allocation2 + $0x6c] sm:$0xf]
      %v4550 = vld [vmem:[#allocation2 + $0x70] sm:$0xf]
      %v4551 = vld [vmem:[#allocation2 + $0x74] sm:$0x1]
      %v4562 = vunpack.c.l.b16 %v4542
      %v4563 = vunpack.c.l.b16 %v4543
      %v4564 = vunpack.c.l.b16 %v4544
      %v4565 = vunpack.c.l.b16 %v4545
      %v4566 = vunpack.c.l.b16 %v4546
      %v4567 = vunpack.c.l.b16 %v4547
      %v4568 = vunpack.c.l.b16 %v4548
      %v4569 = vunpack.c.l.b16 %v4549
      %v4570 = vunpack.c.l.b16 %v4550
      %v4571 = vunpack.c.l.b16 %v4551
      %v4572 = vpack.c.b16 %v4563, %v4562
      %v4573 = vpack.c.b16 %v4565, %v4564
      %v4574 = vpack.c.b16 %v4567, %v4566
      %v4575 = vpack.c.b16 %v4569, %v4568
      %v4576 = vpack.c.b16 %v4571, %v4570
      %v4578 = vshrl.u32 %v4572, 16
      %v4580 = vshll.u32 %v4572, 16
      %v4582 = vrot.slane %v4580, 1
      %v4583 = vor.u32 %v4578, %v4582
      %v4585 = vshll.u32 %v4573, 16
      %v4587 = vrot.slane %v4585, 1
      %v4588 = vsel %vm894, %v4583, %v4587
      %v4589 = vshrl.u32 %v4573, 16
      %v4591 = vor.u32 %v4589, %v4587
      %v4593 = vshll.u32 %v4574, 16
      %v4595 = vrot.slane %v4593, 1
      %v4596 = vsel %vm894, %v4591, %v4595
      %v4597 = vshrl.u32 %v4574, 16
      %v4599 = vor.u32 %v4597, %v4595
      %v4601 = vshll.u32 %v4575, 16
      %v4603 = vrot.slane %v4601, 1
      %v4604 = vsel %vm894, %v4599, %v4603
      %v4605 = vshrl.u32 %v4575, 16
      %v4607 = vor.u32 %v4605, %v4603
      %v4609 = vshll.u32 %v4576, 16
      %v4611 = vrot.slane %v4609, 1
      %v4612 = vsel %vm894, %v4607, %v4611
      %v4613 = vshrl.u32 %v4576, 16
      %v4615 = vor.u32 %v4613, %v4611
      %v4637 = vunpack.c.l.b16 %v4526
      %v4638 = vunpack.c.l.b16 %v4527
      %v4639 = vunpack.c.l.b16 %v4528
      %v4640 = vunpack.c.l.b16 %v4529
      %v4641 = vunpack.c.l.b16 %v4530
      %v4642 = vunpack.c.l.b16 %v4531
      %v4643 = vunpack.c.l.b16 %v4532
      %v4644 = vunpack.c.l.b16 %v4533
      %v4645 = vunpack.c.l.b16 %v4534
      %v4646 = vunpack.c.l.b16 %v4535
      %v4647 = vunpack.c.l.b16 %v4536
      %v4648 = vunpack.c.l.b16 %v4537
      %v4649 = vunpack.c.l.b16 %v4538
      %v4650 = vunpack.c.l.b16 %v4539
      %v4651 = vunpack.c.l.b16 %v4540
      %v4652 = vunpack.c.l.b16 %v4541
      %v4653 = vpack.c.b16 %v4638, %v4637
      %v4654 = vpack.c.b16 %v4640, %v4639
      %v4655 = vpack.c.b16 %v4642, %v4641
      %v4656 = vpack.c.b16 %v4644, %v4643
      %v4657 = vpack.c.b16 %v4646, %v4645
      %v4658 = vpack.c.b16 %v4648, %v4647
      %v4659 = vpack.c.b16 %v4650, %v4649
      %v4660 = vpack.c.b16 %v4652, %v4651
      %4669 = vmatprep.subr.bf16.mxu0 0
      %4670 = vmatpush1.bf16.msra.mxu0 %v4660
      %4671 = vmatprep.subr.bf16.mxu0 0
      %4672 = vmatpush1.bf16.msra.mxu0 %v4659
      %4673 = vmatprep.subr.bf16.mxu0 0
      %4674 = vmatpush1.bf16.msra.mxu0 %v4658
      %4675 = vmatprep.subr.bf16.mxu0 0
      %4676 = vmatpush1.bf16.msra.mxu0 %v4657
      %4677 = vmatprep.subr.bf16.mxu0 0
      %4678 = vmatpush1.bf16.msra.mxu0 %v4656
      %4679 = vmatprep.subr.bf16.mxu0 0
      %4680 = vmatpush1.bf16.msra.mxu0 %v4655
      %4681 = vmatprep.subr.bf16.mxu0 0
      %4682 = vmatpush1.bf16.msra.mxu0 %v4654
      %4683 = vmatprep.subr.bf16.mxu0 0
      %4684 = vmatpush1.bf16.msra.mxu0 %v4653
      %4685 = vmatprep.subr.bf16.mxu0 0
      %4686 = vmatpush2.bf16.msra.mxu0 0
      %4687 = vmatprep.subr.bf16.mxu0 0
      %4688 = vmatpush2.bf16.msra.mxu0 0
      %4689 = vmatprep.subr.bf16.mxu0 0
      %4690 = vmatpush2.bf16.msra.mxu0 0
      %4691 = vmatprep.subr.bf16.mxu0 0
      %4692 = vmatpush2.bf16.msra.mxu0 0
      %4693 = vmatprep.subr.bf16.mxu0 0
      %4694 = vmatpush2.bf16.msra.mxu0 0
      %4695 = vmatprep.subr.bf16.mxu0 0
      %4696 = vmatpush2.bf16.msra.mxu0 0
      %4697 = vmatprep.subr.bf16.mxu0 0
      %4698 = vmatpush2.bf16.msra.mxu0 0
      %4699 = vmatprep.subr.bf16.mxu0 0
      %4700 = vmatpush2.bf16.msra.mxu0 0
      %4701 = vmatprep.mubr.bf16.mxu0 0
      %4702 = vmatmul.mubr.bf16.gmra.mxu0 %v4588
      %v4703 = vpop.f32.mrf.mxu0
      %v4704 = vadd.f32 0.0, %v4703
      %v4705 = vpop.f32.mrf.mxu0
      %v4706 = vpop.f32.mrf.mxu0
      %v4707 = vadd.f32 0.0, %v4706
      %v4708 = vpop.f32.mrf.mxu0
      %4709 = vmatprep.mubr.bf16.mxu0 0
      %4710 = vmatmul.mubr.bf16.gmra.mxu0 %v4596
      %v4711 = vpop.f32.mrf.mxu0
      %v4712 = vadd.f32 0.0, %v4711
      %v4713 = vpop.f32.mrf.mxu0
      %v4714 = vpop.f32.mrf.mxu0
      %v4715 = vadd.f32 0.0, %v4714
      %v4716 = vpop.f32.mrf.mxu0
      %4717 = vmatprep.mubr.bf16.mxu0 0
      %4718 = vmatmul.mubr.bf16.gmra.mxu0 %v4604
      %v4719 = vpop.f32.mrf.mxu0
      %v4720 = vadd.f32 0.0, %v4719
      %v4721 = vpop.f32.mrf.mxu0
      %v4722 = vpop.f32.mrf.mxu0
      %v4723 = vadd.f32 0.0, %v4722
      %v4724 = vpop.f32.mrf.mxu0
      %4725 = vmatprep.mubr.bf16.mxu0 0
      %4726 = vmatmul.mubr.bf16.gmra.mxu0 %v4612
      %v4727 = vpop.f32.mrf.mxu0
      %v4728 = vadd.f32 0.0, %v4727
      %v4729 = vpop.f32.mrf.mxu0
      %v4730 = vpop.f32.mrf.mxu0
      %v4731 = vadd.f32 0.0, %v4730
      %v4732 = vpop.f32.mrf.mxu0
      %4733 = vmatprep.mubr.bf16.mxu0 0
      %4734 = vmatmul.mubr.bf16.gmra.mxu0 %v4615
      %v4735 = vpop.f32.mrf.mxu0
      %v4736 = vadd.f32 0.0, %v4735
      %v4737 = vpop.f32.mrf.mxu0
      %v4738 = vpop.f32.mrf.mxu0
      %v4739 = vpop.f32.mrf.mxu0
      %4740 = vdwg.mxu0
      %v4741 = vadd.f32 %v4517, %v4704
      %v4742 = vadd.f32 %v4518, %v4707
      %v4743 = vadd.f32 %v4519, %v4712
      %v4744 = vadd.f32 %v4520, %v4715
      %v4745 = vadd.f32 %v4521, %v4720
      %v4746 = vadd.f32 %v4522, %v4723
      %v4747 = vadd.f32 %v4523, %v4728
      %v4748 = vadd.f32 %v4524, %v4731
      %v4749 = vadd.f32 %v4525, %v4736
      %v4750 = vld [vmem:[%s2796] sm:$0xf]
      %v4751 = vld [vmem:[%s2796 + $0x4] sm:$0xf]
      %v4752 = vld [vmem:[%s2796 + $0x8] sm:$0xf]
      %v4753 = vld [vmem:[%s2796 + $0xc] sm:$0xf]
      %v4754 = vld [vmem:[%s2796 + $0x10] sm:$0xf]
      %v4755 = vld [vmem:[%s2796 + $0x14] sm:$0xf]
      %v4756 = vld [vmem:[%s2796 + $0x18] sm:$0xf]
      %v4757 = vld [vmem:[%s2796 + $0x1c] sm:$0xf]
      %v4758 = vld [vmem:[%s2796 + $0x20] sm:$0xf]
      %v4759 = vld [vmem:[%s2796 + $0x24] sm:$0xf]
      %v4760 = vld [vmem:[%s2796 + $0x28] sm:$0xf]
      %v4761 = vld [vmem:[%s2796 + $0x2c] sm:$0xf]
      %v4762 = vld [vmem:[%s2796 + $0x30] sm:$0xf]
      %v4763 = vld [vmem:[%s2796 + $0x34] sm:$0xf]
      %v4764 = vld [vmem:[%s2796 + $0x38] sm:$0xf]
      %v4765 = vld [vmem:[%s2796 + $0x3c] sm:$0xf]
      %v4766 = vld [vmem:[#allocation2 + $0x50] sm:$0xe]
      %v4768 = vunpack.c.l.b16 %v4766
      %v4769 = vpack.c.b16 %v4563, %v4768
      %v4770 = vrot.slane %v4769, 1
      %v4771 = vrot.slane %v4573, 1
      %v4772 = vsel %vm1290, %v4770, %v4771
      %v4773 = vrot.slane %v4574, 1
      %v4774 = vsel %vm1290, %v4771, %v4773
      %v4775 = vrot.slane %v4575, 1
      %v4776 = vsel %vm1290, %v4773, %v4775
      %v4777 = vrot.slane %v4576, 1
      %v4778 = vsel %vm1290, %v4775, %v4777
      %v4800 = vunpack.c.l.b16 %v4750
      %v4801 = vunpack.c.l.b16 %v4751
      %v4802 = vunpack.c.l.b16 %v4752
      %v4803 = vunpack.c.l.b16 %v4753
      %v4804 = vunpack.c.l.b16 %v4754
      %v4805 = vunpack.c.l.b16 %v4755
      %v4806 = vunpack.c.l.b16 %v4756
      %v4807 = vunpack.c.l.b16 %v4757
      %v4808 = vunpack.c.l.b16 %v4758
      %v4809 = vunpack.c.l.b16 %v4759
      %v4810 = vunpack.c.l.b16 %v4760
      %v4811 = vunpack.c.l.b16 %v4761
      %v4812 = vunpack.c.l.b16 %v4762
      %v4813 = vunpack.c.l.b16 %v4763
      %v4814 = vunpack.c.l.b16 %v4764
      %v4815 = vunpack.c.l.b16 %v4765
      %v4816 = vpack.c.b16 %v4801, %v4800
      %v4817 = vpack.c.b16 %v4803, %v4802
      %v4818 = vpack.c.b16 %v4805, %v4804
      %v4819 = vpack.c.b16 %v4807, %v4806
      %v4820 = vpack.c.b16 %v4809, %v4808
      %v4821 = vpack.c.b16 %v4811, %v4810
      %v4822 = vpack.c.b16 %v4813, %v4812
      %v4823 = vpack.c.b16 %v4815, %v4814
      %4832 = vmatprep.subr.bf16.mxu0 0
      %4833 = vmatpush1.bf16.msra.mxu0 %v4823
      %4834 = vmatprep.subr.bf16.mxu0 0
      %4835 = vmatpush1.bf16.msra.mxu0 %v4822
      %4836 = vmatprep.subr.bf16.mxu0 0
      %4837 = vmatpush1.bf16.msra.mxu0 %v4821
      %4838 = vmatprep.subr.bf16.mxu0 0
      %4839 = vmatpush1.bf16.msra.mxu0 %v4820
      %4840 = vmatprep.subr.bf16.mxu0 0
      %4841 = vmatpush1.bf16.msra.mxu0 %v4819
      %4842 = vmatprep.subr.bf16.mxu0 0
      %4843 = vmatpush1.bf16.msra.mxu0 %v4818
      %4844 = vmatprep.subr.bf16.mxu0 0
      %4845 = vmatpush1.bf16.msra.mxu0 %v4817
      %4846 = vmatprep.subr.bf16.mxu0 0
      %4847 = vmatpush1.bf16.msra.mxu0 %v4816
      %4848 = vmatprep.subr.bf16.mxu0 0
      %4849 = vmatpush2.bf16.msra.mxu0 0
      %4850 = vmatprep.subr.bf16.mxu0 0
      %4851 = vmatpush2.bf16.msra.mxu0 0
      %4852 = vmatprep.subr.bf16.mxu0 0
      %4853 = vmatpush2.bf16.msra.mxu0 0
      %4854 = vmatprep.subr.bf16.mxu0 0
      %4855 = vmatpush2.bf16.msra.mxu0 0
      %4856 = vmatprep.subr.bf16.mxu0 0
      %4857 = vmatpush2.bf16.msra.mxu0 0
      %4858 = vmatprep.subr.bf16.mxu0 0
      %4859 = vmatpush2.bf16.msra.mxu0 0
      %4860 = vmatprep.subr.bf16.mxu0 0
      %4861 = vmatpush2.bf16.msra.mxu0 0
      %4862 = vmatprep.subr.bf16.mxu0 0
      %4863 = vmatpush2.bf16.msra.mxu0 0
      %4864 = vmatprep.mubr.bf16.mxu0 0
      %4865 = vmatmul.mubr.bf16.gmra.mxu0 %v4772
      %v4866 = vpop.f32.mrf.mxu0
      %v4867 = vadd.f32 0.0, %v4866
      %v4868 = vpop.f32.mrf.mxu0
      %v4869 = vpop.f32.mrf.mxu0
      %v4870 = vadd.f32 0.0, %v4869
      %v4871 = vpop.f32.mrf.mxu0
      %4872 = vmatprep.mubr.bf16.mxu0 0
      %4873 = vmatmul.mubr.bf16.gmra.mxu0 %v4774
      %v4874 = vpop.f32.mrf.mxu0
      %v4875 = vadd.f32 0.0, %v4874
      %v4876 = vpop.f32.mrf.mxu0
      %v4877 = vpop.f32.mrf.mxu0
      %v4878 = vadd.f32 0.0, %v4877
      %v4879 = vpop.f32.mrf.mxu0
      %4880 = vmatprep.mubr.bf16.mxu0 0
      %4881 = vmatmul.mubr.bf16.gmra.mxu0 %v4776
      %v4882 = vpop.f32.mrf.mxu0
      %v4883 = vadd.f32 0.0, %v4882
      %v4884 = vpop.f32.mrf.mxu0
      %v4885 = vpop.f32.mrf.mxu0
      %v4886 = vadd.f32 0.0, %v4885
      %v4887 = vpop.f32.mrf.mxu0
      %4888 = vmatprep.mubr.bf16.mxu0 0
      %4889 = vmatmul.mubr.bf16.gmra.mxu0 %v4778
      %v4890 = vpop.f32.mrf.mxu0
      %v4891 = vadd.f32 0.0, %v4890
      %v4892 = vpop.f32.mrf.mxu0
      %v4893 = vpop.f32.mrf.mxu0
      %v4894 = vadd.f32 0.0, %v4893
      %v4895 = vpop.f32.mrf.mxu0
      %4896 = vmatprep.mubr.bf16.mxu0 0
      %4897 = vmatmul.mubr.bf16.gmra.mxu0 %v4777
      %v4898 = vpop.f32.mrf.mxu0
      %v4899 = vadd.f32 0.0, %v4898
      %v4900 = vpop.f32.mrf.mxu0
      %v4901 = vpop.f32.mrf.mxu0
      %v4902 = vpop.f32.mrf.mxu0
      %4903 = vdwg.mxu0
      %v4904 = vadd.f32 %v4741, %v4867
      %v4905 = vadd.f32 %v4742, %v4870
      %v4906 = vadd.f32 %v4743, %v4875
      %v4907 = vadd.f32 %v4744, %v4878
      %v4908 = vadd.f32 %v4745, %v4883
      %v4909 = vadd.f32 %v4746, %v4886
      %v4910 = vadd.f32 %v4747, %v4891
      %v4911 = vadd.f32 %v4748, %v4894
      %v4912 = vadd.f32 %v4749, %v4899
      %v4913 = vpack.c.bf16 %v4905, %v4904
      %v4914 = vpack.c.bf16 %v4907, %v4906
      %v4915 = vpack.c.bf16 %v4909, %v4908
      %v4916 = vpack.c.bf16 %v4911, %v4910
      %v4917 = vpack.c.bf16 %v4912, %v4912
      %v4923 = vunpack.c.l.b16 %v4913
      %v4924 = vunpack.c.h.b16 %v4913
      %v4925 = vunpack.c.l.b16 %v4914
      %v4926 = vunpack.c.h.b16 %v4914
      %v4927 = vunpack.c.l.b16 %v4915
      %v4928 = vunpack.c.h.b16 %v4915
      %v4929 = vunpack.c.l.b16 %v4916
      %v4930 = vunpack.c.h.b16 %v4916
      %v4931 = vunpack.c.l.b16 %v4917
      %v4932 = vpack.c.b16 %v4923, %v4923
      %v4933 = vpack.c.b16 %v4924, %v4924
      %v4934 = vpack.c.b16 %v4925, %v4925
      %v4935 = vpack.c.b16 %v4926, %v4926
      %v4936 = vpack.c.b16 %v4927, %v4927
      %v4937 = vpack.c.b16 %v4928, %v4928
      %v4938 = vpack.c.b16 %v4929, %v4929
      %v4939 = vpack.c.b16 %v4930, %v4930
      %v4940 = vpack.c.b16 %v4931, %v4931
      %4950 = vst [vmem:[%s440 + $0x40] sm:$0xf] %v4932
      %4951 = vst [vmem:[%s440 + $0x44] sm:$0xf] %v4933
      %4952 = vst [vmem:[%s440 + $0x48] sm:$0xf] %v4934
      %4953 = vst [vmem:[%s440 + $0x4c] sm:$0xf] %v4935
      %4954 = vst [vmem:[%s440 + $0x50] sm:$0xf] %v4936
      %4955 = vst [vmem:[%s440 + $0x54] sm:$0xf] %v4937
      %4956 = vst [vmem:[%s440 + $0x58] sm:$0xf] %v4938
      %4957 = vst [vmem:[%s440 + $0x5c] sm:$0xf] %v4939
      %4958 = vst [vmem:[%s440 + $0x60] sm:$0xf] %v4940
      %v4959 = vld [vmem:[%s427 + $0x80] sm:$0xff]
      %v4960 = vld [vmem:[%s427 + $0x88] sm:$0xff]
      %v4961 = vld [vmem:[%s427 + $0x90] sm:$0xff]
      %v4962 = vld [vmem:[%s427 + $0x98] sm:$0xff]
      %v4963 = vld [vmem:[%s427 + $0xa0] sm:$0xff]
      %v4964 = vld [vmem:[%s427 + $0xa8] sm:$0xff]
      %v4965 = vld [vmem:[%s427 + $0xb0] sm:$0xff]
      %v4966 = vld [vmem:[%s427 + $0xb8] sm:$0xff]
      %v4967 = vld [vmem:[%s427 + $0xc0] sm:$0xff]
      %4969 = vset.pattern.permute.xlu0 0
      %4970 = vperm.xlu0 %4969, %v4959
      %v4971 = vpop.permute.xlu0 %4970
      %4974 = vset.pattern.permute.xlu0 0
      %4975 = vperm.xlu0 %4974, %v4960
      %v4976 = vpop.permute.xlu0 %4975
      %4979 = vset.pattern.permute.xlu0 0
      %4980 = vperm.xlu0 %4979, %v4961
      %v4981 = vpop.permute.xlu0 %4980
      %4984 = vset.pattern.permute.xlu0 0
      %4985 = vperm.xlu0 %4984, %v4962
      %v4986 = vpop.permute.xlu0 %4985
      %4989 = vset.pattern.permute.xlu0 0
      %4990 = vperm.xlu0 %4989, %v4963
      %v4991 = vpop.permute.xlu0 %4990
      %4994 = vset.pattern.permute.xlu0 0
      %4995 = vperm.xlu0 %4994, %v4964
      %v4996 = vpop.permute.xlu0 %4995
      %4999 = vset.pattern.permute.xlu0 0
      %5000 = vperm.xlu0 %4999, %v4965
      %v5001 = vpop.permute.xlu0 %5000
      %5004 = vset.pattern.permute.xlu0 0
      %5005 = vperm.xlu0 %5004, %v4966
      %v5006 = vpop.permute.xlu0 %5005
      %5009 = vset.pattern.permute.xlu0 0
      %5010 = vperm.xlu0 %5009, %v4967
      %v5011 = vpop.permute.xlu0 %5010
      %v5013 = vmul.f32 %v4904, %v4971
      %v5014 = vmul.f32 %v4905, %v4976
      %v5015 = vmul.f32 %v4906, %v4981
      %v5016 = vmul.f32 %v4907, %v4986
      %v5017 = vmul.f32 %v4908, %v4991
      %v5018 = vmul.f32 %v4909, %v4996
      %v5019 = vmul.f32 %v4910, %v5001
      %v5020 = vmul.f32 %v4911, %v5006
      %v5021 = vmul.f32 %v4912, %v5011
      %v5022 = vadd.f32 %v5013, %v5014
      %v5023 = vadd.f32 %v5022, %v5015
      %v5024 = vadd.f32 %v5023, %v5016
      %v5025 = vadd.f32 %v5024, %v5017
      %v5026 = vadd.f32 %v5025, %v5018
      %v5027 = vadd.f32 %v5026, %v5019
      %v5028 = vadd.f32 %v5027, %v5020
      %v5029 = vadd.f32 %v5028, %v5021
      %v5030 = vrot.slane %v5029, 4
      %v5031 = vadd.f32 %v5029, %v5030
      %v5032 = vrot.slane %v5031, 2
      %v5033 = vadd.f32 %v5031, %v5032
      %v5034 = vrot.slane %v5033, 1
      %v5035 = vadd.f32 %v5033, %v5034
      %v5036 = vadd.f32 %v3216, %v5035
      %v5037 = vmul.f32 %v5013, %v4904
      %v5038 = vmul.f32 %v5014, %v4905
      %v5039 = vmul.f32 %v5015, %v4906
      %v5040 = vmul.f32 %v5016, %v4907
      %v5041 = vmul.f32 %v5017, %v4908
      %v5042 = vmul.f32 %v5018, %v4909
      %v5043 = vmul.f32 %v5019, %v4910
      %v5044 = vmul.f32 %v5020, %v4911
      %v5045 = vmul.f32 %v5021, %v4912
      %v5046 = vadd.f32 %v5037, %v5038
      %v5047 = vadd.f32 %v5046, %v5039
      %v5048 = vadd.f32 %v5047, %v5040
      %v5049 = vadd.f32 %v5048, %v5041
      %v5050 = vadd.f32 %v5049, %v5042
      %v5051 = vadd.f32 %v5050, %v5043
      %v5052 = vadd.f32 %v5051, %v5044
      %v5053 = vadd.f32 %v5052, %v5045
      %v5054 = vrot.slane %v5053, 4
      %v5055 = vadd.f32 %v5053, %v5054
      %v5056 = vrot.slane %v5055, 2
      %v5057 = vadd.f32 %v5055, %v5056
      %v5058 = vrot.slane %v5057, 1
      %v5059 = vadd.f32 %v5057, %v5058
      %v5060 = vadd.f32 %v3254, %v5059
      %vm5061 = vcmask 1040384
      %v5062 = vsel %vm5061, %v5036, %v5060
      %vm5063 = vcmask 1041408
      %v5064 = vsel %vm5063, %v5062, 0.0
      %5065 = vst [vmem:[%s451] sm:$0xff] %v5064
      %s5066 = smul.u32 25, %s25
      %p5067 = scmp.lt.s32.totalorder %s24, 1
      %s5068 = scalar_select %p5067, %s24, 1
      %p5069 = scmp.lt.s32.totalorder %s5066, 24
      %s5070 = scalar_select %p5069, %s5066, 24
      %p5071 = scmp.lt.s32.totalorder %s26, 0
      %s5072 = scalar_select %p5071, %s26, 0
      %s5073 = sadd.s32 %s5072, %s5070
      %s5074 = smul.addr %s5068, 25
      %s5075 = sadd.s32 %s5073, %s5074
      %s5076 = smul.addr %s5075, 4
      %s5077 = scalar_lea.vmem %s6, %s5076
      %p5078 = scmp.lt.s32.totalorder %s24, 1
      %s5079 = scalar_select %p5078, %s24, 1
      %p5080 = scmp.lt.s32.totalorder %s25, 0
      %s5081 = scalar_select %p5080, %s25, 0
      %p5082 = scmp.lt.s32.totalorder %s26, 0
      %s5083 = scalar_select %p5082, %s26, 0
      %s5084 = sadd.s32 %s5083, %s5081
      %s5085 = sadd.s32 %s5084, %s5079
      %s5086 = smul.addr %s5085, 8
      %s5087 = scalar_lea.vmem %s7, %s5086
      // Predicated region
      $region49: #{double_conv_forward.4} parent=43 // pred_check
        %p5088 = pneg %p209
      $region50: #{double_conv_forward.4} parent=43 // pred_check_branch
        %5090 = sbr.rel (%p5088) target = $region52
      $region51: #{double_conv_forward.4} parent=43 // pred_region
        %s5091 = smul.u32 25, %s25
      $region52: #{double_conv_forward.4} parent=43 // pred_fallthru
        _
      // Predicated region
      $region53: #{double_conv_forward.4} parent=43 // pred_check
        %p5092 = pneg %p239
      $region54: #{double_conv_forward.4} parent=43 // pred_check_branch
        %5094 = sbr.rel (%p5092) target = $region56
      $region55: #{double_conv_forward.4} parent=43 // pred_region
        _
      $region56: #{double_conv_forward.4} parent=43 // pred_fallthru
        _
    $region44: #{double_conv_forward.4} parent=5 // pred_fallthru
      _
    %p5095 = scmp.le.s32.totalorder 2, %s14
    // Predicated region
    $region57: #{double_conv_forward.4} parent=5 // pred_check
      %p5096 = pneg %p5095
    $region58: #{double_conv_forward.4} parent=5 // pred_check_branch
      %5098 = sbr.rel (%p5096) target = $region60
    $region59: #{double_conv_forward.4} parent=5 // pred_region
      %s5099 = ssub.s32 %s14, 2
      // Predicated region
      $region61: #{double_conv_forward.4} parent=59 // pred_check
        %p5100 = pneg %p215
      $region62: #{double_conv_forward.4} parent=59 // pred_check_branch
        %5102 = sbr.rel (%p5100) target = $region64
      $region63: #{double_conv_forward.4} parent=59 // pred_region
        %s5103 = smul.u32 25, %s28
        %p5104 = scmp.lt.s32.totalorder %s27, 1
        %s5105 = scalar_select %p5104, %s27, 1
        %p5106 = scmp.lt.s32.totalorder %s5103, 24
        %s5107 = scalar_select %p5106, %s5103, 24
        %p5108 = scmp.lt.s32.totalorder %s29, 0
        %s5109 = scalar_select %p5108, %s29, 0
        %s5110 = sadd.s32 %s5109, %s5107
        %s5111 = smul.addr %s5105, 25
        %s5112 = sadd.s32 %s5110, %s5111
        %s5113 = smul.addr %s5112, 4
        %s5114 = scalar_lea.vmem %s6, %s5113
      $region64: #{double_conv_forward.4} parent=59 // pred_fallthru
        _
      // Predicated region
      $region65: #{double_conv_forward.4} parent=59 // pred_check
        %p5115 = pneg %p245
      $region66: #{double_conv_forward.4} parent=59 // pred_check_branch
        %5117 = sbr.rel (%p5115) target = $region68
      $region67: #{double_conv_forward.4} parent=59 // pred_region
        %p5118 = scmp.lt.s32.totalorder %s27, 1
        %s5119 = scalar_select %p5118, %s27, 1
        %p5120 = scmp.lt.s32.totalorder %s28, 0
        %s5121 = scalar_select %p5120, %s28, 0
        %p5122 = scmp.lt.s32.totalorder %s29, 0
        %s5123 = scalar_select %p5122, %s29, 0
        %s5124 = sadd.s32 %s5123, %s5121
        %s5125 = sadd.s32 %s5124, %s5119
        %s5126 = smul.addr %s5125, 8
        %s5127 = scalar_lea.vmem %s7, %s5126
      $region68: #{double_conv_forward.4} parent=59 // pred_fallthru
        _
    $region60: #{double_conv_forward.4} parent=5 // pred_fallthru
      _
  $region6: #{double_conv_forward.4} parent=0 // loop_footer
    %s18 = sadd.s32 1, %s14
  $region7: #{double_conv_forward.4} parent=0 // loop_footer_branch
    %13 = sbr.rel target = $region3
  $region8: #{double_conv_forward.4} parent=0 // loop_exit
    _

</llo_original>
